<compile_context>
chip_gen: v7x
topology: tpu7x:2x2x1
jax: 0.10.0
libtpu: 0.0.40
codegen_flags: <defaults>
</compile_context>

<pallas_src>
import functools

import jax
import jax.numpy as jnp
from jax.experimental import pallas as pl
from jax.experimental.pallas import tpu as pltpu

# f32-accurate matmuls everywhere (kernel + reference) so the identity-matmul
# transposes and the fused s/t projection match the pure-JAX reference tightly.
jax.config.update("jax_default_matmul_precision", "highest")


def _flow_chain_kernel(mask_ref, w1_ref, b1_ref, wst_ref, bst_ref,
                       z_ref, out_ref, *, num_flows, dim):
    """Apply all `num_flows` masked-affine flows to one (TB, D) batch block."""
    # Tiny DxD identity, used to transpose activations on the (otherwise idle)
    # MXU. Exact for a 0/1 matrix; avoids relying on XLU transpose lowering for
    # a 16-wide minor dimension.
    eye = (jax.lax.broadcasted_iota(jnp.int32, (dim, dim), 0)
           == jax.lax.broadcasted_iota(jnp.int32, (dim, dim), 1)).astype(jnp.float32)

    # (TB, D) natural-layout block -> (D, TB): batch on the 128-lane axis for
    # every matmul / VPU / EUP op below (lane-dense, no masked partial stores).
    z = jax.lax.dot_general(
        eye, z_ref[...], (((1,), (1,)), ((), ())),          # A @ B^T pattern
        precision=jax.lax.Precision.HIGHEST,
        preferred_element_type=jnp.float32)                  # (D, TB) == block^T

    for k in range(num_flows):        # K is small: fully unrolled, weights VMEM-resident
        m = mask_ref[k]               # (D, 1) binary mask
        om = 1.0 - m
        # Mask is pre-folded into W1 (see prepare_multiscale_flow_params),
        # so no explicit z*m feeding the first matmul.
        h = jnp.tanh(jnp.dot(w1_ref[k], z, preferred_element_type=jnp.float32)
                     + b1_ref[k])                            # (H, TB)
        st = jnp.dot(wst_ref[k], h, preferred_element_type=jnp.float32) \
            + bst_ref[k]                                     # (2D, TB)
        s = st[:dim, :]                                      # (D, TB)
        t = st[dim:, :]                                      # (D, TB)
        # z' = m*z + (1-m)*(z*exp(s) + t) == z*(m + (1-m)*exp(s)) + (1-m)*t
        z = z * (m + om * jnp.exp(s)) + om * t

    # (D, TB) -> (TB, D) for the store, again via the identity on the MXU.
    out_ref[...] = jax.lax.dot_general(
        z, eye, (((0,), (0,)), ((), ())),                    # A^T @ B pattern
        precision=jax.lax.Precision.HIGHEST,
        preferred_element_type=jnp.float32)


def prepare_multiscale_flow_params(masks, w1, b1, ws, bs, wt, bt):
    """One-time parameter re-layout (hoisted out of the per-call hot path).

    masks: (K, 1, D); w1: (K, D, H); b1: (K, 1, H)
    ws/wt: (K, H, D); bs/bt: (K, 1, D)
    Returns kernel-layout params: mask (K,D,1), w1 (K,H,D) with the mask folded
    in, b1 (K,H,1), fused wst (K,2D,H), fused bst (K,2D,1).
    """
    K, D, H = w1.shape
    assert D % 8 == 0, "D must be a multiple of 8 so the s/t split is sublane-aligned"
    mask_col = jnp.transpose(masks, (0, 2, 1)).astype(jnp.float32)      # (K, D, 1)
    w1_masked = w1 * mask_col                                           # fold mask into W1
    return {
        "mask": mask_col,
        "w1": jnp.transpose(w1_masked, (0, 2, 1)).astype(jnp.float32),  # (K, H, D)
        "b1": jnp.transpose(b1, (0, 2, 1)).astype(jnp.float32),         # (K, H, 1)
        "wst": jnp.concatenate([jnp.transpose(ws, (0, 2, 1)),
                                jnp.transpose(wt, (0, 2, 1))],
                               axis=1).astype(jnp.float32),             # (K, 2D, H)
        "bst": jnp.concatenate([jnp.transpose(bs, (0, 2, 1)),
                                jnp.transpose(bt, (0, 2, 1))],
                               axis=1).astype(jnp.float32),             # (K, 2D, 1)
    }
    # TODO(synk): optional bf16 weight/activation casts for the two matmuls
    # (worthwhile on v6e/v7x, not v5e) are not enabled here.


def _round_up(x, m):
    return ((x + m - 1) // m) * m


def _auto_batch_tile(batch):
    """>=2 lane-aligned tiles when the batch allows it (v7x dual-TC sharding),
    each as large as possible (<=1024) to amortize per-grid-step overhead."""
    if _round_up(batch, 128) <= 128:
        return 128
    half = _round_up(pl.cdiv(batch, 2), 128)
    return max(128, min(1024, half))


@functools.partial(jax.jit, static_argnames=("batch_tile",))
def multiscale_flow_forward(z, params, batch_tile=None):
    """Forward pass of the K-flow coupling chain.

    z: (B, D) float32; params: output of prepare_multiscale_flow_params.
    batch_tile: columns per grid step (multiple of 128). Default auto-selects
    >=2 tiles (good for v7x); on single-TC v5e/v6e pass round_up(B,128) to run
    the whole batch in one grid step.
    """
    mask, w1, b1, wst, bst = (params["mask"], params["w1"], params["b1"],
                              params["wst"], params["bst"])
    K, H, D = w1.shape
    B = z.shape[0]

    TB = batch_tile if batch_tile is not None else _auto_batch_tile(B)
    B_pad = _round_up(B, TB)
    zp = jnp.pad(z, ((0, B_pad - B), (0, 0))) if B_pad != B else z
    grid = (B_pad // TB,)

    kernel = functools.partial(_flow_chain_kernel, num_flows=K, dim=D)

    out = pl.pallas_call(
        kernel,
        out_shape=jax.ShapeDtypeStruct((B_pad, D), jnp.float32),
        grid_spec=pltpu.PrefetchScalarGridSpec(
            num_scalar_prefetch=0,
            grid=grid,
            in_specs=[
                # Constant index maps => weights DMA'd once, VMEM-resident for
                # the whole grid (do NOT reintroduce a K grid axis).
                pl.BlockSpec((K, D, 1), lambda b: (0, 0, 0)),       # mask      (K,D,1)
                pl.BlockSpec((K, H, D), lambda b: (0, 0, 0)),       # W1^T*m    (K,H,D)
                pl.BlockSpec((K, H, 1), lambda b: (0, 0, 0)),       # b1^T      (K,H,1)
                pl.BlockSpec((K, 2 * D, H), lambda b: (0, 0, 0)),   # [Ws;Wt]^T (K,2D,H)
                pl.BlockSpec((K, 2 * D, 1), lambda b: (0, 0, 0)),   # [bs;bt]^T (K,2D,1)
                pl.BlockSpec((TB, D), lambda b: (b, 0)),            # z block   (TB,D)
            ],
            out_specs=pl.BlockSpec((TB, D), lambda b: (b, 0)),
        ),
        compiler_params=pltpu.CompilerParams(
            dimension_semantics=("parallel",)),
    )(mask, w1, b1, wst, bst, zp)

    return out[:B] if B_pad != B else out


def ref_forward(z, masks, w1, b1, ws, bs, wt, bt):
    """Pure-JAX reference of the same flow chain (original (B, D) layout)."""
    K = w1.shape[0]
    for k in range(K):
        m = masks[k, 0]
        zm = z * m
        h = jnp.tanh(zm @ w1[k] + b1[k, 0])
        s = h @ ws[k] + bs[k, 0]
        t = h @ wt[k] + bt[k, 0]
        z = zm + (1.0 - m) * (z * jnp.exp(s) + t)
    return z


if __name__ == "__main__":
    # Small deterministic problem: batch=512 (auto tile -> TB=256, grid=(2,)),
    # latent dim D=16, hidden H=32, K=4 flows.
    B, D, H, K = 512, 16, 32, 4
    key = jax.random.PRNGKey(0)
    kz, k1, k2, k3, k4, k5, k6 = jax.random.split(key, 7)

    z = jax.random.normal(kz, (B, D), dtype=jnp.float32)

    # Alternating binary masks per flow, shaped (K, 1, D).
    masks = jnp.stack(
        [((jnp.arange(D) + k) % 2).astype(jnp.float32)[None, :] for k in range(K)]
    )

    scale = 0.1
    w1 = scale * jax.random.normal(k1, (K, D, H), dtype=jnp.float32)
    b1 = scale * jax.random.normal(k2, (K, 1, H), dtype=jnp.float32)
    ws = scale * jax.random.normal(k3, (K, H, D), dtype=jnp.float32)
    bs = scale * jax.random.normal(k4, (K, 1, D), dtype=jnp.float32)
    wt = scale * jax.random.normal(k5, (K, H, D), dtype=jnp.float32)
    bt = scale * jax.random.normal(k6, (K, 1, D), dtype=jnp.float32)

    # One-time parameter preprocessing (outside the per-call hot path).
    params = prepare_multiscale_flow_params(masks, w1, b1, ws, bs, wt, bt)

    ref = ref_forward(z, masks, w1, b1, ws, bs, wt, bt)

    # Auto tiling: TB=256, 2 parallel tiles (v7x-friendly, TB well above 128).
    out = jax.block_until_ready(multiscale_flow_forward(z, params))
    assert out.shape == (B, D)
    assert jnp.allclose(out, ref, rtol=1e-4, atol=1e-4), "mismatch vs reference"

    # Single-tile variant (the recommended config on single-TC v5e/v6e).
    out_single = jax.block_until_ready(
        multiscale_flow_forward(z, params, batch_tile=512))
    assert jnp.allclose(out_single, ref, rtol=1e-4, atol=1e-4), "mismatch (single tile)"

    # TODO(synk): MultiscaleFlow's merge/split ops, base-distribution log_prob,
    # inverse / log-det accumulation and class-conditional paths are not part
    # of this forward flow-chain kernel and are not implemented here.
    print("KERNEL_OK")
</pallas_src>

<mosaic_0001>
module attributes {stable_mosaic.version = 11 : i64} {
  func.func @_flow_chain_kernel(%arg0: i32, %arg1: memref<4x16x1xf32, #tpu.memory_space<vmem>>, %arg2: memref<4x32x16xf32, #tpu.memory_space<vmem>>, %arg3: memref<4x32x1xf32, #tpu.memory_space<vmem>>, %arg4: memref<4x32x32xf32, #tpu.memory_space<vmem>>, %arg5: memref<4x32x1xf32, #tpu.memory_space<vmem>>, %arg6: memref<256x16xf32, #tpu.memory_space<vmem>>, %arg7: memref<256x16xf32, #tpu.memory_space<vmem>>) attributes {dimension_semantics = [#tpu.dimension_semantics<parallel>], iteration_bounds = array<i64: 2>, scalar_prefetch = 0 : i64, scratch_operands = 0 : i64, tpu.core_type = #tpu.core_type<tc>, window_params = [{pipeline_mode = #tpu.pipeline_mode<synchronous>, transform_indices = @transform_0, window_bounds = array<i64: 4, 16, 1>}, {pipeline_mode = #tpu.pipeline_mode<synchronous>, transform_indices = @transform_1, window_bounds = array<i64: 4, 32, 16>}, {pipeline_mode = #tpu.pipeline_mode<synchronous>, transform_indices = @transform_2, window_bounds = array<i64: 4, 32, 1>}, {pipeline_mode = #tpu.pipeline_mode<synchronous>, transform_indices = @transform_3, window_bounds = array<i64: 4, 32, 32>}, {pipeline_mode = #tpu.pipeline_mode<synchronous>, transform_indices = @transform_4, window_bounds = array<i64: 4, 32, 1>}, {transform_indices = @transform_5, window_bounds = array<i64: 256, 16>}, {transform_indices = @transform_6, window_bounds = array<i64: 256, 16>}]} {
    %0 = tpu.iota {dimensions = array<i32: 0>} : vector<16x16xi32>
    %1 = tpu.iota {dimensions = array<i32: 1>} : vector<16x16xi32>
    %2 = arith.cmpi eq, %0, %1 : vector<16x16xi32>
    %3 = arith.extui %2 : vector<16x16xi1> to vector<16x16xi32>
    %4 = arith.sitofp %3 : vector<16x16xi32> to vector<16x16xf32>
    %c0 = arith.constant 0 : index
    %c0_0 = arith.constant 0 : index
    %5 = vector.load %arg6[%c0, %c0_0] : memref<256x16xf32, #tpu.memory_space<vmem>>, vector<256x16xf32>
    %cst = arith.constant dense<0.000000e+00> : vector<16x256xf32>
    %6 = tpu.matmul %4, %5, %cst {dimension_numbers = #tpu.dot_dimension_numbers<[1], [1], [0], [0], [0, 0, 1, 0], [], []>, precision = #tpu.contract_precision<fp32>} : vector<16x16xf32>, vector<256x16xf32>, vector<16x256xf32> -> vector<16x256xf32>
    %c0_1 = arith.constant 0 : index
    %c0_2 = arith.constant 0 : index
    %c0_3 = arith.constant 0 : index
    %7 = vector.load %arg1[%c0_1, %c0_2, %c0_3] : memref<4x16x1xf32, #tpu.memory_space<vmem>>, vector<1x16x1xf32>
    %8 = vector.shape_cast %7 : vector<1x16x1xf32> to vector<16x1xf32>
    %cst_4 = arith.constant 1.000000e+00 : f32
    %9 = vector.broadcast %cst_4 : f32 to vector<16x1xf32>
    %10 = arith.subf %9, %8 : vector<16x1xf32>
    %c0_5 = arith.constant 0 : index
    %c0_6 = arith.constant 0 : index
    %c0_7 = arith.constant 0 : index
    %11 = vector.load %arg2[%c0_5, %c0_6, %c0_7] : memref<4x32x16xf32, #tpu.memory_space<vmem>>, vector<1x32x16xf32>
    %12 = vector.shape_cast %11 : vector<1x32x16xf32> to vector<32x16xf32>
    %cst_8 = arith.constant dense<0.000000e+00> : vector<32x256xf32>
    %13 = tpu.matmul %12, %6, %cst_8 {dimension_numbers = #tpu.dot_dimension_numbers<[1], [0], [0], [1], [0, 0, 1, 1], [], []>, precision = #tpu.contract_precision<fp32>} : vector<32x16xf32>, vector<16x256xf32>, vector<32x256xf32> -> vector<32x256xf32>
    %c0_9 = arith.constant 0 : index
    %c0_10 = arith.constant 0 : index
    %c0_11 = arith.constant 0 : index
    %14 = vector.load %arg3[%c0_9, %c0_10, %c0_11] : memref<4x32x1xf32, #tpu.memory_space<vmem>>, vector<1x32x1xf32>
    %15 = vector.shape_cast %14 : vector<1x32x1xf32> to vector<32x1xf32>
    %16 = vector.broadcast %15 : vector<32x1xf32> to vector<32x256xf32>
    %17 = arith.addf %13, %16 : vector<32x256xf32>
    %18 = math.tanh %17 : vector<32x256xf32>
    %c0_12 = arith.constant 0 : index
    %c0_13 = arith.constant 0 : index
    %c0_14 = arith.constant 0 : index
    %19 = vector.load %arg4[%c0_12, %c0_13, %c0_14] : memref<4x32x32xf32, #tpu.memory_space<vmem>>, vector<1x32x32xf32>
    %20 = vector.shape_cast %19 : vector<1x32x32xf32> to vector<32x32xf32>
    %cst_15 = arith.constant dense<0.000000e+00> : vector<32x256xf32>
    %21 = tpu.matmul %20, %18, %cst_15 {dimension_numbers = #tpu.dot_dimension_numbers<[1], [0], [0], [1], [0, 0, 1, 1], [], []>, precision = #tpu.contract_precision<fp32>} : vector<32x32xf32>, vector<32x256xf32>, vector<32x256xf32> -> vector<32x256xf32>
    %c0_16 = arith.constant 0 : index
    %c0_17 = arith.constant 0 : index
    %c0_18 = arith.constant 0 : index
    %22 = vector.load %arg5[%c0_16, %c0_17, %c0_18] : memref<4x32x1xf32, #tpu.memory_space<vmem>>, vector<1x32x1xf32>
    %23 = vector.shape_cast %22 : vector<1x32x1xf32> to vector<32x1xf32>
    %24 = vector.broadcast %23 : vector<32x1xf32> to vector<32x256xf32>
    %25 = arith.addf %21, %24 : vector<32x256xf32>
    %26 = vector.extract_strided_slice %25 {offsets = [0, 0], sizes = [16, 256], strides = [1, 1]} : vector<32x256xf32> to vector<16x256xf32>
    %27 = vector.extract_strided_slice %25 {offsets = [16, 0], sizes = [16, 256], strides = [1, 1]} : vector<32x256xf32> to vector<16x256xf32>
    %28 = math.exp %26 : vector<16x256xf32>
    %29 = vector.broadcast %10 : vector<16x1xf32> to vector<16x256xf32>
    %30 = arith.mulf %29, %28 : vector<16x256xf32>
    %31 = vector.broadcast %8 : vector<16x1xf32> to vector<16x256xf32>
    %32 = arith.addf %31, %30 : vector<16x256xf32>
    %33 = arith.mulf %6, %32 : vector<16x256xf32>
    %34 = vector.broadcast %10 : vector<16x1xf32> to vector<16x256xf32>
    %35 = arith.mulf %34, %27 : vector<16x256xf32>
    %36 = arith.addf %33, %35 : vector<16x256xf32>
    %c1 = arith.constant 1 : index
    %c0_19 = arith.constant 0 : index
    %c0_20 = arith.constant 0 : index
    %37 = vector.load %arg1[%c1, %c0_19, %c0_20] : memref<4x16x1xf32, #tpu.memory_space<vmem>>, vector<1x16x1xf32>
    %38 = vector.shape_cast %37 : vector<1x16x1xf32> to vector<16x1xf32>
    %cst_21 = arith.constant 1.000000e+00 : f32
    %39 = vector.broadcast %cst_21 : f32 to vector<16x1xf32>
    %40 = arith.subf %39, %38 : vector<16x1xf32>
    %c1_22 = arith.constant 1 : index
    %c0_23 = arith.constant 0 : index
    %c0_24 = arith.constant 0 : index
    %41 = vector.load %arg2[%c1_22, %c0_23, %c0_24] : memref<4x32x16xf32, #tpu.memory_space<vmem>>, vector<1x32x16xf32>
    %42 = vector.shape_cast %41 : vector<1x32x16xf32> to vector<32x16xf32>
    %cst_25 = arith.constant dense<0.000000e+00> : vector<32x256xf32>
    %43 = tpu.matmul %42, %36, %cst_25 {dimension_numbers = #tpu.dot_dimension_numbers<[1], [0], [0], [1], [0, 0, 1, 1], [], []>, precision = #tpu.contract_precision<fp32>} : vector<32x16xf32>, vector<16x256xf32>, vector<32x256xf32> -> vector<32x256xf32>
    %c1_26 = arith.constant 1 : index
    %c0_27 = arith.constant 0 : index
    %c0_28 = arith.constant 0 : index
    %44 = vector.load %arg3[%c1_26, %c0_27, %c0_28] : memref<4x32x1xf32, #tpu.memory_space<vmem>>, vector<1x32x1xf32>
    %45 = vector.shape_cast %44 : vector<1x32x1xf32> to vector<32x1xf32>
    %46 = vector.broadcast %45 : vector<32x1xf32> to vector<32x256xf32>
    %47 = arith.addf %43, %46 : vector<32x256xf32>
    %48 = math.tanh %47 : vector<32x256xf32>
    %c1_29 = arith.constant 1 : index
    %c0_30 = arith.constant 0 : index
    %c0_31 = arith.constant 0 : index
    %49 = vector.load %arg4[%c1_29, %c0_30, %c0_31] : memref<4x32x32xf32, #tpu.memory_space<vmem>>, vector<1x32x32xf32>
    %50 = vector.shape_cast %49 : vector<1x32x32xf32> to vector<32x32xf32>
    %cst_32 = arith.constant dense<0.000000e+00> : vector<32x256xf32>
    %51 = tpu.matmul %50, %48, %cst_32 {dimension_numbers = #tpu.dot_dimension_numbers<[1], [0], [0], [1], [0, 0, 1, 1], [], []>, precision = #tpu.contract_precision<fp32>} : vector<32x32xf32>, vector<32x256xf32>, vector<32x256xf32> -> vector<32x256xf32>
    %c1_33 = arith.constant 1 : index
    %c0_34 = arith.constant 0 : index
    %c0_35 = arith.constant 0 : index
    %52 = vector.load %arg5[%c1_33, %c0_34, %c0_35] : memref<4x32x1xf32, #tpu.memory_space<vmem>>, vector<1x32x1xf32>
    %53 = vector.shape_cast %52 : vector<1x32x1xf32> to vector<32x1xf32>
    %54 = vector.broadcast %53 : vector<32x1xf32> to vector<32x256xf32>
    %55 = arith.addf %51, %54 : vector<32x256xf32>
    %56 = vector.extract_strided_slice %55 {offsets = [0, 0], sizes = [16, 256], strides = [1, 1]} : vector<32x256xf32> to vector<16x256xf32>
    %57 = vector.extract_strided_slice %55 {offsets = [16, 0], sizes = [16, 256], strides = [1, 1]} : vector<32x256xf32> to vector<16x256xf32>
    %58 = math.exp %56 : vector<16x256xf32>
    %59 = vector.broadcast %40 : vector<16x1xf32> to vector<16x256xf32>
    %60 = arith.mulf %59, %58 : vector<16x256xf32>
    %61 = vector.broadcast %38 : vector<16x1xf32> to vector<16x256xf32>
    %62 = arith.addf %61, %60 : vector<16x256xf32>
    %63 = arith.mulf %36, %62 : vector<16x256xf32>
    %64 = vector.broadcast %40 : vector<16x1xf32> to vector<16x256xf32>
    %65 = arith.mulf %64, %57 : vector<16x256xf32>
    %66 = arith.addf %63, %65 : vector<16x256xf32>
    %c2 = arith.constant 2 : index
    %c0_36 = arith.constant 0 : index
    %c0_37 = arith.constant 0 : index
    %67 = vector.load %arg1[%c2, %c0_36, %c0_37] : memref<4x16x1xf32, #tpu.memory_space<vmem>>, vector<1x16x1xf32>
    %68 = vector.shape_cast %67 : vector<1x16x1xf32> to vector<16x1xf32>
    %cst_38 = arith.constant 1.000000e+00 : f32
    %69 = vector.broadcast %cst_38 : f32 to vector<16x1xf32>
    %70 = arith.subf %69, %68 : vector<16x1xf32>
    %c2_39 = arith.constant 2 : index
    %c0_40 = arith.constant 0 : index
    %c0_41 = arith.constant 0 : index
    %71 = vector.load %arg2[%c2_39, %c0_40, %c0_41] : memref<4x32x16xf32, #tpu.memory_space<vmem>>, vector<1x32x16xf32>
    %72 = vector.shape_cast %71 : vector<1x32x16xf32> to vector<32x16xf32>
    %cst_42 = arith.constant dense<0.000000e+00> : vector<32x256xf32>
    %73 = tpu.matmul %72, %66, %cst_42 {dimension_numbers = #tpu.dot_dimension_numbers<[1], [0], [0], [1], [0, 0, 1, 1], [], []>, precision = #tpu.contract_precision<fp32>} : vector<32x16xf32>, vector<16x256xf32>, vector<32x256xf32> -> vector<32x256xf32>
    %c2_43 = arith.constant 2 : index
    %c0_44 = arith.constant 0 : index
    %c0_45 = arith.constant 0 : index
    %74 = vector.load %arg3[%c2_43, %c0_44, %c0_45] : memref<4x32x1xf32, #tpu.memory_space<vmem>>, vector<1x32x1xf32>
    %75 = vector.shape_cast %74 : vector<1x32x1xf32> to vector<32x1xf32>
    %76 = vector.broadcast %75 : vector<32x1xf32> to vector<32x256xf32>
    %77 = arith.addf %73, %76 : vector<32x256xf32>
    %78 = math.tanh %77 : vector<32x256xf32>
    %c2_46 = arith.constant 2 : index
    %c0_47 = arith.constant 0 : index
    %c0_48 = arith.constant 0 : index
    %79 = vector.load %arg4[%c2_46, %c0_47, %c0_48] : memref<4x32x32xf32, #tpu.memory_space<vmem>>, vector<1x32x32xf32>
    %80 = vector.shape_cast %79 : vector<1x32x32xf32> to vector<32x32xf32>
    %cst_49 = arith.constant dense<0.000000e+00> : vector<32x256xf32>
    %81 = tpu.matmul %80, %78, %cst_49 {dimension_numbers = #tpu.dot_dimension_numbers<[1], [0], [0], [1], [0, 0, 1, 1], [], []>, precision = #tpu.contract_precision<fp32>} : vector<32x32xf32>, vector<32x256xf32>, vector<32x256xf32> -> vector<32x256xf32>
    %c2_50 = arith.constant 2 : index
    %c0_51 = arith.constant 0 : index
    %c0_52 = arith.constant 0 : index
    %82 = vector.load %arg5[%c2_50, %c0_51, %c0_52] : memref<4x32x1xf32, #tpu.memory_space<vmem>>, vector<1x32x1xf32>
    %83 = vector.shape_cast %82 : vector<1x32x1xf32> to vector<32x1xf32>
    %84 = vector.broadcast %83 : vector<32x1xf32> to vector<32x256xf32>
    %85 = arith.addf %81, %84 : vector<32x256xf32>
    %86 = vector.extract_strided_slice %85 {offsets = [0, 0], sizes = [16, 256], strides = [1, 1]} : vector<32x256xf32> to vector<16x256xf32>
    %87 = vector.extract_strided_slice %85 {offsets = [16, 0], sizes = [16, 256], strides = [1, 1]} : vector<32x256xf32> to vector<16x256xf32>
    %88 = math.exp %86 : vector<16x256xf32>
    %89 = vector.broadcast %70 : vector<16x1xf32> to vector<16x256xf32>
    %90 = arith.mulf %89, %88 : vector<16x256xf32>
    %91 = vector.broadcast %68 : vector<16x1xf32> to vector<16x256xf32>
    %92 = arith.addf %91, %90 : vector<16x256xf32>
    %93 = arith.mulf %66, %92 : vector<16x256xf32>
    %94 = vector.broadcast %70 : vector<16x1xf32> to vector<16x256xf32>
    %95 = arith.mulf %94, %87 : vector<16x256xf32>
    %96 = arith.addf %93, %95 : vector<16x256xf32>
    %c3 = arith.constant 3 : index
    %c0_53 = arith.constant 0 : index
    %c0_54 = arith.constant 0 : index
    %97 = vector.load %arg1[%c3, %c0_53, %c0_54] : memref<4x16x1xf32, #tpu.memory_space<vmem>>, vector<1x16x1xf32>
    %98 = vector.shape_cast %97 : vector<1x16x1xf32> to vector<16x1xf32>
    %cst_55 = arith.constant 1.000000e+00 : f32
    %99 = vector.broadcast %cst_55 : f32 to vector<16x1xf32>
    %100 = arith.subf %99, %98 : vector<16x1xf32>
    %c3_56 = arith.constant 3 : index
    %c0_57 = arith.constant 0 : index
    %c0_58 = arith.constant 0 : index
    %101 = vector.load %arg2[%c3_56, %c0_57, %c0_58] : memref<4x32x16xf32, #tpu.memory_space<vmem>>, vector<1x32x16xf32>
    %102 = vector.shape_cast %101 : vector<1x32x16xf32> to vector<32x16xf32>
    %cst_59 = arith.constant dense<0.000000e+00> : vector<32x256xf32>
    %103 = tpu.matmul %102, %96, %cst_59 {dimension_numbers = #tpu.dot_dimension_numbers<[1], [0], [0], [1], [0, 0, 1, 1], [], []>, precision = #tpu.contract_precision<fp32>} : vector<32x16xf32>, vector<16x256xf32>, vector<32x256xf32> -> vector<32x256xf32>
    %c3_60 = arith.constant 3 : index
    %c0_61 = arith.constant 0 : index
    %c0_62 = arith.constant 0 : index
    %104 = vector.load %arg3[%c3_60, %c0_61, %c0_62] : memref<4x32x1xf32, #tpu.memory_space<vmem>>, vector<1x32x1xf32>
    %105 = vector.shape_cast %104 : vector<1x32x1xf32> to vector<32x1xf32>
    %106 = vector.broadcast %105 : vector<32x1xf32> to vector<32x256xf32>
    %107 = arith.addf %103, %106 : vector<32x256xf32>
    %108 = math.tanh %107 : vector<32x256xf32>
    %c3_63 = arith.constant 3 : index
    %c0_64 = arith.constant 0 : index
    %c0_65 = arith.constant 0 : index
    %109 = vector.load %arg4[%c3_63, %c0_64, %c0_65] : memref<4x32x32xf32, #tpu.memory_space<vmem>>, vector<1x32x32xf32>
    %110 = vector.shape_cast %109 : vector<1x32x32xf32> to vector<32x32xf32>
    %cst_66 = arith.constant dense<0.000000e+00> : vector<32x256xf32>
    %111 = tpu.matmul %110, %108, %cst_66 {dimension_numbers = #tpu.dot_dimension_numbers<[1], [0], [0], [1], [0, 0, 1, 1], [], []>, precision = #tpu.contract_precision<fp32>} : vector<32x32xf32>, vector<32x256xf32>, vector<32x256xf32> -> vector<32x256xf32>
    %c3_67 = arith.constant 3 : index
    %c0_68 = arith.constant 0 : index
    %c0_69 = arith.constant 0 : index
    %112 = vector.load %arg5[%c3_67, %c0_68, %c0_69] : memref<4x32x1xf32, #tpu.memory_space<vmem>>, vector<1x32x1xf32>
    %113 = vector.shape_cast %112 : vector<1x32x1xf32> to vector<32x1xf32>
    %114 = vector.broadcast %113 : vector<32x1xf32> to vector<32x256xf32>
    %115 = arith.addf %111, %114 : vector<32x256xf32>
    %116 = vector.extract_strided_slice %115 {offsets = [0, 0], sizes = [16, 256], strides = [1, 1]} : vector<32x256xf32> to vector<16x256xf32>
    %117 = vector.extract_strided_slice %115 {offsets = [16, 0], sizes = [16, 256], strides = [1, 1]} : vector<32x256xf32> to vector<16x256xf32>
    %118 = math.exp %116 : vector<16x256xf32>
    %119 = vector.broadcast %100 : vector<16x1xf32> to vector<16x256xf32>
    %120 = arith.mulf %119, %118 : vector<16x256xf32>
    %121 = vector.broadcast %98 : vector<16x1xf32> to vector<16x256xf32>
    %122 = arith.addf %121, %120 : vector<16x256xf32>
    %123 = arith.mulf %96, %122 : vector<16x256xf32>
    %124 = vector.broadcast %100 : vector<16x1xf32> to vector<16x256xf32>
    %125 = arith.mulf %124, %117 : vector<16x256xf32>
    %126 = arith.addf %123, %125 : vector<16x256xf32>
    %cst_70 = arith.constant dense<0.000000e+00> : vector<256x16xf32>
    %127 = tpu.matmul %126, %4, %cst_70 {dimension_numbers = #tpu.dot_dimension_numbers<[0], [0], [1], [1], [0, 1, 1, 1], [], []>, precision = #tpu.contract_precision<fp32>} : vector<16x256xf32>, vector<16x16xf32>, vector<256x16xf32> -> vector<256x16xf32>
    %c0_71 = arith.constant 0 : index
    %c0_72 = arith.constant 0 : index
    %128 = vector.load %arg7[%c0_71, %c0_72] : memref<256x16xf32, #tpu.memory_space<vmem>>, vector<256x16xf32>
    tpu.vector_store %arg7[%c0_71, %c0_72], %127 {strides = array<i32>} : memref<256x16xf32, #tpu.memory_space<vmem>>, vector<256x16xf32>,
    return
  }
  func.func @transform_0(%arg0: i32) -> (i32, i32, i32) {
    %c0_i32 = arith.constant 0 : i32
    %c0_i32_0 = arith.constant 0 : i32
    %c0_i32_1 = arith.constant 0 : i32
    %c0_i32_2 = arith.constant 0 : i32
    return %c0_i32, %c0_i32_0, %c0_i32_1 : i32, i32, i32
  }
  func.func @transform_1(%arg0: i32) -> (i32, i32, i32) {
    %c0_i32 = arith.constant 0 : i32
    %c0_i32_0 = arith.constant 0 : i32
    %c0_i32_1 = arith.constant 0 : i32
    %c0_i32_2 = arith.constant 0 : i32
    return %c0_i32, %c0_i32_0, %c0_i32_1 : i32, i32, i32
  }
  func.func @transform_2(%arg0: i32) -> (i32, i32, i32) {
    %c0_i32 = arith.constant 0 : i32
    %c0_i32_0 = arith.constant 0 : i32
    %c0_i32_1 = arith.constant 0 : i32
    %c0_i32_2 = arith.constant 0 : i32
    return %c0_i32, %c0_i32_0, %c0_i32_1 : i32, i32, i32
  }
  func.func @transform_3(%arg0: i32) -> (i32, i32, i32) {
    %c0_i32 = arith.constant 0 : i32
    %c0_i32_0 = arith.constant 0 : i32
    %c0_i32_1 = arith.constant 0 : i32
    %c0_i32_2 = arith.constant 0 : i32
    return %c0_i32, %c0_i32_0, %c0_i32_1 : i32, i32, i32
  }
  func.func @transform_4(%arg0: i32) -> (i32, i32, i32) {
    %c0_i32 = arith.constant 0 : i32
    %c0_i32_0 = arith.constant 0 : i32
    %c0_i32_1 = arith.constant 0 : i32
    %c0_i32_2 = arith.constant 0 : i32
    return %c0_i32, %c0_i32_0, %c0_i32_1 : i32, i32, i32
  }
  func.func @transform_5(%arg0: i32) -> (i32, i32) {
    %c0_i32 = arith.constant 0 : i32
    %c0_i32_0 = arith.constant 0 : i32
    return %arg0, %c0_i32 : i32, i32
  }
  func.func @transform_6(%arg0: i32) -> (i32, i32) {
    %c0_i32 = arith.constant 0 : i32
    %c0_i32_0 = arith.constant 0 : i32
    return %arg0, %c0_i32 : i32, i32
  }
}

</mosaic_0001>

<llo_original>
// kernel: multiscale_flow_forward.1
$region0: #{multiscale_flow_forward.1}
  #allocation0 [shape = 'u32[]', space=smem, size = 0x4, offset = 0x4, fixed_abs, tag = 'smem constant byte address 0x4 - core index']
  #allocation1 [shape = 'u32[144,128]{1,0:T(1,128)}', space=vmem, size = 0x12000, scoped, tag = 'internal scratch']
  %s0 = inlined_call_operand.vmem [shape: f32[4,16,1], index: 0, kind: input, shape index: {}]
  %s1 = inlined_call_operand.vmem [shape: f32[4,32,16], index: 1, kind: input, shape index: {}]
  %s2 = inlined_call_operand.vmem [shape: f32[4,32,1], index: 2, kind: input, shape index: {}]
  %s3 = inlined_call_operand.vmem [shape: f32[4,32,32], index: 3, kind: input, shape index: {}]
  %s4 = inlined_call_operand.vmem [shape: f32[4,32,1], index: 4, kind: input, shape index: {}]
  %s5 = inlined_call_operand.vmem [shape: f32[512,16], index: 5, kind: input, shape index: {}]
  %s6 = inlined_call_operand.vmem [shape: f32[512,16], index: 6, kind: output, shape index: {}]
  %s7 = sld [smem:[#allocation0]]
  $region57: #{multiscale_flow_forward.1} parent=0
    _
  %s9 = ssub.s32 1, %s7
  %s10 = scalar_select 0, %s9, %s7
  loop: start=0, step=1, limit=4
  $region2: #{multiscale_flow_forward.1} parent=0 // loop_pre_header
    _
  $region3: #{multiscale_flow_forward.1} parent=0 // loop_header
    %s12 = sphi 0, %s16
    %p13 = scmp.ge.s32.totalorder %s12, 4
    %s20 = sphi 0, %s20
    %s22 = sphi 0, %s20
    %s23 = sphi 0, %s22
    %s37 = sphi 0, %s23
    %s41 = sphi 0, %s41
    %s43 = sphi 0, %s41
    %s44 = sphi 0, %s43
    %s58 = sphi 0, %s44
    %s62 = sphi 0, %s62
    %s64 = sphi 0, %s62
    %s65 = sphi 0, %s64
    %s79 = sphi 0, %s65
    %s83 = sphi 0, %s83
    %s85 = sphi 0, %s83
    %s86 = sphi 0, %s85
    %s100 = sphi 0, %s86
    %s104 = sphi 0, %s104
    %s106 = sphi 0, %s104
    %s107 = sphi 0, %s106
    %s121 = sphi 0, %s107
    %s127 = sphi 0, %s129
    %s130 = sphi 0, %s127
    %s131 = sphi 0, %s130
    %s147 = sphi 0, %s131
    %s153 = sphi 0, %s155
    %s156 = sphi 0, %s153
    %s157 = sphi 0, %s156
    %s173 = sphi 0, %s157
  $region4: #{multiscale_flow_forward.1} parent=0 // loop_header_branch
    %15 = sbr.rel (%p13) target = $region8
  $region5: #{multiscale_flow_forward.1} parent=0 // loop_body
    %s17 = ssub.s32 %s12, 1
    %s18 = ssub.s32 %s12, 2
    %s19 = sadd.s32 %s12, 1
    %s21 = sadd.s32 %s20, 1
    %p24 = scmp.eq.s32.totalorder %s12, 1
    %p25 = scmp.ne.s32.totalorder %s20, %s22
    %p26 = scmp.eq.s32.totalorder %s12, 0
    %p27 = por %p25, %p26
    %p28 = scmp.ne.s32.totalorder %s20, %s22
    %p29 = scmp.eq.s32.totalorder %s17, 1
    %p30 = por %p28, %p29
    %p31 = scmp.ne.s32.totalorder %s22, %s23
    %p32 = scmp.eq.s32.totalorder %s17, 0
    %p33 = por %p31, %p32
    %p34 = scmp.ne.s32.totalorder %s22, %s23
    %p35 = scmp.eq.s32.totalorder %s18, 1
    %p36 = por %p34, %p35
    %p38 = scmp.ne.s32.totalorder %s23, %s37
    %p39 = scmp.eq.s32.totalorder %s18, 0
    %p40 = por %p38, %p39
    %s42 = sadd.s32 %s41, 1
    %p45 = scmp.eq.s32.totalorder %s12, 1
    %p46 = scmp.ne.s32.totalorder %s41, %s43
    %p47 = scmp.eq.s32.totalorder %s12, 0
    %p48 = por %p46, %p47
    %p49 = scmp.ne.s32.totalorder %s41, %s43
    %p50 = scmp.eq.s32.totalorder %s17, 1
    %p51 = por %p49, %p50
    %p52 = scmp.ne.s32.totalorder %s43, %s44
    %p53 = scmp.eq.s32.totalorder %s17, 0
    %p54 = por %p52, %p53
    %p55 = scmp.ne.s32.totalorder %s43, %s44
    %p56 = scmp.eq.s32.totalorder %s18, 1
    %p57 = por %p55, %p56
    %p59 = scmp.ne.s32.totalorder %s44, %s58
    %p60 = scmp.eq.s32.totalorder %s18, 0
    %p61 = por %p59, %p60
    %s63 = sadd.s32 %s62, 1
    %p66 = scmp.eq.s32.totalorder %s12, 1
    %p67 = scmp.ne.s32.totalorder %s62, %s64
    %p68 = scmp.eq.s32.totalorder %s12, 0
    %p69 = por %p67, %p68
    %p70 = scmp.ne.s32.totalorder %s62, %s64
    %p71 = scmp.eq.s32.totalorder %s17, 1
    %p72 = por %p70, %p71
    %p73 = scmp.ne.s32.totalorder %s64, %s65
    %p74 = scmp.eq.s32.totalorder %s17, 0
    %p75 = por %p73, %p74
    %p76 = scmp.ne.s32.totalorder %s64, %s65
    %p77 = scmp.eq.s32.totalorder %s18, 1
    %p78 = por %p76, %p77
    %p80 = scmp.ne.s32.totalorder %s65, %s79
    %p81 = scmp.eq.s32.totalorder %s18, 0
    %p82 = por %p80, %p81
    %s84 = sadd.s32 %s83, 1
    %p87 = scmp.eq.s32.totalorder %s12, 1
    %p88 = scmp.ne.s32.totalorder %s83, %s85
    %p89 = scmp.eq.s32.totalorder %s12, 0
    %p90 = por %p88, %p89
    %p91 = scmp.ne.s32.totalorder %s83, %s85
    %p92 = scmp.eq.s32.totalorder %s17, 1
    %p93 = por %p91, %p92
    %p94 = scmp.ne.s32.totalorder %s85, %s86
    %p95 = scmp.eq.s32.totalorder %s17, 0
    %p96 = por %p94, %p95
    %p97 = scmp.ne.s32.totalorder %s85, %s86
    %p98 = scmp.eq.s32.totalorder %s18, 1
    %p99 = por %p97, %p98
    %p101 = scmp.ne.s32.totalorder %s86, %s100
    %p102 = scmp.eq.s32.totalorder %s18, 0
    %p103 = por %p101, %p102
    %s105 = sadd.s32 %s104, 1
    %p108 = scmp.eq.s32.totalorder %s12, 1
    %p109 = scmp.ne.s32.totalorder %s104, %s106
    %p110 = scmp.eq.s32.totalorder %s12, 0
    %p111 = por %p109, %p110
    %p112 = scmp.ne.s32.totalorder %s104, %s106
    %p113 = scmp.eq.s32.totalorder %s17, 1
    %p114 = por %p112, %p113
    %p115 = scmp.ne.s32.totalorder %s106, %s107
    %p116 = scmp.eq.s32.totalorder %s17, 0
    %p117 = por %p115, %p116
    %p118 = scmp.ne.s32.totalorder %s106, %s107
    %p119 = scmp.eq.s32.totalorder %s18, 1
    %p120 = por %p118, %p119
    %p122 = scmp.ne.s32.totalorder %s107, %s121
    %p123 = scmp.eq.s32.totalorder %s18, 0
    %p124 = por %p122, %p123
    %s125 = ssub.s32 %s12, %s19
    %p126 = scmp.eq.s32.totalorder %s125, 0
    %s128 = sadd.s32 %s127, 1
    %s129 = scalar_select %p126, %s127, %s128
    %p132 = pneg %p126
    %p133 = scmp.eq.s32.totalorder %s12, 1
    %p134 = por %p132, %p133
    %p135 = scmp.ne.s32.totalorder %s127, %s130
    %p136 = scmp.eq.s32.totalorder %s12, 0
    %p137 = por %p135, %p136
    %p138 = scmp.ne.s32.totalorder %s127, %s130
    %p139 = scmp.eq.s32.totalorder %s17, 1
    %p140 = por %p138, %p139
    %p141 = scmp.ne.s32.totalorder %s130, %s131
    %p142 = scmp.eq.s32.totalorder %s17, 0
    %p143 = por %p141, %p142
    %p144 = scmp.ne.s32.totalorder %s130, %s131
    %p145 = scmp.eq.s32.totalorder %s18, 1
    %p146 = por %p144, %p145
    %p148 = scmp.ne.s32.totalorder %s131, %s147
    %p149 = scmp.eq.s32.totalorder %s18, 0
    %p150 = por %p148, %p149
    %s151 = ssub.s32 %s12, %s19
    %p152 = scmp.eq.s32.totalorder %s151, 0
    %s154 = sadd.s32 %s153, 1
    %s155 = scalar_select %p152, %s153, %s154
    %p158 = pneg %p152
    %p159 = scmp.eq.s32.totalorder %s12, 1
    %p160 = por %p158, %p159
    %p161 = scmp.ne.s32.totalorder %s153, %s156
    %p162 = scmp.eq.s32.totalorder %s12, 0
    %p163 = por %p161, %p162
    %p164 = scmp.ne.s32.totalorder %s153, %s156
    %p165 = scmp.eq.s32.totalorder %s17, 1
    %p166 = por %p164, %p165
    %p167 = scmp.ne.s32.totalorder %s156, %s157
    %p168 = scmp.eq.s32.totalorder %s17, 0
    %p169 = por %p167, %p168
    %p170 = scmp.ne.s32.totalorder %s156, %s157
    %p171 = scmp.eq.s32.totalorder %s18, 1
    %p172 = por %p170, %p171
    %p174 = scmp.ne.s32.totalorder %s157, %s173
    %p175 = scmp.eq.s32.totalorder %s18, 0
    %p176 = por %p174, %p175
    %p177 = scmp.le.s32.totalorder 1, %s12
    %p178 = scmp.lt.s32.totalorder %s12, 3
    %p179 = pnand %p177, %p178
    %p180 = pneg %p179
    // Predicated region
    $region9: #{multiscale_flow_forward.1} parent=5 // pred_check
      _
    $region10: #{multiscale_flow_forward.1} parent=5 // pred_check_branch
      %182 = sbr.rel (%p179) target = $region12
    $region11: #{multiscale_flow_forward.1} parent=5 // pred_region
      %s183 = ssub.s32 %s12, 1
      // Predicated region
      $region13: #{multiscale_flow_forward.1} parent=11 // pred_check
        %p184 = pneg %p33
      $region14: #{multiscale_flow_forward.1} parent=11 // pred_check_branch
        %186 = sbr.rel (%p184) target = $region16
      $region15: #{multiscale_flow_forward.1} parent=11 // pred_region
        _
      $region16: #{multiscale_flow_forward.1} parent=11 // pred_fallthru
        _
      // Predicated region
      $region17: #{multiscale_flow_forward.1} parent=11 // pred_check
        %p187 = pneg %p54
      $region18: #{multiscale_flow_forward.1} parent=11 // pred_check_branch
        %189 = sbr.rel (%p187) target = $region20
      $region19: #{multiscale_flow_forward.1} parent=11 // pred_region
        _
      $region20: #{multiscale_flow_forward.1} parent=11 // pred_fallthru
        _
      // Predicated region
      $region21: #{multiscale_flow_forward.1} parent=11 // pred_check
        %p190 = pneg %p75
      $region22: #{multiscale_flow_forward.1} parent=11 // pred_check_branch
        %192 = sbr.rel (%p190) target = $region24
      $region23: #{multiscale_flow_forward.1} parent=11 // pred_region
        _
      $region24: #{multiscale_flow_forward.1} parent=11 // pred_fallthru
        _
      // Predicated region
      $region25: #{multiscale_flow_forward.1} parent=11 // pred_check
        %p193 = pneg %p96
      $region26: #{multiscale_flow_forward.1} parent=11 // pred_check_branch
        %195 = sbr.rel (%p193) target = $region28
      $region27: #{multiscale_flow_forward.1} parent=11 // pred_region
        _
      $region28: #{multiscale_flow_forward.1} parent=11 // pred_fallthru
        _
      // Predicated region
      $region29: #{multiscale_flow_forward.1} parent=11 // pred_check
        %p196 = pneg %p117
      $region30: #{multiscale_flow_forward.1} parent=11 // pred_check_branch
        %198 = sbr.rel (%p196) target = $region32
      $region31: #{multiscale_flow_forward.1} parent=11 // pred_region
        _
      $region32: #{multiscale_flow_forward.1} parent=11 // pred_fallthru
        _
    $region12: #{multiscale_flow_forward.1} parent=5 // pred_fallthru
      _
    %p199 = scmp.lt.s32.totalorder %s12, 2
    // Predicated region
    $region33: #{multiscale_flow_forward.1} parent=5 // pred_check
      %p200 = pneg %p199
    $region34: #{multiscale_flow_forward.1} parent=5 // pred_check_branch
      %202 = sbr.rel (%p200) target = $region36
    $region35: #{multiscale_flow_forward.1} parent=5 // pred_region
      // Predicated region
      $region37: #{multiscale_flow_forward.1} parent=35 // pred_check
        %p203 = pneg %p137
      $region38: #{multiscale_flow_forward.1} parent=35 // pred_check_branch
        %205 = sbr.rel (%p203) target = $region40
      $region39: #{multiscale_flow_forward.1} parent=35 // pred_region
        %s206 = smul.u32 32, %s12
        %p207 = scmp.lt.s32.totalorder %s206, 63
        %s208 = scalar_select %p207, %s206, 63
        %s209 = smul.addr %s208, 8
        %s210 = scalar_lea.vmem %s5, %s209
        %s211 = smul.u32 32, %s12
      $region40: #{multiscale_flow_forward.1} parent=35 // pred_fallthru
        _
    $region36: #{multiscale_flow_forward.1} parent=5 // pred_fallthru
      _
    %p212 = scmp.le.s32.totalorder 1, %s12
    %p213 = scmp.lt.s32.totalorder %s12, 3
    %p214 = pnand %p212, %p213
    %p215 = pneg %p214
    // Predicated region
    $region41: #{multiscale_flow_forward.1} parent=5 // pred_check
      _
    $region42: #{multiscale_flow_forward.1} parent=5 // pred_check_branch
      %217 = sbr.rel (%p214) target = $region44
    $region43: #{multiscale_flow_forward.1} parent=5 // pred_region
      %s218 = ssub.s32 %s12, 1
      %p219 = pneg %p33
      %p220 = pneg %p30
      %p221 = pneg %p54
      %p222 = pneg %p51
      %p223 = pneg %p75
      %p224 = pneg %p72
      %p225 = pneg %p96
      %p226 = pneg %p93
      %p227 = pneg %p117
      %p228 = pneg %p114
      %s229 = smul.u32 32, %s17
      %p230 = scmp.lt.s32.totalorder %s229, 63
      %s231 = scalar_select %p230, %s229, 63
      %s232 = smul.addr %s231, 8
      %s233 = scalar_lea.vmem %s5, %s232
      %p234 = pneg %p143
      %p235 = pneg %p140
      %p236 = pneg %p169
      %p237 = pneg %p166
      %s238 = smul.u32 32, %s17
      %p239 = scmp.lt.s32.totalorder %s238, 63
      %s240 = scalar_select %p239, %s238, 63
      %s241 = smul.addr %s240, 8
      %s242 = scalar_lea.vmem %s6, %s241
      %s243 = smul.u32 32, %s17
      %p244 = scmp.lt.s32.totalorder %s243, 63
      %s245 = scalar_select %p244, %s243, 63
      %s246 = smul.addr %s245, 8
      %s247 = scalar_lea.vmem %s5, %s246
      %s248 = smul.u32 32, %s17
      %s249 = smul.u32 32, %s17
      %p250 = scmp.lt.s32.totalorder %s249, 63
      %s251 = scalar_select %p250, %s249, 63
      %s252 = smul.addr %s251, 8
      %s253 = scalar_lea.vmem %s6, %s252
      %s254 = smul.u32 32, %s17
      %v255 = vlaneseq
      %v256 = vshrl.u32 %v255, 7
      %v257 = vadd.s32 %v256, 8
      %v258 = vlaneseq
      %v259 = vand.u32 %v258, 127
      %vm260 = vcmp.eq.s32.totalorder %v256, %v259
      %vm261 = vcmp.eq.s32.totalorder %v257, %v259
      %v262 = vsel %vm260, 1, 0
      %v263 = vsel %vm261, 1, 0
      %v264 = vcvt.s32.f32 %v262
      %v265 = vcvt.s32.f32 %v263
      %v266 = vld [vmem:[%s247] sm:$0xff]
      %v267 = vld [vmem:[%s247 + $0x8] sm:$0xff]
      %v268 = vld [vmem:[%s247 + $0x10] sm:$0xff]
      %v269 = vld [vmem:[%s247 + $0x18] sm:$0xff]
      %v270 = vld [vmem:[%s247 + $0x20] sm:$0xff]
      %v271 = vld [vmem:[%s247 + $0x28] sm:$0xff]
      %v272 = vld [vmem:[%s247 + $0x30] sm:$0xff]
      %v273 = vld [vmem:[%s247 + $0x38] sm:$0xff]
      %v274 = vld [vmem:[%s247 + $0x40] sm:$0xff]
      %v275 = vld [vmem:[%s247 + $0x48] sm:$0xff]
      %v276 = vld [vmem:[%s247 + $0x50] sm:$0xff]
      %v277 = vld [vmem:[%s247 + $0x58] sm:$0xff]
      %v278 = vld [vmem:[%s247 + $0x60] sm:$0xff]
      %v279 = vld [vmem:[%s247 + $0x68] sm:$0xff]
      %v280 = vld [vmem:[%s247 + $0x70] sm:$0xff]
      %v281 = vld [vmem:[%s247 + $0x78] sm:$0xff]
      %v282 = vld [vmem:[%s247 + $0x80] sm:$0xff]
      %v283 = vld [vmem:[%s247 + $0x88] sm:$0xff]
      %v284 = vld [vmem:[%s247 + $0x90] sm:$0xff]
      %v285 = vld [vmem:[%s247 + $0x98] sm:$0xff]
      %v286 = vld [vmem:[%s247 + $0xa0] sm:$0xff]
      %v287 = vld [vmem:[%s247 + $0xa8] sm:$0xff]
      %v288 = vld [vmem:[%s247 + $0xb0] sm:$0xff]
      %v289 = vld [vmem:[%s247 + $0xb8] sm:$0xff]
      %v290 = vld [vmem:[%s247 + $0xc0] sm:$0xff]
      %v291 = vld [vmem:[%s247 + $0xc8] sm:$0xff]
      %v292 = vld [vmem:[%s247 + $0xd0] sm:$0xff]
      %v293 = vld [vmem:[%s247 + $0xd8] sm:$0xff]
      %v294 = vld [vmem:[%s247 + $0xe0] sm:$0xff]
      %v295 = vld [vmem:[%s247 + $0xe8] sm:$0xff]
      %v296 = vld [vmem:[%s247 + $0xf0] sm:$0xff]
      %v297 = vld [vmem:[%s247 + $0xf8] sm:$0xff]
      %vm298 = vcmask 130048
      %v300 = vsel %vm298, %v264, 0
      %v303 = vsel %vm298, %v265, 0
      %v306 = vsel %vm298, %v266, 0
      %v309 = vsel %vm298, %v267, 0
      %v312 = vsel %vm298, %v268, 0
      %v315 = vsel %vm298, %v269, 0
      %v318 = vsel %vm298, %v270, 0
      %v321 = vsel %vm298, %v271, 0
      %v324 = vsel %vm298, %v272, 0
      %v327 = vsel %vm298, %v273, 0
      %v330 = vsel %vm298, %v274, 0
      %v333 = vsel %vm298, %v275, 0
      %v336 = vsel %vm298, %v276, 0
      %v339 = vsel %vm298, %v277, 0
      %v342 = vsel %vm298, %v278, 0
      %v345 = vsel %vm298, %v279, 0
      %v348 = vsel %vm298, %v280, 0
      %v351 = vsel %vm298, %v281, 0
      %v354 = vsel %vm298, %v282, 0
      %v357 = vsel %vm298, %v283, 0
      %v360 = vsel %vm298, %v284, 0
      %v363 = vsel %vm298, %v285, 0
      %v366 = vsel %vm298, %v286, 0
      %v369 = vsel %vm298, %v287, 0
      %v372 = vsel %vm298, %v288, 0
      %v375 = vsel %vm298, %v289, 0
      %v378 = vsel %vm298, %v290, 0
      %v381 = vsel %vm298, %v291, 0
      %v384 = vsel %vm298, %v292, 0
      %v387 = vsel %vm298, %v293, 0
      %v390 = vsel %vm298, %v294, 0
      %v393 = vsel %vm298, %v295, 0
      %v396 = vsel %vm298, %v296, 0
      %v399 = vsel %vm298, %v297, 0
      %401 = vmatprep.subr.mxu0 0.0
      %v402 = vand.u32 %v306, 4294901760
      %403 = vmatpush1.xpose.msra.mxu0 %v402
      %404 = vmatprep.subr.mxu0 0.0
      %v405 = vand.u32 %v309, 4294901760
      %406 = vmatpush1.xpose.msra.mxu0 %v405
      %407 = vmatprep.subr.mxu0 0.0
      %v408 = vand.u32 %v312, 4294901760
      %409 = vmatpush1.xpose.msra.mxu0 %v408
      %410 = vmatprep.subr.mxu0 0.0
      %v411 = vand.u32 %v315, 4294901760
      %412 = vmatpush1.xpose.msra.mxu0 %v411
      %413 = vmatprep.subr.mxu0 0.0
      %v414 = vand.u32 %v318, 4294901760
      %415 = vmatpush1.xpose.msra.mxu0 %v414
      %416 = vmatprep.subr.mxu0 0.0
      %v417 = vand.u32 %v321, 4294901760
      %418 = vmatpush1.xpose.msra.mxu0 %v417
      %419 = vmatprep.subr.mxu0 0.0
      %v420 = vand.u32 %v324, 4294901760
      %421 = vmatpush1.xpose.msra.mxu0 %v420
      %422 = vmatprep.subr.mxu0 0.0
      %v423 = vand.u32 %v327, 4294901760
      %424 = vmatpush1.xpose.msra.mxu0 %v423
      %425 = vmatprep.subr.mxu0 0.0
      %v426 = vand.u32 %v330, 4294901760
      %427 = vmatpush1.xpose.msra.mxu0 %v426
      %428 = vmatprep.subr.mxu0 0.0
      %v429 = vand.u32 %v333, 4294901760
      %430 = vmatpush1.xpose.msra.mxu0 %v429
      %431 = vmatprep.subr.mxu0 0.0
      %v432 = vand.u32 %v336, 4294901760
      %433 = vmatpush1.xpose.msra.mxu0 %v432
      %434 = vmatprep.subr.mxu0 0.0
      %v435 = vand.u32 %v339, 4294901760
      %436 = vmatpush1.xpose.msra.mxu0 %v435
      %437 = vmatprep.subr.mxu0 0.0
      %v438 = vand.u32 %v342, 4294901760
      %439 = vmatpush1.xpose.msra.mxu0 %v438
      %440 = vmatprep.subr.mxu0 0.0
      %v441 = vand.u32 %v345, 4294901760
      %442 = vmatpush1.xpose.msra.mxu0 %v441
      %443 = vmatprep.subr.mxu0 0.0
      %v444 = vand.u32 %v348, 4294901760
      %445 = vmatpush1.xpose.msra.mxu0 %v444
      %446 = vmatprep.subr.mxu0 0.0
      %v447 = vand.u32 %v351, 4294901760
      %448 = vmatpush1.xpose.msra.mxu0 %v447
      %449 = vmatprep.subr.mxu0 0.0
      %v450 = vand.u32 %v354, 4294901760
      %451 = vmatpush1.xpose.msra.mxu0 %v450
      %452 = vmatprep.subr.mxu0 0.0
      %v453 = vand.u32 %v357, 4294901760
      %454 = vmatpush1.xpose.msra.mxu0 %v453
      %455 = vmatprep.subr.mxu0 0.0
      %v456 = vand.u32 %v360, 4294901760
      %457 = vmatpush1.xpose.msra.mxu0 %v456
      %458 = vmatprep.subr.mxu0 0.0
      %v459 = vand.u32 %v363, 4294901760
      %460 = vmatpush1.xpose.msra.mxu0 %v459
      %461 = vmatprep.subr.mxu0 0.0
      %v462 = vand.u32 %v366, 4294901760
      %463 = vmatpush1.xpose.msra.mxu0 %v462
      %464 = vmatprep.subr.mxu0 0.0
      %v465 = vand.u32 %v369, 4294901760
      %466 = vmatpush1.xpose.msra.mxu0 %v465
      %467 = vmatprep.subr.mxu0 0.0
      %v468 = vand.u32 %v372, 4294901760
      %469 = vmatpush1.xpose.msra.mxu0 %v468
      %470 = vmatprep.subr.mxu0 0.0
      %v471 = vand.u32 %v375, 4294901760
      %472 = vmatpush1.xpose.msra.mxu0 %v471
      %473 = vmatprep.subr.mxu0 0.0
      %v474 = vand.u32 %v378, 4294901760
      %475 = vmatpush1.xpose.msra.mxu0 %v474
      %476 = vmatprep.subr.mxu0 0.0
      %v477 = vand.u32 %v381, 4294901760
      %478 = vmatpush1.xpose.msra.mxu0 %v477
      %479 = vmatprep.subr.mxu0 0.0
      %v480 = vand.u32 %v384, 4294901760
      %481 = vmatpush1.xpose.msra.mxu0 %v480
      %482 = vmatprep.subr.mxu0 0.0
      %v483 = vand.u32 %v387, 4294901760
      %484 = vmatpush1.xpose.msra.mxu0 %v483
      %485 = vmatprep.subr.mxu0 0.0
      %v486 = vand.u32 %v390, 4294901760
      %487 = vmatpush1.xpose.msra.mxu0 %v486
      %488 = vmatprep.subr.mxu0 0.0
      %v489 = vand.u32 %v393, 4294901760
      %490 = vmatpush1.xpose.msra.mxu0 %v489
      %491 = vmatprep.subr.mxu0 0.0
      %v492 = vand.u32 %v396, 4294901760
      %493 = vmatpush1.xpose.msra.mxu0 %v492
      %494 = vmatprep.subr.mxu0 0.0
      %v495 = vand.u32 %v399, 4294901760
      %496 = vmatpush1.xpose.msra.mxu0 %v495
      %497 = vmatprep.mubr.f32.mxu0 0.0
      %v498 = vand.u32 %v300, 4294901760
      %v499 = vsub.f32 %v300, %v498
      %v500 = vand.u32 %v499, 4294901760
      %v501 = vsub.f32 %v499, %v500
      %v502 = vand.u32 %v501, 4294901760
      %503 = vmatmul.mubr.f32.gmra.mrb[0].mxu0 %v502
      %v504 = vpop.f32.mrb[0].mxu0
      %v505 = vadd.f32 0.0, %v504
      %v506 = vpop.f32.mrb[0].mxu0
      %v507 = vadd.f32 0.0, %v506
      %508 = vmatprep.mubr.f32.mxu0 0.0
      %v509 = vand.u32 %v303, 4294901760
      %v510 = vsub.f32 %v303, %v509
      %v511 = vand.u32 %v510, 4294901760
      %v512 = vsub.f32 %v510, %v511
      %v513 = vand.u32 %v512, 4294901760
      %514 = vmatmul.mubr.f32.gmra.mrb[0].mxu0 %v513
      %v515 = vpop.f32.mrb[0].mxu0
      %v516 = vadd.f32 0.0, %v515
      %v517 = vpop.f32.mrb[0].mxu0
      %v518 = vadd.f32 0.0, %v517
      %519 = vdwg.mxu0
      %520 = vmatprep.subr.mxu0 0.0
      %v521 = vand.u32 %v306, 4294901760
      %v522 = vsub.f32 %v306, %v521
      %v523 = vand.u32 %v522, 4294901760
      %v524 = vsub.f32 %v522, %v523
      %v525 = vand.u32 %v524, 4294901760
      %526 = vmatpush1.xpose.msra.mxu0 %v525
      %527 = vmatprep.subr.mxu0 0.0
      %v528 = vand.u32 %v309, 4294901760
      %v529 = vsub.f32 %v309, %v528
      %v530 = vand.u32 %v529, 4294901760
      %v531 = vsub.f32 %v529, %v530
      %v532 = vand.u32 %v531, 4294901760
      %533 = vmatpush1.xpose.msra.mxu0 %v532
      %534 = vmatprep.subr.mxu0 0.0
      %v535 = vand.u32 %v312, 4294901760
      %v536 = vsub.f32 %v312, %v535
      %v537 = vand.u32 %v536, 4294901760
      %v538 = vsub.f32 %v536, %v537
      %v539 = vand.u32 %v538, 4294901760
      %540 = vmatpush1.xpose.msra.mxu0 %v539
      %541 = vmatprep.subr.mxu0 0.0
      %v542 = vand.u32 %v315, 4294901760
      %v543 = vsub.f32 %v315, %v542
      %v544 = vand.u32 %v543, 4294901760
      %v545 = vsub.f32 %v543, %v544
      %v546 = vand.u32 %v545, 4294901760
      %547 = vmatpush1.xpose.msra.mxu0 %v546
      %548 = vmatprep.subr.mxu0 0.0
      %v549 = vand.u32 %v318, 4294901760
      %v550 = vsub.f32 %v318, %v549
      %v551 = vand.u32 %v550, 4294901760
      %v552 = vsub.f32 %v550, %v551
      %v553 = vand.u32 %v552, 4294901760
      %554 = vmatpush1.xpose.msra.mxu0 %v553
      %555 = vmatprep.subr.mxu0 0.0
      %v556 = vand.u32 %v321, 4294901760
      %v557 = vsub.f32 %v321, %v556
      %v558 = vand.u32 %v557, 4294901760
      %v559 = vsub.f32 %v557, %v558
      %v560 = vand.u32 %v559, 4294901760
      %561 = vmatpush1.xpose.msra.mxu0 %v560
      %562 = vmatprep.subr.mxu0 0.0
      %v563 = vand.u32 %v324, 4294901760
      %v564 = vsub.f32 %v324, %v563
      %v565 = vand.u32 %v564, 4294901760
      %v566 = vsub.f32 %v564, %v565
      %v567 = vand.u32 %v566, 4294901760
      %568 = vmatpush1.xpose.msra.mxu0 %v567
      %569 = vmatprep.subr.mxu0 0.0
      %v570 = vand.u32 %v327, 4294901760
      %v571 = vsub.f32 %v327, %v570
      %v572 = vand.u32 %v571, 4294901760
      %v573 = vsub.f32 %v571, %v572
      %v574 = vand.u32 %v573, 4294901760
      %575 = vmatpush1.xpose.msra.mxu0 %v574
      %576 = vmatprep.subr.mxu0 0.0
      %v577 = vand.u32 %v330, 4294901760
      %v578 = vsub.f32 %v330, %v577
      %v579 = vand.u32 %v578, 4294901760
      %v580 = vsub.f32 %v578, %v579
      %v581 = vand.u32 %v580, 4294901760
      %582 = vmatpush1.xpose.msra.mxu0 %v581
      %583 = vmatprep.subr.mxu0 0.0
      %v584 = vand.u32 %v333, 4294901760
      %v585 = vsub.f32 %v333, %v584
      %v586 = vand.u32 %v585, 4294901760
      %v587 = vsub.f32 %v585, %v586
      %v588 = vand.u32 %v587, 4294901760
      %589 = vmatpush1.xpose.msra.mxu0 %v588
      %590 = vmatprep.subr.mxu0 0.0
      %v591 = vand.u32 %v336, 4294901760
      %v592 = vsub.f32 %v336, %v591
      %v593 = vand.u32 %v592, 4294901760
      %v594 = vsub.f32 %v592, %v593
      %v595 = vand.u32 %v594, 4294901760
      %596 = vmatpush1.xpose.msra.mxu0 %v595
      %597 = vmatprep.subr.mxu0 0.0
      %v598 = vand.u32 %v339, 4294901760
      %v599 = vsub.f32 %v339, %v598
      %v600 = vand.u32 %v599, 4294901760
      %v601 = vsub.f32 %v599, %v600
      %v602 = vand.u32 %v601, 4294901760
      %603 = vmatpush1.xpose.msra.mxu0 %v602
      %604 = vmatprep.subr.mxu0 0.0
      %v605 = vand.u32 %v342, 4294901760
      %v606 = vsub.f32 %v342, %v605
      %v607 = vand.u32 %v606, 4294901760
      %v608 = vsub.f32 %v606, %v607
      %v609 = vand.u32 %v608, 4294901760
      %610 = vmatpush1.xpose.msra.mxu0 %v609
      %611 = vmatprep.subr.mxu0 0.0
      %v612 = vand.u32 %v345, 4294901760
      %v613 = vsub.f32 %v345, %v612
      %v614 = vand.u32 %v613, 4294901760
      %v615 = vsub.f32 %v613, %v614
      %v616 = vand.u32 %v615, 4294901760
      %617 = vmatpush1.xpose.msra.mxu0 %v616
      %618 = vmatprep.subr.mxu0 0.0
      %v619 = vand.u32 %v348, 4294901760
      %v620 = vsub.f32 %v348, %v619
      %v621 = vand.u32 %v620, 4294901760
      %v622 = vsub.f32 %v620, %v621
      %v623 = vand.u32 %v622, 4294901760
      %624 = vmatpush1.xpose.msra.mxu0 %v623
      %625 = vmatprep.subr.mxu0 0.0
      %v626 = vand.u32 %v351, 4294901760
      %v627 = vsub.f32 %v351, %v626
      %v628 = vand.u32 %v627, 4294901760
      %v629 = vsub.f32 %v627, %v628
      %v630 = vand.u32 %v629, 4294901760
      %631 = vmatpush1.xpose.msra.mxu0 %v630
      %632 = vmatprep.subr.mxu0 0.0
      %v633 = vand.u32 %v354, 4294901760
      %v634 = vsub.f32 %v354, %v633
      %v635 = vand.u32 %v634, 4294901760
      %v636 = vsub.f32 %v634, %v635
      %v637 = vand.u32 %v636, 4294901760
      %638 = vmatpush1.xpose.msra.mxu0 %v637
      %639 = vmatprep.subr.mxu0 0.0
      %v640 = vand.u32 %v357, 4294901760
      %v641 = vsub.f32 %v357, %v640
      %v642 = vand.u32 %v641, 4294901760
      %v643 = vsub.f32 %v641, %v642
      %v644 = vand.u32 %v643, 4294901760
      %645 = vmatpush1.xpose.msra.mxu0 %v644
      %646 = vmatprep.subr.mxu0 0.0
      %v647 = vand.u32 %v360, 4294901760
      %v648 = vsub.f32 %v360, %v647
      %v649 = vand.u32 %v648, 4294901760
      %v650 = vsub.f32 %v648, %v649
      %v651 = vand.u32 %v650, 4294901760
      %652 = vmatpush1.xpose.msra.mxu0 %v651
      %653 = vmatprep.subr.mxu0 0.0
      %v654 = vand.u32 %v363, 4294901760
      %v655 = vsub.f32 %v363, %v654
      %v656 = vand.u32 %v655, 4294901760
      %v657 = vsub.f32 %v655, %v656
      %v658 = vand.u32 %v657, 4294901760
      %659 = vmatpush1.xpose.msra.mxu0 %v658
      %660 = vmatprep.subr.mxu0 0.0
      %v661 = vand.u32 %v366, 4294901760
      %v662 = vsub.f32 %v366, %v661
      %v663 = vand.u32 %v662, 4294901760
      %v664 = vsub.f32 %v662, %v663
      %v665 = vand.u32 %v664, 4294901760
      %666 = vmatpush1.xpose.msra.mxu0 %v665
      %667 = vmatprep.subr.mxu0 0.0
      %v668 = vand.u32 %v369, 4294901760
      %v669 = vsub.f32 %v369, %v668
      %v670 = vand.u32 %v669, 4294901760
      %v671 = vsub.f32 %v669, %v670
      %v672 = vand.u32 %v671, 4294901760
      %673 = vmatpush1.xpose.msra.mxu0 %v672
      %674 = vmatprep.subr.mxu0 0.0
      %v675 = vand.u32 %v372, 4294901760
      %v676 = vsub.f32 %v372, %v675
      %v677 = vand.u32 %v676, 4294901760
      %v678 = vsub.f32 %v676, %v677
      %v679 = vand.u32 %v678, 4294901760
      %680 = vmatpush1.xpose.msra.mxu0 %v679
      %681 = vmatprep.subr.mxu0 0.0
      %v682 = vand.u32 %v375, 4294901760
      %v683 = vsub.f32 %v375, %v682
      %v684 = vand.u32 %v683, 4294901760
      %v685 = vsub.f32 %v683, %v684
      %v686 = vand.u32 %v685, 4294901760
      %687 = vmatpush1.xpose.msra.mxu0 %v686
      %688 = vmatprep.subr.mxu0 0.0
      %v689 = vand.u32 %v378, 4294901760
      %v690 = vsub.f32 %v378, %v689
      %v691 = vand.u32 %v690, 4294901760
      %v692 = vsub.f32 %v690, %v691
      %v693 = vand.u32 %v692, 4294901760
      %694 = vmatpush1.xpose.msra.mxu0 %v693
      %695 = vmatprep.subr.mxu0 0.0
      %v696 = vand.u32 %v381, 4294901760
      %v697 = vsub.f32 %v381, %v696
      %v698 = vand.u32 %v697, 4294901760
      %v699 = vsub.f32 %v697, %v698
      %v700 = vand.u32 %v699, 4294901760
      %701 = vmatpush1.xpose.msra.mxu0 %v700
      %702 = vmatprep.subr.mxu0 0.0
      %v703 = vand.u32 %v384, 4294901760
      %v704 = vsub.f32 %v384, %v703
      %v705 = vand.u32 %v704, 4294901760
      %v706 = vsub.f32 %v704, %v705
      %v707 = vand.u32 %v706, 4294901760
      %708 = vmatpush1.xpose.msra.mxu0 %v707
      %709 = vmatprep.subr.mxu0 0.0
      %v710 = vand.u32 %v387, 4294901760
      %v711 = vsub.f32 %v387, %v710
      %v712 = vand.u32 %v711, 4294901760
      %v713 = vsub.f32 %v711, %v712
      %v714 = vand.u32 %v713, 4294901760
      %715 = vmatpush1.xpose.msra.mxu0 %v714
      %716 = vmatprep.subr.mxu0 0.0
      %v717 = vand.u32 %v390, 4294901760
      %v718 = vsub.f32 %v390, %v717
      %v719 = vand.u32 %v718, 4294901760
      %v720 = vsub.f32 %v718, %v719
      %v721 = vand.u32 %v720, 4294901760
      %722 = vmatpush1.xpose.msra.mxu0 %v721
      %723 = vmatprep.subr.mxu0 0.0
      %v724 = vand.u32 %v393, 4294901760
      %v725 = vsub.f32 %v393, %v724
      %v726 = vand.u32 %v725, 4294901760
      %v727 = vsub.f32 %v725, %v726
      %v728 = vand.u32 %v727, 4294901760
      %729 = vmatpush1.xpose.msra.mxu0 %v728
      %730 = vmatprep.subr.mxu0 0.0
      %v731 = vand.u32 %v396, 4294901760
      %v732 = vsub.f32 %v396, %v731
      %v733 = vand.u32 %v732, 4294901760
      %v734 = vsub.f32 %v732, %v733
      %v735 = vand.u32 %v734, 4294901760
      %736 = vmatpush1.xpose.msra.mxu0 %v735
      %737 = vmatprep.subr.mxu0 0.0
      %v738 = vand.u32 %v399, 4294901760
      %v739 = vsub.f32 %v399, %v738
      %v740 = vand.u32 %v739, 4294901760
      %v741 = vsub.f32 %v739, %v740
      %v742 = vand.u32 %v741, 4294901760
      %743 = vmatpush1.xpose.msra.mxu0 %v742
      %744 = vmatprep.mubr.f32.mxu0 0.0
      %v745 = vand.u32 %v300, 4294901760
      %746 = vmatmul.mubr.f32.gmra.mrb[0].mxu0 %v745
      %v747 = vpop.f32.mrb[0].mxu0
      %v748 = vadd.f32 %v505, %v747
      %v749 = vpop.f32.mrb[0].mxu0
      %v750 = vadd.f32 %v507, %v749
      %751 = vmatprep.mubr.f32.mxu0 0.0
      %v752 = vand.u32 %v303, 4294901760
      %753 = vmatmul.mubr.f32.gmra.mrb[0].mxu0 %v752
      %v754 = vpop.f32.mrb[0].mxu0
      %v755 = vadd.f32 %v516, %v754
      %v756 = vpop.f32.mrb[0].mxu0
      %v757 = vadd.f32 %v518, %v756
      %758 = vdwg.mxu0
      %759 = vmatprep.subr.mxu0 0.0
      %v760 = vand.u32 %v306, 4294901760
      %v761 = vsub.f32 %v306, %v760
      %762 = vmatpush1.xpose.msra.mxu0 %v761
      %763 = vmatprep.subr.mxu0 0.0
      %v764 = vand.u32 %v309, 4294901760
      %v765 = vsub.f32 %v309, %v764
      %766 = vmatpush1.xpose.msra.mxu0 %v765
      %767 = vmatprep.subr.mxu0 0.0
      %v768 = vand.u32 %v312, 4294901760
      %v769 = vsub.f32 %v312, %v768
      %770 = vmatpush1.xpose.msra.mxu0 %v769
      %771 = vmatprep.subr.mxu0 0.0
      %v772 = vand.u32 %v315, 4294901760
      %v773 = vsub.f32 %v315, %v772
      %774 = vmatpush1.xpose.msra.mxu0 %v773
      %775 = vmatprep.subr.mxu0 0.0
      %v776 = vand.u32 %v318, 4294901760
      %v777 = vsub.f32 %v318, %v776
      %778 = vmatpush1.xpose.msra.mxu0 %v777
      %779 = vmatprep.subr.mxu0 0.0
      %v780 = vand.u32 %v321, 4294901760
      %v781 = vsub.f32 %v321, %v780
      %782 = vmatpush1.xpose.msra.mxu0 %v781
      %783 = vmatprep.subr.mxu0 0.0
      %v784 = vand.u32 %v324, 4294901760
      %v785 = vsub.f32 %v324, %v784
      %786 = vmatpush1.xpose.msra.mxu0 %v785
      %787 = vmatprep.subr.mxu0 0.0
      %v788 = vand.u32 %v327, 4294901760
      %v789 = vsub.f32 %v327, %v788
      %790 = vmatpush1.xpose.msra.mxu0 %v789
      %791 = vmatprep.subr.mxu0 0.0
      %v792 = vand.u32 %v330, 4294901760
      %v793 = vsub.f32 %v330, %v792
      %794 = vmatpush1.xpose.msra.mxu0 %v793
      %795 = vmatprep.subr.mxu0 0.0
      %v796 = vand.u32 %v333, 4294901760
      %v797 = vsub.f32 %v333, %v796
      %798 = vmatpush1.xpose.msra.mxu0 %v797
      %799 = vmatprep.subr.mxu0 0.0
      %v800 = vand.u32 %v336, 4294901760
      %v801 = vsub.f32 %v336, %v800
      %802 = vmatpush1.xpose.msra.mxu0 %v801
      %803 = vmatprep.subr.mxu0 0.0
      %v804 = vand.u32 %v339, 4294901760
      %v805 = vsub.f32 %v339, %v804
      %806 = vmatpush1.xpose.msra.mxu0 %v805
      %807 = vmatprep.subr.mxu0 0.0
      %v808 = vand.u32 %v342, 4294901760
      %v809 = vsub.f32 %v342, %v808
      %810 = vmatpush1.xpose.msra.mxu0 %v809
      %811 = vmatprep.subr.mxu0 0.0
      %v812 = vand.u32 %v345, 4294901760
      %v813 = vsub.f32 %v345, %v812
      %814 = vmatpush1.xpose.msra.mxu0 %v813
      %815 = vmatprep.subr.mxu0 0.0
      %v816 = vand.u32 %v348, 4294901760
      %v817 = vsub.f32 %v348, %v816
      %818 = vmatpush1.xpose.msra.mxu0 %v817
      %819 = vmatprep.subr.mxu0 0.0
      %v820 = vand.u32 %v351, 4294901760
      %v821 = vsub.f32 %v351, %v820
      %822 = vmatpush1.xpose.msra.mxu0 %v821
      %823 = vmatprep.subr.mxu0 0.0
      %v824 = vand.u32 %v354, 4294901760
      %v825 = vsub.f32 %v354, %v824
      %826 = vmatpush1.xpose.msra.mxu0 %v825
      %827 = vmatprep.subr.mxu0 0.0
      %v828 = vand.u32 %v357, 4294901760
      %v829 = vsub.f32 %v357, %v828
      %830 = vmatpush1.xpose.msra.mxu0 %v829
      %831 = vmatprep.subr.mxu0 0.0
      %v832 = vand.u32 %v360, 4294901760
      %v833 = vsub.f32 %v360, %v832
      %834 = vmatpush1.xpose.msra.mxu0 %v833
      %835 = vmatprep.subr.mxu0 0.0
      %v836 = vand.u32 %v363, 4294901760
      %v837 = vsub.f32 %v363, %v836
      %838 = vmatpush1.xpose.msra.mxu0 %v837
      %839 = vmatprep.subr.mxu0 0.0
      %v840 = vand.u32 %v366, 4294901760
      %v841 = vsub.f32 %v366, %v840
      %842 = vmatpush1.xpose.msra.mxu0 %v841
      %843 = vmatprep.subr.mxu0 0.0
      %v844 = vand.u32 %v369, 4294901760
      %v845 = vsub.f32 %v369, %v844
      %846 = vmatpush1.xpose.msra.mxu0 %v845
      %847 = vmatprep.subr.mxu0 0.0
      %v848 = vand.u32 %v372, 4294901760
      %v849 = vsub.f32 %v372, %v848
      %850 = vmatpush1.xpose.msra.mxu0 %v849
      %851 = vmatprep.subr.mxu0 0.0
      %v852 = vand.u32 %v375, 4294901760
      %v853 = vsub.f32 %v375, %v852
      %854 = vmatpush1.xpose.msra.mxu0 %v853
      %855 = vmatprep.subr.mxu0 0.0
      %v856 = vand.u32 %v378, 4294901760
      %v857 = vsub.f32 %v378, %v856
      %858 = vmatpush1.xpose.msra.mxu0 %v857
      %859 = vmatprep.subr.mxu0 0.0
      %v860 = vand.u32 %v381, 4294901760
      %v861 = vsub.f32 %v381, %v860
      %862 = vmatpush1.xpose.msra.mxu0 %v861
      %863 = vmatprep.subr.mxu0 0.0
      %v864 = vand.u32 %v384, 4294901760
      %v865 = vsub.f32 %v384, %v864
      %866 = vmatpush1.xpose.msra.mxu0 %v865
      %867 = vmatprep.subr.mxu0 0.0
      %v868 = vand.u32 %v387, 4294901760
      %v869 = vsub.f32 %v387, %v868
      %870 = vmatpush1.xpose.msra.mxu0 %v869
      %871 = vmatprep.subr.mxu0 0.0
      %v872 = vand.u32 %v390, 4294901760
      %v873 = vsub.f32 %v390, %v872
      %874 = vmatpush1.xpose.msra.mxu0 %v873
      %875 = vmatprep.subr.mxu0 0.0
      %v876 = vand.u32 %v393, 4294901760
      %v877 = vsub.f32 %v393, %v876
      %878 = vmatpush1.xpose.msra.mxu0 %v877
      %879 = vmatprep.subr.mxu0 0.0
      %v880 = vand.u32 %v396, 4294901760
      %v881 = vsub.f32 %v396, %v880
      %882 = vmatpush1.xpose.msra.mxu0 %v881
      %883 = vmatprep.subr.mxu0 0.0
      %v884 = vand.u32 %v399, 4294901760
      %v885 = vsub.f32 %v399, %v884
      %886 = vmatpush1.xpose.msra.mxu0 %v885
      %887 = vmatprep.mubr.f32.mxu0 0.0
      %v888 = vand.u32 %v300, 4294901760
      %v889 = vsub.f32 %v300, %v888
      %890 = vmatmul.mubr.f32.gmra.mrb[0].mxu0 %v889
      %v891 = vpop.f32.mrb[0].mxu0
      %v892 = vadd.f32 %v748, %v891
      %v893 = vpop.f32.mrb[0].mxu0
      %v894 = vadd.f32 %v750, %v893
      %895 = vmatprep.mubr.f32.mxu0 0.0
      %v896 = vand.u32 %v303, 4294901760
      %v897 = vsub.f32 %v303, %v896
      %898 = vmatmul.mubr.f32.gmra.mrb[0].mxu0 %v897
      %v899 = vpop.f32.mrb[0].mxu0
      %v900 = vadd.f32 %v755, %v899
      %v901 = vpop.f32.mrb[0].mxu0
      %v902 = vadd.f32 %v757, %v901
      %903 = vdwg.mxu0
      %904 = vmatprep.subr.mxu0 0.0
      %v905 = vand.u32 %v306, 4294901760
      %906 = vmatpush1.xpose.msra.mxu0 %v905
      %907 = vmatprep.subr.mxu0 0.0
      %v908 = vand.u32 %v309, 4294901760
      %909 = vmatpush1.xpose.msra.mxu0 %v908
      %910 = vmatprep.subr.mxu0 0.0
      %v911 = vand.u32 %v312, 4294901760
      %912 = vmatpush1.xpose.msra.mxu0 %v911
      %913 = vmatprep.subr.mxu0 0.0
      %v914 = vand.u32 %v315, 4294901760
      %915 = vmatpush1.xpose.msra.mxu0 %v914
      %916 = vmatprep.subr.mxu0 0.0
      %v917 = vand.u32 %v318, 4294901760
      %918 = vmatpush1.xpose.msra.mxu0 %v917
      %919 = vmatprep.subr.mxu0 0.0
      %v920 = vand.u32 %v321, 4294901760
      %921 = vmatpush1.xpose.msra.mxu0 %v920
      %922 = vmatprep.subr.mxu0 0.0
      %v923 = vand.u32 %v324, 4294901760
      %924 = vmatpush1.xpose.msra.mxu0 %v923
      %925 = vmatprep.subr.mxu0 0.0
      %v926 = vand.u32 %v327, 4294901760
      %927 = vmatpush1.xpose.msra.mxu0 %v926
      %928 = vmatprep.subr.mxu0 0.0
      %v929 = vand.u32 %v330, 4294901760
      %930 = vmatpush1.xpose.msra.mxu0 %v929
      %931 = vmatprep.subr.mxu0 0.0
      %v932 = vand.u32 %v333, 4294901760
      %933 = vmatpush1.xpose.msra.mxu0 %v932
      %934 = vmatprep.subr.mxu0 0.0
      %v935 = vand.u32 %v336, 4294901760
      %936 = vmatpush1.xpose.msra.mxu0 %v935
      %937 = vmatprep.subr.mxu0 0.0
      %v938 = vand.u32 %v339, 4294901760
      %939 = vmatpush1.xpose.msra.mxu0 %v938
      %940 = vmatprep.subr.mxu0 0.0
      %v941 = vand.u32 %v342, 4294901760
      %942 = vmatpush1.xpose.msra.mxu0 %v941
      %943 = vmatprep.subr.mxu0 0.0
      %v944 = vand.u32 %v345, 4294901760
      %945 = vmatpush1.xpose.msra.mxu0 %v944
      %946 = vmatprep.subr.mxu0 0.0
      %v947 = vand.u32 %v348, 4294901760
      %948 = vmatpush1.xpose.msra.mxu0 %v947
      %949 = vmatprep.subr.mxu0 0.0
      %v950 = vand.u32 %v351, 4294901760
      %951 = vmatpush1.xpose.msra.mxu0 %v950
      %952 = vmatprep.subr.mxu0 0.0
      %v953 = vand.u32 %v354, 4294901760
      %954 = vmatpush1.xpose.msra.mxu0 %v953
      %955 = vmatprep.subr.mxu0 0.0
      %v956 = vand.u32 %v357, 4294901760
      %957 = vmatpush1.xpose.msra.mxu0 %v956
      %958 = vmatprep.subr.mxu0 0.0
      %v959 = vand.u32 %v360, 4294901760
      %960 = vmatpush1.xpose.msra.mxu0 %v959
      %961 = vmatprep.subr.mxu0 0.0
      %v962 = vand.u32 %v363, 4294901760
      %963 = vmatpush1.xpose.msra.mxu0 %v962
      %964 = vmatprep.subr.mxu0 0.0
      %v965 = vand.u32 %v366, 4294901760
      %966 = vmatpush1.xpose.msra.mxu0 %v965
      %967 = vmatprep.subr.mxu0 0.0
      %v968 = vand.u32 %v369, 4294901760
      %969 = vmatpush1.xpose.msra.mxu0 %v968
      %970 = vmatprep.subr.mxu0 0.0
      %v971 = vand.u32 %v372, 4294901760
      %972 = vmatpush1.xpose.msra.mxu0 %v971
      %973 = vmatprep.subr.mxu0 0.0
      %v974 = vand.u32 %v375, 4294901760
      %975 = vmatpush1.xpose.msra.mxu0 %v974
      %976 = vmatprep.subr.mxu0 0.0
      %v977 = vand.u32 %v378, 4294901760
      %978 = vmatpush1.xpose.msra.mxu0 %v977
      %979 = vmatprep.subr.mxu0 0.0
      %v980 = vand.u32 %v381, 4294901760
      %981 = vmatpush1.xpose.msra.mxu0 %v980
      %982 = vmatprep.subr.mxu0 0.0
      %v983 = vand.u32 %v384, 4294901760
      %984 = vmatpush1.xpose.msra.mxu0 %v983
      %985 = vmatprep.subr.mxu0 0.0
      %v986 = vand.u32 %v387, 4294901760
      %987 = vmatpush1.xpose.msra.mxu0 %v986
      %988 = vmatprep.subr.mxu0 0.0
      %v989 = vand.u32 %v390, 4294901760
      %990 = vmatpush1.xpose.msra.mxu0 %v989
      %991 = vmatprep.subr.mxu0 0.0
      %v992 = vand.u32 %v393, 4294901760
      %993 = vmatpush1.xpose.msra.mxu0 %v992
      %994 = vmatprep.subr.mxu0 0.0
      %v995 = vand.u32 %v396, 4294901760
      %996 = vmatpush1.xpose.msra.mxu0 %v995
      %997 = vmatprep.subr.mxu0 0.0
      %v998 = vand.u32 %v399, 4294901760
      %999 = vmatpush1.xpose.msra.mxu0 %v998
      %1000 = vmatprep.mubr.f32.mxu0 0.0
      %v1001 = vand.u32 %v300, 4294901760
      %v1002 = vsub.f32 %v300, %v1001
      %v1003 = vand.u32 %v1002, 4294901760
      %1004 = vmatmul.mubr.f32.gmra.mrb[0].mxu0 %v1003
      %v1005 = vpop.f32.mrb[0].mxu0
      %v1006 = vadd.f32 %v892, %v1005
      %v1007 = vpop.f32.mrb[0].mxu0
      %v1008 = vadd.f32 %v894, %v1007
      %1009 = vmatprep.mubr.f32.mxu0 0.0
      %v1010 = vand.u32 %v303, 4294901760
      %v1011 = vsub.f32 %v303, %v1010
      %v1012 = vand.u32 %v1011, 4294901760
      %1013 = vmatmul.mubr.f32.gmra.mrb[0].mxu0 %v1012
      %v1014 = vpop.f32.mrb[0].mxu0
      %v1015 = vadd.f32 %v900, %v1014
      %v1016 = vpop.f32.mrb[0].mxu0
      %v1017 = vadd.f32 %v902, %v1016
      %1018 = vdwg.mxu0
      %1019 = vmatprep.subr.mxu0 0.0
      %v1020 = vand.u32 %v306, 4294901760
      %v1021 = vsub.f32 %v306, %v1020
      %v1022 = vand.u32 %v1021, 4294901760
      %1023 = vmatpush1.xpose.msra.mxu0 %v1022
      %1024 = vmatprep.subr.mxu0 0.0
      %v1025 = vand.u32 %v309, 4294901760
      %v1026 = vsub.f32 %v309, %v1025
      %v1027 = vand.u32 %v1026, 4294901760
      %1028 = vmatpush1.xpose.msra.mxu0 %v1027
      %1029 = vmatprep.subr.mxu0 0.0
      %v1030 = vand.u32 %v312, 4294901760
      %v1031 = vsub.f32 %v312, %v1030
      %v1032 = vand.u32 %v1031, 4294901760
      %1033 = vmatpush1.xpose.msra.mxu0 %v1032
      %1034 = vmatprep.subr.mxu0 0.0
      %v1035 = vand.u32 %v315, 4294901760
      %v1036 = vsub.f32 %v315, %v1035
      %v1037 = vand.u32 %v1036, 4294901760
      %1038 = vmatpush1.xpose.msra.mxu0 %v1037
      %1039 = vmatprep.subr.mxu0 0.0
      %v1040 = vand.u32 %v318, 4294901760
      %v1041 = vsub.f32 %v318, %v1040
      %v1042 = vand.u32 %v1041, 4294901760
      %1043 = vmatpush1.xpose.msra.mxu0 %v1042
      %1044 = vmatprep.subr.mxu0 0.0
      %v1045 = vand.u32 %v321, 4294901760
      %v1046 = vsub.f32 %v321, %v1045
      %v1047 = vand.u32 %v1046, 4294901760
      %1048 = vmatpush1.xpose.msra.mxu0 %v1047
      %1049 = vmatprep.subr.mxu0 0.0
      %v1050 = vand.u32 %v324, 4294901760
      %v1051 = vsub.f32 %v324, %v1050
      %v1052 = vand.u32 %v1051, 4294901760
      %1053 = vmatpush1.xpose.msra.mxu0 %v1052
      %1054 = vmatprep.subr.mxu0 0.0
      %v1055 = vand.u32 %v327, 4294901760
      %v1056 = vsub.f32 %v327, %v1055
      %v1057 = vand.u32 %v1056, 4294901760
      %1058 = vmatpush1.xpose.msra.mxu0 %v1057
      %1059 = vmatprep.subr.mxu0 0.0
      %v1060 = vand.u32 %v330, 4294901760
      %v1061 = vsub.f32 %v330, %v1060
      %v1062 = vand.u32 %v1061, 4294901760
      %1063 = vmatpush1.xpose.msra.mxu0 %v1062
      %1064 = vmatprep.subr.mxu0 0.0
      %v1065 = vand.u32 %v333, 4294901760
      %v1066 = vsub.f32 %v333, %v1065
      %v1067 = vand.u32 %v1066, 4294901760
      %1068 = vmatpush1.xpose.msra.mxu0 %v1067
      %1069 = vmatprep.subr.mxu0 0.0
      %v1070 = vand.u32 %v336, 4294901760
      %v1071 = vsub.f32 %v336, %v1070
      %v1072 = vand.u32 %v1071, 4294901760
      %1073 = vmatpush1.xpose.msra.mxu0 %v1072
      %1074 = vmatprep.subr.mxu0 0.0
      %v1075 = vand.u32 %v339, 4294901760
      %v1076 = vsub.f32 %v339, %v1075
      %v1077 = vand.u32 %v1076, 4294901760
      %1078 = vmatpush1.xpose.msra.mxu0 %v1077
      %1079 = vmatprep.subr.mxu0 0.0
      %v1080 = vand.u32 %v342, 4294901760
      %v1081 = vsub.f32 %v342, %v1080
      %v1082 = vand.u32 %v1081, 4294901760
      %1083 = vmatpush1.xpose.msra.mxu0 %v1082
      %1084 = vmatprep.subr.mxu0 0.0
      %v1085 = vand.u32 %v345, 4294901760
      %v1086 = vsub.f32 %v345, %v1085
      %v1087 = vand.u32 %v1086, 4294901760
      %1088 = vmatpush1.xpose.msra.mxu0 %v1087
      %1089 = vmatprep.subr.mxu0 0.0
      %v1090 = vand.u32 %v348, 4294901760
      %v1091 = vsub.f32 %v348, %v1090
      %v1092 = vand.u32 %v1091, 4294901760
      %1093 = vmatpush1.xpose.msra.mxu0 %v1092
      %1094 = vmatprep.subr.mxu0 0.0
      %v1095 = vand.u32 %v351, 4294901760
      %v1096 = vsub.f32 %v351, %v1095
      %v1097 = vand.u32 %v1096, 4294901760
      %1098 = vmatpush1.xpose.msra.mxu0 %v1097
      %1099 = vmatprep.subr.mxu0 0.0
      %v1100 = vand.u32 %v354, 4294901760
      %v1101 = vsub.f32 %v354, %v1100
      %v1102 = vand.u32 %v1101, 4294901760
      %1103 = vmatpush1.xpose.msra.mxu0 %v1102
      %1104 = vmatprep.subr.mxu0 0.0
      %v1105 = vand.u32 %v357, 4294901760
      %v1106 = vsub.f32 %v357, %v1105
      %v1107 = vand.u32 %v1106, 4294901760
      %1108 = vmatpush1.xpose.msra.mxu0 %v1107
      %1109 = vmatprep.subr.mxu0 0.0
      %v1110 = vand.u32 %v360, 4294901760
      %v1111 = vsub.f32 %v360, %v1110
      %v1112 = vand.u32 %v1111, 4294901760
      %1113 = vmatpush1.xpose.msra.mxu0 %v1112
      %1114 = vmatprep.subr.mxu0 0.0
      %v1115 = vand.u32 %v363, 4294901760
      %v1116 = vsub.f32 %v363, %v1115
      %v1117 = vand.u32 %v1116, 4294901760
      %1118 = vmatpush1.xpose.msra.mxu0 %v1117
      %1119 = vmatprep.subr.mxu0 0.0
      %v1120 = vand.u32 %v366, 4294901760
      %v1121 = vsub.f32 %v366, %v1120
      %v1122 = vand.u32 %v1121, 4294901760
      %1123 = vmatpush1.xpose.msra.mxu0 %v1122
      %1124 = vmatprep.subr.mxu0 0.0
      %v1125 = vand.u32 %v369, 4294901760
      %v1126 = vsub.f32 %v369, %v1125
      %v1127 = vand.u32 %v1126, 4294901760
      %1128 = vmatpush1.xpose.msra.mxu0 %v1127
      %1129 = vmatprep.subr.mxu0 0.0
      %v1130 = vand.u32 %v372, 4294901760
      %v1131 = vsub.f32 %v372, %v1130
      %v1132 = vand.u32 %v1131, 4294901760
      %1133 = vmatpush1.xpose.msra.mxu0 %v1132
      %1134 = vmatprep.subr.mxu0 0.0
      %v1135 = vand.u32 %v375, 4294901760
      %v1136 = vsub.f32 %v375, %v1135
      %v1137 = vand.u32 %v1136, 4294901760
      %1138 = vmatpush1.xpose.msra.mxu0 %v1137
      %1139 = vmatprep.subr.mxu0 0.0
      %v1140 = vand.u32 %v378, 4294901760
      %v1141 = vsub.f32 %v378, %v1140
      %v1142 = vand.u32 %v1141, 4294901760
      %1143 = vmatpush1.xpose.msra.mxu0 %v1142
      %1144 = vmatprep.subr.mxu0 0.0
      %v1145 = vand.u32 %v381, 4294901760
      %v1146 = vsub.f32 %v381, %v1145
      %v1147 = vand.u32 %v1146, 4294901760
      %1148 = vmatpush1.xpose.msra.mxu0 %v1147
      %1149 = vmatprep.subr.mxu0 0.0
      %v1150 = vand.u32 %v384, 4294901760
      %v1151 = vsub.f32 %v384, %v1150
      %v1152 = vand.u32 %v1151, 4294901760
      %1153 = vmatpush1.xpose.msra.mxu0 %v1152
      %1154 = vmatprep.subr.mxu0 0.0
      %v1155 = vand.u32 %v387, 4294901760
      %v1156 = vsub.f32 %v387, %v1155
      %v1157 = vand.u32 %v1156, 4294901760
      %1158 = vmatpush1.xpose.msra.mxu0 %v1157
      %1159 = vmatprep.subr.mxu0 0.0
      %v1160 = vand.u32 %v390, 4294901760
      %v1161 = vsub.f32 %v390, %v1160
      %v1162 = vand.u32 %v1161, 4294901760
      %1163 = vmatpush1.xpose.msra.mxu0 %v1162
      %1164 = vmatprep.subr.mxu0 0.0
      %v1165 = vand.u32 %v393, 4294901760
      %v1166 = vsub.f32 %v393, %v1165
      %v1167 = vand.u32 %v1166, 4294901760
      %1168 = vmatpush1.xpose.msra.mxu0 %v1167
      %1169 = vmatprep.subr.mxu0 0.0
      %v1170 = vand.u32 %v396, 4294901760
      %v1171 = vsub.f32 %v396, %v1170
      %v1172 = vand.u32 %v1171, 4294901760
      %1173 = vmatpush1.xpose.msra.mxu0 %v1172
      %1174 = vmatprep.subr.mxu0 0.0
      %v1175 = vand.u32 %v399, 4294901760
      %v1176 = vsub.f32 %v399, %v1175
      %v1177 = vand.u32 %v1176, 4294901760
      %1178 = vmatpush1.xpose.msra.mxu0 %v1177
      %1179 = vmatprep.mubr.f32.mxu0 0.0
      %v1180 = vand.u32 %v300, 4294901760
      %1181 = vmatmul.mubr.f32.gmra.mrb[0].mxu0 %v1180
      %v1182 = vpop.f32.mrb[0].mxu0
      %v1183 = vadd.f32 %v1006, %v1182
      %v1184 = vpop.f32.mrb[0].mxu0
      %v1185 = vadd.f32 %v1008, %v1184
      %1186 = vmatprep.mubr.f32.mxu0 0.0
      %v1187 = vand.u32 %v303, 4294901760
      %1188 = vmatmul.mubr.f32.gmra.mrb[0].mxu0 %v1187
      %v1189 = vpop.f32.mrb[0].mxu0
      %v1190 = vadd.f32 %v1015, %v1189
      %v1191 = vpop.f32.mrb[0].mxu0
      %v1192 = vadd.f32 %v1017, %v1191
      %1193 = vdwg.mxu0
      %1194 = vmatprep.subr.mxu0 0.0
      %v1195 = vand.u32 %v306, 4294901760
      %1196 = vmatpush1.xpose.msra.mxu0 %v1195
      %1197 = vmatprep.subr.mxu0 0.0
      %v1198 = vand.u32 %v309, 4294901760
      %1199 = vmatpush1.xpose.msra.mxu0 %v1198
      %1200 = vmatprep.subr.mxu0 0.0
      %v1201 = vand.u32 %v312, 4294901760
      %1202 = vmatpush1.xpose.msra.mxu0 %v1201
      %1203 = vmatprep.subr.mxu0 0.0
      %v1204 = vand.u32 %v315, 4294901760
      %1205 = vmatpush1.xpose.msra.mxu0 %v1204
      %1206 = vmatprep.subr.mxu0 0.0
      %v1207 = vand.u32 %v318, 4294901760
      %1208 = vmatpush1.xpose.msra.mxu0 %v1207
      %1209 = vmatprep.subr.mxu0 0.0
      %v1210 = vand.u32 %v321, 4294901760
      %1211 = vmatpush1.xpose.msra.mxu0 %v1210
      %1212 = vmatprep.subr.mxu0 0.0
      %v1213 = vand.u32 %v324, 4294901760
      %1214 = vmatpush1.xpose.msra.mxu0 %v1213
      %1215 = vmatprep.subr.mxu0 0.0
      %v1216 = vand.u32 %v327, 4294901760
      %1217 = vmatpush1.xpose.msra.mxu0 %v1216
      %1218 = vmatprep.subr.mxu0 0.0
      %v1219 = vand.u32 %v330, 4294901760
      %1220 = vmatpush1.xpose.msra.mxu0 %v1219
      %1221 = vmatprep.subr.mxu0 0.0
      %v1222 = vand.u32 %v333, 4294901760
      %1223 = vmatpush1.xpose.msra.mxu0 %v1222
      %1224 = vmatprep.subr.mxu0 0.0
      %v1225 = vand.u32 %v336, 4294901760
      %1226 = vmatpush1.xpose.msra.mxu0 %v1225
      %1227 = vmatprep.subr.mxu0 0.0
      %v1228 = vand.u32 %v339, 4294901760
      %1229 = vmatpush1.xpose.msra.mxu0 %v1228
      %1230 = vmatprep.subr.mxu0 0.0
      %v1231 = vand.u32 %v342, 4294901760
      %1232 = vmatpush1.xpose.msra.mxu0 %v1231
      %1233 = vmatprep.subr.mxu0 0.0
      %v1234 = vand.u32 %v345, 4294901760
      %1235 = vmatpush1.xpose.msra.mxu0 %v1234
      %1236 = vmatprep.subr.mxu0 0.0
      %v1237 = vand.u32 %v348, 4294901760
      %1238 = vmatpush1.xpose.msra.mxu0 %v1237
      %1239 = vmatprep.subr.mxu0 0.0
      %v1240 = vand.u32 %v351, 4294901760
      %1241 = vmatpush1.xpose.msra.mxu0 %v1240
      %1242 = vmatprep.subr.mxu0 0.0
      %v1243 = vand.u32 %v354, 4294901760
      %1244 = vmatpush1.xpose.msra.mxu0 %v1243
      %1245 = vmatprep.subr.mxu0 0.0
      %v1246 = vand.u32 %v357, 4294901760
      %1247 = vmatpush1.xpose.msra.mxu0 %v1246
      %1248 = vmatprep.subr.mxu0 0.0
      %v1249 = vand.u32 %v360, 4294901760
      %1250 = vmatpush1.xpose.msra.mxu0 %v1249
      %1251 = vmatprep.subr.mxu0 0.0
      %v1252 = vand.u32 %v363, 4294901760
      %1253 = vmatpush1.xpose.msra.mxu0 %v1252
      %1254 = vmatprep.subr.mxu0 0.0
      %v1255 = vand.u32 %v366, 4294901760
      %1256 = vmatpush1.xpose.msra.mxu0 %v1255
      %1257 = vmatprep.subr.mxu0 0.0
      %v1258 = vand.u32 %v369, 4294901760
      %1259 = vmatpush1.xpose.msra.mxu0 %v1258
      %1260 = vmatprep.subr.mxu0 0.0
      %v1261 = vand.u32 %v372, 4294901760
      %1262 = vmatpush1.xpose.msra.mxu0 %v1261
      %1263 = vmatprep.subr.mxu0 0.0
      %v1264 = vand.u32 %v375, 4294901760
      %1265 = vmatpush1.xpose.msra.mxu0 %v1264
      %1266 = vmatprep.subr.mxu0 0.0
      %v1267 = vand.u32 %v378, 4294901760
      %1268 = vmatpush1.xpose.msra.mxu0 %v1267
      %1269 = vmatprep.subr.mxu0 0.0
      %v1270 = vand.u32 %v381, 4294901760
      %1271 = vmatpush1.xpose.msra.mxu0 %v1270
      %1272 = vmatprep.subr.mxu0 0.0
      %v1273 = vand.u32 %v384, 4294901760
      %1274 = vmatpush1.xpose.msra.mxu0 %v1273
      %1275 = vmatprep.subr.mxu0 0.0
      %v1276 = vand.u32 %v387, 4294901760
      %1277 = vmatpush1.xpose.msra.mxu0 %v1276
      %1278 = vmatprep.subr.mxu0 0.0
      %v1279 = vand.u32 %v390, 4294901760
      %1280 = vmatpush1.xpose.msra.mxu0 %v1279
      %1281 = vmatprep.subr.mxu0 0.0
      %v1282 = vand.u32 %v393, 4294901760
      %1283 = vmatpush1.xpose.msra.mxu0 %v1282
      %1284 = vmatprep.subr.mxu0 0.0
      %v1285 = vand.u32 %v396, 4294901760
      %1286 = vmatpush1.xpose.msra.mxu0 %v1285
      %1287 = vmatprep.subr.mxu0 0.0
      %v1288 = vand.u32 %v399, 4294901760
      %1289 = vmatpush1.xpose.msra.mxu0 %v1288
      %1290 = vmatprep.mubr.f32.mxu0 0.0
      %v1291 = vand.u32 %v300, 4294901760
      %1292 = vmatmul.mubr.f32.gmra.mrb[0].mxu0 %v1291
      %v1293 = vpop.f32.mrb[0].mxu0
      %v1294 = vadd.f32 %v1183, %v1293
      %v1295 = vpop.f32.mrb[0].mxu0
      %v1296 = vadd.f32 %v1185, %v1295
      %1297 = vmatprep.mubr.f32.mxu0 0.0
      %v1298 = vand.u32 %v303, 4294901760
      %1299 = vmatmul.mubr.f32.gmra.mrb[0].mxu0 %v1298
      %v1300 = vpop.f32.mrb[0].mxu0
      %v1301 = vadd.f32 %v1190, %v1300
      %v1302 = vpop.f32.mrb[0].mxu0
      %v1303 = vadd.f32 %v1192, %v1302
      %1304 = vdwg.mxu0
      %v1305 = vld [vmem:[%s0] sm:$0xff]
      %v1306 = vld [vmem:[%s0 + $0x8] sm:$0xff]
      %v1307 = vsub.f32 1.0, %v1305
      %v1308 = vsub.f32 1.0, %v1306
      %v1309 = vld [vmem:[%s1] sm:$0xff]
      %v1310 = vld [vmem:[%s1 + $0x8] sm:$0xff]
      %v1311 = vld [vmem:[%s1 + $0x10] sm:$0xff]
      %v1312 = vld [vmem:[%s1 + $0x18] sm:$0xff]
      %v1313 = vld [vmem:[%s2] sm:$0xff]
      %v1314 = vld [vmem:[%s2 + $0x8] sm:$0xff]
      %v1315 = vld [vmem:[%s2 + $0x10] sm:$0xff]
      %v1316 = vld [vmem:[%s2 + $0x18] sm:$0xff]
      %1318 = vset.pattern.permute.xlu0 0
      %1319 = vperm.xlu0 %1318, %v1313
      %v1320 = vpop.permute.xlu0 %1319
      %1323 = vset.pattern.permute.xlu0 0
      %1324 = vperm.xlu0 %1323, %v1314
      %v1325 = vpop.permute.xlu0 %1324
      %1328 = vset.pattern.permute.xlu0 0
      %1329 = vperm.xlu0 %1328, %v1315
      %v1330 = vpop.permute.xlu0 %1329
      %1333 = vset.pattern.permute.xlu0 0
      %1334 = vperm.xlu0 %1333, %v1316
      %v1335 = vpop.permute.xlu0 %1334
      %v1338 = vsel %vm298, %v1309, 0
      %v1341 = vsel %vm298, %v1310, 0
      %v1344 = vsel %vm298, %v1311, 0
      %v1347 = vsel %vm298, %v1312, 0
      %v1349 = vand.u32 %v1296, 4294901760
      %1350 = vmatprep.subr.mxu0 %v1349
      %v1351 = vand.u32 %v1294, 4294901760
      %1352 = vmatpush1.msra.mxu0 %v1351
      %v1353 = vand.u32 %v1303, 4294901760
      %1354 = vmatprep.subr.mxu0 %v1353
      %v1355 = vand.u32 %v1301, 4294901760
      %1356 = vmatpush1.msra.mxu0 %v1355
      %1357 = vmatprep.subr.mxu0 0.0
      %1358 = vmatpush1.msra.mxu0 0.0
      %1359 = vmatprep.subr.mxu0 0.0
      %1360 = vmatpush1.msra.mxu0 0.0
      %1361 = vmatprep.subr.mxu0 0.0
      %1362 = vmatpush1.msra.mxu0 0.0
      %1363 = vmatprep.subr.mxu0 0.0
      %1364 = vmatpush1.msra.mxu0 0.0
      %1365 = vmatprep.subr.mxu0 0.0
      %1366 = vmatpush1.msra.mxu0 0.0
      %1367 = vmatprep.subr.mxu0 0.0
      %1368 = vmatpush1.msra.mxu0 0.0
      %1369 = vmatprep.subr.mxu0 0.0
      %1370 = vmatpush1.msra.mxu0 0.0
      %1371 = vmatprep.subr.mxu0 0.0
      %1372 = vmatpush1.msra.mxu0 0.0
      %1373 = vmatprep.subr.mxu0 0.0
      %1374 = vmatpush1.msra.mxu0 0.0
      %1375 = vmatprep.subr.mxu0 0.0
      %1376 = vmatpush1.msra.mxu0 0.0
      %1377 = vmatprep.subr.mxu0 0.0
      %1378 = vmatpush1.msra.mxu0 0.0
      %1379 = vmatprep.subr.mxu0 0.0
      %1380 = vmatpush1.msra.mxu0 0.0
      %1381 = vmatprep.subr.mxu0 0.0
      %1382 = vmatpush1.msra.mxu0 0.0
      %1383 = vmatprep.subr.mxu0 0.0
      %1384 = vmatpush1.msra.mxu0 0.0
      %1385 = vmatprep.subr.mxu0 0.0
      %1386 = vmatpush1.msra.mxu0 0.0
      %1387 = vmatprep.subr.mxu0 0.0
      %1388 = vmatpush1.msra.mxu0 0.0
      %1389 = vmatprep.subr.mxu0 0.0
      %1390 = vmatpush1.msra.mxu0 0.0
      %1391 = vmatprep.subr.mxu0 0.0
      %1392 = vmatpush1.msra.mxu0 0.0
      %1393 = vmatprep.subr.mxu0 0.0
      %1394 = vmatpush1.msra.mxu0 0.0
      %1395 = vmatprep.subr.mxu0 0.0
      %1396 = vmatpush1.msra.mxu0 0.0
      %1397 = vmatprep.subr.mxu0 0.0
      %1398 = vmatpush1.msra.mxu0 0.0
      %1399 = vmatprep.subr.mxu0 0.0
      %1400 = vmatpush1.msra.mxu0 0.0
      %1401 = vmatprep.subr.mxu0 0.0
      %1402 = vmatpush1.msra.mxu0 0.0
      %1403 = vmatprep.subr.mxu0 0.0
      %1404 = vmatpush1.msra.mxu0 0.0
      %1405 = vmatprep.subr.mxu0 0.0
      %1406 = vmatpush1.msra.mxu0 0.0
      %1407 = vmatprep.subr.mxu0 0.0
      %1408 = vmatpush1.msra.mxu0 0.0
      %1409 = vmatprep.subr.mxu0 0.0
      %1410 = vmatpush1.msra.mxu0 0.0
      %1411 = vmatprep.subr.mxu0 0.0
      %1412 = vmatpush1.msra.mxu0 0.0
      %1413 = vmatprep.subr.mxu0 0.0
      %1414 = vmatpush1.msra.mxu0 0.0
      %1415 = vmatprep.subr.mxu0 0.0
      %1416 = vmatpush1.msra.mxu0 0.0
      %1417 = vmatprep.mubr.f32.mxu0 0.0
      %v1418 = vand.u32 %v1338, 4294901760
      %v1419 = vsub.f32 %v1338, %v1418
      %v1420 = vand.u32 %v1419, 4294901760
      %v1421 = vsub.f32 %v1419, %v1420
      %v1422 = vand.u32 %v1421, 4294901760
      %1423 = vmatmul.mubr.f32.gmra.mrb[0].mxu0 %v1422
      %v1424 = vpop.f32.mrb[0].mxu0
      %v1425 = vadd.f32 %v1320, %v1424
      %v1426 = vpop.f32.mrb[0].mxu0
      %v1427 = vadd.f32 %v1320, %v1426
      %1428 = vmatprep.mubr.f32.mxu0 0.0
      %v1429 = vand.u32 %v1341, 4294901760
      %v1430 = vsub.f32 %v1341, %v1429
      %v1431 = vand.u32 %v1430, 4294901760
      %v1432 = vsub.f32 %v1430, %v1431
      %v1433 = vand.u32 %v1432, 4294901760
      %1434 = vmatmul.mubr.f32.gmra.mrb[0].mxu0 %v1433
      %v1435 = vpop.f32.mrb[0].mxu0
      %v1436 = vadd.f32 %v1325, %v1435
      %v1437 = vpop.f32.mrb[0].mxu0
      %v1438 = vadd.f32 %v1325, %v1437
      %1439 = vmatprep.mubr.f32.mxu0 0.0
      %v1440 = vand.u32 %v1344, 4294901760
      %v1441 = vsub.f32 %v1344, %v1440
      %v1442 = vand.u32 %v1441, 4294901760
      %v1443 = vsub.f32 %v1441, %v1442
      %v1444 = vand.u32 %v1443, 4294901760
      %1445 = vmatmul.mubr.f32.gmra.mrb[0].mxu0 %v1444
      %v1446 = vpop.f32.mrb[0].mxu0
      %v1447 = vadd.f32 %v1330, %v1446
      %v1448 = vpop.f32.mrb[0].mxu0
      %v1449 = vadd.f32 %v1330, %v1448
      %1450 = vmatprep.mubr.f32.mxu0 0.0
      %v1451 = vand.u32 %v1347, 4294901760
      %v1452 = vsub.f32 %v1347, %v1451
      %v1453 = vand.u32 %v1452, 4294901760
      %v1454 = vsub.f32 %v1452, %v1453
      %v1455 = vand.u32 %v1454, 4294901760
      %1456 = vmatmul.mubr.f32.gmra.mrb[0].mxu0 %v1455
      %v1457 = vpop.f32.mrb[0].mxu0
      %v1458 = vadd.f32 %v1335, %v1457
      %v1459 = vpop.f32.mrb[0].mxu0
      %v1460 = vadd.f32 %v1335, %v1459
      %1461 = vdwg.mxu0
      %v1462 = vand.u32 %v1296, 4294901760
      %v1463 = vsub.f32 %v1296, %v1462
      %v1464 = vand.u32 %v1463, 4294901760
      %v1465 = vsub.f32 %v1463, %v1464
      %v1466 = vand.u32 %v1465, 4294901760
      %1467 = vmatprep.subr.mxu0 %v1466
      %v1468 = vand.u32 %v1294, 4294901760
      %v1469 = vsub.f32 %v1294, %v1468
      %v1470 = vand.u32 %v1469, 4294901760
      %v1471 = vsub.f32 %v1469, %v1470
      %v1472 = vand.u32 %v1471, 4294901760
      %1473 = vmatpush1.msra.mxu0 %v1472
      %v1474 = vand.u32 %v1303, 4294901760
      %v1475 = vsub.f32 %v1303, %v1474
      %v1476 = vand.u32 %v1475, 4294901760
      %v1477 = vsub.f32 %v1475, %v1476
      %v1478 = vand.u32 %v1477, 4294901760
      %1479 = vmatprep.subr.mxu0 %v1478
      %v1480 = vand.u32 %v1301, 4294901760
      %v1481 = vsub.f32 %v1301, %v1480
      %v1482 = vand.u32 %v1481, 4294901760
      %v1483 = vsub.f32 %v1481, %v1482
      %v1484 = vand.u32 %v1483, 4294901760
      %1485 = vmatpush1.msra.mxu0 %v1484
      %1486 = vmatprep.subr.mxu0 0.0
      %1487 = vmatpush1.msra.mxu0 0.0
      %1488 = vmatprep.subr.mxu0 0.0
      %1489 = vmatpush1.msra.mxu0 0.0
      %1490 = vmatprep.subr.mxu0 0.0
      %1491 = vmatpush1.msra.mxu0 0.0
      %1492 = vmatprep.subr.mxu0 0.0
      %1493 = vmatpush1.msra.mxu0 0.0
      %1494 = vmatprep.subr.mxu0 0.0
      %1495 = vmatpush1.msra.mxu0 0.0
      %1496 = vmatprep.subr.mxu0 0.0
      %1497 = vmatpush1.msra.mxu0 0.0
      %1498 = vmatprep.subr.mxu0 0.0
      %1499 = vmatpush1.msra.mxu0 0.0
      %1500 = vmatprep.subr.mxu0 0.0
      %1501 = vmatpush1.msra.mxu0 0.0
      %1502 = vmatprep.subr.mxu0 0.0
      %1503 = vmatpush1.msra.mxu0 0.0
      %1504 = vmatprep.subr.mxu0 0.0
      %1505 = vmatpush1.msra.mxu0 0.0
      %1506 = vmatprep.subr.mxu0 0.0
      %1507 = vmatpush1.msra.mxu0 0.0
      %1508 = vmatprep.subr.mxu0 0.0
      %1509 = vmatpush1.msra.mxu0 0.0
      %1510 = vmatprep.subr.mxu0 0.0
      %1511 = vmatpush1.msra.mxu0 0.0
      %1512 = vmatprep.subr.mxu0 0.0
      %1513 = vmatpush1.msra.mxu0 0.0
      %1514 = vmatprep.subr.mxu0 0.0
      %1515 = vmatpush1.msra.mxu0 0.0
      %1516 = vmatprep.subr.mxu0 0.0
      %1517 = vmatpush1.msra.mxu0 0.0
      %1518 = vmatprep.subr.mxu0 0.0
      %1519 = vmatpush1.msra.mxu0 0.0
      %1520 = vmatprep.subr.mxu0 0.0
      %1521 = vmatpush1.msra.mxu0 0.0
      %1522 = vmatprep.subr.mxu0 0.0
      %1523 = vmatpush1.msra.mxu0 0.0
      %1524 = vmatprep.subr.mxu0 0.0
      %1525 = vmatpush1.msra.mxu0 0.0
      %1526 = vmatprep.subr.mxu0 0.0
      %1527 = vmatpush1.msra.mxu0 0.0
      %1528 = vmatprep.subr.mxu0 0.0
      %1529 = vmatpush1.msra.mxu0 0.0
      %1530 = vmatprep.subr.mxu0 0.0
      %1531 = vmatpush1.msra.mxu0 0.0
      %1532 = vmatprep.subr.mxu0 0.0
      %1533 = vmatpush1.msra.mxu0 0.0
      %1534 = vmatprep.subr.mxu0 0.0
      %1535 = vmatpush1.msra.mxu0 0.0
      %1536 = vmatprep.subr.mxu0 0.0
      %1537 = vmatpush1.msra.mxu0 0.0
      %1538 = vmatprep.subr.mxu0 0.0
      %1539 = vmatpush1.msra.mxu0 0.0
      %1540 = vmatprep.subr.mxu0 0.0
      %1541 = vmatpush1.msra.mxu0 0.0
      %1542 = vmatprep.subr.mxu0 0.0
      %1543 = vmatpush1.msra.mxu0 0.0
      %1544 = vmatprep.subr.mxu0 0.0
      %1545 = vmatpush1.msra.mxu0 0.0
      %1546 = vmatprep.mubr.f32.mxu0 0.0
      %v1547 = vand.u32 %v1338, 4294901760
      %1548 = vmatmul.mubr.f32.gmra.mrb[0].mxu0 %v1547
      %v1549 = vpop.f32.mrb[0].mxu0
      %v1550 = vadd.f32 %v1425, %v1549
      %v1551 = vpop.f32.mrb[0].mxu0
      %v1552 = vadd.f32 %v1427, %v1551
      %1553 = vmatprep.mubr.f32.mxu0 0.0
      %v1554 = vand.u32 %v1341, 4294901760
      %1555 = vmatmul.mubr.f32.gmra.mrb[0].mxu0 %v1554
      %v1556 = vpop.f32.mrb[0].mxu0
      %v1557 = vadd.f32 %v1436, %v1556
      %v1558 = vpop.f32.mrb[0].mxu0
      %v1559 = vadd.f32 %v1438, %v1558
      %1560 = vmatprep.mubr.f32.mxu0 0.0
      %v1561 = vand.u32 %v1344, 4294901760
      %1562 = vmatmul.mubr.f32.gmra.mrb[0].mxu0 %v1561
      %v1563 = vpop.f32.mrb[0].mxu0
      %v1564 = vadd.f32 %v1447, %v1563
      %v1565 = vpop.f32.mrb[0].mxu0
      %v1566 = vadd.f32 %v1449, %v1565
      %1567 = vmatprep.mubr.f32.mxu0 0.0
      %v1568 = vand.u32 %v1347, 4294901760
      %1569 = vmatmul.mubr.f32.gmra.mrb[0].mxu0 %v1568
      %v1570 = vpop.f32.mrb[0].mxu0
      %v1571 = vadd.f32 %v1458, %v1570
      %v1572 = vpop.f32.mrb[0].mxu0
      %v1573 = vadd.f32 %v1460, %v1572
      %1574 = vdwg.mxu0
      %v1575 = vand.u32 %v1296, 4294901760
      %v1576 = vsub.f32 %v1296, %v1575
      %1577 = vmatprep.subr.mxu0 %v1576
      %v1578 = vand.u32 %v1294, 4294901760
      %v1579 = vsub.f32 %v1294, %v1578
      %1580 = vmatpush1.msra.mxu0 %v1579
      %v1581 = vand.u32 %v1303, 4294901760
      %v1582 = vsub.f32 %v1303, %v1581
      %1583 = vmatprep.subr.mxu0 %v1582
      %v1584 = vand.u32 %v1301, 4294901760
      %v1585 = vsub.f32 %v1301, %v1584
      %1586 = vmatpush1.msra.mxu0 %v1585
      %1587 = vmatprep.subr.mxu0 0.0
      %1588 = vmatpush1.msra.mxu0 0.0
      %1589 = vmatprep.subr.mxu0 0.0
      %1590 = vmatpush1.msra.mxu0 0.0
      %1591 = vmatprep.subr.mxu0 0.0
      %1592 = vmatpush1.msra.mxu0 0.0
      %1593 = vmatprep.subr.mxu0 0.0
      %1594 = vmatpush1.msra.mxu0 0.0
      %1595 = vmatprep.subr.mxu0 0.0
      %1596 = vmatpush1.msra.mxu0 0.0
      %1597 = vmatprep.subr.mxu0 0.0
      %1598 = vmatpush1.msra.mxu0 0.0
      %1599 = vmatprep.subr.mxu0 0.0
      %1600 = vmatpush1.msra.mxu0 0.0
      %1601 = vmatprep.subr.mxu0 0.0
      %1602 = vmatpush1.msra.mxu0 0.0
      %1603 = vmatprep.subr.mxu0 0.0
      %1604 = vmatpush1.msra.mxu0 0.0
      %1605 = vmatprep.subr.mxu0 0.0
      %1606 = vmatpush1.msra.mxu0 0.0
      %1607 = vmatprep.subr.mxu0 0.0
      %1608 = vmatpush1.msra.mxu0 0.0
      %1609 = vmatprep.subr.mxu0 0.0
      %1610 = vmatpush1.msra.mxu0 0.0
      %1611 = vmatprep.subr.mxu0 0.0
      %1612 = vmatpush1.msra.mxu0 0.0
      %1613 = vmatprep.subr.mxu0 0.0
      %1614 = vmatpush1.msra.mxu0 0.0
      %1615 = vmatprep.subr.mxu0 0.0
      %1616 = vmatpush1.msra.mxu0 0.0
      %1617 = vmatprep.subr.mxu0 0.0
      %1618 = vmatpush1.msra.mxu0 0.0
      %1619 = vmatprep.subr.mxu0 0.0
      %1620 = vmatpush1.msra.mxu0 0.0
      %1621 = vmatprep.subr.mxu0 0.0
      %1622 = vmatpush1.msra.mxu0 0.0
      %1623 = vmatprep.subr.mxu0 0.0
      %1624 = vmatpush1.msra.mxu0 0.0
      %1625 = vmatprep.subr.mxu0 0.0
      %1626 = vmatpush1.msra.mxu0 0.0
      %1627 = vmatprep.subr.mxu0 0.0
      %1628 = vmatpush1.msra.mxu0 0.0
      %1629 = vmatprep.subr.mxu0 0.0
      %1630 = vmatpush1.msra.mxu0 0.0
      %1631 = vmatprep.subr.mxu0 0.0
      %1632 = vmatpush1.msra.mxu0 0.0
      %1633 = vmatprep.subr.mxu0 0.0
      %1634 = vmatpush1.msra.mxu0 0.0
      %1635 = vmatprep.subr.mxu0 0.0
      %1636 = vmatpush1.msra.mxu0 0.0
      %1637 = vmatprep.subr.mxu0 0.0
      %1638 = vmatpush1.msra.mxu0 0.0
      %1639 = vmatprep.subr.mxu0 0.0
      %1640 = vmatpush1.msra.mxu0 0.0
      %1641 = vmatprep.subr.mxu0 0.0
      %1642 = vmatpush1.msra.mxu0 0.0
      %1643 = vmatprep.subr.mxu0 0.0
      %1644 = vmatpush1.msra.mxu0 0.0
      %1645 = vmatprep.subr.mxu0 0.0
      %1646 = vmatpush1.msra.mxu0 0.0
      %1647 = vmatprep.mubr.f32.mxu0 0.0
      %v1648 = vand.u32 %v1338, 4294901760
      %v1649 = vsub.f32 %v1338, %v1648
      %1650 = vmatmul.mubr.f32.gmra.mrb[0].mxu0 %v1649
      %v1651 = vpop.f32.mrb[0].mxu0
      %v1652 = vadd.f32 %v1550, %v1651
      %v1653 = vpop.f32.mrb[0].mxu0
      %v1654 = vadd.f32 %v1552, %v1653
      %1655 = vmatprep.mubr.f32.mxu0 0.0
      %v1656 = vand.u32 %v1341, 4294901760
      %v1657 = vsub.f32 %v1341, %v1656
      %1658 = vmatmul.mubr.f32.gmra.mrb[0].mxu0 %v1657
      %v1659 = vpop.f32.mrb[0].mxu0
      %v1660 = vadd.f32 %v1557, %v1659
      %v1661 = vpop.f32.mrb[0].mxu0
      %v1662 = vadd.f32 %v1559, %v1661
      %1663 = vmatprep.mubr.f32.mxu0 0.0
      %v1664 = vand.u32 %v1344, 4294901760
      %v1665 = vsub.f32 %v1344, %v1664
      %1666 = vmatmul.mubr.f32.gmra.mrb[0].mxu0 %v1665
      %v1667 = vpop.f32.mrb[0].mxu0
      %v1668 = vadd.f32 %v1564, %v1667
      %v1669 = vpop.f32.mrb[0].mxu0
      %v1670 = vadd.f32 %v1566, %v1669
      %1671 = vmatprep.mubr.f32.mxu0 0.0
      %v1672 = vand.u32 %v1347, 4294901760
      %v1673 = vsub.f32 %v1347, %v1672
      %1674 = vmatmul.mubr.f32.gmra.mrb[0].mxu0 %v1673
      %v1675 = vpop.f32.mrb[0].mxu0
      %v1676 = vadd.f32 %v1571, %v1675
      %v1677 = vpop.f32.mrb[0].mxu0
      %v1678 = vadd.f32 %v1573, %v1677
      %1679 = vdwg.mxu0
      %v1680 = vand.u32 %v1296, 4294901760
      %1681 = vmatprep.subr.mxu0 %v1680
      %v1682 = vand.u32 %v1294, 4294901760
      %1683 = vmatpush1.msra.mxu0 %v1682
      %v1684 = vand.u32 %v1303, 4294901760
      %1685 = vmatprep.subr.mxu0 %v1684
      %v1686 = vand.u32 %v1301, 4294901760
      %1687 = vmatpush1.msra.mxu0 %v1686
      %1688 = vmatprep.subr.mxu0 0.0
      %1689 = vmatpush1.msra.mxu0 0.0
      %1690 = vmatprep.subr.mxu0 0.0
      %1691 = vmatpush1.msra.mxu0 0.0
      %1692 = vmatprep.subr.mxu0 0.0
      %1693 = vmatpush1.msra.mxu0 0.0
      %1694 = vmatprep.subr.mxu0 0.0
      %1695 = vmatpush1.msra.mxu0 0.0
      %1696 = vmatprep.subr.mxu0 0.0
      %1697 = vmatpush1.msra.mxu0 0.0
      %1698 = vmatprep.subr.mxu0 0.0
      %1699 = vmatpush1.msra.mxu0 0.0
      %1700 = vmatprep.subr.mxu0 0.0
      %1701 = vmatpush1.msra.mxu0 0.0
      %1702 = vmatprep.subr.mxu0 0.0
      %1703 = vmatpush1.msra.mxu0 0.0
      %1704 = vmatprep.subr.mxu0 0.0
      %1705 = vmatpush1.msra.mxu0 0.0
      %1706 = vmatprep.subr.mxu0 0.0
      %1707 = vmatpush1.msra.mxu0 0.0
      %1708 = vmatprep.subr.mxu0 0.0
      %1709 = vmatpush1.msra.mxu0 0.0
      %1710 = vmatprep.subr.mxu0 0.0
      %1711 = vmatpush1.msra.mxu0 0.0
      %1712 = vmatprep.subr.mxu0 0.0
      %1713 = vmatpush1.msra.mxu0 0.0
      %1714 = vmatprep.subr.mxu0 0.0
      %1715 = vmatpush1.msra.mxu0 0.0
      %1716 = vmatprep.subr.mxu0 0.0
      %1717 = vmatpush1.msra.mxu0 0.0
      %1718 = vmatprep.subr.mxu0 0.0
      %1719 = vmatpush1.msra.mxu0 0.0
      %1720 = vmatprep.subr.mxu0 0.0
      %1721 = vmatpush1.msra.mxu0 0.0
      %1722 = vmatprep.subr.mxu0 0.0
      %1723 = vmatpush1.msra.mxu0 0.0
      %1724 = vmatprep.subr.mxu0 0.0
      %1725 = vmatpush1.msra.mxu0 0.0
      %1726 = vmatprep.subr.mxu0 0.0
      %1727 = vmatpush1.msra.mxu0 0.0
      %1728 = vmatprep.subr.mxu0 0.0
      %1729 = vmatpush1.msra.mxu0 0.0
      %1730 = vmatprep.subr.mxu0 0.0
      %1731 = vmatpush1.msra.mxu0 0.0
      %1732 = vmatprep.subr.mxu0 0.0
      %1733 = vmatpush1.msra.mxu0 0.0
      %1734 = vmatprep.subr.mxu0 0.0
      %1735 = vmatpush1.msra.mxu0 0.0
      %1736 = vmatprep.subr.mxu0 0.0
      %1737 = vmatpush1.msra.mxu0 0.0
      %1738 = vmatprep.subr.mxu0 0.0
      %1739 = vmatpush1.msra.mxu0 0.0
      %1740 = vmatprep.subr.mxu0 0.0
      %1741 = vmatpush1.msra.mxu0 0.0
      %1742 = vmatprep.subr.mxu0 0.0
      %1743 = vmatpush1.msra.mxu0 0.0
      %1744 = vmatprep.subr.mxu0 0.0
      %1745 = vmatpush1.msra.mxu0 0.0
      %1746 = vmatprep.subr.mxu0 0.0
      %1747 = vmatpush1.msra.mxu0 0.0
      %1748 = vmatprep.mubr.f32.mxu0 0.0
      %v1749 = vand.u32 %v1338, 4294901760
      %v1750 = vsub.f32 %v1338, %v1749
      %v1751 = vand.u32 %v1750, 4294901760
      %1752 = vmatmul.mubr.f32.gmra.mrb[0].mxu0 %v1751
      %v1753 = vpop.f32.mrb[0].mxu0
      %v1754 = vadd.f32 %v1652, %v1753
      %v1755 = vpop.f32.mrb[0].mxu0
      %v1756 = vadd.f32 %v1654, %v1755
      %1757 = vmatprep.mubr.f32.mxu0 0.0
      %v1758 = vand.u32 %v1341, 4294901760
      %v1759 = vsub.f32 %v1341, %v1758
      %v1760 = vand.u32 %v1759, 4294901760
      %1761 = vmatmul.mubr.f32.gmra.mrb[0].mxu0 %v1760
      %v1762 = vpop.f32.mrb[0].mxu0
      %v1763 = vadd.f32 %v1660, %v1762
      %v1764 = vpop.f32.mrb[0].mxu0
      %v1765 = vadd.f32 %v1662, %v1764
      %1766 = vmatprep.mubr.f32.mxu0 0.0
      %v1767 = vand.u32 %v1344, 4294901760
      %v1768 = vsub.f32 %v1344, %v1767
      %v1769 = vand.u32 %v1768, 4294901760
      %1770 = vmatmul.mubr.f32.gmra.mrb[0].mxu0 %v1769
      %v1771 = vpop.f32.mrb[0].mxu0
      %v1772 = vadd.f32 %v1668, %v1771
      %v1773 = vpop.f32.mrb[0].mxu0
      %v1774 = vadd.f32 %v1670, %v1773
      %1775 = vmatprep.mubr.f32.mxu0 0.0
      %v1776 = vand.u32 %v1347, 4294901760
      %v1777 = vsub.f32 %v1347, %v1776
      %v1778 = vand.u32 %v1777, 4294901760
      %1779 = vmatmul.mubr.f32.gmra.mrb[0].mxu0 %v1778
      %v1780 = vpop.f32.mrb[0].mxu0
      %v1781 = vadd.f32 %v1676, %v1780
      %v1782 = vpop.f32.mrb[0].mxu0
      %v1783 = vadd.f32 %v1678, %v1782
      %1784 = vdwg.mxu0
      %v1785 = vand.u32 %v1296, 4294901760
      %v1786 = vsub.f32 %v1296, %v1785
      %v1787 = vand.u32 %v1786, 4294901760
      %1788 = vmatprep.subr.mxu0 %v1787
      %v1789 = vand.u32 %v1294, 4294901760
      %v1790 = vsub.f32 %v1294, %v1789
      %v1791 = vand.u32 %v1790, 4294901760
      %1792 = vmatpush1.msra.mxu0 %v1791
      %v1793 = vand.u32 %v1303, 4294901760
      %v1794 = vsub.f32 %v1303, %v1793
      %v1795 = vand.u32 %v1794, 4294901760
      %1796 = vmatprep.subr.mxu0 %v1795
      %v1797 = vand.u32 %v1301, 4294901760
      %v1798 = vsub.f32 %v1301, %v1797
      %v1799 = vand.u32 %v1798, 4294901760
      %1800 = vmatpush1.msra.mxu0 %v1799
      %1801 = vmatprep.subr.mxu0 0.0
      %1802 = vmatpush1.msra.mxu0 0.0
      %1803 = vmatprep.subr.mxu0 0.0
      %1804 = vmatpush1.msra.mxu0 0.0
      %1805 = vmatprep.subr.mxu0 0.0
      %1806 = vmatpush1.msra.mxu0 0.0
      %1807 = vmatprep.subr.mxu0 0.0
      %1808 = vmatpush1.msra.mxu0 0.0
      %1809 = vmatprep.subr.mxu0 0.0
      %1810 = vmatpush1.msra.mxu0 0.0
      %1811 = vmatprep.subr.mxu0 0.0
      %1812 = vmatpush1.msra.mxu0 0.0
      %1813 = vmatprep.subr.mxu0 0.0
      %1814 = vmatpush1.msra.mxu0 0.0
      %1815 = vmatprep.subr.mxu0 0.0
      %1816 = vmatpush1.msra.mxu0 0.0
      %1817 = vmatprep.subr.mxu0 0.0
      %1818 = vmatpush1.msra.mxu0 0.0
      %1819 = vmatprep.subr.mxu0 0.0
      %1820 = vmatpush1.msra.mxu0 0.0
      %1821 = vmatprep.subr.mxu0 0.0
      %1822 = vmatpush1.msra.mxu0 0.0
      %1823 = vmatprep.subr.mxu0 0.0
      %1824 = vmatpush1.msra.mxu0 0.0
      %1825 = vmatprep.subr.mxu0 0.0
      %1826 = vmatpush1.msra.mxu0 0.0
      %1827 = vmatprep.subr.mxu0 0.0
      %1828 = vmatpush1.msra.mxu0 0.0
      %1829 = vmatprep.subr.mxu0 0.0
      %1830 = vmatpush1.msra.mxu0 0.0
      %1831 = vmatprep.subr.mxu0 0.0
      %1832 = vmatpush1.msra.mxu0 0.0
      %1833 = vmatprep.subr.mxu0 0.0
      %1834 = vmatpush1.msra.mxu0 0.0
      %1835 = vmatprep.subr.mxu0 0.0
      %1836 = vmatpush1.msra.mxu0 0.0
      %1837 = vmatprep.subr.mxu0 0.0
      %1838 = vmatpush1.msra.mxu0 0.0
      %1839 = vmatprep.subr.mxu0 0.0
      %1840 = vmatpush1.msra.mxu0 0.0
      %1841 = vmatprep.subr.mxu0 0.0
      %1842 = vmatpush1.msra.mxu0 0.0
      %1843 = vmatprep.subr.mxu0 0.0
      %1844 = vmatpush1.msra.mxu0 0.0
      %1845 = vmatprep.subr.mxu0 0.0
      %1846 = vmatpush1.msra.mxu0 0.0
      %1847 = vmatprep.subr.mxu0 0.0
      %1848 = vmatpush1.msra.mxu0 0.0
      %1849 = vmatprep.subr.mxu0 0.0
      %1850 = vmatpush1.msra.mxu0 0.0
      %1851 = vmatprep.subr.mxu0 0.0
      %1852 = vmatpush1.msra.mxu0 0.0
      %1853 = vmatprep.subr.mxu0 0.0
      %1854 = vmatpush1.msra.mxu0 0.0
      %1855 = vmatprep.subr.mxu0 0.0
      %1856 = vmatpush1.msra.mxu0 0.0
      %1857 = vmatprep.subr.mxu0 0.0
      %1858 = vmatpush1.msra.mxu0 0.0
      %1859 = vmatprep.subr.mxu0 0.0
      %1860 = vmatpush1.msra.mxu0 0.0
      %1861 = vmatprep.mubr.f32.mxu0 0.0
      %v1862 = vand.u32 %v1338, 4294901760
      %1863 = vmatmul.mubr.f32.gmra.mrb[0].mxu0 %v1862
      %v1864 = vpop.f32.mrb[0].mxu0
      %v1865 = vadd.f32 %v1754, %v1864
      %v1866 = vpop.f32.mrb[0].mxu0
      %v1867 = vadd.f32 %v1756, %v1866
      %1868 = vmatprep.mubr.f32.mxu0 0.0
      %v1869 = vand.u32 %v1341, 4294901760
      %1870 = vmatmul.mubr.f32.gmra.mrb[0].mxu0 %v1869
      %v1871 = vpop.f32.mrb[0].mxu0
      %v1872 = vadd.f32 %v1763, %v1871
      %v1873 = vpop.f32.mrb[0].mxu0
      %v1874 = vadd.f32 %v1765, %v1873
      %1875 = vmatprep.mubr.f32.mxu0 0.0
      %v1876 = vand.u32 %v1344, 4294901760
      %1877 = vmatmul.mubr.f32.gmra.mrb[0].mxu0 %v1876
      %v1878 = vpop.f32.mrb[0].mxu0
      %v1879 = vadd.f32 %v1772, %v1878
      %v1880 = vpop.f32.mrb[0].mxu0
      %v1881 = vadd.f32 %v1774, %v1880
      %1882 = vmatprep.mubr.f32.mxu0 0.0
      %v1883 = vand.u32 %v1347, 4294901760
      %1884 = vmatmul.mubr.f32.gmra.mrb[0].mxu0 %v1883
      %v1885 = vpop.f32.mrb[0].mxu0
      %v1886 = vadd.f32 %v1781, %v1885
      %v1887 = vpop.f32.mrb[0].mxu0
      %v1888 = vadd.f32 %v1783, %v1887
      %1889 = vdwg.mxu0
      %v1890 = vand.u32 %v1296, 4294901760
      %1891 = vmatprep.subr.mxu0 %v1890
      %v1892 = vand.u32 %v1294, 4294901760
      %1893 = vmatpush1.msra.mxu0 %v1892
      %v1894 = vand.u32 %v1303, 4294901760
      %1895 = vmatprep.subr.mxu0 %v1894
      %v1896 = vand.u32 %v1301, 4294901760
      %1897 = vmatpush1.msra.mxu0 %v1896
      %1898 = vmatprep.subr.mxu0 0.0
      %1899 = vmatpush1.msra.mxu0 0.0
      %1900 = vmatprep.subr.mxu0 0.0
      %1901 = vmatpush1.msra.mxu0 0.0
      %1902 = vmatprep.subr.mxu0 0.0
      %1903 = vmatpush1.msra.mxu0 0.0
      %1904 = vmatprep.subr.mxu0 0.0
      %1905 = vmatpush1.msra.mxu0 0.0
      %1906 = vmatprep.subr.mxu0 0.0
      %1907 = vmatpush1.msra.mxu0 0.0
      %1908 = vmatprep.subr.mxu0 0.0
      %1909 = vmatpush1.msra.mxu0 0.0
      %1910 = vmatprep.subr.mxu0 0.0
      %1911 = vmatpush1.msra.mxu0 0.0
      %1912 = vmatprep.subr.mxu0 0.0
      %1913 = vmatpush1.msra.mxu0 0.0
      %1914 = vmatprep.subr.mxu0 0.0
      %1915 = vmatpush1.msra.mxu0 0.0
      %1916 = vmatprep.subr.mxu0 0.0
      %1917 = vmatpush1.msra.mxu0 0.0
      %1918 = vmatprep.subr.mxu0 0.0
      %1919 = vmatpush1.msra.mxu0 0.0
      %1920 = vmatprep.subr.mxu0 0.0
      %1921 = vmatpush1.msra.mxu0 0.0
      %1922 = vmatprep.subr.mxu0 0.0
      %1923 = vmatpush1.msra.mxu0 0.0
      %1924 = vmatprep.subr.mxu0 0.0
      %1925 = vmatpush1.msra.mxu0 0.0
      %1926 = vmatprep.subr.mxu0 0.0
      %1927 = vmatpush1.msra.mxu0 0.0
      %1928 = vmatprep.subr.mxu0 0.0
      %1929 = vmatpush1.msra.mxu0 0.0
      %1930 = vmatprep.subr.mxu0 0.0
      %1931 = vmatpush1.msra.mxu0 0.0
      %1932 = vmatprep.subr.mxu0 0.0
      %1933 = vmatpush1.msra.mxu0 0.0
      %1934 = vmatprep.subr.mxu0 0.0
      %1935 = vmatpush1.msra.mxu0 0.0
      %1936 = vmatprep.subr.mxu0 0.0
      %1937 = vmatpush1.msra.mxu0 0.0
      %1938 = vmatprep.subr.mxu0 0.0
      %1939 = vmatpush1.msra.mxu0 0.0
      %1940 = vmatprep.subr.mxu0 0.0
      %1941 = vmatpush1.msra.mxu0 0.0
      %1942 = vmatprep.subr.mxu0 0.0
      %1943 = vmatpush1.msra.mxu0 0.0
      %1944 = vmatprep.subr.mxu0 0.0
      %1945 = vmatpush1.msra.mxu0 0.0
      %1946 = vmatprep.subr.mxu0 0.0
      %1947 = vmatpush1.msra.mxu0 0.0
      %1948 = vmatprep.subr.mxu0 0.0
      %1949 = vmatpush1.msra.mxu0 0.0
      %1950 = vmatprep.subr.mxu0 0.0
      %1951 = vmatpush1.msra.mxu0 0.0
      %1952 = vmatprep.subr.mxu0 0.0
      %1953 = vmatpush1.msra.mxu0 0.0
      %1954 = vmatprep.subr.mxu0 0.0
      %1955 = vmatpush1.msra.mxu0 0.0
      %1956 = vmatprep.subr.mxu0 0.0
      %1957 = vmatpush1.msra.mxu0 0.0
      %1958 = vmatprep.mubr.f32.mxu0 0.0
      %v1959 = vand.u32 %v1338, 4294901760
      %1960 = vmatmul.mubr.f32.gmra.mrb[0].mxu0 %v1959
      %v1961 = vpop.f32.mrb[0].mxu0
      %v1962 = vadd.f32 %v1865, %v1961
      %v1963 = vpop.f32.mrb[0].mxu0
      %v1964 = vadd.f32 %v1867, %v1963
      %1965 = vmatprep.mubr.f32.mxu0 0.0
      %v1966 = vand.u32 %v1341, 4294901760
      %1967 = vmatmul.mubr.f32.gmra.mrb[0].mxu0 %v1966
      %v1968 = vpop.f32.mrb[0].mxu0
      %v1969 = vadd.f32 %v1872, %v1968
      %v1970 = vpop.f32.mrb[0].mxu0
      %v1971 = vadd.f32 %v1874, %v1970
      %1972 = vmatprep.mubr.f32.mxu0 0.0
      %v1973 = vand.u32 %v1344, 4294901760
      %1974 = vmatmul.mubr.f32.gmra.mrb[0].mxu0 %v1973
      %v1975 = vpop.f32.mrb[0].mxu0
      %v1976 = vadd.f32 %v1879, %v1975
      %v1977 = vpop.f32.mrb[0].mxu0
      %v1978 = vadd.f32 %v1881, %v1977
      %1979 = vmatprep.mubr.f32.mxu0 0.0
      %v1980 = vand.u32 %v1347, 4294901760
      %1981 = vmatmul.mubr.f32.gmra.mrb[0].mxu0 %v1980
      %v1982 = vpop.f32.mrb[0].mxu0
      %v1983 = vadd.f32 %v1886, %v1982
      %v1984 = vpop.f32.mrb[0].mxu0
      %v1985 = vadd.f32 %v1888, %v1984
      %1986 = vdwg.mxu0
      %v1987 = vtanh.pop %v1962
      %v1988 = vtanh.pop %v1964
      %v1989 = vtanh.pop %v1969
      %v1990 = vtanh.pop %v1971
      %v1991 = vtanh.pop %v1976
      %v1992 = vtanh.pop %v1978
      %v1993 = vtanh.pop %v1983
      %v1994 = vtanh.pop %v1985
      %v1995 = vld [vmem:[%s3] sm:$0xff]
      %v1996 = vld [vmem:[%s3 + $0x8] sm:$0xff]
      %v1997 = vld [vmem:[%s3 + $0x10] sm:$0xff]
      %v1998 = vld [vmem:[%s3 + $0x18] sm:$0xff]
      %v1999 = vld [vmem:[%s4] sm:$0xff]
      %v2000 = vld [vmem:[%s4 + $0x8] sm:$0xff]
      %v2001 = vld [vmem:[%s4 + $0x10] sm:$0xff]
      %v2002 = vld [vmem:[%s4 + $0x18] sm:$0xff]
      %2004 = vset.pattern.permute.xlu0 0
      %2005 = vperm.xlu0 %2004, %v1999
      %v2006 = vpop.permute.xlu0 %2005
      %2009 = vset.pattern.permute.xlu0 0
      %2010 = vperm.xlu0 %2009, %v2000
      %v2011 = vpop.permute.xlu0 %2010
      %2014 = vset.pattern.permute.xlu0 0
      %2015 = vperm.xlu0 %2014, %v2001
      %v2016 = vpop.permute.xlu0 %2015
      %2019 = vset.pattern.permute.xlu0 0
      %2020 = vperm.xlu0 %2019, %v2002
      %v2021 = vpop.permute.xlu0 %2020
      %vm2023 = vcmask 261120
      %v2025 = vsel %vm2023, %v1995, 0
      %v2028 = vsel %vm2023, %v1996, 0
      %v2031 = vsel %vm2023, %v1997, 0
      %v2034 = vsel %vm2023, %v1998, 0
      %v2036 = vand.u32 %v1988, 4294901760
      %2037 = vmatprep.subr.mxu0 %v2036
      %v2038 = vand.u32 %v1987, 4294901760
      %2039 = vmatpush1.msra.mxu0 %v2038
      %v2040 = vand.u32 %v1990, 4294901760
      %2041 = vmatprep.subr.mxu0 %v2040
      %v2042 = vand.u32 %v1989, 4294901760
      %2043 = vmatpush1.msra.mxu0 %v2042
      %v2044 = vand.u32 %v1992, 4294901760
      %2045 = vmatprep.subr.mxu0 %v2044
      %v2046 = vand.u32 %v1991, 4294901760
      %2047 = vmatpush1.msra.mxu0 %v2046
      %v2048 = vand.u32 %v1994, 4294901760
      %2049 = vmatprep.subr.mxu0 %v2048
      %v2050 = vand.u32 %v1993, 4294901760
      %2051 = vmatpush1.msra.mxu0 %v2050
      %2052 = vmatprep.subr.mxu0 0.0
      %2053 = vmatpush1.msra.mxu0 0.0
      %2054 = vmatprep.subr.mxu0 0.0
      %2055 = vmatpush1.msra.mxu0 0.0
      %2056 = vmatprep.subr.mxu0 0.0
      %2057 = vmatpush1.msra.mxu0 0.0
      %2058 = vmatprep.subr.mxu0 0.0
      %2059 = vmatpush1.msra.mxu0 0.0
      %2060 = vmatprep.subr.mxu0 0.0
      %2061 = vmatpush1.msra.mxu0 0.0
      %2062 = vmatprep.subr.mxu0 0.0
      %2063 = vmatpush1.msra.mxu0 0.0
      %2064 = vmatprep.subr.mxu0 0.0
      %2065 = vmatpush1.msra.mxu0 0.0
      %2066 = vmatprep.subr.mxu0 0.0
      %2067 = vmatpush1.msra.mxu0 0.0
      %2068 = vmatprep.subr.mxu0 0.0
      %2069 = vmatpush1.msra.mxu0 0.0
      %2070 = vmatprep.subr.mxu0 0.0
      %2071 = vmatpush1.msra.mxu0 0.0
      %2072 = vmatprep.subr.mxu0 0.0
      %2073 = vmatpush1.msra.mxu0 0.0
      %2074 = vmatprep.subr.mxu0 0.0
      %2075 = vmatpush1.msra.mxu0 0.0
      %2076 = vmatprep.subr.mxu0 0.0
      %2077 = vmatpush1.msra.mxu0 0.0
      %2078 = vmatprep.subr.mxu0 0.0
      %2079 = vmatpush1.msra.mxu0 0.0
      %2080 = vmatprep.subr.mxu0 0.0
      %2081 = vmatpush1.msra.mxu0 0.0
      %2082 = vmatprep.subr.mxu0 0.0
      %2083 = vmatpush1.msra.mxu0 0.0
      %2084 = vmatprep.subr.mxu0 0.0
      %2085 = vmatpush1.msra.mxu0 0.0
      %2086 = vmatprep.subr.mxu0 0.0
      %2087 = vmatpush1.msra.mxu0 0.0
      %2088 = vmatprep.subr.mxu0 0.0
      %2089 = vmatpush1.msra.mxu0 0.0
      %2090 = vmatprep.subr.mxu0 0.0
      %2091 = vmatpush1.msra.mxu0 0.0
      %2092 = vmatprep.subr.mxu0 0.0
      %2093 = vmatpush1.msra.mxu0 0.0
      %2094 = vmatprep.subr.mxu0 0.0
      %2095 = vmatpush1.msra.mxu0 0.0
      %2096 = vmatprep.subr.mxu0 0.0
      %2097 = vmatpush1.msra.mxu0 0.0
      %2098 = vmatprep.subr.mxu0 0.0
      %2099 = vmatpush1.msra.mxu0 0.0
      %2100 = vmatprep.subr.mxu0 0.0
      %2101 = vmatpush1.msra.mxu0 0.0
      %2102 = vmatprep.subr.mxu0 0.0
      %2103 = vmatpush1.msra.mxu0 0.0
      %2104 = vmatprep.subr.mxu0 0.0
      %2105 = vmatpush1.msra.mxu0 0.0
      %2106 = vmatprep.subr.mxu0 0.0
      %2107 = vmatpush1.msra.mxu0 0.0
      %2108 = vmatprep.mubr.f32.mxu0 0.0
      %v2109 = vand.u32 %v2025, 4294901760
      %v2110 = vsub.f32 %v2025, %v2109
      %v2111 = vand.u32 %v2110, 4294901760
      %v2112 = vsub.f32 %v2110, %v2111
      %v2113 = vand.u32 %v2112, 4294901760
      %2114 = vmatmul.mubr.f32.gmra.mrb[0].mxu0 %v2113
      %v2115 = vpop.f32.mrb[0].mxu0
      %v2116 = vadd.f32 %v2006, %v2115
      %v2117 = vpop.f32.mrb[0].mxu0
      %v2118 = vadd.f32 %v2006, %v2117
      %2119 = vmatprep.mubr.f32.mxu0 0.0
      %v2120 = vand.u32 %v2028, 4294901760
      %v2121 = vsub.f32 %v2028, %v2120
      %v2122 = vand.u32 %v2121, 4294901760
      %v2123 = vsub.f32 %v2121, %v2122
      %v2124 = vand.u32 %v2123, 4294901760
      %2125 = vmatmul.mubr.f32.gmra.mrb[0].mxu0 %v2124
      %v2126 = vpop.f32.mrb[0].mxu0
      %v2127 = vadd.f32 %v2011, %v2126
      %v2128 = vpop.f32.mrb[0].mxu0
      %v2129 = vadd.f32 %v2011, %v2128
      %2130 = vmatprep.mubr.f32.mxu0 0.0
      %v2131 = vand.u32 %v2031, 4294901760
      %v2132 = vsub.f32 %v2031, %v2131
      %v2133 = vand.u32 %v2132, 4294901760
      %v2134 = vsub.f32 %v2132, %v2133
      %v2135 = vand.u32 %v2134, 4294901760
      %2136 = vmatmul.mubr.f32.gmra.mrb[0].mxu0 %v2135
      %v2137 = vpop.f32.mrb[0].mxu0
      %v2138 = vadd.f32 %v2016, %v2137
      %v2139 = vpop.f32.mrb[0].mxu0
      %v2140 = vadd.f32 %v2016, %v2139
      %2141 = vmatprep.mubr.f32.mxu0 0.0
      %v2142 = vand.u32 %v2034, 4294901760
      %v2143 = vsub.f32 %v2034, %v2142
      %v2144 = vand.u32 %v2143, 4294901760
      %v2145 = vsub.f32 %v2143, %v2144
      %v2146 = vand.u32 %v2145, 4294901760
      %2147 = vmatmul.mubr.f32.gmra.mrb[0].mxu0 %v2146
      %v2148 = vpop.f32.mrb[0].mxu0
      %v2149 = vadd.f32 %v2021, %v2148
      %v2150 = vpop.f32.mrb[0].mxu0
      %v2151 = vadd.f32 %v2021, %v2150
      %2152 = vdwg.mxu0
      %v2153 = vand.u32 %v1988, 4294901760
      %v2154 = vsub.f32 %v1988, %v2153
      %v2155 = vand.u32 %v2154, 4294901760
      %v2156 = vsub.f32 %v2154, %v2155
      %v2157 = vand.u32 %v2156, 4294901760
      %2158 = vmatprep.subr.mxu0 %v2157
      %v2159 = vand.u32 %v1987, 4294901760
      %v2160 = vsub.f32 %v1987, %v2159
      %v2161 = vand.u32 %v2160, 4294901760
      %v2162 = vsub.f32 %v2160, %v2161
      %v2163 = vand.u32 %v2162, 4294901760
      %2164 = vmatpush1.msra.mxu0 %v2163
      %v2165 = vand.u32 %v1990, 4294901760
      %v2166 = vsub.f32 %v1990, %v2165
      %v2167 = vand.u32 %v2166, 4294901760
      %v2168 = vsub.f32 %v2166, %v2167
      %v2169 = vand.u32 %v2168, 4294901760
      %2170 = vmatprep.subr.mxu0 %v2169
      %v2171 = vand.u32 %v1989, 4294901760
      %v2172 = vsub.f32 %v1989, %v2171
      %v2173 = vand.u32 %v2172, 4294901760
      %v2174 = vsub.f32 %v2172, %v2173
      %v2175 = vand.u32 %v2174, 4294901760
      %2176 = vmatpush1.msra.mxu0 %v2175
      %v2177 = vand.u32 %v1992, 4294901760
      %v2178 = vsub.f32 %v1992, %v2177
      %v2179 = vand.u32 %v2178, 4294901760
      %v2180 = vsub.f32 %v2178, %v2179
      %v2181 = vand.u32 %v2180, 4294901760
      %2182 = vmatprep.subr.mxu0 %v2181
      %v2183 = vand.u32 %v1991, 4294901760
      %v2184 = vsub.f32 %v1991, %v2183
      %v2185 = vand.u32 %v2184, 4294901760
      %v2186 = vsub.f32 %v2184, %v2185
      %v2187 = vand.u32 %v2186, 4294901760
      %2188 = vmatpush1.msra.mxu0 %v2187
      %v2189 = vand.u32 %v1994, 4294901760
      %v2190 = vsub.f32 %v1994, %v2189
      %v2191 = vand.u32 %v2190, 4294901760
      %v2192 = vsub.f32 %v2190, %v2191
      %v2193 = vand.u32 %v2192, 4294901760
      %2194 = vmatprep.subr.mxu0 %v2193
      %v2195 = vand.u32 %v1993, 4294901760
      %v2196 = vsub.f32 %v1993, %v2195
      %v2197 = vand.u32 %v2196, 4294901760
      %v2198 = vsub.f32 %v2196, %v2197
      %v2199 = vand.u32 %v2198, 4294901760
      %2200 = vmatpush1.msra.mxu0 %v2199
      %2201 = vmatprep.subr.mxu0 0.0
      %2202 = vmatpush1.msra.mxu0 0.0
      %2203 = vmatprep.subr.mxu0 0.0
      %2204 = vmatpush1.msra.mxu0 0.0
      %2205 = vmatprep.subr.mxu0 0.0
      %2206 = vmatpush1.msra.mxu0 0.0
      %2207 = vmatprep.subr.mxu0 0.0
      %2208 = vmatpush1.msra.mxu0 0.0
      %2209 = vmatprep.subr.mxu0 0.0
      %2210 = vmatpush1.msra.mxu0 0.0
      %2211 = vmatprep.subr.mxu0 0.0
      %2212 = vmatpush1.msra.mxu0 0.0
      %2213 = vmatprep.subr.mxu0 0.0
      %2214 = vmatpush1.msra.mxu0 0.0
      %2215 = vmatprep.subr.mxu0 0.0
      %2216 = vmatpush1.msra.mxu0 0.0
      %2217 = vmatprep.subr.mxu0 0.0
      %2218 = vmatpush1.msra.mxu0 0.0
      %2219 = vmatprep.subr.mxu0 0.0
      %2220 = vmatpush1.msra.mxu0 0.0
      %2221 = vmatprep.subr.mxu0 0.0
      %2222 = vmatpush1.msra.mxu0 0.0
      %2223 = vmatprep.subr.mxu0 0.0
      %2224 = vmatpush1.msra.mxu0 0.0
      %2225 = vmatprep.subr.mxu0 0.0
      %2226 = vmatpush1.msra.mxu0 0.0
      %2227 = vmatprep.subr.mxu0 0.0
      %2228 = vmatpush1.msra.mxu0 0.0
      %2229 = vmatprep.subr.mxu0 0.0
      %2230 = vmatpush1.msra.mxu0 0.0
      %2231 = vmatprep.subr.mxu0 0.0
      %2232 = vmatpush1.msra.mxu0 0.0
      %2233 = vmatprep.subr.mxu0 0.0
      %2234 = vmatpush1.msra.mxu0 0.0
      %2235 = vmatprep.subr.mxu0 0.0
      %2236 = vmatpush1.msra.mxu0 0.0
      %2237 = vmatprep.subr.mxu0 0.0
      %2238 = vmatpush1.msra.mxu0 0.0
      %2239 = vmatprep.subr.mxu0 0.0
      %2240 = vmatpush1.msra.mxu0 0.0
      %2241 = vmatprep.subr.mxu0 0.0
      %2242 = vmatpush1.msra.mxu0 0.0
      %2243 = vmatprep.subr.mxu0 0.0
      %2244 = vmatpush1.msra.mxu0 0.0
      %2245 = vmatprep.subr.mxu0 0.0
      %2246 = vmatpush1.msra.mxu0 0.0
      %2247 = vmatprep.subr.mxu0 0.0
      %2248 = vmatpush1.msra.mxu0 0.0
      %2249 = vmatprep.subr.mxu0 0.0
      %2250 = vmatpush1.msra.mxu0 0.0
      %2251 = vmatprep.subr.mxu0 0.0
      %2252 = vmatpush1.msra.mxu0 0.0
      %2253 = vmatprep.subr.mxu0 0.0
      %2254 = vmatpush1.msra.mxu0 0.0
      %2255 = vmatprep.subr.mxu0 0.0
      %2256 = vmatpush1.msra.mxu0 0.0
      %2257 = vmatprep.mubr.f32.mxu0 0.0
      %v2258 = vand.u32 %v2025, 4294901760
      %2259 = vmatmul.mubr.f32.gmra.mrb[0].mxu0 %v2258
      %v2260 = vpop.f32.mrb[0].mxu0
      %v2261 = vadd.f32 %v2116, %v2260
      %v2262 = vpop.f32.mrb[0].mxu0
      %v2263 = vadd.f32 %v2118, %v2262
      %2264 = vmatprep.mubr.f32.mxu0 0.0
      %v2265 = vand.u32 %v2028, 4294901760
      %2266 = vmatmul.mubr.f32.gmra.mrb[0].mxu0 %v2265
      %v2267 = vpop.f32.mrb[0].mxu0
      %v2268 = vadd.f32 %v2127, %v2267
      %v2269 = vpop.f32.mrb[0].mxu0
      %v2270 = vadd.f32 %v2129, %v2269
      %2271 = vmatprep.mubr.f32.mxu0 0.0
      %v2272 = vand.u32 %v2031, 4294901760
      %2273 = vmatmul.mubr.f32.gmra.mrb[0].mxu0 %v2272
      %v2274 = vpop.f32.mrb[0].mxu0
      %v2275 = vadd.f32 %v2138, %v2274
      %v2276 = vpop.f32.mrb[0].mxu0
      %v2277 = vadd.f32 %v2140, %v2276
      %2278 = vmatprep.mubr.f32.mxu0 0.0
      %v2279 = vand.u32 %v2034, 4294901760
      %2280 = vmatmul.mubr.f32.gmra.mrb[0].mxu0 %v2279
      %v2281 = vpop.f32.mrb[0].mxu0
      %v2282 = vadd.f32 %v2149, %v2281
      %v2283 = vpop.f32.mrb[0].mxu0
      %v2284 = vadd.f32 %v2151, %v2283
      %2285 = vdwg.mxu0
      %v2286 = vand.u32 %v1988, 4294901760
      %v2287 = vsub.f32 %v1988, %v2286
      %2288 = vmatprep.subr.mxu0 %v2287
      %v2289 = vand.u32 %v1987, 4294901760
      %v2290 = vsub.f32 %v1987, %v2289
      %2291 = vmatpush1.msra.mxu0 %v2290
      %v2292 = vand.u32 %v1990, 4294901760
      %v2293 = vsub.f32 %v1990, %v2292
      %2294 = vmatprep.subr.mxu0 %v2293
      %v2295 = vand.u32 %v1989, 4294901760
      %v2296 = vsub.f32 %v1989, %v2295
      %2297 = vmatpush1.msra.mxu0 %v2296
      %v2298 = vand.u32 %v1992, 4294901760
      %v2299 = vsub.f32 %v1992, %v2298
      %2300 = vmatprep.subr.mxu0 %v2299
      %v2301 = vand.u32 %v1991, 4294901760
      %v2302 = vsub.f32 %v1991, %v2301
      %2303 = vmatpush1.msra.mxu0 %v2302
      %v2304 = vand.u32 %v1994, 4294901760
      %v2305 = vsub.f32 %v1994, %v2304
      %2306 = vmatprep.subr.mxu0 %v2305
      %v2307 = vand.u32 %v1993, 4294901760
      %v2308 = vsub.f32 %v1993, %v2307
      %2309 = vmatpush1.msra.mxu0 %v2308
      %2310 = vmatprep.subr.mxu0 0.0
      %2311 = vmatpush1.msra.mxu0 0.0
      %2312 = vmatprep.subr.mxu0 0.0
      %2313 = vmatpush1.msra.mxu0 0.0
      %2314 = vmatprep.subr.mxu0 0.0
      %2315 = vmatpush1.msra.mxu0 0.0
      %2316 = vmatprep.subr.mxu0 0.0
      %2317 = vmatpush1.msra.mxu0 0.0
      %2318 = vmatprep.subr.mxu0 0.0
      %2319 = vmatpush1.msra.mxu0 0.0
      %2320 = vmatprep.subr.mxu0 0.0
      %2321 = vmatpush1.msra.mxu0 0.0
      %2322 = vmatprep.subr.mxu0 0.0
      %2323 = vmatpush1.msra.mxu0 0.0
      %2324 = vmatprep.subr.mxu0 0.0
      %2325 = vmatpush1.msra.mxu0 0.0
      %2326 = vmatprep.subr.mxu0 0.0
      %2327 = vmatpush1.msra.mxu0 0.0
      %2328 = vmatprep.subr.mxu0 0.0
      %2329 = vmatpush1.msra.mxu0 0.0
      %2330 = vmatprep.subr.mxu0 0.0
      %2331 = vmatpush1.msra.mxu0 0.0
      %2332 = vmatprep.subr.mxu0 0.0
      %2333 = vmatpush1.msra.mxu0 0.0
      %2334 = vmatprep.subr.mxu0 0.0
      %2335 = vmatpush1.msra.mxu0 0.0
      %2336 = vmatprep.subr.mxu0 0.0
      %2337 = vmatpush1.msra.mxu0 0.0
      %2338 = vmatprep.subr.mxu0 0.0
      %2339 = vmatpush1.msra.mxu0 0.0
      %2340 = vmatprep.subr.mxu0 0.0
      %2341 = vmatpush1.msra.mxu0 0.0
      %2342 = vmatprep.subr.mxu0 0.0
      %2343 = vmatpush1.msra.mxu0 0.0
      %2344 = vmatprep.subr.mxu0 0.0
      %2345 = vmatpush1.msra.mxu0 0.0
      %2346 = vmatprep.subr.mxu0 0.0
      %2347 = vmatpush1.msra.mxu0 0.0
      %2348 = vmatprep.subr.mxu0 0.0
      %2349 = vmatpush1.msra.mxu0 0.0
      %2350 = vmatprep.subr.mxu0 0.0
      %2351 = vmatpush1.msra.mxu0 0.0
      %2352 = vmatprep.subr.mxu0 0.0
      %2353 = vmatpush1.msra.mxu0 0.0
      %2354 = vmatprep.subr.mxu0 0.0
      %2355 = vmatpush1.msra.mxu0 0.0
      %2356 = vmatprep.subr.mxu0 0.0
      %2357 = vmatpush1.msra.mxu0 0.0
      %2358 = vmatprep.subr.mxu0 0.0
      %2359 = vmatpush1.msra.mxu0 0.0
      %2360 = vmatprep.subr.mxu0 0.0
      %2361 = vmatpush1.msra.mxu0 0.0
      %2362 = vmatprep.subr.mxu0 0.0
      %2363 = vmatpush1.msra.mxu0 0.0
      %2364 = vmatprep.subr.mxu0 0.0
      %2365 = vmatpush1.msra.mxu0 0.0
      %2366 = vmatprep.mubr.f32.mxu0 0.0
      %v2367 = vand.u32 %v2025, 4294901760
      %v2368 = vsub.f32 %v2025, %v2367
      %2369 = vmatmul.mubr.f32.gmra.mrb[0].mxu0 %v2368
      %v2370 = vpop.f32.mrb[0].mxu0
      %v2371 = vadd.f32 %v2261, %v2370
      %v2372 = vpop.f32.mrb[0].mxu0
      %v2373 = vadd.f32 %v2263, %v2372
      %2374 = vmatprep.mubr.f32.mxu0 0.0
      %v2375 = vand.u32 %v2028, 4294901760
      %v2376 = vsub.f32 %v2028, %v2375
      %2377 = vmatmul.mubr.f32.gmra.mrb[0].mxu0 %v2376
      %v2378 = vpop.f32.mrb[0].mxu0
      %v2379 = vadd.f32 %v2268, %v2378
      %v2380 = vpop.f32.mrb[0].mxu0
      %v2381 = vadd.f32 %v2270, %v2380
      %2382 = vmatprep.mubr.f32.mxu0 0.0
      %v2383 = vand.u32 %v2031, 4294901760
      %v2384 = vsub.f32 %v2031, %v2383
      %2385 = vmatmul.mubr.f32.gmra.mrb[0].mxu0 %v2384
      %v2386 = vpop.f32.mrb[0].mxu0
      %v2387 = vadd.f32 %v2275, %v2386
      %v2388 = vpop.f32.mrb[0].mxu0
      %v2389 = vadd.f32 %v2277, %v2388
      %2390 = vmatprep.mubr.f32.mxu0 0.0
      %v2391 = vand.u32 %v2034, 4294901760
      %v2392 = vsub.f32 %v2034, %v2391
      %2393 = vmatmul.mubr.f32.gmra.mrb[0].mxu0 %v2392
      %v2394 = vpop.f32.mrb[0].mxu0
      %v2395 = vadd.f32 %v2282, %v2394
      %v2396 = vpop.f32.mrb[0].mxu0
      %v2397 = vadd.f32 %v2284, %v2396
      %2398 = vdwg.mxu0
      %v2399 = vand.u32 %v1988, 4294901760
      %2400 = vmatprep.subr.mxu0 %v2399
      %v2401 = vand.u32 %v1987, 4294901760
      %2402 = vmatpush1.msra.mxu0 %v2401
      %v2403 = vand.u32 %v1990, 4294901760
      %2404 = vmatprep.subr.mxu0 %v2403
      %v2405 = vand.u32 %v1989, 4294901760
      %2406 = vmatpush1.msra.mxu0 %v2405
      %v2407 = vand.u32 %v1992, 4294901760
      %2408 = vmatprep.subr.mxu0 %v2407
      %v2409 = vand.u32 %v1991, 4294901760
      %2410 = vmatpush1.msra.mxu0 %v2409
      %v2411 = vand.u32 %v1994, 4294901760
      %2412 = vmatprep.subr.mxu0 %v2411
      %v2413 = vand.u32 %v1993, 4294901760
      %2414 = vmatpush1.msra.mxu0 %v2413
      %2415 = vmatprep.subr.mxu0 0.0
      %2416 = vmatpush1.msra.mxu0 0.0
      %2417 = vmatprep.subr.mxu0 0.0
      %2418 = vmatpush1.msra.mxu0 0.0
      %2419 = vmatprep.subr.mxu0 0.0
      %2420 = vmatpush1.msra.mxu0 0.0
      %2421 = vmatprep.subr.mxu0 0.0
      %2422 = vmatpush1.msra.mxu0 0.0
      %2423 = vmatprep.subr.mxu0 0.0
      %2424 = vmatpush1.msra.mxu0 0.0
      %2425 = vmatprep.subr.mxu0 0.0
      %2426 = vmatpush1.msra.mxu0 0.0
      %2427 = vmatprep.subr.mxu0 0.0
      %2428 = vmatpush1.msra.mxu0 0.0
      %2429 = vmatprep.subr.mxu0 0.0
      %2430 = vmatpush1.msra.mxu0 0.0
      %2431 = vmatprep.subr.mxu0 0.0
      %2432 = vmatpush1.msra.mxu0 0.0
      %2433 = vmatprep.subr.mxu0 0.0
      %2434 = vmatpush1.msra.mxu0 0.0
      %2435 = vmatprep.subr.mxu0 0.0
      %2436 = vmatpush1.msra.mxu0 0.0
      %2437 = vmatprep.subr.mxu0 0.0
      %2438 = vmatpush1.msra.mxu0 0.0
      %2439 = vmatprep.subr.mxu0 0.0
      %2440 = vmatpush1.msra.mxu0 0.0
      %2441 = vmatprep.subr.mxu0 0.0
      %2442 = vmatpush1.msra.mxu0 0.0
      %2443 = vmatprep.subr.mxu0 0.0
      %2444 = vmatpush1.msra.mxu0 0.0
      %2445 = vmatprep.subr.mxu0 0.0
      %2446 = vmatpush1.msra.mxu0 0.0
      %2447 = vmatprep.subr.mxu0 0.0
      %2448 = vmatpush1.msra.mxu0 0.0
      %2449 = vmatprep.subr.mxu0 0.0
      %2450 = vmatpush1.msra.mxu0 0.0
      %2451 = vmatprep.subr.mxu0 0.0
      %2452 = vmatpush1.msra.mxu0 0.0
      %2453 = vmatprep.subr.mxu0 0.0
      %2454 = vmatpush1.msra.mxu0 0.0
      %2455 = vmatprep.subr.mxu0 0.0
      %2456 = vmatpush1.msra.mxu0 0.0
      %2457 = vmatprep.subr.mxu0 0.0
      %2458 = vmatpush1.msra.mxu0 0.0
      %2459 = vmatprep.subr.mxu0 0.0
      %2460 = vmatpush1.msra.mxu0 0.0
      %2461 = vmatprep.subr.mxu0 0.0
      %2462 = vmatpush1.msra.mxu0 0.0
      %2463 = vmatprep.subr.mxu0 0.0
      %2464 = vmatpush1.msra.mxu0 0.0
      %2465 = vmatprep.subr.mxu0 0.0
      %2466 = vmatpush1.msra.mxu0 0.0
      %2467 = vmatprep.subr.mxu0 0.0
      %2468 = vmatpush1.msra.mxu0 0.0
      %2469 = vmatprep.subr.mxu0 0.0
      %2470 = vmatpush1.msra.mxu0 0.0
      %2471 = vmatprep.mubr.f32.mxu0 0.0
      %v2472 = vand.u32 %v2025, 4294901760
      %v2473 = vsub.f32 %v2025, %v2472
      %v2474 = vand.u32 %v2473, 4294901760
      %2475 = vmatmul.mubr.f32.gmra.mrb[0].mxu0 %v2474
      %v2476 = vpop.f32.mrb[0].mxu0
      %v2477 = vadd.f32 %v2371, %v2476
      %v2478 = vpop.f32.mrb[0].mxu0
      %v2479 = vadd.f32 %v2373, %v2478
      %2480 = vmatprep.mubr.f32.mxu0 0.0
      %v2481 = vand.u32 %v2028, 4294901760
      %v2482 = vsub.f32 %v2028, %v2481
      %v2483 = vand.u32 %v2482, 4294901760
      %2484 = vmatmul.mubr.f32.gmra.mrb[0].mxu0 %v2483
      %v2485 = vpop.f32.mrb[0].mxu0
      %v2486 = vadd.f32 %v2379, %v2485
      %v2487 = vpop.f32.mrb[0].mxu0
      %v2488 = vadd.f32 %v2381, %v2487
      %2489 = vmatprep.mubr.f32.mxu0 0.0
      %v2490 = vand.u32 %v2031, 4294901760
      %v2491 = vsub.f32 %v2031, %v2490
      %v2492 = vand.u32 %v2491, 4294901760
      %2493 = vmatmul.mubr.f32.gmra.mrb[0].mxu0 %v2492
      %v2494 = vpop.f32.mrb[0].mxu0
      %v2495 = vadd.f32 %v2387, %v2494
      %v2496 = vpop.f32.mrb[0].mxu0
      %v2497 = vadd.f32 %v2389, %v2496
      %2498 = vmatprep.mubr.f32.mxu0 0.0
      %v2499 = vand.u32 %v2034, 4294901760
      %v2500 = vsub.f32 %v2034, %v2499
      %v2501 = vand.u32 %v2500, 4294901760
      %2502 = vmatmul.mubr.f32.gmra.mrb[0].mxu0 %v2501
      %v2503 = vpop.f32.mrb[0].mxu0
      %v2504 = vadd.f32 %v2395, %v2503
      %v2505 = vpop.f32.mrb[0].mxu0
      %v2506 = vadd.f32 %v2397, %v2505
      %2507 = vdwg.mxu0
      %v2508 = vand.u32 %v1988, 4294901760
      %v2509 = vsub.f32 %v1988, %v2508
      %v2510 = vand.u32 %v2509, 4294901760
      %2511 = vmatprep.subr.mxu0 %v2510
      %v2512 = vand.u32 %v1987, 4294901760
      %v2513 = vsub.f32 %v1987, %v2512
      %v2514 = vand.u32 %v2513, 4294901760
      %2515 = vmatpush1.msra.mxu0 %v2514
      %v2516 = vand.u32 %v1990, 4294901760
      %v2517 = vsub.f32 %v1990, %v2516
      %v2518 = vand.u32 %v2517, 4294901760
      %2519 = vmatprep.subr.mxu0 %v2518
      %v2520 = vand.u32 %v1989, 4294901760
      %v2521 = vsub.f32 %v1989, %v2520
      %v2522 = vand.u32 %v2521, 4294901760
      %2523 = vmatpush1.msra.mxu0 %v2522
      %v2524 = vand.u32 %v1992, 4294901760
      %v2525 = vsub.f32 %v1992, %v2524
      %v2526 = vand.u32 %v2525, 4294901760
      %2527 = vmatprep.subr.mxu0 %v2526
      %v2528 = vand.u32 %v1991, 4294901760
      %v2529 = vsub.f32 %v1991, %v2528
      %v2530 = vand.u32 %v2529, 4294901760
      %2531 = vmatpush1.msra.mxu0 %v2530
      %v2532 = vand.u32 %v1994, 4294901760
      %v2533 = vsub.f32 %v1994, %v2532
      %v2534 = vand.u32 %v2533, 4294901760
      %2535 = vmatprep.subr.mxu0 %v2534
      %v2536 = vand.u32 %v1993, 4294901760
      %v2537 = vsub.f32 %v1993, %v2536
      %v2538 = vand.u32 %v2537, 4294901760
      %2539 = vmatpush1.msra.mxu0 %v2538
      %2540 = vmatprep.subr.mxu0 0.0
      %2541 = vmatpush1.msra.mxu0 0.0
      %2542 = vmatprep.subr.mxu0 0.0
      %2543 = vmatpush1.msra.mxu0 0.0
      %2544 = vmatprep.subr.mxu0 0.0
      %2545 = vmatpush1.msra.mxu0 0.0
      %2546 = vmatprep.subr.mxu0 0.0
      %2547 = vmatpush1.msra.mxu0 0.0
      %2548 = vmatprep.subr.mxu0 0.0
      %2549 = vmatpush1.msra.mxu0 0.0
      %2550 = vmatprep.subr.mxu0 0.0
      %2551 = vmatpush1.msra.mxu0 0.0
      %2552 = vmatprep.subr.mxu0 0.0
      %2553 = vmatpush1.msra.mxu0 0.0
      %2554 = vmatprep.subr.mxu0 0.0
      %2555 = vmatpush1.msra.mxu0 0.0
      %2556 = vmatprep.subr.mxu0 0.0
      %2557 = vmatpush1.msra.mxu0 0.0
      %2558 = vmatprep.subr.mxu0 0.0
      %2559 = vmatpush1.msra.mxu0 0.0
      %2560 = vmatprep.subr.mxu0 0.0
      %2561 = vmatpush1.msra.mxu0 0.0
      %2562 = vmatprep.subr.mxu0 0.0
      %2563 = vmatpush1.msra.mxu0 0.0
      %2564 = vmatprep.subr.mxu0 0.0
      %2565 = vmatpush1.msra.mxu0 0.0
      %2566 = vmatprep.subr.mxu0 0.0
      %2567 = vmatpush1.msra.mxu0 0.0
      %2568 = vmatprep.subr.mxu0 0.0
      %2569 = vmatpush1.msra.mxu0 0.0
      %2570 = vmatprep.subr.mxu0 0.0
      %2571 = vmatpush1.msra.mxu0 0.0
      %2572 = vmatprep.subr.mxu0 0.0
      %2573 = vmatpush1.msra.mxu0 0.0
      %2574 = vmatprep.subr.mxu0 0.0
      %2575 = vmatpush1.msra.mxu0 0.0
      %2576 = vmatprep.subr.mxu0 0.0
      %2577 = vmatpush1.msra.mxu0 0.0
      %2578 = vmatprep.subr.mxu0 0.0
      %2579 = vmatpush1.msra.mxu0 0.0
      %2580 = vmatprep.subr.mxu0 0.0
      %2581 = vmatpush1.msra.mxu0 0.0
      %2582 = vmatprep.subr.mxu0 0.0
      %2583 = vmatpush1.msra.mxu0 0.0
      %2584 = vmatprep.subr.mxu0 0.0
      %2585 = vmatpush1.msra.mxu0 0.0
      %2586 = vmatprep.subr.mxu0 0.0
      %2587 = vmatpush1.msra.mxu0 0.0
      %2588 = vmatprep.subr.mxu0 0.0
      %2589 = vmatpush1.msra.mxu0 0.0
      %2590 = vmatprep.subr.mxu0 0.0
      %2591 = vmatpush1.msra.mxu0 0.0
      %2592 = vmatprep.subr.mxu0 0.0
      %2593 = vmatpush1.msra.mxu0 0.0
      %2594 = vmatprep.subr.mxu0 0.0
      %2595 = vmatpush1.msra.mxu0 0.0
      %2596 = vmatprep.mubr.f32.mxu0 0.0
      %v2597 = vand.u32 %v2025, 4294901760
      %2598 = vmatmul.mubr.f32.gmra.mrb[0].mxu0 %v2597
      %v2599 = vpop.f32.mrb[0].mxu0
      %v2600 = vadd.f32 %v2477, %v2599
      %v2601 = vpop.f32.mrb[0].mxu0
      %v2602 = vadd.f32 %v2479, %v2601
      %2603 = vmatprep.mubr.f32.mxu0 0.0
      %v2604 = vand.u32 %v2028, 4294901760
      %2605 = vmatmul.mubr.f32.gmra.mrb[0].mxu0 %v2604
      %v2606 = vpop.f32.mrb[0].mxu0
      %v2607 = vadd.f32 %v2486, %v2606
      %v2608 = vpop.f32.mrb[0].mxu0
      %v2609 = vadd.f32 %v2488, %v2608
      %2610 = vmatprep.mubr.f32.mxu0 0.0
      %v2611 = vand.u32 %v2031, 4294901760
      %2612 = vmatmul.mubr.f32.gmra.mrb[0].mxu0 %v2611
      %v2613 = vpop.f32.mrb[0].mxu0
      %v2614 = vadd.f32 %v2495, %v2613
      %v2615 = vpop.f32.mrb[0].mxu0
      %v2616 = vadd.f32 %v2497, %v2615
      %2617 = vmatprep.mubr.f32.mxu0 0.0
      %v2618 = vand.u32 %v2034, 4294901760
      %2619 = vmatmul.mubr.f32.gmra.mrb[0].mxu0 %v2618
      %v2620 = vpop.f32.mrb[0].mxu0
      %v2621 = vadd.f32 %v2504, %v2620
      %v2622 = vpop.f32.mrb[0].mxu0
      %v2623 = vadd.f32 %v2506, %v2622
      %2624 = vdwg.mxu0
      %v2625 = vand.u32 %v1988, 4294901760
      %2626 = vmatprep.subr.mxu0 %v2625
      %v2627 = vand.u32 %v1987, 4294901760
      %2628 = vmatpush1.msra.mxu0 %v2627
      %v2629 = vand.u32 %v1990, 4294901760
      %2630 = vmatprep.subr.mxu0 %v2629
      %v2631 = vand.u32 %v1989, 4294901760
      %2632 = vmatpush1.msra.mxu0 %v2631
      %v2633 = vand.u32 %v1992, 4294901760
      %2634 = vmatprep.subr.mxu0 %v2633
      %v2635 = vand.u32 %v1991, 4294901760
      %2636 = vmatpush1.msra.mxu0 %v2635
      %v2637 = vand.u32 %v1994, 4294901760
      %2638 = vmatprep.subr.mxu0 %v2637
      %v2639 = vand.u32 %v1993, 4294901760
      %2640 = vmatpush1.msra.mxu0 %v2639
      %2641 = vmatprep.subr.mxu0 0.0
      %2642 = vmatpush1.msra.mxu0 0.0
      %2643 = vmatprep.subr.mxu0 0.0
      %2644 = vmatpush1.msra.mxu0 0.0
      %2645 = vmatprep.subr.mxu0 0.0
      %2646 = vmatpush1.msra.mxu0 0.0
      %2647 = vmatprep.subr.mxu0 0.0
      %2648 = vmatpush1.msra.mxu0 0.0
      %2649 = vmatprep.subr.mxu0 0.0
      %2650 = vmatpush1.msra.mxu0 0.0
      %2651 = vmatprep.subr.mxu0 0.0
      %2652 = vmatpush1.msra.mxu0 0.0
      %2653 = vmatprep.subr.mxu0 0.0
      %2654 = vmatpush1.msra.mxu0 0.0
      %2655 = vmatprep.subr.mxu0 0.0
      %2656 = vmatpush1.msra.mxu0 0.0
      %2657 = vmatprep.subr.mxu0 0.0
      %2658 = vmatpush1.msra.mxu0 0.0
      %2659 = vmatprep.subr.mxu0 0.0
      %2660 = vmatpush1.msra.mxu0 0.0
      %2661 = vmatprep.subr.mxu0 0.0
      %2662 = vmatpush1.msra.mxu0 0.0
      %2663 = vmatprep.subr.mxu0 0.0
      %2664 = vmatpush1.msra.mxu0 0.0
      %2665 = vmatprep.subr.mxu0 0.0
      %2666 = vmatpush1.msra.mxu0 0.0
      %2667 = vmatprep.subr.mxu0 0.0
      %2668 = vmatpush1.msra.mxu0 0.0
      %2669 = vmatprep.subr.mxu0 0.0
      %2670 = vmatpush1.msra.mxu0 0.0
      %2671 = vmatprep.subr.mxu0 0.0
      %2672 = vmatpush1.msra.mxu0 0.0
      %2673 = vmatprep.subr.mxu0 0.0
      %2674 = vmatpush1.msra.mxu0 0.0
      %2675 = vmatprep.subr.mxu0 0.0
      %2676 = vmatpush1.msra.mxu0 0.0
      %2677 = vmatprep.subr.mxu0 0.0
      %2678 = vmatpush1.msra.mxu0 0.0
      %2679 = vmatprep.subr.mxu0 0.0
      %2680 = vmatpush1.msra.mxu0 0.0
      %2681 = vmatprep.subr.mxu0 0.0
      %2682 = vmatpush1.msra.mxu0 0.0
      %2683 = vmatprep.subr.mxu0 0.0
      %2684 = vmatpush1.msra.mxu0 0.0
      %2685 = vmatprep.subr.mxu0 0.0
      %2686 = vmatpush1.msra.mxu0 0.0
      %2687 = vmatprep.subr.mxu0 0.0
      %2688 = vmatpush1.msra.mxu0 0.0
      %2689 = vmatprep.subr.mxu0 0.0
      %2690 = vmatpush1.msra.mxu0 0.0
      %2691 = vmatprep.subr.mxu0 0.0
      %2692 = vmatpush1.msra.mxu0 0.0
      %2693 = vmatprep.subr.mxu0 0.0
      %2694 = vmatpush1.msra.mxu0 0.0
      %2695 = vmatprep.subr.mxu0 0.0
      %2696 = vmatpush1.msra.mxu0 0.0
      %2697 = vmatprep.mubr.f32.mxu0 0.0
      %v2698 = vand.u32 %v2025, 4294901760
      %2699 = vmatmul.mubr.f32.gmra.mrb[0].mxu0 %v2698
      %v2700 = vpop.f32.mrb[0].mxu0
      %v2701 = vadd.f32 %v2600, %v2700
      %v2702 = vpop.f32.mrb[0].mxu0
      %v2703 = vadd.f32 %v2602, %v2702
      %2704 = vmatprep.mubr.f32.mxu0 0.0
      %v2705 = vand.u32 %v2028, 4294901760
      %2706 = vmatmul.mubr.f32.gmra.mrb[0].mxu0 %v2705
      %v2707 = vpop.f32.mrb[0].mxu0
      %v2708 = vadd.f32 %v2607, %v2707
      %v2709 = vpop.f32.mrb[0].mxu0
      %v2710 = vadd.f32 %v2609, %v2709
      %2711 = vmatprep.mubr.f32.mxu0 0.0
      %v2712 = vand.u32 %v2031, 4294901760
      %2713 = vmatmul.mubr.f32.gmra.mrb[0].mxu0 %v2712
      %v2714 = vpop.f32.mrb[0].mxu0
      %v2715 = vadd.f32 %v2614, %v2714
      %v2716 = vpop.f32.mrb[0].mxu0
      %v2717 = vadd.f32 %v2616, %v2716
      %2718 = vmatprep.mubr.f32.mxu0 0.0
      %v2719 = vand.u32 %v2034, 4294901760
      %2720 = vmatmul.mubr.f32.gmra.mrb[0].mxu0 %v2719
      %v2721 = vpop.f32.mrb[0].mxu0
      %v2722 = vadd.f32 %v2621, %v2721
      %v2723 = vpop.f32.mrb[0].mxu0
      %v2724 = vadd.f32 %v2623, %v2723
      %2725 = vdwg.mxu0
      %v2726 = vmul.f32 %v2701, 1.442695
      %v2727 = vpow.pop %v2726
      %v2728 = vmul.f32 %v2703, 1.442695
      %v2729 = vpow.pop %v2728
      %v2730 = vmul.f32 %v2708, 1.442695
      %v2731 = vpow.pop %v2730
      %v2732 = vmul.f32 %v2710, 1.442695
      %v2733 = vpow.pop %v2732
      %2735 = vset.pattern.permute.xlu0 0
      %2736 = vperm.xlu0 %2735, %v1307
      %v2737 = vpop.permute.xlu0 %2736
      %2740 = vset.pattern.permute.xlu0 0
      %2741 = vperm.xlu0 %2740, %v1308
      %v2742 = vpop.permute.xlu0 %2741
      %v2744 = vmul.f32 %v2737, %v2727
      %v2745 = vmul.f32 %v2737, %v2729
      %v2746 = vmul.f32 %v2742, %v2731
      %v2747 = vmul.f32 %v2742, %v2733
      %2749 = vset.pattern.permute.xlu0 0
      %2750 = vperm.xlu0 %2749, %v1305
      %v2751 = vpop.permute.xlu0 %2750
      %2754 = vset.pattern.permute.xlu0 0
      %2755 = vperm.xlu0 %2754, %v1306
      %v2756 = vpop.permute.xlu0 %2755
      %v2758 = vadd.f32 %v2751, %v2744
      %v2759 = vadd.f32 %v2751, %v2745
      %v2760 = vadd.f32 %v2756, %v2746
      %v2761 = vadd.f32 %v2756, %v2747
      %v2762 = vmul.f32 %v1294, %v2758
      %v2763 = vmul.f32 %v1296, %v2759
      %v2764 = vmul.f32 %v1301, %v2760
      %v2765 = vmul.f32 %v1303, %v2761
      %v2766 = vmul.f32 %v2737, %v2715
      %v2767 = vmul.f32 %v2737, %v2717
      %v2768 = vmul.f32 %v2742, %v2722
      %v2769 = vmul.f32 %v2742, %v2724
      %v2770 = vadd.f32 %v2762, %v2766
      %v2771 = vadd.f32 %v2763, %v2767
      %v2772 = vadd.f32 %v2764, %v2768
      %v2773 = vadd.f32 %v2765, %v2769
      %s2774 = scalar_lea.vmem %s0, 16
      %v2775 = vld [vmem:[%s2774] sm:$0xff]
      %v2776 = vld [vmem:[%s2774 + $0x8] sm:$0xff]
      %v2777 = vsub.f32 1.0, %v2775
      %v2778 = vsub.f32 1.0, %v2776
      %s2779 = scalar_lea.vmem %s1, 32
      %v2780 = vld [vmem:[%s2779] sm:$0xff]
      %v2781 = vld [vmem:[%s2779 + $0x8] sm:$0xff]
      %v2782 = vld [vmem:[%s2779 + $0x10] sm:$0xff]
      %v2783 = vld [vmem:[%s2779 + $0x18] sm:$0xff]
      %s2784 = scalar_lea.vmem %s2, 32
      %v2785 = vld [vmem:[%s2784] sm:$0xff]
      %v2786 = vld [vmem:[%s2784 + $0x8] sm:$0xff]
      %v2787 = vld [vmem:[%s2784 + $0x10] sm:$0xff]
      %v2788 = vld [vmem:[%s2784 + $0x18] sm:$0xff]
      %2790 = vset.pattern.permute.xlu0 0
      %2791 = vperm.xlu0 %2790, %v2785
      %v2792 = vpop.permute.xlu0 %2791
      %2795 = vset.pattern.permute.xlu0 0
      %2796 = vperm.xlu0 %2795, %v2786
      %v2797 = vpop.permute.xlu0 %2796
      %2800 = vset.pattern.permute.xlu0 0
      %2801 = vperm.xlu0 %2800, %v2787
      %v2802 = vpop.permute.xlu0 %2801
      %2805 = vset.pattern.permute.xlu0 0
      %2806 = vperm.xlu0 %2805, %v2788
      %v2807 = vpop.permute.xlu0 %2806
      %v2810 = vsel %vm298, %v2780, 0
      %v2813 = vsel %vm298, %v2781, 0
      %v2816 = vsel %vm298, %v2782, 0
      %v2819 = vsel %vm298, %v2783, 0
      %v2821 = vand.u32 %v2771, 4294901760
      %2822 = vmatprep.subr.mxu0 %v2821
      %v2823 = vand.u32 %v2770, 4294901760
      %2824 = vmatpush1.msra.mxu0 %v2823
      %v2825 = vand.u32 %v2773, 4294901760
      %2826 = vmatprep.subr.mxu0 %v2825
      %v2827 = vand.u32 %v2772, 4294901760
      %2828 = vmatpush1.msra.mxu0 %v2827
      %2829 = vmatprep.subr.mxu0 0.0
      %2830 = vmatpush1.msra.mxu0 0.0
      %2831 = vmatprep.subr.mxu0 0.0
      %2832 = vmatpush1.msra.mxu0 0.0
      %2833 = vmatprep.subr.mxu0 0.0
      %2834 = vmatpush1.msra.mxu0 0.0
      %2835 = vmatprep.subr.mxu0 0.0
      %2836 = vmatpush1.msra.mxu0 0.0
      %2837 = vmatprep.subr.mxu0 0.0
      %2838 = vmatpush1.msra.mxu0 0.0
      %2839 = vmatprep.subr.mxu0 0.0
      %2840 = vmatpush1.msra.mxu0 0.0
      %2841 = vmatprep.subr.mxu0 0.0
      %2842 = vmatpush1.msra.mxu0 0.0
      %2843 = vmatprep.subr.mxu0 0.0
      %2844 = vmatpush1.msra.mxu0 0.0
      %2845 = vmatprep.subr.mxu0 0.0
      %2846 = vmatpush1.msra.mxu0 0.0
      %2847 = vmatprep.subr.mxu0 0.0
      %2848 = vmatpush1.msra.mxu0 0.0
      %2849 = vmatprep.subr.mxu0 0.0
      %2850 = vmatpush1.msra.mxu0 0.0
      %2851 = vmatprep.subr.mxu0 0.0
      %2852 = vmatpush1.msra.mxu0 0.0
      %2853 = vmatprep.subr.mxu0 0.0
      %2854 = vmatpush1.msra.mxu0 0.0
      %2855 = vmatprep.subr.mxu0 0.0
      %2856 = vmatpush1.msra.mxu0 0.0
      %2857 = vmatprep.subr.mxu0 0.0
      %2858 = vmatpush1.msra.mxu0 0.0
      %2859 = vmatprep.subr.mxu0 0.0
      %2860 = vmatpush1.msra.mxu0 0.0
      %2861 = vmatprep.subr.mxu0 0.0
      %2862 = vmatpush1.msra.mxu0 0.0
      %2863 = vmatprep.subr.mxu0 0.0
      %2864 = vmatpush1.msra.mxu0 0.0
      %2865 = vmatprep.subr.mxu0 0.0
      %2866 = vmatpush1.msra.mxu0 0.0
      %2867 = vmatprep.subr.mxu0 0.0
      %2868 = vmatpush1.msra.mxu0 0.0
      %2869 = vmatprep.subr.mxu0 0.0
      %2870 = vmatpush1.msra.mxu0 0.0
      %2871 = vmatprep.subr.mxu0 0.0
      %2872 = vmatpush1.msra.mxu0 0.0
      %2873 = vmatprep.subr.mxu0 0.0
      %2874 = vmatpush1.msra.mxu0 0.0
      %2875 = vmatprep.subr.mxu0 0.0
      %2876 = vmatpush1.msra.mxu0 0.0
      %2877 = vmatprep.subr.mxu0 0.0
      %2878 = vmatpush1.msra.mxu0 0.0
      %2879 = vmatprep.subr.mxu0 0.0
      %2880 = vmatpush1.msra.mxu0 0.0
      %2881 = vmatprep.subr.mxu0 0.0
      %2882 = vmatpush1.msra.mxu0 0.0
      %2883 = vmatprep.subr.mxu0 0.0
      %2884 = vmatpush1.msra.mxu0 0.0
      %2885 = vmatprep.subr.mxu0 0.0
      %2886 = vmatpush1.msra.mxu0 0.0
      %2887 = vmatprep.subr.mxu0 0.0
      %2888 = vmatpush1.msra.mxu0 0.0
      %2889 = vmatprep.mubr.f32.mxu0 0.0
      %v2890 = vand.u32 %v2810, 4294901760
      %v2891 = vsub.f32 %v2810, %v2890
      %v2892 = vand.u32 %v2891, 4294901760
      %v2893 = vsub.f32 %v2891, %v2892
      %v2894 = vand.u32 %v2893, 4294901760
      %2895 = vmatmul.mubr.f32.gmra.mrb[0].mxu0 %v2894
      %v2896 = vpop.f32.mrb[0].mxu0
      %v2897 = vadd.f32 %v2792, %v2896
      %v2898 = vpop.f32.mrb[0].mxu0
      %v2899 = vadd.f32 %v2792, %v2898
      %2900 = vmatprep.mubr.f32.mxu0 0.0
      %v2901 = vand.u32 %v2813, 4294901760
      %v2902 = vsub.f32 %v2813, %v2901
      %v2903 = vand.u32 %v2902, 4294901760
      %v2904 = vsub.f32 %v2902, %v2903
      %v2905 = vand.u32 %v2904, 4294901760
      %2906 = vmatmul.mubr.f32.gmra.mrb[0].mxu0 %v2905
      %v2907 = vpop.f32.mrb[0].mxu0
      %v2908 = vadd.f32 %v2797, %v2907
      %v2909 = vpop.f32.mrb[0].mxu0
      %v2910 = vadd.f32 %v2797, %v2909
      %2911 = vmatprep.mubr.f32.mxu0 0.0
      %v2912 = vand.u32 %v2816, 4294901760
      %v2913 = vsub.f32 %v2816, %v2912
      %v2914 = vand.u32 %v2913, 4294901760
      %v2915 = vsub.f32 %v2913, %v2914
      %v2916 = vand.u32 %v2915, 4294901760
      %2917 = vmatmul.mubr.f32.gmra.mrb[0].mxu0 %v2916
      %v2918 = vpop.f32.mrb[0].mxu0
      %v2919 = vadd.f32 %v2802, %v2918
      %v2920 = vpop.f32.mrb[0].mxu0
      %v2921 = vadd.f32 %v2802, %v2920
      %2922 = vmatprep.mubr.f32.mxu0 0.0
      %v2923 = vand.u32 %v2819, 4294901760
      %v2924 = vsub.f32 %v2819, %v2923
      %v2925 = vand.u32 %v2924, 4294901760
      %v2926 = vsub.f32 %v2924, %v2925
      %v2927 = vand.u32 %v2926, 4294901760
      %2928 = vmatmul.mubr.f32.gmra.mrb[0].mxu0 %v2927
      %v2929 = vpop.f32.mrb[0].mxu0
      %v2930 = vadd.f32 %v2807, %v2929
      %v2931 = vpop.f32.mrb[0].mxu0
      %v2932 = vadd.f32 %v2807, %v2931
      %2933 = vdwg.mxu0
      %v2934 = vand.u32 %v2771, 4294901760
      %v2935 = vsub.f32 %v2771, %v2934
      %v2936 = vand.u32 %v2935, 4294901760
      %v2937 = vsub.f32 %v2935, %v2936
      %v2938 = vand.u32 %v2937, 4294901760
      %2939 = vmatprep.subr.mxu0 %v2938
      %v2940 = vand.u32 %v2770, 4294901760
      %v2941 = vsub.f32 %v2770, %v2940
      %v2942 = vand.u32 %v2941, 4294901760
      %v2943 = vsub.f32 %v2941, %v2942
      %v2944 = vand.u32 %v2943, 4294901760
      %2945 = vmatpush1.msra.mxu0 %v2944
      %v2946 = vand.u32 %v2773, 4294901760
      %v2947 = vsub.f32 %v2773, %v2946
      %v2948 = vand.u32 %v2947, 4294901760
      %v2949 = vsub.f32 %v2947, %v2948
      %v2950 = vand.u32 %v2949, 4294901760
      %2951 = vmatprep.subr.mxu0 %v2950
      %v2952 = vand.u32 %v2772, 4294901760
      %v2953 = vsub.f32 %v2772, %v2952
      %v2954 = vand.u32 %v2953, 4294901760
      %v2955 = vsub.f32 %v2953, %v2954
      %v2956 = vand.u32 %v2955, 4294901760
      %2957 = vmatpush1.msra.mxu0 %v2956
      %2958 = vmatprep.subr.mxu0 0.0
      %2959 = vmatpush1.msra.mxu0 0.0
      %2960 = vmatprep.subr.mxu0 0.0
      %2961 = vmatpush1.msra.mxu0 0.0
      %2962 = vmatprep.subr.mxu0 0.0
      %2963 = vmatpush1.msra.mxu0 0.0
      %2964 = vmatprep.subr.mxu0 0.0
      %2965 = vmatpush1.msra.mxu0 0.0
      %2966 = vmatprep.subr.mxu0 0.0
      %2967 = vmatpush1.msra.mxu0 0.0
      %2968 = vmatprep.subr.mxu0 0.0
      %2969 = vmatpush1.msra.mxu0 0.0
      %2970 = vmatprep.subr.mxu0 0.0
      %2971 = vmatpush1.msra.mxu0 0.0
      %2972 = vmatprep.subr.mxu0 0.0
      %2973 = vmatpush1.msra.mxu0 0.0
      %2974 = vmatprep.subr.mxu0 0.0
      %2975 = vmatpush1.msra.mxu0 0.0
      %2976 = vmatprep.subr.mxu0 0.0
      %2977 = vmatpush1.msra.mxu0 0.0
      %2978 = vmatprep.subr.mxu0 0.0
      %2979 = vmatpush1.msra.mxu0 0.0
      %2980 = vmatprep.subr.mxu0 0.0
      %2981 = vmatpush1.msra.mxu0 0.0
      %2982 = vmatprep.subr.mxu0 0.0
      %2983 = vmatpush1.msra.mxu0 0.0
      %2984 = vmatprep.subr.mxu0 0.0
      %2985 = vmatpush1.msra.mxu0 0.0
      %2986 = vmatprep.subr.mxu0 0.0
      %2987 = vmatpush1.msra.mxu0 0.0
      %2988 = vmatprep.subr.mxu0 0.0
      %2989 = vmatpush1.msra.mxu0 0.0
      %2990 = vmatprep.subr.mxu0 0.0
      %2991 = vmatpush1.msra.mxu0 0.0
      %2992 = vmatprep.subr.mxu0 0.0
      %2993 = vmatpush1.msra.mxu0 0.0
      %2994 = vmatprep.subr.mxu0 0.0
      %2995 = vmatpush1.msra.mxu0 0.0
      %2996 = vmatprep.subr.mxu0 0.0
      %2997 = vmatpush1.msra.mxu0 0.0
      %2998 = vmatprep.subr.mxu0 0.0
      %2999 = vmatpush1.msra.mxu0 0.0
      %3000 = vmatprep.subr.mxu0 0.0
      %3001 = vmatpush1.msra.mxu0 0.0
      %3002 = vmatprep.subr.mxu0 0.0
      %3003 = vmatpush1.msra.mxu0 0.0
      %3004 = vmatprep.subr.mxu0 0.0
      %3005 = vmatpush1.msra.mxu0 0.0
      %3006 = vmatprep.subr.mxu0 0.0
      %3007 = vmatpush1.msra.mxu0 0.0
      %3008 = vmatprep.subr.mxu0 0.0
      %3009 = vmatpush1.msra.mxu0 0.0
      %3010 = vmatprep.subr.mxu0 0.0
      %3011 = vmatpush1.msra.mxu0 0.0
      %3012 = vmatprep.subr.mxu0 0.0
      %3013 = vmatpush1.msra.mxu0 0.0
      %3014 = vmatprep.subr.mxu0 0.0
      %3015 = vmatpush1.msra.mxu0 0.0
      %3016 = vmatprep.subr.mxu0 0.0
      %3017 = vmatpush1.msra.mxu0 0.0
      %3018 = vmatprep.mubr.f32.mxu0 0.0
      %v3019 = vand.u32 %v2810, 4294901760
      %3020 = vmatmul.mubr.f32.gmra.mrb[0].mxu0 %v3019
      %v3021 = vpop.f32.mrb[0].mxu0
      %v3022 = vadd.f32 %v2897, %v3021
      %v3023 = vpop.f32.mrb[0].mxu0
      %v3024 = vadd.f32 %v2899, %v3023
      %3025 = vmatprep.mubr.f32.mxu0 0.0
      %v3026 = vand.u32 %v2813, 4294901760
      %3027 = vmatmul.mubr.f32.gmra.mrb[0].mxu0 %v3026
      %v3028 = vpop.f32.mrb[0].mxu0
      %v3029 = vadd.f32 %v2908, %v3028
      %v3030 = vpop.f32.mrb[0].mxu0
      %v3031 = vadd.f32 %v2910, %v3030
      %3032 = vmatprep.mubr.f32.mxu0 0.0
      %v3033 = vand.u32 %v2816, 4294901760
      %3034 = vmatmul.mubr.f32.gmra.mrb[0].mxu0 %v3033
      %v3035 = vpop.f32.mrb[0].mxu0
      %v3036 = vadd.f32 %v2919, %v3035
      %v3037 = vpop.f32.mrb[0].mxu0
      %v3038 = vadd.f32 %v2921, %v3037
      %3039 = vmatprep.mubr.f32.mxu0 0.0
      %v3040 = vand.u32 %v2819, 4294901760
      %3041 = vmatmul.mubr.f32.gmra.mrb[0].mxu0 %v3040
      %v3042 = vpop.f32.mrb[0].mxu0
      %v3043 = vadd.f32 %v2930, %v3042
      %v3044 = vpop.f32.mrb[0].mxu0
      %v3045 = vadd.f32 %v2932, %v3044
      %3046 = vdwg.mxu0
      %v3047 = vand.u32 %v2771, 4294901760
      %v3048 = vsub.f32 %v2771, %v3047
      %3049 = vmatprep.subr.mxu0 %v3048
      %v3050 = vand.u32 %v2770, 4294901760
      %v3051 = vsub.f32 %v2770, %v3050
      %3052 = vmatpush1.msra.mxu0 %v3051
      %v3053 = vand.u32 %v2773, 4294901760
      %v3054 = vsub.f32 %v2773, %v3053
      %3055 = vmatprep.subr.mxu0 %v3054
      %v3056 = vand.u32 %v2772, 4294901760
      %v3057 = vsub.f32 %v2772, %v3056
      %3058 = vmatpush1.msra.mxu0 %v3057
      %3059 = vmatprep.subr.mxu0 0.0
      %3060 = vmatpush1.msra.mxu0 0.0
      %3061 = vmatprep.subr.mxu0 0.0
      %3062 = vmatpush1.msra.mxu0 0.0
      %3063 = vmatprep.subr.mxu0 0.0
      %3064 = vmatpush1.msra.mxu0 0.0
      %3065 = vmatprep.subr.mxu0 0.0
      %3066 = vmatpush1.msra.mxu0 0.0
      %3067 = vmatprep.subr.mxu0 0.0
      %3068 = vmatpush1.msra.mxu0 0.0
      %3069 = vmatprep.subr.mxu0 0.0
      %3070 = vmatpush1.msra.mxu0 0.0
      %3071 = vmatprep.subr.mxu0 0.0
      %3072 = vmatpush1.msra.mxu0 0.0
      %3073 = vmatprep.subr.mxu0 0.0
      %3074 = vmatpush1.msra.mxu0 0.0
      %3075 = vmatprep.subr.mxu0 0.0
      %3076 = vmatpush1.msra.mxu0 0.0
      %3077 = vmatprep.subr.mxu0 0.0
      %3078 = vmatpush1.msra.mxu0 0.0
      %3079 = vmatprep.subr.mxu0 0.0
      %3080 = vmatpush1.msra.mxu0 0.0
      %3081 = vmatprep.subr.mxu0 0.0
      %3082 = vmatpush1.msra.mxu0 0.0
      %3083 = vmatprep.subr.mxu0 0.0
      %3084 = vmatpush1.msra.mxu0 0.0
      %3085 = vmatprep.subr.mxu0 0.0
      %3086 = vmatpush1.msra.mxu0 0.0
      %3087 = vmatprep.subr.mxu0 0.0
      %3088 = vmatpush1.msra.mxu0 0.0
      %3089 = vmatprep.subr.mxu0 0.0
      %3090 = vmatpush1.msra.mxu0 0.0
      %3091 = vmatprep.subr.mxu0 0.0
      %3092 = vmatpush1.msra.mxu0 0.0
      %3093 = vmatprep.subr.mxu0 0.0
      %3094 = vmatpush1.msra.mxu0 0.0
      %3095 = vmatprep.subr.mxu0 0.0
      %3096 = vmatpush1.msra.mxu0 0.0
      %3097 = vmatprep.subr.mxu0 0.0
      %3098 = vmatpush1.msra.mxu0 0.0
      %3099 = vmatprep.subr.mxu0 0.0
      %3100 = vmatpush1.msra.mxu0 0.0
      %3101 = vmatprep.subr.mxu0 0.0
      %3102 = vmatpush1.msra.mxu0 0.0
      %3103 = vmatprep.subr.mxu0 0.0
      %3104 = vmatpush1.msra.mxu0 0.0
      %3105 = vmatprep.subr.mxu0 0.0
      %3106 = vmatpush1.msra.mxu0 0.0
      %3107 = vmatprep.subr.mxu0 0.0
      %3108 = vmatpush1.msra.mxu0 0.0
      %3109 = vmatprep.subr.mxu0 0.0
      %3110 = vmatpush1.msra.mxu0 0.0
      %3111 = vmatprep.subr.mxu0 0.0
      %3112 = vmatpush1.msra.mxu0 0.0
      %3113 = vmatprep.subr.mxu0 0.0
      %3114 = vmatpush1.msra.mxu0 0.0
      %3115 = vmatprep.subr.mxu0 0.0
      %3116 = vmatpush1.msra.mxu0 0.0
      %3117 = vmatprep.subr.mxu0 0.0
      %3118 = vmatpush1.msra.mxu0 0.0
      %3119 = vmatprep.mubr.f32.mxu0 0.0
      %v3120 = vand.u32 %v2810, 4294901760
      %v3121 = vsub.f32 %v2810, %v3120
      %3122 = vmatmul.mubr.f32.gmra.mrb[0].mxu0 %v3121
      %v3123 = vpop.f32.mrb[0].mxu0
      %v3124 = vadd.f32 %v3022, %v3123
      %v3125 = vpop.f32.mrb[0].mxu0
      %v3126 = vadd.f32 %v3024, %v3125
      %3127 = vmatprep.mubr.f32.mxu0 0.0
      %v3128 = vand.u32 %v2813, 4294901760
      %v3129 = vsub.f32 %v2813, %v3128
      %3130 = vmatmul.mubr.f32.gmra.mrb[0].mxu0 %v3129
      %v3131 = vpop.f32.mrb[0].mxu0
      %v3132 = vadd.f32 %v3029, %v3131
      %v3133 = vpop.f32.mrb[0].mxu0
      %v3134 = vadd.f32 %v3031, %v3133
      %3135 = vmatprep.mubr.f32.mxu0 0.0
      %v3136 = vand.u32 %v2816, 4294901760
      %v3137 = vsub.f32 %v2816, %v3136
      %3138 = vmatmul.mubr.f32.gmra.mrb[0].mxu0 %v3137
      %v3139 = vpop.f32.mrb[0].mxu0
      %v3140 = vadd.f32 %v3036, %v3139
      %v3141 = vpop.f32.mrb[0].mxu0
      %v3142 = vadd.f32 %v3038, %v3141
      %3143 = vmatprep.mubr.f32.mxu0 0.0
      %v3144 = vand.u32 %v2819, 4294901760
      %v3145 = vsub.f32 %v2819, %v3144
      %3146 = vmatmul.mubr.f32.gmra.mrb[0].mxu0 %v3145
      %v3147 = vpop.f32.mrb[0].mxu0
      %v3148 = vadd.f32 %v3043, %v3147
      %v3149 = vpop.f32.mrb[0].mxu0
      %v3150 = vadd.f32 %v3045, %v3149
      %3151 = vdwg.mxu0
      %v3152 = vand.u32 %v2771, 4294901760
      %3153 = vmatprep.subr.mxu0 %v3152
      %v3154 = vand.u32 %v2770, 4294901760
      %3155 = vmatpush1.msra.mxu0 %v3154
      %v3156 = vand.u32 %v2773, 4294901760
      %3157 = vmatprep.subr.mxu0 %v3156
      %v3158 = vand.u32 %v2772, 4294901760
      %3159 = vmatpush1.msra.mxu0 %v3158
      %3160 = vmatprep.subr.mxu0 0.0
      %3161 = vmatpush1.msra.mxu0 0.0
      %3162 = vmatprep.subr.mxu0 0.0
      %3163 = vmatpush1.msra.mxu0 0.0
      %3164 = vmatprep.subr.mxu0 0.0
      %3165 = vmatpush1.msra.mxu0 0.0
      %3166 = vmatprep.subr.mxu0 0.0
      %3167 = vmatpush1.msra.mxu0 0.0
      %3168 = vmatprep.subr.mxu0 0.0
      %3169 = vmatpush1.msra.mxu0 0.0
      %3170 = vmatprep.subr.mxu0 0.0
      %3171 = vmatpush1.msra.mxu0 0.0
      %3172 = vmatprep.subr.mxu0 0.0
      %3173 = vmatpush1.msra.mxu0 0.0
      %3174 = vmatprep.subr.mxu0 0.0
      %3175 = vmatpush1.msra.mxu0 0.0
      %3176 = vmatprep.subr.mxu0 0.0
      %3177 = vmatpush1.msra.mxu0 0.0
      %3178 = vmatprep.subr.mxu0 0.0
      %3179 = vmatpush1.msra.mxu0 0.0
      %3180 = vmatprep.subr.mxu0 0.0
      %3181 = vmatpush1.msra.mxu0 0.0
      %3182 = vmatprep.subr.mxu0 0.0
      %3183 = vmatpush1.msra.mxu0 0.0
      %3184 = vmatprep.subr.mxu0 0.0
      %3185 = vmatpush1.msra.mxu0 0.0
      %3186 = vmatprep.subr.mxu0 0.0
      %3187 = vmatpush1.msra.mxu0 0.0
      %3188 = vmatprep.subr.mxu0 0.0
      %3189 = vmatpush1.msra.mxu0 0.0
      %3190 = vmatprep.subr.mxu0 0.0
      %3191 = vmatpush1.msra.mxu0 0.0
      %3192 = vmatprep.subr.mxu0 0.0
      %3193 = vmatpush1.msra.mxu0 0.0
      %3194 = vmatprep.subr.mxu0 0.0
      %3195 = vmatpush1.msra.mxu0 0.0
      %3196 = vmatprep.subr.mxu0 0.0
      %3197 = vmatpush1.msra.mxu0 0.0
      %3198 = vmatprep.subr.mxu0 0.0
      %3199 = vmatpush1.msra.mxu0 0.0
      %3200 = vmatprep.subr.mxu0 0.0
      %3201 = vmatpush1.msra.mxu0 0.0
      %3202 = vmatprep.subr.mxu0 0.0
      %3203 = vmatpush1.msra.mxu0 0.0
      %3204 = vmatprep.subr.mxu0 0.0
      %3205 = vmatpush1.msra.mxu0 0.0
      %3206 = vmatprep.subr.mxu0 0.0
      %3207 = vmatpush1.msra.mxu0 0.0
      %3208 = vmatprep.subr.mxu0 0.0
      %3209 = vmatpush1.msra.mxu0 0.0
      %3210 = vmatprep.subr.mxu0 0.0
      %3211 = vmatpush1.msra.mxu0 0.0
      %3212 = vmatprep.subr.mxu0 0.0
      %3213 = vmatpush1.msra.mxu0 0.0
      %3214 = vmatprep.subr.mxu0 0.0
      %3215 = vmatpush1.msra.mxu0 0.0
      %3216 = vmatprep.subr.mxu0 0.0
      %3217 = vmatpush1.msra.mxu0 0.0
      %3218 = vmatprep.subr.mxu0 0.0
      %3219 = vmatpush1.msra.mxu0 0.0
      %3220 = vmatprep.mubr.f32.mxu0 0.0
      %v3221 = vand.u32 %v2810, 4294901760
      %v3222 = vsub.f32 %v2810, %v3221
      %v3223 = vand.u32 %v3222, 4294901760
      %3224 = vmatmul.mubr.f32.gmra.mrb[0].mxu0 %v3223
      %v3225 = vpop.f32.mrb[0].mxu0
      %v3226 = vadd.f32 %v3124, %v3225
      %v3227 = vpop.f32.mrb[0].mxu0
      %v3228 = vadd.f32 %v3126, %v3227
      %3229 = vmatprep.mubr.f32.mxu0 0.0
      %v3230 = vand.u32 %v2813, 4294901760
      %v3231 = vsub.f32 %v2813, %v3230
      %v3232 = vand.u32 %v3231, 4294901760
      %3233 = vmatmul.mubr.f32.gmra.mrb[0].mxu0 %v3232
      %v3234 = vpop.f32.mrb[0].mxu0
      %v3235 = vadd.f32 %v3132, %v3234
      %v3236 = vpop.f32.mrb[0].mxu0
      %v3237 = vadd.f32 %v3134, %v3236
      %3238 = vmatprep.mubr.f32.mxu0 0.0
      %v3239 = vand.u32 %v2816, 4294901760
      %v3240 = vsub.f32 %v2816, %v3239
      %v3241 = vand.u32 %v3240, 4294901760
      %3242 = vmatmul.mubr.f32.gmra.mrb[0].mxu0 %v3241
      %v3243 = vpop.f32.mrb[0].mxu0
      %v3244 = vadd.f32 %v3140, %v3243
      %v3245 = vpop.f32.mrb[0].mxu0
      %v3246 = vadd.f32 %v3142, %v3245
      %3247 = vmatprep.mubr.f32.mxu0 0.0
      %v3248 = vand.u32 %v2819, 4294901760
      %v3249 = vsub.f32 %v2819, %v3248
      %v3250 = vand.u32 %v3249, 4294901760
      %3251 = vmatmul.mubr.f32.gmra.mrb[0].mxu0 %v3250
      %v3252 = vpop.f32.mrb[0].mxu0
      %v3253 = vadd.f32 %v3148, %v3252
      %v3254 = vpop.f32.mrb[0].mxu0
      %v3255 = vadd.f32 %v3150, %v3254
      %3256 = vdwg.mxu0
      %v3257 = vand.u32 %v2771, 4294901760
      %v3258 = vsub.f32 %v2771, %v3257
      %v3259 = vand.u32 %v3258, 4294901760
      %3260 = vmatprep.subr.mxu0 %v3259
      %v3261 = vand.u32 %v2770, 4294901760
      %v3262 = vsub.f32 %v2770, %v3261
      %v3263 = vand.u32 %v3262, 4294901760
      %3264 = vmatpush1.msra.mxu0 %v3263
      %v3265 = vand.u32 %v2773, 4294901760
      %v3266 = vsub.f32 %v2773, %v3265
      %v3267 = vand.u32 %v3266, 4294901760
      %3268 = vmatprep.subr.mxu0 %v3267
      %v3269 = vand.u32 %v2772, 4294901760
      %v3270 = vsub.f32 %v2772, %v3269
      %v3271 = vand.u32 %v3270, 4294901760
      %3272 = vmatpush1.msra.mxu0 %v3271
      %3273 = vmatprep.subr.mxu0 0.0
      %3274 = vmatpush1.msra.mxu0 0.0
      %3275 = vmatprep.subr.mxu0 0.0
      %3276 = vmatpush1.msra.mxu0 0.0
      %3277 = vmatprep.subr.mxu0 0.0
      %3278 = vmatpush1.msra.mxu0 0.0
      %3279 = vmatprep.subr.mxu0 0.0
      %3280 = vmatpush1.msra.mxu0 0.0
      %3281 = vmatprep.subr.mxu0 0.0
      %3282 = vmatpush1.msra.mxu0 0.0
      %3283 = vmatprep.subr.mxu0 0.0
      %3284 = vmatpush1.msra.mxu0 0.0
      %3285 = vmatprep.subr.mxu0 0.0
      %3286 = vmatpush1.msra.mxu0 0.0
      %3287 = vmatprep.subr.mxu0 0.0
      %3288 = vmatpush1.msra.mxu0 0.0
      %3289 = vmatprep.subr.mxu0 0.0
      %3290 = vmatpush1.msra.mxu0 0.0
      %3291 = vmatprep.subr.mxu0 0.0
      %3292 = vmatpush1.msra.mxu0 0.0
      %3293 = vmatprep.subr.mxu0 0.0
      %3294 = vmatpush1.msra.mxu0 0.0
      %3295 = vmatprep.subr.mxu0 0.0
      %3296 = vmatpush1.msra.mxu0 0.0
      %3297 = vmatprep.subr.mxu0 0.0
      %3298 = vmatpush1.msra.mxu0 0.0
      %3299 = vmatprep.subr.mxu0 0.0
      %3300 = vmatpush1.msra.mxu0 0.0
      %3301 = vmatprep.subr.mxu0 0.0
      %3302 = vmatpush1.msra.mxu0 0.0
      %3303 = vmatprep.subr.mxu0 0.0
      %3304 = vmatpush1.msra.mxu0 0.0
      %3305 = vmatprep.subr.mxu0 0.0
      %3306 = vmatpush1.msra.mxu0 0.0
      %3307 = vmatprep.subr.mxu0 0.0
      %3308 = vmatpush1.msra.mxu0 0.0
      %3309 = vmatprep.subr.mxu0 0.0
      %3310 = vmatpush1.msra.mxu0 0.0
      %3311 = vmatprep.subr.mxu0 0.0
      %3312 = vmatpush1.msra.mxu0 0.0
      %3313 = vmatprep.subr.mxu0 0.0
      %3314 = vmatpush1.msra.mxu0 0.0
      %3315 = vmatprep.subr.mxu0 0.0
      %3316 = vmatpush1.msra.mxu0 0.0
      %3317 = vmatprep.subr.mxu0 0.0
      %3318 = vmatpush1.msra.mxu0 0.0
      %3319 = vmatprep.subr.mxu0 0.0
      %3320 = vmatpush1.msra.mxu0 0.0
      %3321 = vmatprep.subr.mxu0 0.0
      %3322 = vmatpush1.msra.mxu0 0.0
      %3323 = vmatprep.subr.mxu0 0.0
      %3324 = vmatpush1.msra.mxu0 0.0
      %3325 = vmatprep.subr.mxu0 0.0
      %3326 = vmatpush1.msra.mxu0 0.0
      %3327 = vmatprep.subr.mxu0 0.0
      %3328 = vmatpush1.msra.mxu0 0.0
      %3329 = vmatprep.subr.mxu0 0.0
      %3330 = vmatpush1.msra.mxu0 0.0
      %3331 = vmatprep.subr.mxu0 0.0
      %3332 = vmatpush1.msra.mxu0 0.0
      %3333 = vmatprep.mubr.f32.mxu0 0.0
      %v3334 = vand.u32 %v2810, 4294901760
      %3335 = vmatmul.mubr.f32.gmra.mrb[0].mxu0 %v3334
      %v3336 = vpop.f32.mrb[0].mxu0
      %v3337 = vadd.f32 %v3226, %v3336
      %v3338 = vpop.f32.mrb[0].mxu0
      %v3339 = vadd.f32 %v3228, %v3338
      %3340 = vmatprep.mubr.f32.mxu0 0.0
      %v3341 = vand.u32 %v2813, 4294901760
      %3342 = vmatmul.mubr.f32.gmra.mrb[0].mxu0 %v3341
      %v3343 = vpop.f32.mrb[0].mxu0
      %v3344 = vadd.f32 %v3235, %v3343
      %v3345 = vpop.f32.mrb[0].mxu0
      %v3346 = vadd.f32 %v3237, %v3345
      %3347 = vmatprep.mubr.f32.mxu0 0.0
      %v3348 = vand.u32 %v2816, 4294901760
      %3349 = vmatmul.mubr.f32.gmra.mrb[0].mxu0 %v3348
      %v3350 = vpop.f32.mrb[0].mxu0
      %v3351 = vadd.f32 %v3244, %v3350
      %v3352 = vpop.f32.mrb[0].mxu0
      %v3353 = vadd.f32 %v3246, %v3352
      %3354 = vmatprep.mubr.f32.mxu0 0.0
      %v3355 = vand.u32 %v2819, 4294901760
      %3356 = vmatmul.mubr.f32.gmra.mrb[0].mxu0 %v3355
      %v3357 = vpop.f32.mrb[0].mxu0
      %v3358 = vadd.f32 %v3253, %v3357
      %v3359 = vpop.f32.mrb[0].mxu0
      %v3360 = vadd.f32 %v3255, %v3359
      %3361 = vdwg.mxu0
      %v3362 = vand.u32 %v2771, 4294901760
      %3363 = vmatprep.subr.mxu0 %v3362
      %v3364 = vand.u32 %v2770, 4294901760
      %3365 = vmatpush1.msra.mxu0 %v3364
      %v3366 = vand.u32 %v2773, 4294901760
      %3367 = vmatprep.subr.mxu0 %v3366
      %v3368 = vand.u32 %v2772, 4294901760
      %3369 = vmatpush1.msra.mxu0 %v3368
      %3370 = vmatprep.subr.mxu0 0.0
      %3371 = vmatpush1.msra.mxu0 0.0
      %3372 = vmatprep.subr.mxu0 0.0
      %3373 = vmatpush1.msra.mxu0 0.0
      %3374 = vmatprep.subr.mxu0 0.0
      %3375 = vmatpush1.msra.mxu0 0.0
      %3376 = vmatprep.subr.mxu0 0.0
      %3377 = vmatpush1.msra.mxu0 0.0
      %3378 = vmatprep.subr.mxu0 0.0
      %3379 = vmatpush1.msra.mxu0 0.0
      %3380 = vmatprep.subr.mxu0 0.0
      %3381 = vmatpush1.msra.mxu0 0.0
      %3382 = vmatprep.subr.mxu0 0.0
      %3383 = vmatpush1.msra.mxu0 0.0
      %3384 = vmatprep.subr.mxu0 0.0
      %3385 = vmatpush1.msra.mxu0 0.0
      %3386 = vmatprep.subr.mxu0 0.0
      %3387 = vmatpush1.msra.mxu0 0.0
      %3388 = vmatprep.subr.mxu0 0.0
      %3389 = vmatpush1.msra.mxu0 0.0
      %3390 = vmatprep.subr.mxu0 0.0
      %3391 = vmatpush1.msra.mxu0 0.0
      %3392 = vmatprep.subr.mxu0 0.0
      %3393 = vmatpush1.msra.mxu0 0.0
      %3394 = vmatprep.subr.mxu0 0.0
      %3395 = vmatpush1.msra.mxu0 0.0
      %3396 = vmatprep.subr.mxu0 0.0
      %3397 = vmatpush1.msra.mxu0 0.0
      %3398 = vmatprep.subr.mxu0 0.0
      %3399 = vmatpush1.msra.mxu0 0.0
      %3400 = vmatprep.subr.mxu0 0.0
      %3401 = vmatpush1.msra.mxu0 0.0
      %3402 = vmatprep.subr.mxu0 0.0
      %3403 = vmatpush1.msra.mxu0 0.0
      %3404 = vmatprep.subr.mxu0 0.0
      %3405 = vmatpush1.msra.mxu0 0.0
      %3406 = vmatprep.subr.mxu0 0.0
      %3407 = vmatpush1.msra.mxu0 0.0
      %3408 = vmatprep.subr.mxu0 0.0
      %3409 = vmatpush1.msra.mxu0 0.0
      %3410 = vmatprep.subr.mxu0 0.0
      %3411 = vmatpush1.msra.mxu0 0.0
      %3412 = vmatprep.subr.mxu0 0.0
      %3413 = vmatpush1.msra.mxu0 0.0
      %3414 = vmatprep.subr.mxu0 0.0
      %3415 = vmatpush1.msra.mxu0 0.0
      %3416 = vmatprep.subr.mxu0 0.0
      %3417 = vmatpush1.msra.mxu0 0.0
      %3418 = vmatprep.subr.mxu0 0.0
      %3419 = vmatpush1.msra.mxu0 0.0
      %3420 = vmatprep.subr.mxu0 0.0
      %3421 = vmatpush1.msra.mxu0 0.0
      %3422 = vmatprep.subr.mxu0 0.0
      %3423 = vmatpush1.msra.mxu0 0.0
      %3424 = vmatprep.subr.mxu0 0.0
      %3425 = vmatpush1.msra.mxu0 0.0
      %3426 = vmatprep.subr.mxu0 0.0
      %3427 = vmatpush1.msra.mxu0 0.0
      %3428 = vmatprep.subr.mxu0 0.0
      %3429 = vmatpush1.msra.mxu0 0.0
      %3430 = vmatprep.mubr.f32.mxu0 0.0
      %v3431 = vand.u32 %v2810, 4294901760
      %3432 = vmatmul.mubr.f32.gmra.mrb[0].mxu0 %v3431
      %v3433 = vpop.f32.mrb[0].mxu0
      %v3434 = vadd.f32 %v3337, %v3433
      %v3435 = vpop.f32.mrb[0].mxu0
      %v3436 = vadd.f32 %v3339, %v3435
      %3437 = vmatprep.mubr.f32.mxu0 0.0
      %v3438 = vand.u32 %v2813, 4294901760
      %3439 = vmatmul.mubr.f32.gmra.mrb[0].mxu0 %v3438
      %v3440 = vpop.f32.mrb[0].mxu0
      %v3441 = vadd.f32 %v3344, %v3440
      %v3442 = vpop.f32.mrb[0].mxu0
      %v3443 = vadd.f32 %v3346, %v3442
      %3444 = vmatprep.mubr.f32.mxu0 0.0
      %v3445 = vand.u32 %v2816, 4294901760
      %3446 = vmatmul.mubr.f32.gmra.mrb[0].mxu0 %v3445
      %v3447 = vpop.f32.mrb[0].mxu0
      %v3448 = vadd.f32 %v3351, %v3447
      %v3449 = vpop.f32.mrb[0].mxu0
      %v3450 = vadd.f32 %v3353, %v3449
      %3451 = vmatprep.mubr.f32.mxu0 0.0
      %v3452 = vand.u32 %v2819, 4294901760
      %3453 = vmatmul.mubr.f32.gmra.mrb[0].mxu0 %v3452
      %v3454 = vpop.f32.mrb[0].mxu0
      %v3455 = vadd.f32 %v3358, %v3454
      %v3456 = vpop.f32.mrb[0].mxu0
      %v3457 = vadd.f32 %v3360, %v3456
      %3458 = vdwg.mxu0
      %v3459 = vtanh.pop %v3434
      %v3460 = vtanh.pop %v3436
      %v3461 = vtanh.pop %v3441
      %v3462 = vtanh.pop %v3443
      %v3463 = vtanh.pop %v3448
      %v3464 = vtanh.pop %v3450
      %v3465 = vtanh.pop %v3455
      %v3466 = vtanh.pop %v3457
      %s3467 = scalar_lea.vmem %s3, 32
      %v3468 = vld [vmem:[%s3467] sm:$0xff]
      %v3469 = vld [vmem:[%s3467 + $0x8] sm:$0xff]
      %v3470 = vld [vmem:[%s3467 + $0x10] sm:$0xff]
      %v3471 = vld [vmem:[%s3467 + $0x18] sm:$0xff]
      %s3472 = scalar_lea.vmem %s4, 32
      %v3473 = vld [vmem:[%s3472] sm:$0xff]
      %v3474 = vld [vmem:[%s3472 + $0x8] sm:$0xff]
      %v3475 = vld [vmem:[%s3472 + $0x10] sm:$0xff]
      %v3476 = vld [vmem:[%s3472 + $0x18] sm:$0xff]
      %3478 = vset.pattern.permute.xlu0 0
      %3479 = vperm.xlu0 %3478, %v3473
      %v3480 = vpop.permute.xlu0 %3479
      %3483 = vset.pattern.permute.xlu0 0
      %3484 = vperm.xlu0 %3483, %v3474
      %v3485 = vpop.permute.xlu0 %3484
      %3488 = vset.pattern.permute.xlu0 0
      %3489 = vperm.xlu0 %3488, %v3475
      %v3490 = vpop.permute.xlu0 %3489
      %3493 = vset.pattern.permute.xlu0 0
      %3494 = vperm.xlu0 %3493, %v3476
      %v3495 = vpop.permute.xlu0 %3494
      %v3498 = vsel %vm2023, %v3468, 0
      %v3501 = vsel %vm2023, %v3469, 0
      %v3504 = vsel %vm2023, %v3470, 0
      %v3507 = vsel %vm2023, %v3471, 0
      %v3509 = vand.u32 %v3460, 4294901760
      %3510 = vmatprep.subr.mxu0 %v3509
      %v3511 = vand.u32 %v3459, 4294901760
      %3512 = vmatpush1.msra.mxu0 %v3511
      %v3513 = vand.u32 %v3462, 4294901760
      %3514 = vmatprep.subr.mxu0 %v3513
      %v3515 = vand.u32 %v3461, 4294901760
      %3516 = vmatpush1.msra.mxu0 %v3515
      %v3517 = vand.u32 %v3464, 4294901760
      %3518 = vmatprep.subr.mxu0 %v3517
      %v3519 = vand.u32 %v3463, 4294901760
      %3520 = vmatpush1.msra.mxu0 %v3519
      %v3521 = vand.u32 %v3466, 4294901760
      %3522 = vmatprep.subr.mxu0 %v3521
      %v3523 = vand.u32 %v3465, 4294901760
      %3524 = vmatpush1.msra.mxu0 %v3523
      %3525 = vmatprep.subr.mxu0 0.0
      %3526 = vmatpush1.msra.mxu0 0.0
      %3527 = vmatprep.subr.mxu0 0.0
      %3528 = vmatpush1.msra.mxu0 0.0
      %3529 = vmatprep.subr.mxu0 0.0
      %3530 = vmatpush1.msra.mxu0 0.0
      %3531 = vmatprep.subr.mxu0 0.0
      %3532 = vmatpush1.msra.mxu0 0.0
      %3533 = vmatprep.subr.mxu0 0.0
      %3534 = vmatpush1.msra.mxu0 0.0
      %3535 = vmatprep.subr.mxu0 0.0
      %3536 = vmatpush1.msra.mxu0 0.0
      %3537 = vmatprep.subr.mxu0 0.0
      %3538 = vmatpush1.msra.mxu0 0.0
      %3539 = vmatprep.subr.mxu0 0.0
      %3540 = vmatpush1.msra.mxu0 0.0
      %3541 = vmatprep.subr.mxu0 0.0
      %3542 = vmatpush1.msra.mxu0 0.0
      %3543 = vmatprep.subr.mxu0 0.0
      %3544 = vmatpush1.msra.mxu0 0.0
      %3545 = vmatprep.subr.mxu0 0.0
      %3546 = vmatpush1.msra.mxu0 0.0
      %3547 = vmatprep.subr.mxu0 0.0
      %3548 = vmatpush1.msra.mxu0 0.0
      %3549 = vmatprep.subr.mxu0 0.0
      %3550 = vmatpush1.msra.mxu0 0.0
      %3551 = vmatprep.subr.mxu0 0.0
      %3552 = vmatpush1.msra.mxu0 0.0
      %3553 = vmatprep.subr.mxu0 0.0
      %3554 = vmatpush1.msra.mxu0 0.0
      %3555 = vmatprep.subr.mxu0 0.0
      %3556 = vmatpush1.msra.mxu0 0.0
      %3557 = vmatprep.subr.mxu0 0.0
      %3558 = vmatpush1.msra.mxu0 0.0
      %3559 = vmatprep.subr.mxu0 0.0
      %3560 = vmatpush1.msra.mxu0 0.0
      %3561 = vmatprep.subr.mxu0 0.0
      %3562 = vmatpush1.msra.mxu0 0.0
      %3563 = vmatprep.subr.mxu0 0.0
      %3564 = vmatpush1.msra.mxu0 0.0
      %3565 = vmatprep.subr.mxu0 0.0
      %3566 = vmatpush1.msra.mxu0 0.0
      %3567 = vmatprep.subr.mxu0 0.0
      %3568 = vmatpush1.msra.mxu0 0.0
      %3569 = vmatprep.subr.mxu0 0.0
      %3570 = vmatpush1.msra.mxu0 0.0
      %3571 = vmatprep.subr.mxu0 0.0
      %3572 = vmatpush1.msra.mxu0 0.0
      %3573 = vmatprep.subr.mxu0 0.0
      %3574 = vmatpush1.msra.mxu0 0.0
      %3575 = vmatprep.subr.mxu0 0.0
      %3576 = vmatpush1.msra.mxu0 0.0
      %3577 = vmatprep.subr.mxu0 0.0
      %3578 = vmatpush1.msra.mxu0 0.0
      %3579 = vmatprep.subr.mxu0 0.0
      %3580 = vmatpush1.msra.mxu0 0.0
      %3581 = vmatprep.mubr.f32.mxu0 0.0
      %v3582 = vand.u32 %v3498, 4294901760
      %v3583 = vsub.f32 %v3498, %v3582
      %v3584 = vand.u32 %v3583, 4294901760
      %v3585 = vsub.f32 %v3583, %v3584
      %v3586 = vand.u32 %v3585, 4294901760
      %3587 = vmatmul.mubr.f32.gmra.mrb[0].mxu0 %v3586
      %v3588 = vpop.f32.mrb[0].mxu0
      %v3589 = vadd.f32 %v3480, %v3588
      %v3590 = vpop.f32.mrb[0].mxu0
      %v3591 = vadd.f32 %v3480, %v3590
      %3592 = vmatprep.mubr.f32.mxu0 0.0
      %v3593 = vand.u32 %v3501, 4294901760
      %v3594 = vsub.f32 %v3501, %v3593
      %v3595 = vand.u32 %v3594, 4294901760
      %v3596 = vsub.f32 %v3594, %v3595
      %v3597 = vand.u32 %v3596, 4294901760
      %3598 = vmatmul.mubr.f32.gmra.mrb[0].mxu0 %v3597
      %v3599 = vpop.f32.mrb[0].mxu0
      %v3600 = vadd.f32 %v3485, %v3599
      %v3601 = vpop.f32.mrb[0].mxu0
      %v3602 = vadd.f32 %v3485, %v3601
      %3603 = vmatprep.mubr.f32.mxu0 0.0
      %v3604 = vand.u32 %v3504, 4294901760
      %v3605 = vsub.f32 %v3504, %v3604
      %v3606 = vand.u32 %v3605, 4294901760
      %v3607 = vsub.f32 %v3605, %v3606
      %v3608 = vand.u32 %v3607, 4294901760
      %3609 = vmatmul.mubr.f32.gmra.mrb[0].mxu0 %v3608
      %v3610 = vpop.f32.mrb[0].mxu0
      %v3611 = vadd.f32 %v3490, %v3610
      %v3612 = vpop.f32.mrb[0].mxu0
      %v3613 = vadd.f32 %v3490, %v3612
      %3614 = vmatprep.mubr.f32.mxu0 0.0
      %v3615 = vand.u32 %v3507, 4294901760
      %v3616 = vsub.f32 %v3507, %v3615
      %v3617 = vand.u32 %v3616, 4294901760
      %v3618 = vsub.f32 %v3616, %v3617
      %v3619 = vand.u32 %v3618, 4294901760
      %3620 = vmatmul.mubr.f32.gmra.mrb[0].mxu0 %v3619
      %v3621 = vpop.f32.mrb[0].mxu0
      %v3622 = vadd.f32 %v3495, %v3621
      %v3623 = vpop.f32.mrb[0].mxu0
      %v3624 = vadd.f32 %v3495, %v3623
      %3625 = vdwg.mxu0
      %v3626 = vand.u32 %v3460, 4294901760
      %v3627 = vsub.f32 %v3460, %v3626
      %v3628 = vand.u32 %v3627, 4294901760
      %v3629 = vsub.f32 %v3627, %v3628
      %v3630 = vand.u32 %v3629, 4294901760
      %3631 = vmatprep.subr.mxu0 %v3630
      %v3632 = vand.u32 %v3459, 4294901760
      %v3633 = vsub.f32 %v3459, %v3632
      %v3634 = vand.u32 %v3633, 4294901760
      %v3635 = vsub.f32 %v3633, %v3634
      %v3636 = vand.u32 %v3635, 4294901760
      %3637 = vmatpush1.msra.mxu0 %v3636
      %v3638 = vand.u32 %v3462, 4294901760
      %v3639 = vsub.f32 %v3462, %v3638
      %v3640 = vand.u32 %v3639, 4294901760
      %v3641 = vsub.f32 %v3639, %v3640
      %v3642 = vand.u32 %v3641, 4294901760
      %3643 = vmatprep.subr.mxu0 %v3642
      %v3644 = vand.u32 %v3461, 4294901760
      %v3645 = vsub.f32 %v3461, %v3644
      %v3646 = vand.u32 %v3645, 4294901760
      %v3647 = vsub.f32 %v3645, %v3646
      %v3648 = vand.u32 %v3647, 4294901760
      %3649 = vmatpush1.msra.mxu0 %v3648
      %v3650 = vand.u32 %v3464, 4294901760
      %v3651 = vsub.f32 %v3464, %v3650
      %v3652 = vand.u32 %v3651, 4294901760
      %v3653 = vsub.f32 %v3651, %v3652
      %v3654 = vand.u32 %v3653, 4294901760
      %3655 = vmatprep.subr.mxu0 %v3654
      %v3656 = vand.u32 %v3463, 4294901760
      %v3657 = vsub.f32 %v3463, %v3656
      %v3658 = vand.u32 %v3657, 4294901760
      %v3659 = vsub.f32 %v3657, %v3658
      %v3660 = vand.u32 %v3659, 4294901760
      %3661 = vmatpush1.msra.mxu0 %v3660
      %v3662 = vand.u32 %v3466, 4294901760
      %v3663 = vsub.f32 %v3466, %v3662
      %v3664 = vand.u32 %v3663, 4294901760
      %v3665 = vsub.f32 %v3663, %v3664
      %v3666 = vand.u32 %v3665, 4294901760
      %3667 = vmatprep.subr.mxu0 %v3666
      %v3668 = vand.u32 %v3465, 4294901760
      %v3669 = vsub.f32 %v3465, %v3668
      %v3670 = vand.u32 %v3669, 4294901760
      %v3671 = vsub.f32 %v3669, %v3670
      %v3672 = vand.u32 %v3671, 4294901760
      %3673 = vmatpush1.msra.mxu0 %v3672
      %3674 = vmatprep.subr.mxu0 0.0
      %3675 = vmatpush1.msra.mxu0 0.0
      %3676 = vmatprep.subr.mxu0 0.0
      %3677 = vmatpush1.msra.mxu0 0.0
      %3678 = vmatprep.subr.mxu0 0.0
      %3679 = vmatpush1.msra.mxu0 0.0
      %3680 = vmatprep.subr.mxu0 0.0
      %3681 = vmatpush1.msra.mxu0 0.0
      %3682 = vmatprep.subr.mxu0 0.0
      %3683 = vmatpush1.msra.mxu0 0.0
      %3684 = vmatprep.subr.mxu0 0.0
      %3685 = vmatpush1.msra.mxu0 0.0
      %3686 = vmatprep.subr.mxu0 0.0
      %3687 = vmatpush1.msra.mxu0 0.0
      %3688 = vmatprep.subr.mxu0 0.0
      %3689 = vmatpush1.msra.mxu0 0.0
      %3690 = vmatprep.subr.mxu0 0.0
      %3691 = vmatpush1.msra.mxu0 0.0
      %3692 = vmatprep.subr.mxu0 0.0
      %3693 = vmatpush1.msra.mxu0 0.0
      %3694 = vmatprep.subr.mxu0 0.0
      %3695 = vmatpush1.msra.mxu0 0.0
      %3696 = vmatprep.subr.mxu0 0.0
      %3697 = vmatpush1.msra.mxu0 0.0
      %3698 = vmatprep.subr.mxu0 0.0
      %3699 = vmatpush1.msra.mxu0 0.0
      %3700 = vmatprep.subr.mxu0 0.0
      %3701 = vmatpush1.msra.mxu0 0.0
      %3702 = vmatprep.subr.mxu0 0.0
      %3703 = vmatpush1.msra.mxu0 0.0
      %3704 = vmatprep.subr.mxu0 0.0
      %3705 = vmatpush1.msra.mxu0 0.0
      %3706 = vmatprep.subr.mxu0 0.0
      %3707 = vmatpush1.msra.mxu0 0.0
      %3708 = vmatprep.subr.mxu0 0.0
      %3709 = vmatpush1.msra.mxu0 0.0
      %3710 = vmatprep.subr.mxu0 0.0
      %3711 = vmatpush1.msra.mxu0 0.0
      %3712 = vmatprep.subr.mxu0 0.0
      %3713 = vmatpush1.msra.mxu0 0.0
      %3714 = vmatprep.subr.mxu0 0.0
      %3715 = vmatpush1.msra.mxu0 0.0
      %3716 = vmatprep.subr.mxu0 0.0
      %3717 = vmatpush1.msra.mxu0 0.0
      %3718 = vmatprep.subr.mxu0 0.0
      %3719 = vmatpush1.msra.mxu0 0.0
      %3720 = vmatprep.subr.mxu0 0.0
      %3721 = vmatpush1.msra.mxu0 0.0
      %3722 = vmatprep.subr.mxu0 0.0
      %3723 = vmatpush1.msra.mxu0 0.0
      %3724 = vmatprep.subr.mxu0 0.0
      %3725 = vmatpush1.msra.mxu0 0.0
      %3726 = vmatprep.subr.mxu0 0.0
      %3727 = vmatpush1.msra.mxu0 0.0
      %3728 = vmatprep.subr.mxu0 0.0
      %3729 = vmatpush1.msra.mxu0 0.0
      %3730 = vmatprep.mubr.f32.mxu0 0.0
      %v3731 = vand.u32 %v3498, 4294901760
      %3732 = vmatmul.mubr.f32.gmra.mrb[0].mxu0 %v3731
      %v3733 = vpop.f32.mrb[0].mxu0
      %v3734 = vadd.f32 %v3589, %v3733
      %v3735 = vpop.f32.mrb[0].mxu0
      %v3736 = vadd.f32 %v3591, %v3735
      %3737 = vmatprep.mubr.f32.mxu0 0.0
      %v3738 = vand.u32 %v3501, 4294901760
      %3739 = vmatmul.mubr.f32.gmra.mrb[0].mxu0 %v3738
      %v3740 = vpop.f32.mrb[0].mxu0
      %v3741 = vadd.f32 %v3600, %v3740
      %v3742 = vpop.f32.mrb[0].mxu0
      %v3743 = vadd.f32 %v3602, %v3742
      %3744 = vmatprep.mubr.f32.mxu0 0.0
      %v3745 = vand.u32 %v3504, 4294901760
      %3746 = vmatmul.mubr.f32.gmra.mrb[0].mxu0 %v3745
      %v3747 = vpop.f32.mrb[0].mxu0
      %v3748 = vadd.f32 %v3611, %v3747
      %v3749 = vpop.f32.mrb[0].mxu0
      %v3750 = vadd.f32 %v3613, %v3749
      %3751 = vmatprep.mubr.f32.mxu0 0.0
      %v3752 = vand.u32 %v3507, 4294901760
      %3753 = vmatmul.mubr.f32.gmra.mrb[0].mxu0 %v3752
      %v3754 = vpop.f32.mrb[0].mxu0
      %v3755 = vadd.f32 %v3622, %v3754
      %v3756 = vpop.f32.mrb[0].mxu0
      %v3757 = vadd.f32 %v3624, %v3756
      %3758 = vdwg.mxu0
      %v3759 = vand.u32 %v3460, 4294901760
      %v3760 = vsub.f32 %v3460, %v3759
      %3761 = vmatprep.subr.mxu0 %v3760
      %v3762 = vand.u32 %v3459, 4294901760
      %v3763 = vsub.f32 %v3459, %v3762
      %3764 = vmatpush1.msra.mxu0 %v3763
      %v3765 = vand.u32 %v3462, 4294901760
      %v3766 = vsub.f32 %v3462, %v3765
      %3767 = vmatprep.subr.mxu0 %v3766
      %v3768 = vand.u32 %v3461, 4294901760
      %v3769 = vsub.f32 %v3461, %v3768
      %3770 = vmatpush1.msra.mxu0 %v3769
      %v3771 = vand.u32 %v3464, 4294901760
      %v3772 = vsub.f32 %v3464, %v3771
      %3773 = vmatprep.subr.mxu0 %v3772
      %v3774 = vand.u32 %v3463, 4294901760
      %v3775 = vsub.f32 %v3463, %v3774
      %3776 = vmatpush1.msra.mxu0 %v3775
      %v3777 = vand.u32 %v3466, 4294901760
      %v3778 = vsub.f32 %v3466, %v3777
      %3779 = vmatprep.subr.mxu0 %v3778
      %v3780 = vand.u32 %v3465, 4294901760
      %v3781 = vsub.f32 %v3465, %v3780
      %3782 = vmatpush1.msra.mxu0 %v3781
      %3783 = vmatprep.subr.mxu0 0.0
      %3784 = vmatpush1.msra.mxu0 0.0
      %3785 = vmatprep.subr.mxu0 0.0
      %3786 = vmatpush1.msra.mxu0 0.0
      %3787 = vmatprep.subr.mxu0 0.0
      %3788 = vmatpush1.msra.mxu0 0.0
      %3789 = vmatprep.subr.mxu0 0.0
      %3790 = vmatpush1.msra.mxu0 0.0
      %3791 = vmatprep.subr.mxu0 0.0
      %3792 = vmatpush1.msra.mxu0 0.0
      %3793 = vmatprep.subr.mxu0 0.0
      %3794 = vmatpush1.msra.mxu0 0.0
      %3795 = vmatprep.subr.mxu0 0.0
      %3796 = vmatpush1.msra.mxu0 0.0
      %3797 = vmatprep.subr.mxu0 0.0
      %3798 = vmatpush1.msra.mxu0 0.0
      %3799 = vmatprep.subr.mxu0 0.0
      %3800 = vmatpush1.msra.mxu0 0.0
      %3801 = vmatprep.subr.mxu0 0.0
      %3802 = vmatpush1.msra.mxu0 0.0
      %3803 = vmatprep.subr.mxu0 0.0
      %3804 = vmatpush1.msra.mxu0 0.0
      %3805 = vmatprep.subr.mxu0 0.0
      %3806 = vmatpush1.msra.mxu0 0.0
      %3807 = vmatprep.subr.mxu0 0.0
      %3808 = vmatpush1.msra.mxu0 0.0
      %3809 = vmatprep.subr.mxu0 0.0
      %3810 = vmatpush1.msra.mxu0 0.0
      %3811 = vmatprep.subr.mxu0 0.0
      %3812 = vmatpush1.msra.mxu0 0.0
      %3813 = vmatprep.subr.mxu0 0.0
      %3814 = vmatpush1.msra.mxu0 0.0
      %3815 = vmatprep.subr.mxu0 0.0
      %3816 = vmatpush1.msra.mxu0 0.0
      %3817 = vmatprep.subr.mxu0 0.0
      %3818 = vmatpush1.msra.mxu0 0.0
      %3819 = vmatprep.subr.mxu0 0.0
      %3820 = vmatpush1.msra.mxu0 0.0
      %3821 = vmatprep.subr.mxu0 0.0
      %3822 = vmatpush1.msra.mxu0 0.0
      %3823 = vmatprep.subr.mxu0 0.0
      %3824 = vmatpush1.msra.mxu0 0.0
      %3825 = vmatprep.subr.mxu0 0.0
      %3826 = vmatpush1.msra.mxu0 0.0
      %3827 = vmatprep.subr.mxu0 0.0
      %3828 = vmatpush1.msra.mxu0 0.0
      %3829 = vmatprep.subr.mxu0 0.0
      %3830 = vmatpush1.msra.mxu0 0.0
      %3831 = vmatprep.subr.mxu0 0.0
      %3832 = vmatpush1.msra.mxu0 0.0
      %3833 = vmatprep.subr.mxu0 0.0
      %3834 = vmatpush1.msra.mxu0 0.0
      %3835 = vmatprep.subr.mxu0 0.0
      %3836 = vmatpush1.msra.mxu0 0.0
      %3837 = vmatprep.subr.mxu0 0.0
      %3838 = vmatpush1.msra.mxu0 0.0
      %3839 = vmatprep.mubr.f32.mxu0 0.0
      %v3840 = vand.u32 %v3498, 4294901760
      %v3841 = vsub.f32 %v3498, %v3840
      %3842 = vmatmul.mubr.f32.gmra.mrb[0].mxu0 %v3841
      %v3843 = vpop.f32.mrb[0].mxu0
      %v3844 = vadd.f32 %v3734, %v3843
      %v3845 = vpop.f32.mrb[0].mxu0
      %v3846 = vadd.f32 %v3736, %v3845
      %3847 = vmatprep.mubr.f32.mxu0 0.0
      %v3848 = vand.u32 %v3501, 4294901760
      %v3849 = vsub.f32 %v3501, %v3848
      %3850 = vmatmul.mubr.f32.gmra.mrb[0].mxu0 %v3849
      %v3851 = vpop.f32.mrb[0].mxu0
      %v3852 = vadd.f32 %v3741, %v3851
      %v3853 = vpop.f32.mrb[0].mxu0
      %v3854 = vadd.f32 %v3743, %v3853
      %3855 = vmatprep.mubr.f32.mxu0 0.0
      %v3856 = vand.u32 %v3504, 4294901760
      %v3857 = vsub.f32 %v3504, %v3856
      %3858 = vmatmul.mubr.f32.gmra.mrb[0].mxu0 %v3857
      %v3859 = vpop.f32.mrb[0].mxu0
      %v3860 = vadd.f32 %v3748, %v3859
      %v3861 = vpop.f32.mrb[0].mxu0
      %v3862 = vadd.f32 %v3750, %v3861
      %3863 = vmatprep.mubr.f32.mxu0 0.0
      %v3864 = vand.u32 %v3507, 4294901760
      %v3865 = vsub.f32 %v3507, %v3864
      %3866 = vmatmul.mubr.f32.gmra.mrb[0].mxu0 %v3865
      %v3867 = vpop.f32.mrb[0].mxu0
      %v3868 = vadd.f32 %v3755, %v3867
      %v3869 = vpop.f32.mrb[0].mxu0
      %v3870 = vadd.f32 %v3757, %v3869
      %3871 = vdwg.mxu0
      %v3872 = vand.u32 %v3460, 4294901760
      %3873 = vmatprep.subr.mxu0 %v3872
      %v3874 = vand.u32 %v3459, 4294901760
      %3875 = vmatpush1.msra.mxu0 %v3874
      %v3876 = vand.u32 %v3462, 4294901760
      %3877 = vmatprep.subr.mxu0 %v3876
      %v3878 = vand.u32 %v3461, 4294901760
      %3879 = vmatpush1.msra.mxu0 %v3878
      %v3880 = vand.u32 %v3464, 4294901760
      %3881 = vmatprep.subr.mxu0 %v3880
      %v3882 = vand.u32 %v3463, 4294901760
      %3883 = vmatpush1.msra.mxu0 %v3882
      %v3884 = vand.u32 %v3466, 4294901760
      %3885 = vmatprep.subr.mxu0 %v3884
      %v3886 = vand.u32 %v3465, 4294901760
      %3887 = vmatpush1.msra.mxu0 %v3886
      %3888 = vmatprep.subr.mxu0 0.0
      %3889 = vmatpush1.msra.mxu0 0.0
      %3890 = vmatprep.subr.mxu0 0.0
      %3891 = vmatpush1.msra.mxu0 0.0
      %3892 = vmatprep.subr.mxu0 0.0
      %3893 = vmatpush1.msra.mxu0 0.0
      %3894 = vmatprep.subr.mxu0 0.0
      %3895 = vmatpush1.msra.mxu0 0.0
      %3896 = vmatprep.subr.mxu0 0.0
      %3897 = vmatpush1.msra.mxu0 0.0
      %3898 = vmatprep.subr.mxu0 0.0
      %3899 = vmatpush1.msra.mxu0 0.0
      %3900 = vmatprep.subr.mxu0 0.0
      %3901 = vmatpush1.msra.mxu0 0.0
      %3902 = vmatprep.subr.mxu0 0.0
      %3903 = vmatpush1.msra.mxu0 0.0
      %3904 = vmatprep.subr.mxu0 0.0
      %3905 = vmatpush1.msra.mxu0 0.0
      %3906 = vmatprep.subr.mxu0 0.0
      %3907 = vmatpush1.msra.mxu0 0.0
      %3908 = vmatprep.subr.mxu0 0.0
      %3909 = vmatpush1.msra.mxu0 0.0
      %3910 = vmatprep.subr.mxu0 0.0
      %3911 = vmatpush1.msra.mxu0 0.0
      %3912 = vmatprep.subr.mxu0 0.0
      %3913 = vmatpush1.msra.mxu0 0.0
      %3914 = vmatprep.subr.mxu0 0.0
      %3915 = vmatpush1.msra.mxu0 0.0
      %3916 = vmatprep.subr.mxu0 0.0
      %3917 = vmatpush1.msra.mxu0 0.0
      %3918 = vmatprep.subr.mxu0 0.0
      %3919 = vmatpush1.msra.mxu0 0.0
      %3920 = vmatprep.subr.mxu0 0.0
      %3921 = vmatpush1.msra.mxu0 0.0
      %3922 = vmatprep.subr.mxu0 0.0
      %3923 = vmatpush1.msra.mxu0 0.0
      %3924 = vmatprep.subr.mxu0 0.0
      %3925 = vmatpush1.msra.mxu0 0.0
      %3926 = vmatprep.subr.mxu0 0.0
      %3927 = vmatpush1.msra.mxu0 0.0
      %3928 = vmatprep.subr.mxu0 0.0
      %3929 = vmatpush1.msra.mxu0 0.0
      %3930 = vmatprep.subr.mxu0 0.0
      %3931 = vmatpush1.msra.mxu0 0.0
      %3932 = vmatprep.subr.mxu0 0.0
      %3933 = vmatpush1.msra.mxu0 0.0
      %3934 = vmatprep.subr.mxu0 0.0
      %3935 = vmatpush1.msra.mxu0 0.0
      %3936 = vmatprep.subr.mxu0 0.0
      %3937 = vmatpush1.msra.mxu0 0.0
      %3938 = vmatprep.subr.mxu0 0.0
      %3939 = vmatpush1.msra.mxu0 0.0
      %3940 = vmatprep.subr.mxu0 0.0
      %3941 = vmatpush1.msra.mxu0 0.0
      %3942 = vmatprep.subr.mxu0 0.0
      %3943 = vmatpush1.msra.mxu0 0.0
      %3944 = vmatprep.mubr.f32.mxu0 0.0
      %v3945 = vand.u32 %v3498, 4294901760
      %v3946 = vsub.f32 %v3498, %v3945
      %v3947 = vand.u32 %v3946, 4294901760
      %3948 = vmatmul.mubr.f32.gmra.mrb[0].mxu0 %v3947
      %v3949 = vpop.f32.mrb[0].mxu0
      %v3950 = vadd.f32 %v3844, %v3949
      %v3951 = vpop.f32.mrb[0].mxu0
      %v3952 = vadd.f32 %v3846, %v3951
      %3953 = vmatprep.mubr.f32.mxu0 0.0
      %v3954 = vand.u32 %v3501, 4294901760
      %v3955 = vsub.f32 %v3501, %v3954
      %v3956 = vand.u32 %v3955, 4294901760
      %3957 = vmatmul.mubr.f32.gmra.mrb[0].mxu0 %v3956
      %v3958 = vpop.f32.mrb[0].mxu0
      %v3959 = vadd.f32 %v3852, %v3958
      %v3960 = vpop.f32.mrb[0].mxu0
      %v3961 = vadd.f32 %v3854, %v3960
      %3962 = vmatprep.mubr.f32.mxu0 0.0
      %v3963 = vand.u32 %v3504, 4294901760
      %v3964 = vsub.f32 %v3504, %v3963
      %v3965 = vand.u32 %v3964, 4294901760
      %3966 = vmatmul.mubr.f32.gmra.mrb[0].mxu0 %v3965
      %v3967 = vpop.f32.mrb[0].mxu0
      %v3968 = vadd.f32 %v3860, %v3967
      %v3969 = vpop.f32.mrb[0].mxu0
      %v3970 = vadd.f32 %v3862, %v3969
      %3971 = vmatprep.mubr.f32.mxu0 0.0
      %v3972 = vand.u32 %v3507, 4294901760
      %v3973 = vsub.f32 %v3507, %v3972
      %v3974 = vand.u32 %v3973, 4294901760
      %3975 = vmatmul.mubr.f32.gmra.mrb[0].mxu0 %v3974
      %v3976 = vpop.f32.mrb[0].mxu0
      %v3977 = vadd.f32 %v3868, %v3976
      %v3978 = vpop.f32.mrb[0].mxu0
      %v3979 = vadd.f32 %v3870, %v3978
      %3980 = vdwg.mxu0
      %v3981 = vand.u32 %v3460, 4294901760
      %v3982 = vsub.f32 %v3460, %v3981
      %v3983 = vand.u32 %v3982, 4294901760
      %3984 = vmatprep.subr.mxu0 %v3983
      %v3985 = vand.u32 %v3459, 4294901760
      %v3986 = vsub.f32 %v3459, %v3985
      %v3987 = vand.u32 %v3986, 4294901760
      %3988 = vmatpush1.msra.mxu0 %v3987
      %v3989 = vand.u32 %v3462, 4294901760
      %v3990 = vsub.f32 %v3462, %v3989
      %v3991 = vand.u32 %v3990, 4294901760
      %3992 = vmatprep.subr.mxu0 %v3991
      %v3993 = vand.u32 %v3461, 4294901760
      %v3994 = vsub.f32 %v3461, %v3993
      %v3995 = vand.u32 %v3994, 4294901760
      %3996 = vmatpush1.msra.mxu0 %v3995
      %v3997 = vand.u32 %v3464, 4294901760
      %v3998 = vsub.f32 %v3464, %v3997
      %v3999 = vand.u32 %v3998, 4294901760
      %4000 = vmatprep.subr.mxu0 %v3999
      %v4001 = vand.u32 %v3463, 4294901760
      %v4002 = vsub.f32 %v3463, %v4001
      %v4003 = vand.u32 %v4002, 4294901760
      %4004 = vmatpush1.msra.mxu0 %v4003
      %v4005 = vand.u32 %v3466, 4294901760
      %v4006 = vsub.f32 %v3466, %v4005
      %v4007 = vand.u32 %v4006, 4294901760
      %4008 = vmatprep.subr.mxu0 %v4007
      %v4009 = vand.u32 %v3465, 4294901760
      %v4010 = vsub.f32 %v3465, %v4009
      %v4011 = vand.u32 %v4010, 4294901760
      %4012 = vmatpush1.msra.mxu0 %v4011
      %4013 = vmatprep.subr.mxu0 0.0
      %4014 = vmatpush1.msra.mxu0 0.0
      %4015 = vmatprep.subr.mxu0 0.0
      %4016 = vmatpush1.msra.mxu0 0.0
      %4017 = vmatprep.subr.mxu0 0.0
      %4018 = vmatpush1.msra.mxu0 0.0
      %4019 = vmatprep.subr.mxu0 0.0
      %4020 = vmatpush1.msra.mxu0 0.0
      %4021 = vmatprep.subr.mxu0 0.0
      %4022 = vmatpush1.msra.mxu0 0.0
      %4023 = vmatprep.subr.mxu0 0.0
      %4024 = vmatpush1.msra.mxu0 0.0
      %4025 = vmatprep.subr.mxu0 0.0
      %4026 = vmatpush1.msra.mxu0 0.0
      %4027 = vmatprep.subr.mxu0 0.0
      %4028 = vmatpush1.msra.mxu0 0.0
      %4029 = vmatprep.subr.mxu0 0.0
      %4030 = vmatpush1.msra.mxu0 0.0
      %4031 = vmatprep.subr.mxu0 0.0
      %4032 = vmatpush1.msra.mxu0 0.0
      %4033 = vmatprep.subr.mxu0 0.0
      %4034 = vmatpush1.msra.mxu0 0.0
      %4035 = vmatprep.subr.mxu0 0.0
      %4036 = vmatpush1.msra.mxu0 0.0
      %4037 = vmatprep.subr.mxu0 0.0
      %4038 = vmatpush1.msra.mxu0 0.0
      %4039 = vmatprep.subr.mxu0 0.0
      %4040 = vmatpush1.msra.mxu0 0.0
      %4041 = vmatprep.subr.mxu0 0.0
      %4042 = vmatpush1.msra.mxu0 0.0
      %4043 = vmatprep.subr.mxu0 0.0
      %4044 = vmatpush1.msra.mxu0 0.0
      %4045 = vmatprep.subr.mxu0 0.0
      %4046 = vmatpush1.msra.mxu0 0.0
      %4047 = vmatprep.subr.mxu0 0.0
      %4048 = vmatpush1.msra.mxu0 0.0
      %4049 = vmatprep.subr.mxu0 0.0
      %4050 = vmatpush1.msra.mxu0 0.0
      %4051 = vmatprep.subr.mxu0 0.0
      %4052 = vmatpush1.msra.mxu0 0.0
      %4053 = vmatprep.subr.mxu0 0.0
      %4054 = vmatpush1.msra.mxu0 0.0
      %4055 = vmatprep.subr.mxu0 0.0
      %4056 = vmatpush1.msra.mxu0 0.0
      %4057 = vmatprep.subr.mxu0 0.0
      %4058 = vmatpush1.msra.mxu0 0.0
      %4059 = vmatprep.subr.mxu0 0.0
      %4060 = vmatpush1.msra.mxu0 0.0
      %4061 = vmatprep.subr.mxu0 0.0
      %4062 = vmatpush1.msra.mxu0 0.0
      %4063 = vmatprep.subr.mxu0 0.0
      %4064 = vmatpush1.msra.mxu0 0.0
      %4065 = vmatprep.subr.mxu0 0.0
      %4066 = vmatpush1.msra.mxu0 0.0
      %4067 = vmatprep.subr.mxu0 0.0
      %4068 = vmatpush1.msra.mxu0 0.0
      %4069 = vmatprep.mubr.f32.mxu0 0.0
      %v4070 = vand.u32 %v3498, 4294901760
      %4071 = vmatmul.mubr.f32.gmra.mrb[0].mxu0 %v4070
      %v4072 = vpop.f32.mrb[0].mxu0
      %v4073 = vadd.f32 %v3950, %v4072
      %v4074 = vpop.f32.mrb[0].mxu0
      %v4075 = vadd.f32 %v3952, %v4074
      %4076 = vmatprep.mubr.f32.mxu0 0.0
      %v4077 = vand.u32 %v3501, 4294901760
      %4078 = vmatmul.mubr.f32.gmra.mrb[0].mxu0 %v4077
      %v4079 = vpop.f32.mrb[0].mxu0
      %v4080 = vadd.f32 %v3959, %v4079
      %v4081 = vpop.f32.mrb[0].mxu0
      %v4082 = vadd.f32 %v3961, %v4081
      %4083 = vmatprep.mubr.f32.mxu0 0.0
      %v4084 = vand.u32 %v3504, 4294901760
      %4085 = vmatmul.mubr.f32.gmra.mrb[0].mxu0 %v4084
      %v4086 = vpop.f32.mrb[0].mxu0
      %v4087 = vadd.f32 %v3968, %v4086
      %v4088 = vpop.f32.mrb[0].mxu0
      %v4089 = vadd.f32 %v3970, %v4088
      %4090 = vmatprep.mubr.f32.mxu0 0.0
      %v4091 = vand.u32 %v3507, 4294901760
      %4092 = vmatmul.mubr.f32.gmra.mrb[0].mxu0 %v4091
      %v4093 = vpop.f32.mrb[0].mxu0
      %v4094 = vadd.f32 %v3977, %v4093
      %v4095 = vpop.f32.mrb[0].mxu0
      %v4096 = vadd.f32 %v3979, %v4095
      %4097 = vdwg.mxu0
      %v4098 = vand.u32 %v3460, 4294901760
      %4099 = vmatprep.subr.mxu0 %v4098
      %v4100 = vand.u32 %v3459, 4294901760
      %4101 = vmatpush1.msra.mxu0 %v4100
      %v4102 = vand.u32 %v3462, 4294901760
      %4103 = vmatprep.subr.mxu0 %v4102
      %v4104 = vand.u32 %v3461, 4294901760
      %4105 = vmatpush1.msra.mxu0 %v4104
      %v4106 = vand.u32 %v3464, 4294901760
      %4107 = vmatprep.subr.mxu0 %v4106
      %v4108 = vand.u32 %v3463, 4294901760
      %4109 = vmatpush1.msra.mxu0 %v4108
      %v4110 = vand.u32 %v3466, 4294901760
      %4111 = vmatprep.subr.mxu0 %v4110
      %v4112 = vand.u32 %v3465, 4294901760
      %4113 = vmatpush1.msra.mxu0 %v4112
      %4114 = vmatprep.subr.mxu0 0.0
      %4115 = vmatpush1.msra.mxu0 0.0
      %4116 = vmatprep.subr.mxu0 0.0
      %4117 = vmatpush1.msra.mxu0 0.0
      %4118 = vmatprep.subr.mxu0 0.0
      %4119 = vmatpush1.msra.mxu0 0.0
      %4120 = vmatprep.subr.mxu0 0.0
      %4121 = vmatpush1.msra.mxu0 0.0
      %4122 = vmatprep.subr.mxu0 0.0
      %4123 = vmatpush1.msra.mxu0 0.0
      %4124 = vmatprep.subr.mxu0 0.0
      %4125 = vmatpush1.msra.mxu0 0.0
      %4126 = vmatprep.subr.mxu0 0.0
      %4127 = vmatpush1.msra.mxu0 0.0
      %4128 = vmatprep.subr.mxu0 0.0
      %4129 = vmatpush1.msra.mxu0 0.0
      %4130 = vmatprep.subr.mxu0 0.0
      %4131 = vmatpush1.msra.mxu0 0.0
      %4132 = vmatprep.subr.mxu0 0.0
      %4133 = vmatpush1.msra.mxu0 0.0
      %4134 = vmatprep.subr.mxu0 0.0
      %4135 = vmatpush1.msra.mxu0 0.0
      %4136 = vmatprep.subr.mxu0 0.0
      %4137 = vmatpush1.msra.mxu0 0.0
      %4138 = vmatprep.subr.mxu0 0.0
      %4139 = vmatpush1.msra.mxu0 0.0
      %4140 = vmatprep.subr.mxu0 0.0
      %4141 = vmatpush1.msra.mxu0 0.0
      %4142 = vmatprep.subr.mxu0 0.0
      %4143 = vmatpush1.msra.mxu0 0.0
      %4144 = vmatprep.subr.mxu0 0.0
      %4145 = vmatpush1.msra.mxu0 0.0
      %4146 = vmatprep.subr.mxu0 0.0
      %4147 = vmatpush1.msra.mxu0 0.0
      %4148 = vmatprep.subr.mxu0 0.0
      %4149 = vmatpush1.msra.mxu0 0.0
      %4150 = vmatprep.subr.mxu0 0.0
      %4151 = vmatpush1.msra.mxu0 0.0
      %4152 = vmatprep.subr.mxu0 0.0
      %4153 = vmatpush1.msra.mxu0 0.0
      %4154 = vmatprep.subr.mxu0 0.0
      %4155 = vmatpush1.msra.mxu0 0.0
      %4156 = vmatprep.subr.mxu0 0.0
      %4157 = vmatpush1.msra.mxu0 0.0
      %4158 = vmatprep.subr.mxu0 0.0
      %4159 = vmatpush1.msra.mxu0 0.0
      %4160 = vmatprep.subr.mxu0 0.0
      %4161 = vmatpush1.msra.mxu0 0.0
      %4162 = vmatprep.subr.mxu0 0.0
      %4163 = vmatpush1.msra.mxu0 0.0
      %4164 = vmatprep.subr.mxu0 0.0
      %4165 = vmatpush1.msra.mxu0 0.0
      %4166 = vmatprep.subr.mxu0 0.0
      %4167 = vmatpush1.msra.mxu0 0.0
      %4168 = vmatprep.subr.mxu0 0.0
      %4169 = vmatpush1.msra.mxu0 0.0
      %4170 = vmatprep.mubr.f32.mxu0 0.0
      %v4171 = vand.u32 %v3498, 4294901760
      %4172 = vmatmul.mubr.f32.gmra.mrb[0].mxu0 %v4171
      %v4173 = vpop.f32.mrb[0].mxu0
      %v4174 = vadd.f32 %v4073, %v4173
      %v4175 = vpop.f32.mrb[0].mxu0
      %v4176 = vadd.f32 %v4075, %v4175
      %4177 = vmatprep.mubr.f32.mxu0 0.0
      %v4178 = vand.u32 %v3501, 4294901760
      %4179 = vmatmul.mubr.f32.gmra.mrb[0].mxu0 %v4178
      %v4180 = vpop.f32.mrb[0].mxu0
      %v4181 = vadd.f32 %v4080, %v4180
      %v4182 = vpop.f32.mrb[0].mxu0
      %v4183 = vadd.f32 %v4082, %v4182
      %4184 = vmatprep.mubr.f32.mxu0 0.0
      %v4185 = vand.u32 %v3504, 4294901760
      %4186 = vmatmul.mubr.f32.gmra.mrb[0].mxu0 %v4185
      %v4187 = vpop.f32.mrb[0].mxu0
      %v4188 = vadd.f32 %v4087, %v4187
      %v4189 = vpop.f32.mrb[0].mxu0
      %v4190 = vadd.f32 %v4089, %v4189
      %4191 = vmatprep.mubr.f32.mxu0 0.0
      %v4192 = vand.u32 %v3507, 4294901760
      %4193 = vmatmul.mubr.f32.gmra.mrb[0].mxu0 %v4192
      %v4194 = vpop.f32.mrb[0].mxu0
      %v4195 = vadd.f32 %v4094, %v4194
      %v4196 = vpop.f32.mrb[0].mxu0
      %v4197 = vadd.f32 %v4096, %v4196
      %4198 = vdwg.mxu0
      %v4199 = vmul.f32 %v4174, 1.442695
      %v4200 = vpow.pop %v4199
      %v4201 = vmul.f32 %v4176, 1.442695
      %v4202 = vpow.pop %v4201
      %v4203 = vmul.f32 %v4181, 1.442695
      %v4204 = vpow.pop %v4203
      %v4205 = vmul.f32 %v4183, 1.442695
      %v4206 = vpow.pop %v4205
      %4208 = vset.pattern.permute.xlu0 0
      %4209 = vperm.xlu0 %4208, %v2777
      %v4210 = vpop.permute.xlu0 %4209
      %4213 = vset.pattern.permute.xlu0 0
      %4214 = vperm.xlu0 %4213, %v2778
      %v4215 = vpop.permute.xlu0 %4214
      %v4217 = vmul.f32 %v4210, %v4200
      %v4218 = vmul.f32 %v4210, %v4202
      %v4219 = vmul.f32 %v4215, %v4204
      %v4220 = vmul.f32 %v4215, %v4206
      %4222 = vset.pattern.permute.xlu0 0
      %4223 = vperm.xlu0 %4222, %v2775
      %v4224 = vpop.permute.xlu0 %4223
      %4227 = vset.pattern.permute.xlu0 0
      %4228 = vperm.xlu0 %4227, %v2776
      %v4229 = vpop.permute.xlu0 %4228
      %v4231 = vadd.f32 %v4224, %v4217
      %v4232 = vadd.f32 %v4224, %v4218
      %v4233 = vadd.f32 %v4229, %v4219
      %v4234 = vadd.f32 %v4229, %v4220
      %v4235 = vmul.f32 %v2770, %v4231
      %v4236 = vmul.f32 %v2771, %v4232
      %v4237 = vmul.f32 %v2772, %v4233
      %v4238 = vmul.f32 %v2773, %v4234
      %v4239 = vmul.f32 %v4210, %v4188
      %v4240 = vmul.f32 %v4210, %v4190
      %v4241 = vmul.f32 %v4215, %v4195
      %v4242 = vmul.f32 %v4215, %v4197
      %v4243 = vadd.f32 %v4235, %v4239
      %v4244 = vadd.f32 %v4236, %v4240
      %v4245 = vadd.f32 %v4237, %v4241
      %v4246 = vadd.f32 %v4238, %v4242
      %s4247 = scalar_lea.vmem %s0, 32
      %v4248 = vld [vmem:[%s4247] sm:$0xff]
      %v4249 = vld [vmem:[%s4247 + $0x8] sm:$0xff]
      %v4250 = vsub.f32 1.0, %v4248
      %v4251 = vsub.f32 1.0, %v4249
      %s4252 = scalar_lea.vmem %s1, 64
      %v4253 = vld [vmem:[%s4252] sm:$0xff]
      %v4254 = vld [vmem:[%s4252 + $0x8] sm:$0xff]
      %v4255 = vld [vmem:[%s4252 + $0x10] sm:$0xff]
      %v4256 = vld [vmem:[%s4252 + $0x18] sm:$0xff]
      %s4257 = scalar_lea.vmem %s2, 64
      %v4258 = vld [vmem:[%s4257] sm:$0xff]
      %v4259 = vld [vmem:[%s4257 + $0x8] sm:$0xff]
      %v4260 = vld [vmem:[%s4257 + $0x10] sm:$0xff]
      %v4261 = vld [vmem:[%s4257 + $0x18] sm:$0xff]
      %4263 = vset.pattern.permute.xlu0 0
      %4264 = vperm.xlu0 %4263, %v4258
      %v4265 = vpop.permute.xlu0 %4264
      %4268 = vset.pattern.permute.xlu0 0
      %4269 = vperm.xlu0 %4268, %v4259
      %v4270 = vpop.permute.xlu0 %4269
      %4273 = vset.pattern.permute.xlu0 0
      %4274 = vperm.xlu0 %4273, %v4260
      %v4275 = vpop.permute.xlu0 %4274
      %4278 = vset.pattern.permute.xlu0 0
      %4279 = vperm.xlu0 %4278, %v4261
      %v4280 = vpop.permute.xlu0 %4279
      %v4283 = vsel %vm298, %v4253, 0
      %v4286 = vsel %vm298, %v4254, 0
      %v4289 = vsel %vm298, %v4255, 0
      %v4292 = vsel %vm298, %v4256, 0
      %v4294 = vand.u32 %v4244, 4294901760
      %4295 = vmatprep.subr.mxu0 %v4294
      %v4296 = vand.u32 %v4243, 4294901760
      %4297 = vmatpush1.msra.mxu0 %v4296
      %v4298 = vand.u32 %v4246, 4294901760
      %4299 = vmatprep.subr.mxu0 %v4298
      %v4300 = vand.u32 %v4245, 4294901760
      %4301 = vmatpush1.msra.mxu0 %v4300
      %4302 = vmatprep.subr.mxu0 0.0
      %4303 = vmatpush1.msra.mxu0 0.0
      %4304 = vmatprep.subr.mxu0 0.0
      %4305 = vmatpush1.msra.mxu0 0.0
      %4306 = vmatprep.subr.mxu0 0.0
      %4307 = vmatpush1.msra.mxu0 0.0
      %4308 = vmatprep.subr.mxu0 0.0
      %4309 = vmatpush1.msra.mxu0 0.0
      %4310 = vmatprep.subr.mxu0 0.0
      %4311 = vmatpush1.msra.mxu0 0.0
      %4312 = vmatprep.subr.mxu0 0.0
      %4313 = vmatpush1.msra.mxu0 0.0
      %4314 = vmatprep.subr.mxu0 0.0
      %4315 = vmatpush1.msra.mxu0 0.0
      %4316 = vmatprep.subr.mxu0 0.0
      %4317 = vmatpush1.msra.mxu0 0.0
      %4318 = vmatprep.subr.mxu0 0.0
      %4319 = vmatpush1.msra.mxu0 0.0
      %4320 = vmatprep.subr.mxu0 0.0
      %4321 = vmatpush1.msra.mxu0 0.0
      %4322 = vmatprep.subr.mxu0 0.0
      %4323 = vmatpush1.msra.mxu0 0.0
      %4324 = vmatprep.subr.mxu0 0.0
      %4325 = vmatpush1.msra.mxu0 0.0
      %4326 = vmatprep.subr.mxu0 0.0
      %4327 = vmatpush1.msra.mxu0 0.0
      %4328 = vmatprep.subr.mxu0 0.0
      %4329 = vmatpush1.msra.mxu0 0.0
      %4330 = vmatprep.subr.mxu0 0.0
      %4331 = vmatpush1.msra.mxu0 0.0
      %4332 = vmatprep.subr.mxu0 0.0
      %4333 = vmatpush1.msra.mxu0 0.0
      %4334 = vmatprep.subr.mxu0 0.0
      %4335 = vmatpush1.msra.mxu0 0.0
      %4336 = vmatprep.subr.mxu0 0.0
      %4337 = vmatpush1.msra.mxu0 0.0
      %4338 = vmatprep.subr.mxu0 0.0
      %4339 = vmatpush1.msra.mxu0 0.0
      %4340 = vmatprep.subr.mxu0 0.0
      %4341 = vmatpush1.msra.mxu0 0.0
      %4342 = vmatprep.subr.mxu0 0.0
      %4343 = vmatpush1.msra.mxu0 0.0
      %4344 = vmatprep.subr.mxu0 0.0
      %4345 = vmatpush1.msra.mxu0 0.0
      %4346 = vmatprep.subr.mxu0 0.0
      %4347 = vmatpush1.msra.mxu0 0.0
      %4348 = vmatprep.subr.mxu0 0.0
      %4349 = vmatpush1.msra.mxu0 0.0
      %4350 = vmatprep.subr.mxu0 0.0
      %4351 = vmatpush1.msra.mxu0 0.0
      %4352 = vmatprep.subr.mxu0 0.0
      %4353 = vmatpush1.msra.mxu0 0.0
      %4354 = vmatprep.subr.mxu0 0.0
      %4355 = vmatpush1.msra.mxu0 0.0
      %4356 = vmatprep.subr.mxu0 0.0
      %4357 = vmatpush1.msra.mxu0 0.0
      %4358 = vmatprep.subr.mxu0 0.0
      %4359 = vmatpush1.msra.mxu0 0.0
      %4360 = vmatprep.subr.mxu0 0.0
      %4361 = vmatpush1.msra.mxu0 0.0
      %4362 = vmatprep.mubr.f32.mxu0 0.0
      %v4363 = vand.u32 %v4283, 4294901760
      %v4364 = vsub.f32 %v4283, %v4363
      %v4365 = vand.u32 %v4364, 4294901760
      %v4366 = vsub.f32 %v4364, %v4365
      %v4367 = vand.u32 %v4366, 4294901760
      %4368 = vmatmul.mubr.f32.gmra.mrb[0].mxu0 %v4367
      %v4369 = vpop.f32.mrb[0].mxu0
      %v4370 = vadd.f32 %v4265, %v4369
      %v4371 = vpop.f32.mrb[0].mxu0
      %v4372 = vadd.f32 %v4265, %v4371
      %4373 = vmatprep.mubr.f32.mxu0 0.0
      %v4374 = vand.u32 %v4286, 4294901760
      %v4375 = vsub.f32 %v4286, %v4374
      %v4376 = vand.u32 %v4375, 4294901760
      %v4377 = vsub.f32 %v4375, %v4376
      %v4378 = vand.u32 %v4377, 4294901760
      %4379 = vmatmul.mubr.f32.gmra.mrb[0].mxu0 %v4378
      %v4380 = vpop.f32.mrb[0].mxu0
      %v4381 = vadd.f32 %v4270, %v4380
      %v4382 = vpop.f32.mrb[0].mxu0
      %v4383 = vadd.f32 %v4270, %v4382
      %4384 = vmatprep.mubr.f32.mxu0 0.0
      %v4385 = vand.u32 %v4289, 4294901760
      %v4386 = vsub.f32 %v4289, %v4385
      %v4387 = vand.u32 %v4386, 4294901760
      %v4388 = vsub.f32 %v4386, %v4387
      %v4389 = vand.u32 %v4388, 4294901760
      %4390 = vmatmul.mubr.f32.gmra.mrb[0].mxu0 %v4389
      %v4391 = vpop.f32.mrb[0].mxu0
      %v4392 = vadd.f32 %v4275, %v4391
      %v4393 = vpop.f32.mrb[0].mxu0
      %v4394 = vadd.f32 %v4275, %v4393
      %4395 = vmatprep.mubr.f32.mxu0 0.0
      %v4396 = vand.u32 %v4292, 4294901760
      %v4397 = vsub.f32 %v4292, %v4396
      %v4398 = vand.u32 %v4397, 4294901760
      %v4399 = vsub.f32 %v4397, %v4398
      %v4400 = vand.u32 %v4399, 4294901760
      %4401 = vmatmul.mubr.f32.gmra.mrb[0].mxu0 %v4400
      %v4402 = vpop.f32.mrb[0].mxu0
      %v4403 = vadd.f32 %v4280, %v4402
      %v4404 = vpop.f32.mrb[0].mxu0
      %v4405 = vadd.f32 %v4280, %v4404
      %4406 = vdwg.mxu0
      %v4407 = vand.u32 %v4244, 4294901760
      %v4408 = vsub.f32 %v4244, %v4407
      %v4409 = vand.u32 %v4408, 4294901760
      %v4410 = vsub.f32 %v4408, %v4409
      %v4411 = vand.u32 %v4410, 4294901760
      %4412 = vmatprep.subr.mxu0 %v4411
      %v4413 = vand.u32 %v4243, 4294901760
      %v4414 = vsub.f32 %v4243, %v4413
      %v4415 = vand.u32 %v4414, 4294901760
      %v4416 = vsub.f32 %v4414, %v4415
      %v4417 = vand.u32 %v4416, 4294901760
      %4418 = vmatpush1.msra.mxu0 %v4417
      %v4419 = vand.u32 %v4246, 4294901760
      %v4420 = vsub.f32 %v4246, %v4419
      %v4421 = vand.u32 %v4420, 4294901760
      %v4422 = vsub.f32 %v4420, %v4421
      %v4423 = vand.u32 %v4422, 4294901760
      %4424 = vmatprep.subr.mxu0 %v4423
      %v4425 = vand.u32 %v4245, 4294901760
      %v4426 = vsub.f32 %v4245, %v4425
      %v4427 = vand.u32 %v4426, 4294901760
      %v4428 = vsub.f32 %v4426, %v4427
      %v4429 = vand.u32 %v4428, 4294901760
      %4430 = vmatpush1.msra.mxu0 %v4429
      %4431 = vmatprep.subr.mxu0 0.0
      %4432 = vmatpush1.msra.mxu0 0.0
      %4433 = vmatprep.subr.mxu0 0.0
      %4434 = vmatpush1.msra.mxu0 0.0
      %4435 = vmatprep.subr.mxu0 0.0
      %4436 = vmatpush1.msra.mxu0 0.0
      %4437 = vmatprep.subr.mxu0 0.0
      %4438 = vmatpush1.msra.mxu0 0.0
      %4439 = vmatprep.subr.mxu0 0.0
      %4440 = vmatpush1.msra.mxu0 0.0
      %4441 = vmatprep.subr.mxu0 0.0
      %4442 = vmatpush1.msra.mxu0 0.0
      %4443 = vmatprep.subr.mxu0 0.0
      %4444 = vmatpush1.msra.mxu0 0.0
      %4445 = vmatprep.subr.mxu0 0.0
      %4446 = vmatpush1.msra.mxu0 0.0
      %4447 = vmatprep.subr.mxu0 0.0
      %4448 = vmatpush1.msra.mxu0 0.0
      %4449 = vmatprep.subr.mxu0 0.0
      %4450 = vmatpush1.msra.mxu0 0.0
      %4451 = vmatprep.subr.mxu0 0.0
      %4452 = vmatpush1.msra.mxu0 0.0
      %4453 = vmatprep.subr.mxu0 0.0
      %4454 = vmatpush1.msra.mxu0 0.0
      %4455 = vmatprep.subr.mxu0 0.0
      %4456 = vmatpush1.msra.mxu0 0.0
      %4457 = vmatprep.subr.mxu0 0.0
      %4458 = vmatpush1.msra.mxu0 0.0
      %4459 = vmatprep.subr.mxu0 0.0
      %4460 = vmatpush1.msra.mxu0 0.0
      %4461 = vmatprep.subr.mxu0 0.0
      %4462 = vmatpush1.msra.mxu0 0.0
      %4463 = vmatprep.subr.mxu0 0.0
      %4464 = vmatpush1.msra.mxu0 0.0
      %4465 = vmatprep.subr.mxu0 0.0
      %4466 = vmatpush1.msra.mxu0 0.0
      %4467 = vmatprep.subr.mxu0 0.0
      %4468 = vmatpush1.msra.mxu0 0.0
      %4469 = vmatprep.subr.mxu0 0.0
      %4470 = vmatpush1.msra.mxu0 0.0
      %4471 = vmatprep.subr.mxu0 0.0
      %4472 = vmatpush1.msra.mxu0 0.0
      %4473 = vmatprep.subr.mxu0 0.0
      %4474 = vmatpush1.msra.mxu0 0.0
      %4475 = vmatprep.subr.mxu0 0.0
      %4476 = vmatpush1.msra.mxu0 0.0
      %4477 = vmatprep.subr.mxu0 0.0
      %4478 = vmatpush1.msra.mxu0 0.0
      %4479 = vmatprep.subr.mxu0 0.0
      %4480 = vmatpush1.msra.mxu0 0.0
      %4481 = vmatprep.subr.mxu0 0.0
      %4482 = vmatpush1.msra.mxu0 0.0
      %4483 = vmatprep.subr.mxu0 0.0
      %4484 = vmatpush1.msra.mxu0 0.0
      %4485 = vmatprep.subr.mxu0 0.0
      %4486 = vmatpush1.msra.mxu0 0.0
      %4487 = vmatprep.subr.mxu0 0.0
      %4488 = vmatpush1.msra.mxu0 0.0
      %4489 = vmatprep.subr.mxu0 0.0
      %4490 = vmatpush1.msra.mxu0 0.0
      %4491 = vmatprep.mubr.f32.mxu0 0.0
      %v4492 = vand.u32 %v4283, 4294901760
      %4493 = vmatmul.mubr.f32.gmra.mrb[0].mxu0 %v4492
      %v4494 = vpop.f32.mrb[0].mxu0
      %v4495 = vadd.f32 %v4370, %v4494
      %v4496 = vpop.f32.mrb[0].mxu0
      %v4497 = vadd.f32 %v4372, %v4496
      %4498 = vmatprep.mubr.f32.mxu0 0.0
      %v4499 = vand.u32 %v4286, 4294901760
      %4500 = vmatmul.mubr.f32.gmra.mrb[0].mxu0 %v4499
      %v4501 = vpop.f32.mrb[0].mxu0
      %v4502 = vadd.f32 %v4381, %v4501
      %v4503 = vpop.f32.mrb[0].mxu0
      %v4504 = vadd.f32 %v4383, %v4503
      %4505 = vmatprep.mubr.f32.mxu0 0.0
      %v4506 = vand.u32 %v4289, 4294901760
      %4507 = vmatmul.mubr.f32.gmra.mrb[0].mxu0 %v4506
      %v4508 = vpop.f32.mrb[0].mxu0
      %v4509 = vadd.f32 %v4392, %v4508
      %v4510 = vpop.f32.mrb[0].mxu0
      %v4511 = vadd.f32 %v4394, %v4510
      %4512 = vmatprep.mubr.f32.mxu0 0.0
      %v4513 = vand.u32 %v4292, 4294901760
      %4514 = vmatmul.mubr.f32.gmra.mrb[0].mxu0 %v4513
      %v4515 = vpop.f32.mrb[0].mxu0
      %v4516 = vadd.f32 %v4403, %v4515
      %v4517 = vpop.f32.mrb[0].mxu0
      %v4518 = vadd.f32 %v4405, %v4517
      %4519 = vdwg.mxu0
      %v4520 = vand.u32 %v4244, 4294901760
      %v4521 = vsub.f32 %v4244, %v4520
      %4522 = vmatprep.subr.mxu0 %v4521
      %v4523 = vand.u32 %v4243, 4294901760
      %v4524 = vsub.f32 %v4243, %v4523
      %4525 = vmatpush1.msra.mxu0 %v4524
      %v4526 = vand.u32 %v4246, 4294901760
      %v4527 = vsub.f32 %v4246, %v4526
      %4528 = vmatprep.subr.mxu0 %v4527
      %v4529 = vand.u32 %v4245, 4294901760
      %v4530 = vsub.f32 %v4245, %v4529
      %4531 = vmatpush1.msra.mxu0 %v4530
      %4532 = vmatprep.subr.mxu0 0.0
      %4533 = vmatpush1.msra.mxu0 0.0
      %4534 = vmatprep.subr.mxu0 0.0
      %4535 = vmatpush1.msra.mxu0 0.0
      %4536 = vmatprep.subr.mxu0 0.0
      %4537 = vmatpush1.msra.mxu0 0.0
      %4538 = vmatprep.subr.mxu0 0.0
      %4539 = vmatpush1.msra.mxu0 0.0
      %4540 = vmatprep.subr.mxu0 0.0
      %4541 = vmatpush1.msra.mxu0 0.0
      %4542 = vmatprep.subr.mxu0 0.0
      %4543 = vmatpush1.msra.mxu0 0.0
      %4544 = vmatprep.subr.mxu0 0.0
      %4545 = vmatpush1.msra.mxu0 0.0
      %4546 = vmatprep.subr.mxu0 0.0
      %4547 = vmatpush1.msra.mxu0 0.0
      %4548 = vmatprep.subr.mxu0 0.0
      %4549 = vmatpush1.msra.mxu0 0.0
      %4550 = vmatprep.subr.mxu0 0.0
      %4551 = vmatpush1.msra.mxu0 0.0
      %4552 = vmatprep.subr.mxu0 0.0
      %4553 = vmatpush1.msra.mxu0 0.0
      %4554 = vmatprep.subr.mxu0 0.0
      %4555 = vmatpush1.msra.mxu0 0.0
      %4556 = vmatprep.subr.mxu0 0.0
      %4557 = vmatpush1.msra.mxu0 0.0
      %4558 = vmatprep.subr.mxu0 0.0
      %4559 = vmatpush1.msra.mxu0 0.0
      %4560 = vmatprep.subr.mxu0 0.0
      %4561 = vmatpush1.msra.mxu0 0.0
      %4562 = vmatprep.subr.mxu0 0.0
      %4563 = vmatpush1.msra.mxu0 0.0
      %4564 = vmatprep.subr.mxu0 0.0
      %4565 = vmatpush1.msra.mxu0 0.0
      %4566 = vmatprep.subr.mxu0 0.0
      %4567 = vmatpush1.msra.mxu0 0.0
      %4568 = vmatprep.subr.mxu0 0.0
      %4569 = vmatpush1.msra.mxu0 0.0
      %4570 = vmatprep.subr.mxu0 0.0
      %4571 = vmatpush1.msra.mxu0 0.0
      %4572 = vmatprep.subr.mxu0 0.0
      %4573 = vmatpush1.msra.mxu0 0.0
      %4574 = vmatprep.subr.mxu0 0.0
      %4575 = vmatpush1.msra.mxu0 0.0
      %4576 = vmatprep.subr.mxu0 0.0
      %4577 = vmatpush1.msra.mxu0 0.0
      %4578 = vmatprep.subr.mxu0 0.0
      %4579 = vmatpush1.msra.mxu0 0.0
      %4580 = vmatprep.subr.mxu0 0.0
      %4581 = vmatpush1.msra.mxu0 0.0
      %4582 = vmatprep.subr.mxu0 0.0
      %4583 = vmatpush1.msra.mxu0 0.0
      %4584 = vmatprep.subr.mxu0 0.0
      %4585 = vmatpush1.msra.mxu0 0.0
      %4586 = vmatprep.subr.mxu0 0.0
      %4587 = vmatpush1.msra.mxu0 0.0
      %4588 = vmatprep.subr.mxu0 0.0
      %4589 = vmatpush1.msra.mxu0 0.0
      %4590 = vmatprep.subr.mxu0 0.0
      %4591 = vmatpush1.msra.mxu0 0.0
      %4592 = vmatprep.mubr.f32.mxu0 0.0
      %v4593 = vand.u32 %v4283, 4294901760
      %v4594 = vsub.f32 %v4283, %v4593
      %4595 = vmatmul.mubr.f32.gmra.mrb[0].mxu0 %v4594
      %v4596 = vpop.f32.mrb[0].mxu0
      %v4597 = vadd.f32 %v4495, %v4596
      %v4598 = vpop.f32.mrb[0].mxu0
      %v4599 = vadd.f32 %v4497, %v4598
      %4600 = vmatprep.mubr.f32.mxu0 0.0
      %v4601 = vand.u32 %v4286, 4294901760
      %v4602 = vsub.f32 %v4286, %v4601
      %4603 = vmatmul.mubr.f32.gmra.mrb[0].mxu0 %v4602
      %v4604 = vpop.f32.mrb[0].mxu0
      %v4605 = vadd.f32 %v4502, %v4604
      %v4606 = vpop.f32.mrb[0].mxu0
      %v4607 = vadd.f32 %v4504, %v4606
      %4608 = vmatprep.mubr.f32.mxu0 0.0
      %v4609 = vand.u32 %v4289, 4294901760
      %v4610 = vsub.f32 %v4289, %v4609
      %4611 = vmatmul.mubr.f32.gmra.mrb[0].mxu0 %v4610
      %v4612 = vpop.f32.mrb[0].mxu0
      %v4613 = vadd.f32 %v4509, %v4612
      %v4614 = vpop.f32.mrb[0].mxu0
      %v4615 = vadd.f32 %v4511, %v4614
      %4616 = vmatprep.mubr.f32.mxu0 0.0
      %v4617 = vand.u32 %v4292, 4294901760
      %v4618 = vsub.f32 %v4292, %v4617
      %4619 = vmatmul.mubr.f32.gmra.mrb[0].mxu0 %v4618
      %v4620 = vpop.f32.mrb[0].mxu0
      %v4621 = vadd.f32 %v4516, %v4620
      %v4622 = vpop.f32.mrb[0].mxu0
      %v4623 = vadd.f32 %v4518, %v4622
      %4624 = vdwg.mxu0
      %v4625 = vand.u32 %v4244, 4294901760
      %4626 = vmatprep.subr.mxu0 %v4625
      %v4627 = vand.u32 %v4243, 4294901760
      %4628 = vmatpush1.msra.mxu0 %v4627
      %v4629 = vand.u32 %v4246, 4294901760
      %4630 = vmatprep.subr.mxu0 %v4629
      %v4631 = vand.u32 %v4245, 4294901760
      %4632 = vmatpush1.msra.mxu0 %v4631
      %4633 = vmatprep.subr.mxu0 0.0
      %4634 = vmatpush1.msra.mxu0 0.0
      %4635 = vmatprep.subr.mxu0 0.0
      %4636 = vmatpush1.msra.mxu0 0.0
      %4637 = vmatprep.subr.mxu0 0.0
      %4638 = vmatpush1.msra.mxu0 0.0
      %4639 = vmatprep.subr.mxu0 0.0
      %4640 = vmatpush1.msra.mxu0 0.0
      %4641 = vmatprep.subr.mxu0 0.0
      %4642 = vmatpush1.msra.mxu0 0.0
      %4643 = vmatprep.subr.mxu0 0.0
      %4644 = vmatpush1.msra.mxu0 0.0
      %4645 = vmatprep.subr.mxu0 0.0
      %4646 = vmatpush1.msra.mxu0 0.0
      %4647 = vmatprep.subr.mxu0 0.0
      %4648 = vmatpush1.msra.mxu0 0.0
      %4649 = vmatprep.subr.mxu0 0.0
      %4650 = vmatpush1.msra.mxu0 0.0
      %4651 = vmatprep.subr.mxu0 0.0
      %4652 = vmatpush1.msra.mxu0 0.0
      %4653 = vmatprep.subr.mxu0 0.0
      %4654 = vmatpush1.msra.mxu0 0.0
      %4655 = vmatprep.subr.mxu0 0.0
      %4656 = vmatpush1.msra.mxu0 0.0
      %4657 = vmatprep.subr.mxu0 0.0
      %4658 = vmatpush1.msra.mxu0 0.0
      %4659 = vmatprep.subr.mxu0 0.0
      %4660 = vmatpush1.msra.mxu0 0.0
      %4661 = vmatprep.subr.mxu0 0.0
      %4662 = vmatpush1.msra.mxu0 0.0
      %4663 = vmatprep.subr.mxu0 0.0
      %4664 = vmatpush1.msra.mxu0 0.0
      %4665 = vmatprep.subr.mxu0 0.0
      %4666 = vmatpush1.msra.mxu0 0.0
      %4667 = vmatprep.subr.mxu0 0.0
      %4668 = vmatpush1.msra.mxu0 0.0
      %4669 = vmatprep.subr.mxu0 0.0
      %4670 = vmatpush1.msra.mxu0 0.0
      %4671 = vmatprep.subr.mxu0 0.0
      %4672 = vmatpush1.msra.mxu0 0.0
      %4673 = vmatprep.subr.mxu0 0.0
      %4674 = vmatpush1.msra.mxu0 0.0
      %4675 = vmatprep.subr.mxu0 0.0
      %4676 = vmatpush1.msra.mxu0 0.0
      %4677 = vmatprep.subr.mxu0 0.0
      %4678 = vmatpush1.msra.mxu0 0.0
      %4679 = vmatprep.subr.mxu0 0.0
      %4680 = vmatpush1.msra.mxu0 0.0
      %4681 = vmatprep.subr.mxu0 0.0
      %4682 = vmatpush1.msra.mxu0 0.0
      %4683 = vmatprep.subr.mxu0 0.0
      %4684 = vmatpush1.msra.mxu0 0.0
      %4685 = vmatprep.subr.mxu0 0.0
      %4686 = vmatpush1.msra.mxu0 0.0
      %4687 = vmatprep.subr.mxu0 0.0
      %4688 = vmatpush1.msra.mxu0 0.0
      %4689 = vmatprep.subr.mxu0 0.0
      %4690 = vmatpush1.msra.mxu0 0.0
      %4691 = vmatprep.subr.mxu0 0.0
      %4692 = vmatpush1.msra.mxu0 0.0
      %4693 = vmatprep.mubr.f32.mxu0 0.0
      %v4694 = vand.u32 %v4283, 4294901760
      %v4695 = vsub.f32 %v4283, %v4694
      %v4696 = vand.u32 %v4695, 4294901760
      %4697 = vmatmul.mubr.f32.gmra.mrb[0].mxu0 %v4696
      %v4698 = vpop.f32.mrb[0].mxu0
      %v4699 = vadd.f32 %v4597, %v4698
      %v4700 = vpop.f32.mrb[0].mxu0
      %v4701 = vadd.f32 %v4599, %v4700
      %4702 = vmatprep.mubr.f32.mxu0 0.0
      %v4703 = vand.u32 %v4286, 4294901760
      %v4704 = vsub.f32 %v4286, %v4703
      %v4705 = vand.u32 %v4704, 4294901760
      %4706 = vmatmul.mubr.f32.gmra.mrb[0].mxu0 %v4705
      %v4707 = vpop.f32.mrb[0].mxu0
      %v4708 = vadd.f32 %v4605, %v4707
      %v4709 = vpop.f32.mrb[0].mxu0
      %v4710 = vadd.f32 %v4607, %v4709
      %4711 = vmatprep.mubr.f32.mxu0 0.0
      %v4712 = vand.u32 %v4289, 4294901760
      %v4713 = vsub.f32 %v4289, %v4712
      %v4714 = vand.u32 %v4713, 4294901760
      %4715 = vmatmul.mubr.f32.gmra.mrb[0].mxu0 %v4714
      %v4716 = vpop.f32.mrb[0].mxu0
      %v4717 = vadd.f32 %v4613, %v4716
      %v4718 = vpop.f32.mrb[0].mxu0
      %v4719 = vadd.f32 %v4615, %v4718
      %4720 = vmatprep.mubr.f32.mxu0 0.0
      %v4721 = vand.u32 %v4292, 4294901760
      %v4722 = vsub.f32 %v4292, %v4721
      %v4723 = vand.u32 %v4722, 4294901760
      %4724 = vmatmul.mubr.f32.gmra.mrb[0].mxu0 %v4723
      %v4725 = vpop.f32.mrb[0].mxu0
      %v4726 = vadd.f32 %v4621, %v4725
      %v4727 = vpop.f32.mrb[0].mxu0
      %v4728 = vadd.f32 %v4623, %v4727
      %4729 = vdwg.mxu0
      %v4730 = vand.u32 %v4244, 4294901760
      %v4731 = vsub.f32 %v4244, %v4730
      %v4732 = vand.u32 %v4731, 4294901760
      %4733 = vmatprep.subr.mxu0 %v4732
      %v4734 = vand.u32 %v4243, 4294901760
      %v4735 = vsub.f32 %v4243, %v4734
      %v4736 = vand.u32 %v4735, 4294901760
      %4737 = vmatpush1.msra.mxu0 %v4736
      %v4738 = vand.u32 %v4246, 4294901760
      %v4739 = vsub.f32 %v4246, %v4738
      %v4740 = vand.u32 %v4739, 4294901760
      %4741 = vmatprep.subr.mxu0 %v4740
      %v4742 = vand.u32 %v4245, 4294901760
      %v4743 = vsub.f32 %v4245, %v4742
      %v4744 = vand.u32 %v4743, 4294901760
      %4745 = vmatpush1.msra.mxu0 %v4744
      %4746 = vmatprep.subr.mxu0 0.0
      %4747 = vmatpush1.msra.mxu0 0.0
      %4748 = vmatprep.subr.mxu0 0.0
      %4749 = vmatpush1.msra.mxu0 0.0
      %4750 = vmatprep.subr.mxu0 0.0
      %4751 = vmatpush1.msra.mxu0 0.0
      %4752 = vmatprep.subr.mxu0 0.0
      %4753 = vmatpush1.msra.mxu0 0.0
      %4754 = vmatprep.subr.mxu0 0.0
      %4755 = vmatpush1.msra.mxu0 0.0
      %4756 = vmatprep.subr.mxu0 0.0
      %4757 = vmatpush1.msra.mxu0 0.0
      %4758 = vmatprep.subr.mxu0 0.0
      %4759 = vmatpush1.msra.mxu0 0.0
      %4760 = vmatprep.subr.mxu0 0.0
      %4761 = vmatpush1.msra.mxu0 0.0
      %4762 = vmatprep.subr.mxu0 0.0
      %4763 = vmatpush1.msra.mxu0 0.0
      %4764 = vmatprep.subr.mxu0 0.0
      %4765 = vmatpush1.msra.mxu0 0.0
      %4766 = vmatprep.subr.mxu0 0.0
      %4767 = vmatpush1.msra.mxu0 0.0
      %4768 = vmatprep.subr.mxu0 0.0
      %4769 = vmatpush1.msra.mxu0 0.0
      %4770 = vmatprep.subr.mxu0 0.0
      %4771 = vmatpush1.msra.mxu0 0.0
      %4772 = vmatprep.subr.mxu0 0.0
      %4773 = vmatpush1.msra.mxu0 0.0
      %4774 = vmatprep.subr.mxu0 0.0
      %4775 = vmatpush1.msra.mxu0 0.0
      %4776 = vmatprep.subr.mxu0 0.0
      %4777 = vmatpush1.msra.mxu0 0.0
      %4778 = vmatprep.subr.mxu0 0.0
      %4779 = vmatpush1.msra.mxu0 0.0
      %4780 = vmatprep.subr.mxu0 0.0
      %4781 = vmatpush1.msra.mxu0 0.0
      %4782 = vmatprep.subr.mxu0 0.0
      %4783 = vmatpush1.msra.mxu0 0.0
      %4784 = vmatprep.subr.mxu0 0.0
      %4785 = vmatpush1.msra.mxu0 0.0
      %4786 = vmatprep.subr.mxu0 0.0
      %4787 = vmatpush1.msra.mxu0 0.0
      %4788 = vmatprep.subr.mxu0 0.0
      %4789 = vmatpush1.msra.mxu0 0.0
      %4790 = vmatprep.subr.mxu0 0.0
      %4791 = vmatpush1.msra.mxu0 0.0
      %4792 = vmatprep.subr.mxu0 0.0
      %4793 = vmatpush1.msra.mxu0 0.0
      %4794 = vmatprep.subr.mxu0 0.0
      %4795 = vmatpush1.msra.mxu0 0.0
      %4796 = vmatprep.subr.mxu0 0.0
      %4797 = vmatpush1.msra.mxu0 0.0
      %4798 = vmatprep.subr.mxu0 0.0
      %4799 = vmatpush1.msra.mxu0 0.0
      %4800 = vmatprep.subr.mxu0 0.0
      %4801 = vmatpush1.msra.mxu0 0.0
      %4802 = vmatprep.subr.mxu0 0.0
      %4803 = vmatpush1.msra.mxu0 0.0
      %4804 = vmatprep.subr.mxu0 0.0
      %4805 = vmatpush1.msra.mxu0 0.0
      %4806 = vmatprep.mubr.f32.mxu0 0.0
      %v4807 = vand.u32 %v4283, 4294901760
      %4808 = vmatmul.mubr.f32.gmra.mrb[0].mxu0 %v4807
      %v4809 = vpop.f32.mrb[0].mxu0
      %v4810 = vadd.f32 %v4699, %v4809
      %v4811 = vpop.f32.mrb[0].mxu0
      %v4812 = vadd.f32 %v4701, %v4811
      %4813 = vmatprep.mubr.f32.mxu0 0.0
      %v4814 = vand.u32 %v4286, 4294901760
      %4815 = vmatmul.mubr.f32.gmra.mrb[0].mxu0 %v4814
      %v4816 = vpop.f32.mrb[0].mxu0
      %v4817 = vadd.f32 %v4708, %v4816
      %v4818 = vpop.f32.mrb[0].mxu0
      %v4819 = vadd.f32 %v4710, %v4818
      %4820 = vmatprep.mubr.f32.mxu0 0.0
      %v4821 = vand.u32 %v4289, 4294901760
      %4822 = vmatmul.mubr.f32.gmra.mrb[0].mxu0 %v4821
      %v4823 = vpop.f32.mrb[0].mxu0
      %v4824 = vadd.f32 %v4717, %v4823
      %v4825 = vpop.f32.mrb[0].mxu0
      %v4826 = vadd.f32 %v4719, %v4825
      %4827 = vmatprep.mubr.f32.mxu0 0.0
      %v4828 = vand.u32 %v4292, 4294901760
      %4829 = vmatmul.mubr.f32.gmra.mrb[0].mxu0 %v4828
      %v4830 = vpop.f32.mrb[0].mxu0
      %v4831 = vadd.f32 %v4726, %v4830
      %v4832 = vpop.f32.mrb[0].mxu0
      %v4833 = vadd.f32 %v4728, %v4832
      %4834 = vdwg.mxu0
      %v4835 = vand.u32 %v4244, 4294901760
      %4836 = vmatprep.subr.mxu0 %v4835
      %v4837 = vand.u32 %v4243, 4294901760
      %4838 = vmatpush1.msra.mxu0 %v4837
      %v4839 = vand.u32 %v4246, 4294901760
      %4840 = vmatprep.subr.mxu0 %v4839
      %v4841 = vand.u32 %v4245, 4294901760
      %4842 = vmatpush1.msra.mxu0 %v4841
      %4843 = vmatprep.subr.mxu0 0.0
      %4844 = vmatpush1.msra.mxu0 0.0
      %4845 = vmatprep.subr.mxu0 0.0
      %4846 = vmatpush1.msra.mxu0 0.0
      %4847 = vmatprep.subr.mxu0 0.0
      %4848 = vmatpush1.msra.mxu0 0.0
      %4849 = vmatprep.subr.mxu0 0.0
      %4850 = vmatpush1.msra.mxu0 0.0
      %4851 = vmatprep.subr.mxu0 0.0
      %4852 = vmatpush1.msra.mxu0 0.0
      %4853 = vmatprep.subr.mxu0 0.0
      %4854 = vmatpush1.msra.mxu0 0.0
      %4855 = vmatprep.subr.mxu0 0.0
      %4856 = vmatpush1.msra.mxu0 0.0
      %4857 = vmatprep.subr.mxu0 0.0
      %4858 = vmatpush1.msra.mxu0 0.0
      %4859 = vmatprep.subr.mxu0 0.0
      %4860 = vmatpush1.msra.mxu0 0.0
      %4861 = vmatprep.subr.mxu0 0.0
      %4862 = vmatpush1.msra.mxu0 0.0
      %4863 = vmatprep.subr.mxu0 0.0
      %4864 = vmatpush1.msra.mxu0 0.0
      %4865 = vmatprep.subr.mxu0 0.0
      %4866 = vmatpush1.msra.mxu0 0.0
      %4867 = vmatprep.subr.mxu0 0.0
      %4868 = vmatpush1.msra.mxu0 0.0
      %4869 = vmatprep.subr.mxu0 0.0
      %4870 = vmatpush1.msra.mxu0 0.0
      %4871 = vmatprep.subr.mxu0 0.0
      %4872 = vmatpush1.msra.mxu0 0.0
      %4873 = vmatprep.subr.mxu0 0.0
      %4874 = vmatpush1.msra.mxu0 0.0
      %4875 = vmatprep.subr.mxu0 0.0
      %4876 = vmatpush1.msra.mxu0 0.0
      %4877 = vmatprep.subr.mxu0 0.0
      %4878 = vmatpush1.msra.mxu0 0.0
      %4879 = vmatprep.subr.mxu0 0.0
      %4880 = vmatpush1.msra.mxu0 0.0
      %4881 = vmatprep.subr.mxu0 0.0
      %4882 = vmatpush1.msra.mxu0 0.0
      %4883 = vmatprep.subr.mxu0 0.0
      %4884 = vmatpush1.msra.mxu0 0.0
      %4885 = vmatprep.subr.mxu0 0.0
      %4886 = vmatpush1.msra.mxu0 0.0
      %4887 = vmatprep.subr.mxu0 0.0
      %4888 = vmatpush1.msra.mxu0 0.0
      %4889 = vmatprep.subr.mxu0 0.0
      %4890 = vmatpush1.msra.mxu0 0.0
      %4891 = vmatprep.subr.mxu0 0.0
      %4892 = vmatpush1.msra.mxu0 0.0
      %4893 = vmatprep.subr.mxu0 0.0
      %4894 = vmatpush1.msra.mxu0 0.0
      %4895 = vmatprep.subr.mxu0 0.0
      %4896 = vmatpush1.msra.mxu0 0.0
      %4897 = vmatprep.subr.mxu0 0.0
      %4898 = vmatpush1.msra.mxu0 0.0
      %4899 = vmatprep.subr.mxu0 0.0
      %4900 = vmatpush1.msra.mxu0 0.0
      %4901 = vmatprep.subr.mxu0 0.0
      %4902 = vmatpush1.msra.mxu0 0.0
      %4903 = vmatprep.mubr.f32.mxu0 0.0
      %v4904 = vand.u32 %v4283, 4294901760
      %4905 = vmatmul.mubr.f32.gmra.mrb[0].mxu0 %v4904
      %v4906 = vpop.f32.mrb[0].mxu0
      %v4907 = vadd.f32 %v4810, %v4906
      %v4908 = vpop.f32.mrb[0].mxu0
      %v4909 = vadd.f32 %v4812, %v4908
      %4910 = vmatprep.mubr.f32.mxu0 0.0
      %v4911 = vand.u32 %v4286, 4294901760
      %4912 = vmatmul.mubr.f32.gmra.mrb[0].mxu0 %v4911
      %v4913 = vpop.f32.mrb[0].mxu0
      %v4914 = vadd.f32 %v4817, %v4913
      %v4915 = vpop.f32.mrb[0].mxu0
      %v4916 = vadd.f32 %v4819, %v4915
      %4917 = vmatprep.mubr.f32.mxu0 0.0
      %v4918 = vand.u32 %v4289, 4294901760
      %4919 = vmatmul.mubr.f32.gmra.mrb[0].mxu0 %v4918
      %v4920 = vpop.f32.mrb[0].mxu0
      %v4921 = vadd.f32 %v4824, %v4920
      %v4922 = vpop.f32.mrb[0].mxu0
      %v4923 = vadd.f32 %v4826, %v4922
      %4924 = vmatprep.mubr.f32.mxu0 0.0
      %v4925 = vand.u32 %v4292, 4294901760
      %4926 = vmatmul.mubr.f32.gmra.mrb[0].mxu0 %v4925
      %v4927 = vpop.f32.mrb[0].mxu0
      %v4928 = vadd.f32 %v4831, %v4927
      %v4929 = vpop.f32.mrb[0].mxu0
      %v4930 = vadd.f32 %v4833, %v4929
      %4931 = vdwg.mxu0
      %v4932 = vtanh.pop %v4907
      %v4933 = vtanh.pop %v4909
      %v4934 = vtanh.pop %v4914
      %v4935 = vtanh.pop %v4916
      %v4936 = vtanh.pop %v4921
      %v4937 = vtanh.pop %v4923
      %v4938 = vtanh.pop %v4928
      %v4939 = vtanh.pop %v4930
      %s4940 = scalar_lea.vmem %s3, 64
      %v4941 = vld [vmem:[%s4940] sm:$0xff]
      %v4942 = vld [vmem:[%s4940 + $0x8] sm:$0xff]
      %v4943 = vld [vmem:[%s4940 + $0x10] sm:$0xff]
      %v4944 = vld [vmem:[%s4940 + $0x18] sm:$0xff]
      %s4945 = scalar_lea.vmem %s4, 64
      %v4946 = vld [vmem:[%s4945] sm:$0xff]
      %v4947 = vld [vmem:[%s4945 + $0x8] sm:$0xff]
      %v4948 = vld [vmem:[%s4945 + $0x10] sm:$0xff]
      %v4949 = vld [vmem:[%s4945 + $0x18] sm:$0xff]
      %4951 = vset.pattern.permute.xlu0 0
      %4952 = vperm.xlu0 %4951, %v4946
      %v4953 = vpop.permute.xlu0 %4952
      %4956 = vset.pattern.permute.xlu0 0
      %4957 = vperm.xlu0 %4956, %v4947
      %v4958 = vpop.permute.xlu0 %4957
      %4961 = vset.pattern.permute.xlu0 0
      %4962 = vperm.xlu0 %4961, %v4948
      %v4963 = vpop.permute.xlu0 %4962
      %4966 = vset.pattern.permute.xlu0 0
      %4967 = vperm.xlu0 %4966, %v4949
      %v4968 = vpop.permute.xlu0 %4967
      %v4971 = vsel %vm2023, %v4941, 0
      %v4974 = vsel %vm2023, %v4942, 0
      %v4977 = vsel %vm2023, %v4943, 0
      %v4980 = vsel %vm2023, %v4944, 0
      %v4982 = vand.u32 %v4933, 4294901760
      %4983 = vmatprep.subr.mxu0 %v4982
      %v4984 = vand.u32 %v4932, 4294901760
      %4985 = vmatpush1.msra.mxu0 %v4984
      %v4986 = vand.u32 %v4935, 4294901760
      %4987 = vmatprep.subr.mxu0 %v4986
      %v4988 = vand.u32 %v4934, 4294901760
      %4989 = vmatpush1.msra.mxu0 %v4988
      %v4990 = vand.u32 %v4937, 4294901760
      %4991 = vmatprep.subr.mxu0 %v4990
      %v4992 = vand.u32 %v4936, 4294901760
      %4993 = vmatpush1.msra.mxu0 %v4992
      %v4994 = vand.u32 %v4939, 4294901760
      %4995 = vmatprep.subr.mxu0 %v4994
      %v4996 = vand.u32 %v4938, 4294901760
      %4997 = vmatpush1.msra.mxu0 %v4996
      %4998 = vmatprep.subr.mxu0 0.0
      %4999 = vmatpush1.msra.mxu0 0.0
      %5000 = vmatprep.subr.mxu0 0.0
      %5001 = vmatpush1.msra.mxu0 0.0
      %5002 = vmatprep.subr.mxu0 0.0
      %5003 = vmatpush1.msra.mxu0 0.0
      %5004 = vmatprep.subr.mxu0 0.0
      %5005 = vmatpush1.msra.mxu0 0.0
      %5006 = vmatprep.subr.mxu0 0.0
      %5007 = vmatpush1.msra.mxu0 0.0
      %5008 = vmatprep.subr.mxu0 0.0
      %5009 = vmatpush1.msra.mxu0 0.0
      %5010 = vmatprep.subr.mxu0 0.0
      %5011 = vmatpush1.msra.mxu0 0.0
      %5012 = vmatprep.subr.mxu0 0.0
      %5013 = vmatpush1.msra.mxu0 0.0
      %5014 = vmatprep.subr.mxu0 0.0
      %5015 = vmatpush1.msra.mxu0 0.0
      %5016 = vmatprep.subr.mxu0 0.0
      %5017 = vmatpush1.msra.mxu0 0.0
      %5018 = vmatprep.subr.mxu0 0.0
      %5019 = vmatpush1.msra.mxu0 0.0
      %5020 = vmatprep.subr.mxu0 0.0
      %5021 = vmatpush1.msra.mxu0 0.0
      %5022 = vmatprep.subr.mxu0 0.0
      %5023 = vmatpush1.msra.mxu0 0.0
      %5024 = vmatprep.subr.mxu0 0.0
      %5025 = vmatpush1.msra.mxu0 0.0
      %5026 = vmatprep.subr.mxu0 0.0
      %5027 = vmatpush1.msra.mxu0 0.0
      %5028 = vmatprep.subr.mxu0 0.0
      %5029 = vmatpush1.msra.mxu0 0.0
      %5030 = vmatprep.subr.mxu0 0.0
      %5031 = vmatpush1.msra.mxu0 0.0
      %5032 = vmatprep.subr.mxu0 0.0
      %5033 = vmatpush1.msra.mxu0 0.0
      %5034 = vmatprep.subr.mxu0 0.0
      %5035 = vmatpush1.msra.mxu0 0.0
      %5036 = vmatprep.subr.mxu0 0.0
      %5037 = vmatpush1.msra.mxu0 0.0
      %5038 = vmatprep.subr.mxu0 0.0
      %5039 = vmatpush1.msra.mxu0 0.0
      %5040 = vmatprep.subr.mxu0 0.0
      %5041 = vmatpush1.msra.mxu0 0.0
      %5042 = vmatprep.subr.mxu0 0.0
      %5043 = vmatpush1.msra.mxu0 0.0
      %5044 = vmatprep.subr.mxu0 0.0
      %5045 = vmatpush1.msra.mxu0 0.0
      %5046 = vmatprep.subr.mxu0 0.0
      %5047 = vmatpush1.msra.mxu0 0.0
      %5048 = vmatprep.subr.mxu0 0.0
      %5049 = vmatpush1.msra.mxu0 0.0
      %5050 = vmatprep.subr.mxu0 0.0
      %5051 = vmatpush1.msra.mxu0 0.0
      %5052 = vmatprep.subr.mxu0 0.0
      %5053 = vmatpush1.msra.mxu0 0.0
      %5054 = vmatprep.mubr.f32.mxu0 0.0
      %v5055 = vand.u32 %v4971, 4294901760
      %v5056 = vsub.f32 %v4971, %v5055
      %v5057 = vand.u32 %v5056, 4294901760
      %v5058 = vsub.f32 %v5056, %v5057
      %v5059 = vand.u32 %v5058, 4294901760
      %5060 = vmatmul.mubr.f32.gmra.mrb[0].mxu0 %v5059
      %v5061 = vpop.f32.mrb[0].mxu0
      %v5062 = vadd.f32 %v4953, %v5061
      %v5063 = vpop.f32.mrb[0].mxu0
      %v5064 = vadd.f32 %v4953, %v5063
      %5065 = vmatprep.mubr.f32.mxu0 0.0
      %v5066 = vand.u32 %v4974, 4294901760
      %v5067 = vsub.f32 %v4974, %v5066
      %v5068 = vand.u32 %v5067, 4294901760
      %v5069 = vsub.f32 %v5067, %v5068
      %v5070 = vand.u32 %v5069, 4294901760
      %5071 = vmatmul.mubr.f32.gmra.mrb[0].mxu0 %v5070
      %v5072 = vpop.f32.mrb[0].mxu0
      %v5073 = vadd.f32 %v4958, %v5072
      %v5074 = vpop.f32.mrb[0].mxu0
      %v5075 = vadd.f32 %v4958, %v5074
      %5076 = vmatprep.mubr.f32.mxu0 0.0
      %v5077 = vand.u32 %v4977, 4294901760
      %v5078 = vsub.f32 %v4977, %v5077
      %v5079 = vand.u32 %v5078, 4294901760
      %v5080 = vsub.f32 %v5078, %v5079
      %v5081 = vand.u32 %v5080, 4294901760
      %5082 = vmatmul.mubr.f32.gmra.mrb[0].mxu0 %v5081
      %v5083 = vpop.f32.mrb[0].mxu0
      %v5084 = vadd.f32 %v4963, %v5083
      %v5085 = vpop.f32.mrb[0].mxu0
      %v5086 = vadd.f32 %v4963, %v5085
      %5087 = vmatprep.mubr.f32.mxu0 0.0
      %v5088 = vand.u32 %v4980, 4294901760
      %v5089 = vsub.f32 %v4980, %v5088
      %v5090 = vand.u32 %v5089, 4294901760
      %v5091 = vsub.f32 %v5089, %v5090
      %v5092 = vand.u32 %v5091, 4294901760
      %5093 = vmatmul.mubr.f32.gmra.mrb[0].mxu0 %v5092
      %v5094 = vpop.f32.mrb[0].mxu0
      %v5095 = vadd.f32 %v4968, %v5094
      %v5096 = vpop.f32.mrb[0].mxu0
      %v5097 = vadd.f32 %v4968, %v5096
      %5098 = vdwg.mxu0
      %v5099 = vand.u32 %v4933, 4294901760
      %v5100 = vsub.f32 %v4933, %v5099
      %v5101 = vand.u32 %v5100, 4294901760
      %v5102 = vsub.f32 %v5100, %v5101
      %v5103 = vand.u32 %v5102, 4294901760
      %5104 = vmatprep.subr.mxu0 %v5103
      %v5105 = vand.u32 %v4932, 4294901760
      %v5106 = vsub.f32 %v4932, %v5105
      %v5107 = vand.u32 %v5106, 4294901760
      %v5108 = vsub.f32 %v5106, %v5107
      %v5109 = vand.u32 %v5108, 4294901760
      %5110 = vmatpush1.msra.mxu0 %v5109
      %v5111 = vand.u32 %v4935, 4294901760
      %v5112 = vsub.f32 %v4935, %v5111
      %v5113 = vand.u32 %v5112, 4294901760
      %v5114 = vsub.f32 %v5112, %v5113
      %v5115 = vand.u32 %v5114, 4294901760
      %5116 = vmatprep.subr.mxu0 %v5115
      %v5117 = vand.u32 %v4934, 4294901760
      %v5118 = vsub.f32 %v4934, %v5117
      %v5119 = vand.u32 %v5118, 4294901760
      %v5120 = vsub.f32 %v5118, %v5119
      %v5121 = vand.u32 %v5120, 4294901760
      %5122 = vmatpush1.msra.mxu0 %v5121
      %v5123 = vand.u32 %v4937, 4294901760
      %v5124 = vsub.f32 %v4937, %v5123
      %v5125 = vand.u32 %v5124, 4294901760
      %v5126 = vsub.f32 %v5124, %v5125
      %v5127 = vand.u32 %v5126, 4294901760
      %5128 = vmatprep.subr.mxu0 %v5127
      %v5129 = vand.u32 %v4936, 4294901760
      %v5130 = vsub.f32 %v4936, %v5129
      %v5131 = vand.u32 %v5130, 4294901760
      %v5132 = vsub.f32 %v5130, %v5131
      %v5133 = vand.u32 %v5132, 4294901760
      %5134 = vmatpush1.msra.mxu0 %v5133
      %v5135 = vand.u32 %v4939, 4294901760
      %v5136 = vsub.f32 %v4939, %v5135
      %v5137 = vand.u32 %v5136, 4294901760
      %v5138 = vsub.f32 %v5136, %v5137
      %v5139 = vand.u32 %v5138, 4294901760
      %5140 = vmatprep.subr.mxu0 %v5139
      %v5141 = vand.u32 %v4938, 4294901760
      %v5142 = vsub.f32 %v4938, %v5141
      %v5143 = vand.u32 %v5142, 4294901760
      %v5144 = vsub.f32 %v5142, %v5143
      %v5145 = vand.u32 %v5144, 4294901760
      %5146 = vmatpush1.msra.mxu0 %v5145
      %5147 = vmatprep.subr.mxu0 0.0
      %5148 = vmatpush1.msra.mxu0 0.0
      %5149 = vmatprep.subr.mxu0 0.0
      %5150 = vmatpush1.msra.mxu0 0.0
      %5151 = vmatprep.subr.mxu0 0.0
      %5152 = vmatpush1.msra.mxu0 0.0
      %5153 = vmatprep.subr.mxu0 0.0
      %5154 = vmatpush1.msra.mxu0 0.0
      %5155 = vmatprep.subr.mxu0 0.0
      %5156 = vmatpush1.msra.mxu0 0.0
      %5157 = vmatprep.subr.mxu0 0.0
      %5158 = vmatpush1.msra.mxu0 0.0
      %5159 = vmatprep.subr.mxu0 0.0
      %5160 = vmatpush1.msra.mxu0 0.0
      %5161 = vmatprep.subr.mxu0 0.0
      %5162 = vmatpush1.msra.mxu0 0.0
      %5163 = vmatprep.subr.mxu0 0.0
      %5164 = vmatpush1.msra.mxu0 0.0
      %5165 = vmatprep.subr.mxu0 0.0
      %5166 = vmatpush1.msra.mxu0 0.0
      %5167 = vmatprep.subr.mxu0 0.0
      %5168 = vmatpush1.msra.mxu0 0.0
      %5169 = vmatprep.subr.mxu0 0.0
      %5170 = vmatpush1.msra.mxu0 0.0
      %5171 = vmatprep.subr.mxu0 0.0
      %5172 = vmatpush1.msra.mxu0 0.0
      %5173 = vmatprep.subr.mxu0 0.0
      %5174 = vmatpush1.msra.mxu0 0.0
      %5175 = vmatprep.subr.mxu0 0.0
      %5176 = vmatpush1.msra.mxu0 0.0
      %5177 = vmatprep.subr.mxu0 0.0
      %5178 = vmatpush1.msra.mxu0 0.0
      %5179 = vmatprep.subr.mxu0 0.0
      %5180 = vmatpush1.msra.mxu0 0.0
      %5181 = vmatprep.subr.mxu0 0.0
      %5182 = vmatpush1.msra.mxu0 0.0
      %5183 = vmatprep.subr.mxu0 0.0
      %5184 = vmatpush1.msra.mxu0 0.0
      %5185 = vmatprep.subr.mxu0 0.0
      %5186 = vmatpush1.msra.mxu0 0.0
      %5187 = vmatprep.subr.mxu0 0.0
      %5188 = vmatpush1.msra.mxu0 0.0
      %5189 = vmatprep.subr.mxu0 0.0
      %5190 = vmatpush1.msra.mxu0 0.0
      %5191 = vmatprep.subr.mxu0 0.0
      %5192 = vmatpush1.msra.mxu0 0.0
      %5193 = vmatprep.subr.mxu0 0.0
      %5194 = vmatpush1.msra.mxu0 0.0
      %5195 = vmatprep.subr.mxu0 0.0
      %5196 = vmatpush1.msra.mxu0 0.0
      %5197 = vmatprep.subr.mxu0 0.0
      %5198 = vmatpush1.msra.mxu0 0.0
      %5199 = vmatprep.subr.mxu0 0.0
      %5200 = vmatpush1.msra.mxu0 0.0
      %5201 = vmatprep.subr.mxu0 0.0
      %5202 = vmatpush1.msra.mxu0 0.0
      %5203 = vmatprep.mubr.f32.mxu0 0.0
      %v5204 = vand.u32 %v4971, 4294901760
      %5205 = vmatmul.mubr.f32.gmra.mrb[0].mxu0 %v5204
      %v5206 = vpop.f32.mrb[0].mxu0
      %v5207 = vadd.f32 %v5062, %v5206
      %v5208 = vpop.f32.mrb[0].mxu0
      %v5209 = vadd.f32 %v5064, %v5208
      %5210 = vmatprep.mubr.f32.mxu0 0.0
      %v5211 = vand.u32 %v4974, 4294901760
      %5212 = vmatmul.mubr.f32.gmra.mrb[0].mxu0 %v5211
      %v5213 = vpop.f32.mrb[0].mxu0
      %v5214 = vadd.f32 %v5073, %v5213
      %v5215 = vpop.f32.mrb[0].mxu0
      %v5216 = vadd.f32 %v5075, %v5215
      %5217 = vmatprep.mubr.f32.mxu0 0.0
      %v5218 = vand.u32 %v4977, 4294901760
      %5219 = vmatmul.mubr.f32.gmra.mrb[0].mxu0 %v5218
      %v5220 = vpop.f32.mrb[0].mxu0
      %v5221 = vadd.f32 %v5084, %v5220
      %v5222 = vpop.f32.mrb[0].mxu0
      %v5223 = vadd.f32 %v5086, %v5222
      %5224 = vmatprep.mubr.f32.mxu0 0.0
      %v5225 = vand.u32 %v4980, 4294901760
      %5226 = vmatmul.mubr.f32.gmra.mrb[0].mxu0 %v5225
      %v5227 = vpop.f32.mrb[0].mxu0
      %v5228 = vadd.f32 %v5095, %v5227
      %v5229 = vpop.f32.mrb[0].mxu0
      %v5230 = vadd.f32 %v5097, %v5229
      %5231 = vdwg.mxu0
      %v5232 = vand.u32 %v4933, 4294901760
      %v5233 = vsub.f32 %v4933, %v5232
      %5234 = vmatprep.subr.mxu0 %v5233
      %v5235 = vand.u32 %v4932, 4294901760
      %v5236 = vsub.f32 %v4932, %v5235
      %5237 = vmatpush1.msra.mxu0 %v5236
      %v5238 = vand.u32 %v4935, 4294901760
      %v5239 = vsub.f32 %v4935, %v5238
      %5240 = vmatprep.subr.mxu0 %v5239
      %v5241 = vand.u32 %v4934, 4294901760
      %v5242 = vsub.f32 %v4934, %v5241
      %5243 = vmatpush1.msra.mxu0 %v5242
      %v5244 = vand.u32 %v4937, 4294901760
      %v5245 = vsub.f32 %v4937, %v5244
      %5246 = vmatprep.subr.mxu0 %v5245
      %v5247 = vand.u32 %v4936, 4294901760
      %v5248 = vsub.f32 %v4936, %v5247
      %5249 = vmatpush1.msra.mxu0 %v5248
      %v5250 = vand.u32 %v4939, 4294901760
      %v5251 = vsub.f32 %v4939, %v5250
      %5252 = vmatprep.subr.mxu0 %v5251
      %v5253 = vand.u32 %v4938, 4294901760
      %v5254 = vsub.f32 %v4938, %v5253
      %5255 = vmatpush1.msra.mxu0 %v5254
      %5256 = vmatprep.subr.mxu0 0.0
      %5257 = vmatpush1.msra.mxu0 0.0
      %5258 = vmatprep.subr.mxu0 0.0
      %5259 = vmatpush1.msra.mxu0 0.0
      %5260 = vmatprep.subr.mxu0 0.0
      %5261 = vmatpush1.msra.mxu0 0.0
      %5262 = vmatprep.subr.mxu0 0.0
      %5263 = vmatpush1.msra.mxu0 0.0
      %5264 = vmatprep.subr.mxu0 0.0
      %5265 = vmatpush1.msra.mxu0 0.0
      %5266 = vmatprep.subr.mxu0 0.0
      %5267 = vmatpush1.msra.mxu0 0.0
      %5268 = vmatprep.subr.mxu0 0.0
      %5269 = vmatpush1.msra.mxu0 0.0
      %5270 = vmatprep.subr.mxu0 0.0
      %5271 = vmatpush1.msra.mxu0 0.0
      %5272 = vmatprep.subr.mxu0 0.0
      %5273 = vmatpush1.msra.mxu0 0.0
      %5274 = vmatprep.subr.mxu0 0.0
      %5275 = vmatpush1.msra.mxu0 0.0
      %5276 = vmatprep.subr.mxu0 0.0
      %5277 = vmatpush1.msra.mxu0 0.0
      %5278 = vmatprep.subr.mxu0 0.0
      %5279 = vmatpush1.msra.mxu0 0.0
      %5280 = vmatprep.subr.mxu0 0.0
      %5281 = vmatpush1.msra.mxu0 0.0
      %5282 = vmatprep.subr.mxu0 0.0
      %5283 = vmatpush1.msra.mxu0 0.0
      %5284 = vmatprep.subr.mxu0 0.0
      %5285 = vmatpush1.msra.mxu0 0.0
      %5286 = vmatprep.subr.mxu0 0.0
      %5287 = vmatpush1.msra.mxu0 0.0
      %5288 = vmatprep.subr.mxu0 0.0
      %5289 = vmatpush1.msra.mxu0 0.0
      %5290 = vmatprep.subr.mxu0 0.0
      %5291 = vmatpush1.msra.mxu0 0.0
      %5292 = vmatprep.subr.mxu0 0.0
      %5293 = vmatpush1.msra.mxu0 0.0
      %5294 = vmatprep.subr.mxu0 0.0
      %5295 = vmatpush1.msra.mxu0 0.0
      %5296 = vmatprep.subr.mxu0 0.0
      %5297 = vmatpush1.msra.mxu0 0.0
      %5298 = vmatprep.subr.mxu0 0.0
      %5299 = vmatpush1.msra.mxu0 0.0
      %5300 = vmatprep.subr.mxu0 0.0
      %5301 = vmatpush1.msra.mxu0 0.0
      %5302 = vmatprep.subr.mxu0 0.0
      %5303 = vmatpush1.msra.mxu0 0.0
      %5304 = vmatprep.subr.mxu0 0.0
      %5305 = vmatpush1.msra.mxu0 0.0
      %5306 = vmatprep.subr.mxu0 0.0
      %5307 = vmatpush1.msra.mxu0 0.0
      %5308 = vmatprep.subr.mxu0 0.0
      %5309 = vmatpush1.msra.mxu0 0.0
      %5310 = vmatprep.subr.mxu0 0.0
      %5311 = vmatpush1.msra.mxu0 0.0
      %5312 = vmatprep.mubr.f32.mxu0 0.0
      %v5313 = vand.u32 %v4971, 4294901760
      %v5314 = vsub.f32 %v4971, %v5313
      %5315 = vmatmul.mubr.f32.gmra.mrb[0].mxu0 %v5314
      %v5316 = vpop.f32.mrb[0].mxu0
      %v5317 = vadd.f32 %v5207, %v5316
      %v5318 = vpop.f32.mrb[0].mxu0
      %v5319 = vadd.f32 %v5209, %v5318
      %5320 = vmatprep.mubr.f32.mxu0 0.0
      %v5321 = vand.u32 %v4974, 4294901760
      %v5322 = vsub.f32 %v4974, %v5321
      %5323 = vmatmul.mubr.f32.gmra.mrb[0].mxu0 %v5322
      %v5324 = vpop.f32.mrb[0].mxu0
      %v5325 = vadd.f32 %v5214, %v5324
      %v5326 = vpop.f32.mrb[0].mxu0
      %v5327 = vadd.f32 %v5216, %v5326
      %5328 = vmatprep.mubr.f32.mxu0 0.0
      %v5329 = vand.u32 %v4977, 4294901760
      %v5330 = vsub.f32 %v4977, %v5329
      %5331 = vmatmul.mubr.f32.gmra.mrb[0].mxu0 %v5330
      %v5332 = vpop.f32.mrb[0].mxu0
      %v5333 = vadd.f32 %v5221, %v5332
      %v5334 = vpop.f32.mrb[0].mxu0
      %v5335 = vadd.f32 %v5223, %v5334
      %5336 = vmatprep.mubr.f32.mxu0 0.0
      %v5337 = vand.u32 %v4980, 4294901760
      %v5338 = vsub.f32 %v4980, %v5337
      %5339 = vmatmul.mubr.f32.gmra.mrb[0].mxu0 %v5338
      %v5340 = vpop.f32.mrb[0].mxu0
      %v5341 = vadd.f32 %v5228, %v5340
      %v5342 = vpop.f32.mrb[0].mxu0
      %v5343 = vadd.f32 %v5230, %v5342
      %5344 = vdwg.mxu0
      %v5345 = vand.u32 %v4933, 4294901760
      %5346 = vmatprep.subr.mxu0 %v5345
      %v5347 = vand.u32 %v4932, 4294901760
      %5348 = vmatpush1.msra.mxu0 %v5347
      %v5349 = vand.u32 %v4935, 4294901760
      %5350 = vmatprep.subr.mxu0 %v5349
      %v5351 = vand.u32 %v4934, 4294901760
      %5352 = vmatpush1.msra.mxu0 %v5351
      %v5353 = vand.u32 %v4937, 4294901760
      %5354 = vmatprep.subr.mxu0 %v5353
      %v5355 = vand.u32 %v4936, 4294901760
      %5356 = vmatpush1.msra.mxu0 %v5355
      %v5357 = vand.u32 %v4939, 4294901760
      %5358 = vmatprep.subr.mxu0 %v5357
      %v5359 = vand.u32 %v4938, 4294901760
      %5360 = vmatpush1.msra.mxu0 %v5359
      %5361 = vmatprep.subr.mxu0 0.0
      %5362 = vmatpush1.msra.mxu0 0.0
      %5363 = vmatprep.subr.mxu0 0.0
      %5364 = vmatpush1.msra.mxu0 0.0
      %5365 = vmatprep.subr.mxu0 0.0
      %5366 = vmatpush1.msra.mxu0 0.0
      %5367 = vmatprep.subr.mxu0 0.0
      %5368 = vmatpush1.msra.mxu0 0.0
      %5369 = vmatprep.subr.mxu0 0.0
      %5370 = vmatpush1.msra.mxu0 0.0
      %5371 = vmatprep.subr.mxu0 0.0
      %5372 = vmatpush1.msra.mxu0 0.0
      %5373 = vmatprep.subr.mxu0 0.0
      %5374 = vmatpush1.msra.mxu0 0.0
      %5375 = vmatprep.subr.mxu0 0.0
      %5376 = vmatpush1.msra.mxu0 0.0
      %5377 = vmatprep.subr.mxu0 0.0
      %5378 = vmatpush1.msra.mxu0 0.0
      %5379 = vmatprep.subr.mxu0 0.0
      %5380 = vmatpush1.msra.mxu0 0.0
      %5381 = vmatprep.subr.mxu0 0.0
      %5382 = vmatpush1.msra.mxu0 0.0
      %5383 = vmatprep.subr.mxu0 0.0
      %5384 = vmatpush1.msra.mxu0 0.0
      %5385 = vmatprep.subr.mxu0 0.0
      %5386 = vmatpush1.msra.mxu0 0.0
      %5387 = vmatprep.subr.mxu0 0.0
      %5388 = vmatpush1.msra.mxu0 0.0
      %5389 = vmatprep.subr.mxu0 0.0
      %5390 = vmatpush1.msra.mxu0 0.0
      %5391 = vmatprep.subr.mxu0 0.0
      %5392 = vmatpush1.msra.mxu0 0.0
      %5393 = vmatprep.subr.mxu0 0.0
      %5394 = vmatpush1.msra.mxu0 0.0
      %5395 = vmatprep.subr.mxu0 0.0
      %5396 = vmatpush1.msra.mxu0 0.0
      %5397 = vmatprep.subr.mxu0 0.0
      %5398 = vmatpush1.msra.mxu0 0.0
      %5399 = vmatprep.subr.mxu0 0.0
      %5400 = vmatpush1.msra.mxu0 0.0
      %5401 = vmatprep.subr.mxu0 0.0
      %5402 = vmatpush1.msra.mxu0 0.0
      %5403 = vmatprep.subr.mxu0 0.0
      %5404 = vmatpush1.msra.mxu0 0.0
      %5405 = vmatprep.subr.mxu0 0.0
      %5406 = vmatpush1.msra.mxu0 0.0
      %5407 = vmatprep.subr.mxu0 0.0
      %5408 = vmatpush1.msra.mxu0 0.0
      %5409 = vmatprep.subr.mxu0 0.0
      %5410 = vmatpush1.msra.mxu0 0.0
      %5411 = vmatprep.subr.mxu0 0.0
      %5412 = vmatpush1.msra.mxu0 0.0
      %5413 = vmatprep.subr.mxu0 0.0
      %5414 = vmatpush1.msra.mxu0 0.0
      %5415 = vmatprep.subr.mxu0 0.0
      %5416 = vmatpush1.msra.mxu0 0.0
      %5417 = vmatprep.mubr.f32.mxu0 0.0
      %v5418 = vand.u32 %v4971, 4294901760
      %v5419 = vsub.f32 %v4971, %v5418
      %v5420 = vand.u32 %v5419, 4294901760
      %5421 = vmatmul.mubr.f32.gmra.mrb[0].mxu0 %v5420
      %v5422 = vpop.f32.mrb[0].mxu0
      %v5423 = vadd.f32 %v5317, %v5422
      %v5424 = vpop.f32.mrb[0].mxu0
      %v5425 = vadd.f32 %v5319, %v5424
      %5426 = vmatprep.mubr.f32.mxu0 0.0
      %v5427 = vand.u32 %v4974, 4294901760
      %v5428 = vsub.f32 %v4974, %v5427
      %v5429 = vand.u32 %v5428, 4294901760
      %5430 = vmatmul.mubr.f32.gmra.mrb[0].mxu0 %v5429
      %v5431 = vpop.f32.mrb[0].mxu0
      %v5432 = vadd.f32 %v5325, %v5431
      %v5433 = vpop.f32.mrb[0].mxu0
      %v5434 = vadd.f32 %v5327, %v5433
      %5435 = vmatprep.mubr.f32.mxu0 0.0
      %v5436 = vand.u32 %v4977, 4294901760
      %v5437 = vsub.f32 %v4977, %v5436
      %v5438 = vand.u32 %v5437, 4294901760
      %5439 = vmatmul.mubr.f32.gmra.mrb[0].mxu0 %v5438
      %v5440 = vpop.f32.mrb[0].mxu0
      %v5441 = vadd.f32 %v5333, %v5440
      %v5442 = vpop.f32.mrb[0].mxu0
      %v5443 = vadd.f32 %v5335, %v5442
      %5444 = vmatprep.mubr.f32.mxu0 0.0
      %v5445 = vand.u32 %v4980, 4294901760
      %v5446 = vsub.f32 %v4980, %v5445
      %v5447 = vand.u32 %v5446, 4294901760
      %5448 = vmatmul.mubr.f32.gmra.mrb[0].mxu0 %v5447
      %v5449 = vpop.f32.mrb[0].mxu0
      %v5450 = vadd.f32 %v5341, %v5449
      %v5451 = vpop.f32.mrb[0].mxu0
      %v5452 = vadd.f32 %v5343, %v5451
      %5453 = vdwg.mxu0
      %v5454 = vand.u32 %v4933, 4294901760
      %v5455 = vsub.f32 %v4933, %v5454
      %v5456 = vand.u32 %v5455, 4294901760
      %5457 = vmatprep.subr.mxu0 %v5456
      %v5458 = vand.u32 %v4932, 4294901760
      %v5459 = vsub.f32 %v4932, %v5458
      %v5460 = vand.u32 %v5459, 4294901760
      %5461 = vmatpush1.msra.mxu0 %v5460
      %v5462 = vand.u32 %v4935, 4294901760
      %v5463 = vsub.f32 %v4935, %v5462
      %v5464 = vand.u32 %v5463, 4294901760
      %5465 = vmatprep.subr.mxu0 %v5464
      %v5466 = vand.u32 %v4934, 4294901760
      %v5467 = vsub.f32 %v4934, %v5466
      %v5468 = vand.u32 %v5467, 4294901760
      %5469 = vmatpush1.msra.mxu0 %v5468
      %v5470 = vand.u32 %v4937, 4294901760
      %v5471 = vsub.f32 %v4937, %v5470
      %v5472 = vand.u32 %v5471, 4294901760
      %5473 = vmatprep.subr.mxu0 %v5472
      %v5474 = vand.u32 %v4936, 4294901760
      %v5475 = vsub.f32 %v4936, %v5474
      %v5476 = vand.u32 %v5475, 4294901760
      %5477 = vmatpush1.msra.mxu0 %v5476
      %v5478 = vand.u32 %v4939, 4294901760
      %v5479 = vsub.f32 %v4939, %v5478
      %v5480 = vand.u32 %v5479, 4294901760
      %5481 = vmatprep.subr.mxu0 %v5480
      %v5482 = vand.u32 %v4938, 4294901760
      %v5483 = vsub.f32 %v4938, %v5482
      %v5484 = vand.u32 %v5483, 4294901760
      %5485 = vmatpush1.msra.mxu0 %v5484
      %5486 = vmatprep.subr.mxu0 0.0
      %5487 = vmatpush1.msra.mxu0 0.0
      %5488 = vmatprep.subr.mxu0 0.0
      %5489 = vmatpush1.msra.mxu0 0.0
      %5490 = vmatprep.subr.mxu0 0.0
      %5491 = vmatpush1.msra.mxu0 0.0
      %5492 = vmatprep.subr.mxu0 0.0
      %5493 = vmatpush1.msra.mxu0 0.0
      %5494 = vmatprep.subr.mxu0 0.0
      %5495 = vmatpush1.msra.mxu0 0.0
      %5496 = vmatprep.subr.mxu0 0.0
      %5497 = vmatpush1.msra.mxu0 0.0
      %5498 = vmatprep.subr.mxu0 0.0
      %5499 = vmatpush1.msra.mxu0 0.0
      %5500 = vmatprep.subr.mxu0 0.0
      %5501 = vmatpush1.msra.mxu0 0.0
      %5502 = vmatprep.subr.mxu0 0.0
      %5503 = vmatpush1.msra.mxu0 0.0
      %5504 = vmatprep.subr.mxu0 0.0
      %5505 = vmatpush1.msra.mxu0 0.0
      %5506 = vmatprep.subr.mxu0 0.0
      %5507 = vmatpush1.msra.mxu0 0.0
      %5508 = vmatprep.subr.mxu0 0.0
      %5509 = vmatpush1.msra.mxu0 0.0
      %5510 = vmatprep.subr.mxu0 0.0
      %5511 = vmatpush1.msra.mxu0 0.0
      %5512 = vmatprep.subr.mxu0 0.0
      %5513 = vmatpush1.msra.mxu0 0.0
      %5514 = vmatprep.subr.mxu0 0.0
      %5515 = vmatpush1.msra.mxu0 0.0
      %5516 = vmatprep.subr.mxu0 0.0
      %5517 = vmatpush1.msra.mxu0 0.0
      %5518 = vmatprep.subr.mxu0 0.0
      %5519 = vmatpush1.msra.mxu0 0.0
      %5520 = vmatprep.subr.mxu0 0.0
      %5521 = vmatpush1.msra.mxu0 0.0
      %5522 = vmatprep.subr.mxu0 0.0
      %5523 = vmatpush1.msra.mxu0 0.0
      %5524 = vmatprep.subr.mxu0 0.0
      %5525 = vmatpush1.msra.mxu0 0.0
      %5526 = vmatprep.subr.mxu0 0.0
      %5527 = vmatpush1.msra.mxu0 0.0
      %5528 = vmatprep.subr.mxu0 0.0
      %5529 = vmatpush1.msra.mxu0 0.0
      %5530 = vmatprep.subr.mxu0 0.0
      %5531 = vmatpush1.msra.mxu0 0.0
      %5532 = vmatprep.subr.mxu0 0.0
      %5533 = vmatpush1.msra.mxu0 0.0
      %5534 = vmatprep.subr.mxu0 0.0
      %5535 = vmatpush1.msra.mxu0 0.0
      %5536 = vmatprep.subr.mxu0 0.0
      %5537 = vmatpush1.msra.mxu0 0.0
      %5538 = vmatprep.subr.mxu0 0.0
      %5539 = vmatpush1.msra.mxu0 0.0
      %5540 = vmatprep.subr.mxu0 0.0
      %5541 = vmatpush1.msra.mxu0 0.0
      %5542 = vmatprep.mubr.f32.mxu0 0.0
      %v5543 = vand.u32 %v4971, 4294901760
      %5544 = vmatmul.mubr.f32.gmra.mrb[0].mxu0 %v5543
      %v5545 = vpop.f32.mrb[0].mxu0
      %v5546 = vadd.f32 %v5423, %v5545
      %v5547 = vpop.f32.mrb[0].mxu0
      %v5548 = vadd.f32 %v5425, %v5547
      %5549 = vmatprep.mubr.f32.mxu0 0.0
      %v5550 = vand.u32 %v4974, 4294901760
      %5551 = vmatmul.mubr.f32.gmra.mrb[0].mxu0 %v5550
      %v5552 = vpop.f32.mrb[0].mxu0
      %v5553 = vadd.f32 %v5432, %v5552
      %v5554 = vpop.f32.mrb[0].mxu0
      %v5555 = vadd.f32 %v5434, %v5554
      %5556 = vmatprep.mubr.f32.mxu0 0.0
      %v5557 = vand.u32 %v4977, 4294901760
      %5558 = vmatmul.mubr.f32.gmra.mrb[0].mxu0 %v5557
      %v5559 = vpop.f32.mrb[0].mxu0
      %v5560 = vadd.f32 %v5441, %v5559
      %v5561 = vpop.f32.mrb[0].mxu0
      %v5562 = vadd.f32 %v5443, %v5561
      %5563 = vmatprep.mubr.f32.mxu0 0.0
      %v5564 = vand.u32 %v4980, 4294901760
      %5565 = vmatmul.mubr.f32.gmra.mrb[0].mxu0 %v5564
      %v5566 = vpop.f32.mrb[0].mxu0
      %v5567 = vadd.f32 %v5450, %v5566
      %v5568 = vpop.f32.mrb[0].mxu0
      %v5569 = vadd.f32 %v5452, %v5568
      %5570 = vdwg.mxu0
      %v5571 = vand.u32 %v4933, 4294901760
      %5572 = vmatprep.subr.mxu0 %v5571
      %v5573 = vand.u32 %v4932, 4294901760
      %5574 = vmatpush1.msra.mxu0 %v5573
      %v5575 = vand.u32 %v4935, 4294901760
      %5576 = vmatprep.subr.mxu0 %v5575
      %v5577 = vand.u32 %v4934, 4294901760
      %5578 = vmatpush1.msra.mxu0 %v5577
      %v5579 = vand.u32 %v4937, 4294901760
      %5580 = vmatprep.subr.mxu0 %v5579
      %v5581 = vand.u32 %v4936, 4294901760
      %5582 = vmatpush1.msra.mxu0 %v5581
      %v5583 = vand.u32 %v4939, 4294901760
      %5584 = vmatprep.subr.mxu0 %v5583
      %v5585 = vand.u32 %v4938, 4294901760
      %5586 = vmatpush1.msra.mxu0 %v5585
      %5587 = vmatprep.subr.mxu0 0.0
      %5588 = vmatpush1.msra.mxu0 0.0
      %5589 = vmatprep.subr.mxu0 0.0
      %5590 = vmatpush1.msra.mxu0 0.0
      %5591 = vmatprep.subr.mxu0 0.0
      %5592 = vmatpush1.msra.mxu0 0.0
      %5593 = vmatprep.subr.mxu0 0.0
      %5594 = vmatpush1.msra.mxu0 0.0
      %5595 = vmatprep.subr.mxu0 0.0
      %5596 = vmatpush1.msra.mxu0 0.0
      %5597 = vmatprep.subr.mxu0 0.0
      %5598 = vmatpush1.msra.mxu0 0.0
      %5599 = vmatprep.subr.mxu0 0.0
      %5600 = vmatpush1.msra.mxu0 0.0
      %5601 = vmatprep.subr.mxu0 0.0
      %5602 = vmatpush1.msra.mxu0 0.0
      %5603 = vmatprep.subr.mxu0 0.0
      %5604 = vmatpush1.msra.mxu0 0.0
      %5605 = vmatprep.subr.mxu0 0.0
      %5606 = vmatpush1.msra.mxu0 0.0
      %5607 = vmatprep.subr.mxu0 0.0
      %5608 = vmatpush1.msra.mxu0 0.0
      %5609 = vmatprep.subr.mxu0 0.0
      %5610 = vmatpush1.msra.mxu0 0.0
      %5611 = vmatprep.subr.mxu0 0.0
      %5612 = vmatpush1.msra.mxu0 0.0
      %5613 = vmatprep.subr.mxu0 0.0
      %5614 = vmatpush1.msra.mxu0 0.0
      %5615 = vmatprep.subr.mxu0 0.0
      %5616 = vmatpush1.msra.mxu0 0.0
      %5617 = vmatprep.subr.mxu0 0.0
      %5618 = vmatpush1.msra.mxu0 0.0
      %5619 = vmatprep.subr.mxu0 0.0
      %5620 = vmatpush1.msra.mxu0 0.0
      %5621 = vmatprep.subr.mxu0 0.0
      %5622 = vmatpush1.msra.mxu0 0.0
      %5623 = vmatprep.subr.mxu0 0.0
      %5624 = vmatpush1.msra.mxu0 0.0
      %5625 = vmatprep.subr.mxu0 0.0
      %5626 = vmatpush1.msra.mxu0 0.0
      %5627 = vmatprep.subr.mxu0 0.0
      %5628 = vmatpush1.msra.mxu0 0.0
      %5629 = vmatprep.subr.mxu0 0.0
      %5630 = vmatpush1.msra.mxu0 0.0
      %5631 = vmatprep.subr.mxu0 0.0
      %5632 = vmatpush1.msra.mxu0 0.0
      %5633 = vmatprep.subr.mxu0 0.0
      %5634 = vmatpush1.msra.mxu0 0.0
      %5635 = vmatprep.subr.mxu0 0.0
      %5636 = vmatpush1.msra.mxu0 0.0
      %5637 = vmatprep.subr.mxu0 0.0
      %5638 = vmatpush1.msra.mxu0 0.0
      %5639 = vmatprep.subr.mxu0 0.0
      %5640 = vmatpush1.msra.mxu0 0.0
      %5641 = vmatprep.subr.mxu0 0.0
      %5642 = vmatpush1.msra.mxu0 0.0
      %5643 = vmatprep.mubr.f32.mxu0 0.0
      %v5644 = vand.u32 %v4971, 4294901760
      %5645 = vmatmul.mubr.f32.gmra.mrb[0].mxu0 %v5644
      %v5646 = vpop.f32.mrb[0].mxu0
      %v5647 = vadd.f32 %v5546, %v5646
      %v5648 = vpop.f32.mrb[0].mxu0
      %v5649 = vadd.f32 %v5548, %v5648
      %5650 = vmatprep.mubr.f32.mxu0 0.0
      %v5651 = vand.u32 %v4974, 4294901760
      %5652 = vmatmul.mubr.f32.gmra.mrb[0].mxu0 %v5651
      %v5653 = vpop.f32.mrb[0].mxu0
      %v5654 = vadd.f32 %v5553, %v5653
      %v5655 = vpop.f32.mrb[0].mxu0
      %v5656 = vadd.f32 %v5555, %v5655
      %5657 = vmatprep.mubr.f32.mxu0 0.0
      %v5658 = vand.u32 %v4977, 4294901760
      %5659 = vmatmul.mubr.f32.gmra.mrb[0].mxu0 %v5658
      %v5660 = vpop.f32.mrb[0].mxu0
      %v5661 = vadd.f32 %v5560, %v5660
      %v5662 = vpop.f32.mrb[0].mxu0
      %v5663 = vadd.f32 %v5562, %v5662
      %5664 = vmatprep.mubr.f32.mxu0 0.0
      %v5665 = vand.u32 %v4980, 4294901760
      %5666 = vmatmul.mubr.f32.gmra.mrb[0].mxu0 %v5665
      %v5667 = vpop.f32.mrb[0].mxu0
      %v5668 = vadd.f32 %v5567, %v5667
      %v5669 = vpop.f32.mrb[0].mxu0
      %v5670 = vadd.f32 %v5569, %v5669
      %5671 = vdwg.mxu0
      %v5672 = vmul.f32 %v5647, 1.442695
      %v5673 = vpow.pop %v5672
      %v5674 = vmul.f32 %v5649, 1.442695
      %v5675 = vpow.pop %v5674
      %v5676 = vmul.f32 %v5654, 1.442695
      %v5677 = vpow.pop %v5676
      %v5678 = vmul.f32 %v5656, 1.442695
      %v5679 = vpow.pop %v5678
      %5681 = vset.pattern.permute.xlu0 0
      %5682 = vperm.xlu0 %5681, %v4250
      %v5683 = vpop.permute.xlu0 %5682
      %5686 = vset.pattern.permute.xlu0 0
      %5687 = vperm.xlu0 %5686, %v4251
      %v5688 = vpop.permute.xlu0 %5687
      %v5690 = vmul.f32 %v5683, %v5673
      %v5691 = vmul.f32 %v5683, %v5675
      %v5692 = vmul.f32 %v5688, %v5677
      %v5693 = vmul.f32 %v5688, %v5679
      %5695 = vset.pattern.permute.xlu0 0
      %5696 = vperm.xlu0 %5695, %v4248
      %v5697 = vpop.permute.xlu0 %5696
      %5700 = vset.pattern.permute.xlu0 0
      %5701 = vperm.xlu0 %5700, %v4249
      %v5702 = vpop.permute.xlu0 %5701
      %v5704 = vadd.f32 %v5697, %v5690
      %v5705 = vadd.f32 %v5697, %v5691
      %v5706 = vadd.f32 %v5702, %v5692
      %v5707 = vadd.f32 %v5702, %v5693
      %v5708 = vmul.f32 %v4243, %v5704
      %v5709 = vmul.f32 %v4244, %v5705
      %v5710 = vmul.f32 %v4245, %v5706
      %v5711 = vmul.f32 %v4246, %v5707
      %v5712 = vmul.f32 %v5683, %v5661
      %v5713 = vmul.f32 %v5683, %v5663
      %v5714 = vmul.f32 %v5688, %v5668
      %v5715 = vmul.f32 %v5688, %v5670
      %v5716 = vadd.f32 %v5708, %v5712
      %v5717 = vadd.f32 %v5709, %v5713
      %v5718 = vadd.f32 %v5710, %v5714
      %v5719 = vadd.f32 %v5711, %v5715
      %s5720 = scalar_lea.vmem %s0, 48
      %v5721 = vld [vmem:[%s5720] sm:$0xff]
      %v5722 = vld [vmem:[%s5720 + $0x8] sm:$0xff]
      %v5723 = vsub.f32 1.0, %v5721
      %v5724 = vsub.f32 1.0, %v5722
      %s5725 = scalar_lea.vmem %s1, 96
      %v5726 = vld [vmem:[%s5725] sm:$0xff]
      %v5727 = vld [vmem:[%s5725 + $0x8] sm:$0xff]
      %v5728 = vld [vmem:[%s5725 + $0x10] sm:$0xff]
      %v5729 = vld [vmem:[%s5725 + $0x18] sm:$0xff]
      %s5730 = scalar_lea.vmem %s2, 96
      %v5731 = vld [vmem:[%s5730] sm:$0xff]
      %v5732 = vld [vmem:[%s5730 + $0x8] sm:$0xff]
      %v5733 = vld [vmem:[%s5730 + $0x10] sm:$0xff]
      %v5734 = vld [vmem:[%s5730 + $0x18] sm:$0xff]
      %5736 = vset.pattern.permute.xlu0 0
      %5737 = vperm.xlu0 %5736, %v5731
      %v5738 = vpop.permute.xlu0 %5737
      %5741 = vset.pattern.permute.xlu0 0
      %5742 = vperm.xlu0 %5741, %v5732
      %v5743 = vpop.permute.xlu0 %5742
      %5746 = vset.pattern.permute.xlu0 0
      %5747 = vperm.xlu0 %5746, %v5733
      %v5748 = vpop.permute.xlu0 %5747
      %5751 = vset.pattern.permute.xlu0 0
      %5752 = vperm.xlu0 %5751, %v5734
      %v5753 = vpop.permute.xlu0 %5752
      %v5756 = vsel %vm298, %v5726, 0
      %v5759 = vsel %vm298, %v5727, 0
      %v5762 = vsel %vm298, %v5728, 0
      %v5765 = vsel %vm298, %v5729, 0
      %v5767 = vand.u32 %v5717, 4294901760
      %5768 = vmatprep.subr.mxu0 %v5767
      %v5769 = vand.u32 %v5716, 4294901760
      %5770 = vmatpush1.msra.mxu0 %v5769
      %v5771 = vand.u32 %v5719, 4294901760
      %5772 = vmatprep.subr.mxu0 %v5771
      %v5773 = vand.u32 %v5718, 4294901760
      %5774 = vmatpush1.msra.mxu0 %v5773
      %5775 = vmatprep.subr.mxu0 0.0
      %5776 = vmatpush1.msra.mxu0 0.0
      %5777 = vmatprep.subr.mxu0 0.0
      %5778 = vmatpush1.msra.mxu0 0.0
      %5779 = vmatprep.subr.mxu0 0.0
      %5780 = vmatpush1.msra.mxu0 0.0
      %5781 = vmatprep.subr.mxu0 0.0
      %5782 = vmatpush1.msra.mxu0 0.0
      %5783 = vmatprep.subr.mxu0 0.0
      %5784 = vmatpush1.msra.mxu0 0.0
      %5785 = vmatprep.subr.mxu0 0.0
      %5786 = vmatpush1.msra.mxu0 0.0
      %5787 = vmatprep.subr.mxu0 0.0
      %5788 = vmatpush1.msra.mxu0 0.0
      %5789 = vmatprep.subr.mxu0 0.0
      %5790 = vmatpush1.msra.mxu0 0.0
      %5791 = vmatprep.subr.mxu0 0.0
      %5792 = vmatpush1.msra.mxu0 0.0
      %5793 = vmatprep.subr.mxu0 0.0
      %5794 = vmatpush1.msra.mxu0 0.0
      %5795 = vmatprep.subr.mxu0 0.0
      %5796 = vmatpush1.msra.mxu0 0.0
      %5797 = vmatprep.subr.mxu0 0.0
      %5798 = vmatpush1.msra.mxu0 0.0
      %5799 = vmatprep.subr.mxu0 0.0
      %5800 = vmatpush1.msra.mxu0 0.0
      %5801 = vmatprep.subr.mxu0 0.0
      %5802 = vmatpush1.msra.mxu0 0.0
      %5803 = vmatprep.subr.mxu0 0.0
      %5804 = vmatpush1.msra.mxu0 0.0
      %5805 = vmatprep.subr.mxu0 0.0
      %5806 = vmatpush1.msra.mxu0 0.0
      %5807 = vmatprep.subr.mxu0 0.0
      %5808 = vmatpush1.msra.mxu0 0.0
      %5809 = vmatprep.subr.mxu0 0.0
      %5810 = vmatpush1.msra.mxu0 0.0
      %5811 = vmatprep.subr.mxu0 0.0
      %5812 = vmatpush1.msra.mxu0 0.0
      %5813 = vmatprep.subr.mxu0 0.0
      %5814 = vmatpush1.msra.mxu0 0.0
      %5815 = vmatprep.subr.mxu0 0.0
      %5816 = vmatpush1.msra.mxu0 0.0
      %5817 = vmatprep.subr.mxu0 0.0
      %5818 = vmatpush1.msra.mxu0 0.0
      %5819 = vmatprep.subr.mxu0 0.0
      %5820 = vmatpush1.msra.mxu0 0.0
      %5821 = vmatprep.subr.mxu0 0.0
      %5822 = vmatpush1.msra.mxu0 0.0
      %5823 = vmatprep.subr.mxu0 0.0
      %5824 = vmatpush1.msra.mxu0 0.0
      %5825 = vmatprep.subr.mxu0 0.0
      %5826 = vmatpush1.msra.mxu0 0.0
      %5827 = vmatprep.subr.mxu0 0.0
      %5828 = vmatpush1.msra.mxu0 0.0
      %5829 = vmatprep.subr.mxu0 0.0
      %5830 = vmatpush1.msra.mxu0 0.0
      %5831 = vmatprep.subr.mxu0 0.0
      %5832 = vmatpush1.msra.mxu0 0.0
      %5833 = vmatprep.subr.mxu0 0.0
      %5834 = vmatpush1.msra.mxu0 0.0
      %5835 = vmatprep.mubr.f32.mxu0 0.0
      %v5836 = vand.u32 %v5756, 4294901760
      %v5837 = vsub.f32 %v5756, %v5836
      %v5838 = vand.u32 %v5837, 4294901760
      %v5839 = vsub.f32 %v5837, %v5838
      %v5840 = vand.u32 %v5839, 4294901760
      %5841 = vmatmul.mubr.f32.gmra.mrb[0].mxu0 %v5840
      %v5842 = vpop.f32.mrb[0].mxu0
      %v5843 = vadd.f32 %v5738, %v5842
      %v5844 = vpop.f32.mrb[0].mxu0
      %v5845 = vadd.f32 %v5738, %v5844
      %5846 = vmatprep.mubr.f32.mxu0 0.0
      %v5847 = vand.u32 %v5759, 4294901760
      %v5848 = vsub.f32 %v5759, %v5847
      %v5849 = vand.u32 %v5848, 4294901760
      %v5850 = vsub.f32 %v5848, %v5849
      %v5851 = vand.u32 %v5850, 4294901760
      %5852 = vmatmul.mubr.f32.gmra.mrb[0].mxu0 %v5851
      %v5853 = vpop.f32.mrb[0].mxu0
      %v5854 = vadd.f32 %v5743, %v5853
      %v5855 = vpop.f32.mrb[0].mxu0
      %v5856 = vadd.f32 %v5743, %v5855
      %5857 = vmatprep.mubr.f32.mxu0 0.0
      %v5858 = vand.u32 %v5762, 4294901760
      %v5859 = vsub.f32 %v5762, %v5858
      %v5860 = vand.u32 %v5859, 4294901760
      %v5861 = vsub.f32 %v5859, %v5860
      %v5862 = vand.u32 %v5861, 4294901760
      %5863 = vmatmul.mubr.f32.gmra.mrb[0].mxu0 %v5862
      %v5864 = vpop.f32.mrb[0].mxu0
      %v5865 = vadd.f32 %v5748, %v5864
      %v5866 = vpop.f32.mrb[0].mxu0
      %v5867 = vadd.f32 %v5748, %v5866
      %5868 = vmatprep.mubr.f32.mxu0 0.0
      %v5869 = vand.u32 %v5765, 4294901760
      %v5870 = vsub.f32 %v5765, %v5869
      %v5871 = vand.u32 %v5870, 4294901760
      %v5872 = vsub.f32 %v5870, %v5871
      %v5873 = vand.u32 %v5872, 4294901760
      %5874 = vmatmul.mubr.f32.gmra.mrb[0].mxu0 %v5873
      %v5875 = vpop.f32.mrb[0].mxu0
      %v5876 = vadd.f32 %v5753, %v5875
      %v5877 = vpop.f32.mrb[0].mxu0
      %v5878 = vadd.f32 %v5753, %v5877
      %5879 = vdwg.mxu0
      %v5880 = vand.u32 %v5717, 4294901760
      %v5881 = vsub.f32 %v5717, %v5880
      %v5882 = vand.u32 %v5881, 4294901760
      %v5883 = vsub.f32 %v5881, %v5882
      %v5884 = vand.u32 %v5883, 4294901760
      %5885 = vmatprep.subr.mxu0 %v5884
      %v5886 = vand.u32 %v5716, 4294901760
      %v5887 = vsub.f32 %v5716, %v5886
      %v5888 = vand.u32 %v5887, 4294901760
      %v5889 = vsub.f32 %v5887, %v5888
      %v5890 = vand.u32 %v5889, 4294901760
      %5891 = vmatpush1.msra.mxu0 %v5890
      %v5892 = vand.u32 %v5719, 4294901760
      %v5893 = vsub.f32 %v5719, %v5892
      %v5894 = vand.u32 %v5893, 4294901760
      %v5895 = vsub.f32 %v5893, %v5894
      %v5896 = vand.u32 %v5895, 4294901760
      %5897 = vmatprep.subr.mxu0 %v5896
      %v5898 = vand.u32 %v5718, 4294901760
      %v5899 = vsub.f32 %v5718, %v5898
      %v5900 = vand.u32 %v5899, 4294901760
      %v5901 = vsub.f32 %v5899, %v5900
      %v5902 = vand.u32 %v5901, 4294901760
      %5903 = vmatpush1.msra.mxu0 %v5902
      %5904 = vmatprep.subr.mxu0 0.0
      %5905 = vmatpush1.msra.mxu0 0.0
      %5906 = vmatprep.subr.mxu0 0.0
      %5907 = vmatpush1.msra.mxu0 0.0
      %5908 = vmatprep.subr.mxu0 0.0
      %5909 = vmatpush1.msra.mxu0 0.0
      %5910 = vmatprep.subr.mxu0 0.0
      %5911 = vmatpush1.msra.mxu0 0.0
      %5912 = vmatprep.subr.mxu0 0.0
      %5913 = vmatpush1.msra.mxu0 0.0
      %5914 = vmatprep.subr.mxu0 0.0
      %5915 = vmatpush1.msra.mxu0 0.0
      %5916 = vmatprep.subr.mxu0 0.0
      %5917 = vmatpush1.msra.mxu0 0.0
      %5918 = vmatprep.subr.mxu0 0.0
      %5919 = vmatpush1.msra.mxu0 0.0
      %5920 = vmatprep.subr.mxu0 0.0
      %5921 = vmatpush1.msra.mxu0 0.0
      %5922 = vmatprep.subr.mxu0 0.0
      %5923 = vmatpush1.msra.mxu0 0.0
      %5924 = vmatprep.subr.mxu0 0.0
      %5925 = vmatpush1.msra.mxu0 0.0
      %5926 = vmatprep.subr.mxu0 0.0
      %5927 = vmatpush1.msra.mxu0 0.0
      %5928 = vmatprep.subr.mxu0 0.0
      %5929 = vmatpush1.msra.mxu0 0.0
      %5930 = vmatprep.subr.mxu0 0.0
      %5931 = vmatpush1.msra.mxu0 0.0
      %5932 = vmatprep.subr.mxu0 0.0
      %5933 = vmatpush1.msra.mxu0 0.0
      %5934 = vmatprep.subr.mxu0 0.0
      %5935 = vmatpush1.msra.mxu0 0.0
      %5936 = vmatprep.subr.mxu0 0.0
      %5937 = vmatpush1.msra.mxu0 0.0
      %5938 = vmatprep.subr.mxu0 0.0
      %5939 = vmatpush1.msra.mxu0 0.0
      %5940 = vmatprep.subr.mxu0 0.0
      %5941 = vmatpush1.msra.mxu0 0.0
      %5942 = vmatprep.subr.mxu0 0.0
      %5943 = vmatpush1.msra.mxu0 0.0
      %5944 = vmatprep.subr.mxu0 0.0
      %5945 = vmatpush1.msra.mxu0 0.0
      %5946 = vmatprep.subr.mxu0 0.0
      %5947 = vmatpush1.msra.mxu0 0.0
      %5948 = vmatprep.subr.mxu0 0.0
      %5949 = vmatpush1.msra.mxu0 0.0
      %5950 = vmatprep.subr.mxu0 0.0
      %5951 = vmatpush1.msra.mxu0 0.0
      %5952 = vmatprep.subr.mxu0 0.0
      %5953 = vmatpush1.msra.mxu0 0.0
      %5954 = vmatprep.subr.mxu0 0.0
      %5955 = vmatpush1.msra.mxu0 0.0
      %5956 = vmatprep.subr.mxu0 0.0
      %5957 = vmatpush1.msra.mxu0 0.0
      %5958 = vmatprep.subr.mxu0 0.0
      %5959 = vmatpush1.msra.mxu0 0.0
      %5960 = vmatprep.subr.mxu0 0.0
      %5961 = vmatpush1.msra.mxu0 0.0
      %5962 = vmatprep.subr.mxu0 0.0
      %5963 = vmatpush1.msra.mxu0 0.0
      %5964 = vmatprep.mubr.f32.mxu0 0.0
      %v5965 = vand.u32 %v5756, 4294901760
      %5966 = vmatmul.mubr.f32.gmra.mrb[0].mxu0 %v5965
      %v5967 = vpop.f32.mrb[0].mxu0
      %v5968 = vadd.f32 %v5843, %v5967
      %v5969 = vpop.f32.mrb[0].mxu0
      %v5970 = vadd.f32 %v5845, %v5969
      %5971 = vmatprep.mubr.f32.mxu0 0.0
      %v5972 = vand.u32 %v5759, 4294901760
      %5973 = vmatmul.mubr.f32.gmra.mrb[0].mxu0 %v5972
      %v5974 = vpop.f32.mrb[0].mxu0
      %v5975 = vadd.f32 %v5854, %v5974
      %v5976 = vpop.f32.mrb[0].mxu0
      %v5977 = vadd.f32 %v5856, %v5976
      %5978 = vmatprep.mubr.f32.mxu0 0.0
      %v5979 = vand.u32 %v5762, 4294901760
      %5980 = vmatmul.mubr.f32.gmra.mrb[0].mxu0 %v5979
      %v5981 = vpop.f32.mrb[0].mxu0
      %v5982 = vadd.f32 %v5865, %v5981
      %v5983 = vpop.f32.mrb[0].mxu0
      %v5984 = vadd.f32 %v5867, %v5983
      %5985 = vmatprep.mubr.f32.mxu0 0.0
      %v5986 = vand.u32 %v5765, 4294901760
      %5987 = vmatmul.mubr.f32.gmra.mrb[0].mxu0 %v5986
      %v5988 = vpop.f32.mrb[0].mxu0
      %v5989 = vadd.f32 %v5876, %v5988
      %v5990 = vpop.f32.mrb[0].mxu0
      %v5991 = vadd.f32 %v5878, %v5990
      %5992 = vdwg.mxu0
      %v5993 = vand.u32 %v5717, 4294901760
      %v5994 = vsub.f32 %v5717, %v5993
      %5995 = vmatprep.subr.mxu0 %v5994
      %v5996 = vand.u32 %v5716, 4294901760
      %v5997 = vsub.f32 %v5716, %v5996
      %5998 = vmatpush1.msra.mxu0 %v5997
      %v5999 = vand.u32 %v5719, 4294901760
      %v6000 = vsub.f32 %v5719, %v5999
      %6001 = vmatprep.subr.mxu0 %v6000
      %v6002 = vand.u32 %v5718, 4294901760
      %v6003 = vsub.f32 %v5718, %v6002
      %6004 = vmatpush1.msra.mxu0 %v6003
      %6005 = vmatprep.subr.mxu0 0.0
      %6006 = vmatpush1.msra.mxu0 0.0
      %6007 = vmatprep.subr.mxu0 0.0
      %6008 = vmatpush1.msra.mxu0 0.0
      %6009 = vmatprep.subr.mxu0 0.0
      %6010 = vmatpush1.msra.mxu0 0.0
      %6011 = vmatprep.subr.mxu0 0.0
      %6012 = vmatpush1.msra.mxu0 0.0
      %6013 = vmatprep.subr.mxu0 0.0
      %6014 = vmatpush1.msra.mxu0 0.0
      %6015 = vmatprep.subr.mxu0 0.0
      %6016 = vmatpush1.msra.mxu0 0.0
      %6017 = vmatprep.subr.mxu0 0.0
      %6018 = vmatpush1.msra.mxu0 0.0
      %6019 = vmatprep.subr.mxu0 0.0
      %6020 = vmatpush1.msra.mxu0 0.0
      %6021 = vmatprep.subr.mxu0 0.0
      %6022 = vmatpush1.msra.mxu0 0.0
      %6023 = vmatprep.subr.mxu0 0.0
      %6024 = vmatpush1.msra.mxu0 0.0
      %6025 = vmatprep.subr.mxu0 0.0
      %6026 = vmatpush1.msra.mxu0 0.0
      %6027 = vmatprep.subr.mxu0 0.0
      %6028 = vmatpush1.msra.mxu0 0.0
      %6029 = vmatprep.subr.mxu0 0.0
      %6030 = vmatpush1.msra.mxu0 0.0
      %6031 = vmatprep.subr.mxu0 0.0
      %6032 = vmatpush1.msra.mxu0 0.0
      %6033 = vmatprep.subr.mxu0 0.0
      %6034 = vmatpush1.msra.mxu0 0.0
      %6035 = vmatprep.subr.mxu0 0.0
      %6036 = vmatpush1.msra.mxu0 0.0
      %6037 = vmatprep.subr.mxu0 0.0
      %6038 = vmatpush1.msra.mxu0 0.0
      %6039 = vmatprep.subr.mxu0 0.0
      %6040 = vmatpush1.msra.mxu0 0.0
      %6041 = vmatprep.subr.mxu0 0.0
      %6042 = vmatpush1.msra.mxu0 0.0
      %6043 = vmatprep.subr.mxu0 0.0
      %6044 = vmatpush1.msra.mxu0 0.0
      %6045 = vmatprep.subr.mxu0 0.0
      %6046 = vmatpush1.msra.mxu0 0.0
      %6047 = vmatprep.subr.mxu0 0.0
      %6048 = vmatpush1.msra.mxu0 0.0
      %6049 = vmatprep.subr.mxu0 0.0
      %6050 = vmatpush1.msra.mxu0 0.0
      %6051 = vmatprep.subr.mxu0 0.0
      %6052 = vmatpush1.msra.mxu0 0.0
      %6053 = vmatprep.subr.mxu0 0.0
      %6054 = vmatpush1.msra.mxu0 0.0
      %6055 = vmatprep.subr.mxu0 0.0
      %6056 = vmatpush1.msra.mxu0 0.0
      %6057 = vmatprep.subr.mxu0 0.0
      %6058 = vmatpush1.msra.mxu0 0.0
      %6059 = vmatprep.subr.mxu0 0.0
      %6060 = vmatpush1.msra.mxu0 0.0
      %6061 = vmatprep.subr.mxu0 0.0
      %6062 = vmatpush1.msra.mxu0 0.0
      %6063 = vmatprep.subr.mxu0 0.0
      %6064 = vmatpush1.msra.mxu0 0.0
      %6065 = vmatprep.mubr.f32.mxu0 0.0
      %v6066 = vand.u32 %v5756, 4294901760
      %v6067 = vsub.f32 %v5756, %v6066
      %6068 = vmatmul.mubr.f32.gmra.mrb[0].mxu0 %v6067
      %v6069 = vpop.f32.mrb[0].mxu0
      %v6070 = vadd.f32 %v5968, %v6069
      %v6071 = vpop.f32.mrb[0].mxu0
      %v6072 = vadd.f32 %v5970, %v6071
      %6073 = vmatprep.mubr.f32.mxu0 0.0
      %v6074 = vand.u32 %v5759, 4294901760
      %v6075 = vsub.f32 %v5759, %v6074
      %6076 = vmatmul.mubr.f32.gmra.mrb[0].mxu0 %v6075
      %v6077 = vpop.f32.mrb[0].mxu0
      %v6078 = vadd.f32 %v5975, %v6077
      %v6079 = vpop.f32.mrb[0].mxu0
      %v6080 = vadd.f32 %v5977, %v6079
      %6081 = vmatprep.mubr.f32.mxu0 0.0
      %v6082 = vand.u32 %v5762, 4294901760
      %v6083 = vsub.f32 %v5762, %v6082
      %6084 = vmatmul.mubr.f32.gmra.mrb[0].mxu0 %v6083
      %v6085 = vpop.f32.mrb[0].mxu0
      %v6086 = vadd.f32 %v5982, %v6085
      %v6087 = vpop.f32.mrb[0].mxu0
      %v6088 = vadd.f32 %v5984, %v6087
      %6089 = vmatprep.mubr.f32.mxu0 0.0
      %v6090 = vand.u32 %v5765, 4294901760
      %v6091 = vsub.f32 %v5765, %v6090
      %6092 = vmatmul.mubr.f32.gmra.mrb[0].mxu0 %v6091
      %v6093 = vpop.f32.mrb[0].mxu0
      %v6094 = vadd.f32 %v5989, %v6093
      %v6095 = vpop.f32.mrb[0].mxu0
      %v6096 = vadd.f32 %v5991, %v6095
      %6097 = vdwg.mxu0
      %v6098 = vand.u32 %v5717, 4294901760
      %6099 = vmatprep.subr.mxu0 %v6098
      %v6100 = vand.u32 %v5716, 4294901760
      %6101 = vmatpush1.msra.mxu0 %v6100
      %v6102 = vand.u32 %v5719, 4294901760
      %6103 = vmatprep.subr.mxu0 %v6102
      %v6104 = vand.u32 %v5718, 4294901760
      %6105 = vmatpush1.msra.mxu0 %v6104
      %6106 = vmatprep.subr.mxu0 0.0
      %6107 = vmatpush1.msra.mxu0 0.0
      %6108 = vmatprep.subr.mxu0 0.0
      %6109 = vmatpush1.msra.mxu0 0.0
      %6110 = vmatprep.subr.mxu0 0.0
      %6111 = vmatpush1.msra.mxu0 0.0
      %6112 = vmatprep.subr.mxu0 0.0
      %6113 = vmatpush1.msra.mxu0 0.0
      %6114 = vmatprep.subr.mxu0 0.0
      %6115 = vmatpush1.msra.mxu0 0.0
      %6116 = vmatprep.subr.mxu0 0.0
      %6117 = vmatpush1.msra.mxu0 0.0
      %6118 = vmatprep.subr.mxu0 0.0
      %6119 = vmatpush1.msra.mxu0 0.0
      %6120 = vmatprep.subr.mxu0 0.0
      %6121 = vmatpush1.msra.mxu0 0.0
      %6122 = vmatprep.subr.mxu0 0.0
      %6123 = vmatpush1.msra.mxu0 0.0
      %6124 = vmatprep.subr.mxu0 0.0
      %6125 = vmatpush1.msra.mxu0 0.0
      %6126 = vmatprep.subr.mxu0 0.0
      %6127 = vmatpush1.msra.mxu0 0.0
      %6128 = vmatprep.subr.mxu0 0.0
      %6129 = vmatpush1.msra.mxu0 0.0
      %6130 = vmatprep.subr.mxu0 0.0
      %6131 = vmatpush1.msra.mxu0 0.0
      %6132 = vmatprep.subr.mxu0 0.0
      %6133 = vmatpush1.msra.mxu0 0.0
      %6134 = vmatprep.subr.mxu0 0.0
      %6135 = vmatpush1.msra.mxu0 0.0
      %6136 = vmatprep.subr.mxu0 0.0
      %6137 = vmatpush1.msra.mxu0 0.0
      %6138 = vmatprep.subr.mxu0 0.0
      %6139 = vmatpush1.msra.mxu0 0.0
      %6140 = vmatprep.subr.mxu0 0.0
      %6141 = vmatpush1.msra.mxu0 0.0
      %6142 = vmatprep.subr.mxu0 0.0
      %6143 = vmatpush1.msra.mxu0 0.0
      %6144 = vmatprep.subr.mxu0 0.0
      %6145 = vmatpush1.msra.mxu0 0.0
      %6146 = vmatprep.subr.mxu0 0.0
      %6147 = vmatpush1.msra.mxu0 0.0
      %6148 = vmatprep.subr.mxu0 0.0
      %6149 = vmatpush1.msra.mxu0 0.0
      %6150 = vmatprep.subr.mxu0 0.0
      %6151 = vmatpush1.msra.mxu0 0.0
      %6152 = vmatprep.subr.mxu0 0.0
      %6153 = vmatpush1.msra.mxu0 0.0
      %6154 = vmatprep.subr.mxu0 0.0
      %6155 = vmatpush1.msra.mxu0 0.0
      %6156 = vmatprep.subr.mxu0 0.0
      %6157 = vmatpush1.msra.mxu0 0.0
      %6158 = vmatprep.subr.mxu0 0.0
      %6159 = vmatpush1.msra.mxu0 0.0
      %6160 = vmatprep.subr.mxu0 0.0
      %6161 = vmatpush1.msra.mxu0 0.0
      %6162 = vmatprep.subr.mxu0 0.0
      %6163 = vmatpush1.msra.mxu0 0.0
      %6164 = vmatprep.subr.mxu0 0.0
      %6165 = vmatpush1.msra.mxu0 0.0
      %6166 = vmatprep.mubr.f32.mxu0 0.0
      %v6167 = vand.u32 %v5756, 4294901760
      %v6168 = vsub.f32 %v5756, %v6167
      %v6169 = vand.u32 %v6168, 4294901760
      %6170 = vmatmul.mubr.f32.gmra.mrb[0].mxu0 %v6169
      %v6171 = vpop.f32.mrb[0].mxu0
      %v6172 = vadd.f32 %v6070, %v6171
      %v6173 = vpop.f32.mrb[0].mxu0
      %v6174 = vadd.f32 %v6072, %v6173
      %6175 = vmatprep.mubr.f32.mxu0 0.0
      %v6176 = vand.u32 %v5759, 4294901760
      %v6177 = vsub.f32 %v5759, %v6176
      %v6178 = vand.u32 %v6177, 4294901760
      %6179 = vmatmul.mubr.f32.gmra.mrb[0].mxu0 %v6178
      %v6180 = vpop.f32.mrb[0].mxu0
      %v6181 = vadd.f32 %v6078, %v6180
      %v6182 = vpop.f32.mrb[0].mxu0
      %v6183 = vadd.f32 %v6080, %v6182
      %6184 = vmatprep.mubr.f32.mxu0 0.0
      %v6185 = vand.u32 %v5762, 4294901760
      %v6186 = vsub.f32 %v5762, %v6185
      %v6187 = vand.u32 %v6186, 4294901760
      %6188 = vmatmul.mubr.f32.gmra.mrb[0].mxu0 %v6187
      %v6189 = vpop.f32.mrb[0].mxu0
      %v6190 = vadd.f32 %v6086, %v6189
      %v6191 = vpop.f32.mrb[0].mxu0
      %v6192 = vadd.f32 %v6088, %v6191
      %6193 = vmatprep.mubr.f32.mxu0 0.0
      %v6194 = vand.u32 %v5765, 4294901760
      %v6195 = vsub.f32 %v5765, %v6194
      %v6196 = vand.u32 %v6195, 4294901760
      %6197 = vmatmul.mubr.f32.gmra.mrb[0].mxu0 %v6196
      %v6198 = vpop.f32.mrb[0].mxu0
      %v6199 = vadd.f32 %v6094, %v6198
      %v6200 = vpop.f32.mrb[0].mxu0
      %v6201 = vadd.f32 %v6096, %v6200
      %6202 = vdwg.mxu0
      %v6203 = vand.u32 %v5717, 4294901760
      %v6204 = vsub.f32 %v5717, %v6203
      %v6205 = vand.u32 %v6204, 4294901760
      %6206 = vmatprep.subr.mxu0 %v6205
      %v6207 = vand.u32 %v5716, 4294901760
      %v6208 = vsub.f32 %v5716, %v6207
      %v6209 = vand.u32 %v6208, 4294901760
      %6210 = vmatpush1.msra.mxu0 %v6209
      %v6211 = vand.u32 %v5719, 4294901760
      %v6212 = vsub.f32 %v5719, %v6211
      %v6213 = vand.u32 %v6212, 4294901760
      %6214 = vmatprep.subr.mxu0 %v6213
      %v6215 = vand.u32 %v5718, 4294901760
      %v6216 = vsub.f32 %v5718, %v6215
      %v6217 = vand.u32 %v6216, 4294901760
      %6218 = vmatpush1.msra.mxu0 %v6217
      %6219 = vmatprep.subr.mxu0 0.0
      %6220 = vmatpush1.msra.mxu0 0.0
      %6221 = vmatprep.subr.mxu0 0.0
      %6222 = vmatpush1.msra.mxu0 0.0
      %6223 = vmatprep.subr.mxu0 0.0
      %6224 = vmatpush1.msra.mxu0 0.0
      %6225 = vmatprep.subr.mxu0 0.0
      %6226 = vmatpush1.msra.mxu0 0.0
      %6227 = vmatprep.subr.mxu0 0.0
      %6228 = vmatpush1.msra.mxu0 0.0
      %6229 = vmatprep.subr.mxu0 0.0
      %6230 = vmatpush1.msra.mxu0 0.0
      %6231 = vmatprep.subr.mxu0 0.0
      %6232 = vmatpush1.msra.mxu0 0.0
      %6233 = vmatprep.subr.mxu0 0.0
      %6234 = vmatpush1.msra.mxu0 0.0
      %6235 = vmatprep.subr.mxu0 0.0
      %6236 = vmatpush1.msra.mxu0 0.0
      %6237 = vmatprep.subr.mxu0 0.0
      %6238 = vmatpush1.msra.mxu0 0.0
      %6239 = vmatprep.subr.mxu0 0.0
      %6240 = vmatpush1.msra.mxu0 0.0
      %6241 = vmatprep.subr.mxu0 0.0
      %6242 = vmatpush1.msra.mxu0 0.0
      %6243 = vmatprep.subr.mxu0 0.0
      %6244 = vmatpush1.msra.mxu0 0.0
      %6245 = vmatprep.subr.mxu0 0.0
      %6246 = vmatpush1.msra.mxu0 0.0
      %6247 = vmatprep.subr.mxu0 0.0
      %6248 = vmatpush1.msra.mxu0 0.0
      %6249 = vmatprep.subr.mxu0 0.0
      %6250 = vmatpush1.msra.mxu0 0.0
      %6251 = vmatprep.subr.mxu0 0.0
      %6252 = vmatpush1.msra.mxu0 0.0
      %6253 = vmatprep.subr.mxu0 0.0
      %6254 = vmatpush1.msra.mxu0 0.0
      %6255 = vmatprep.subr.mxu0 0.0
      %6256 = vmatpush1.msra.mxu0 0.0
      %6257 = vmatprep.subr.mxu0 0.0
      %6258 = vmatpush1.msra.mxu0 0.0
      %6259 = vmatprep.subr.mxu0 0.0
      %6260 = vmatpush1.msra.mxu0 0.0
      %6261 = vmatprep.subr.mxu0 0.0
      %6262 = vmatpush1.msra.mxu0 0.0
      %6263 = vmatprep.subr.mxu0 0.0
      %6264 = vmatpush1.msra.mxu0 0.0
      %6265 = vmatprep.subr.mxu0 0.0
      %6266 = vmatpush1.msra.mxu0 0.0
      %6267 = vmatprep.subr.mxu0 0.0
      %6268 = vmatpush1.msra.mxu0 0.0
      %6269 = vmatprep.subr.mxu0 0.0
      %6270 = vmatpush1.msra.mxu0 0.0
      %6271 = vmatprep.subr.mxu0 0.0
      %6272 = vmatpush1.msra.mxu0 0.0
      %6273 = vmatprep.subr.mxu0 0.0
      %6274 = vmatpush1.msra.mxu0 0.0
      %6275 = vmatprep.subr.mxu0 0.0
      %6276 = vmatpush1.msra.mxu0 0.0
      %6277 = vmatprep.subr.mxu0 0.0
      %6278 = vmatpush1.msra.mxu0 0.0
      %6279 = vmatprep.mubr.f32.mxu0 0.0
      %v6280 = vand.u32 %v5756, 4294901760
      %6281 = vmatmul.mubr.f32.gmra.mrb[0].mxu0 %v6280
      %v6282 = vpop.f32.mrb[0].mxu0
      %v6283 = vadd.f32 %v6172, %v6282
      %v6284 = vpop.f32.mrb[0].mxu0
      %v6285 = vadd.f32 %v6174, %v6284
      %6286 = vmatprep.mubr.f32.mxu0 0.0
      %v6287 = vand.u32 %v5759, 4294901760
      %6288 = vmatmul.mubr.f32.gmra.mrb[0].mxu0 %v6287
      %v6289 = vpop.f32.mrb[0].mxu0
      %v6290 = vadd.f32 %v6181, %v6289
      %v6291 = vpop.f32.mrb[0].mxu0
      %v6292 = vadd.f32 %v6183, %v6291
      %6293 = vmatprep.mubr.f32.mxu0 0.0
      %v6294 = vand.u32 %v5762, 4294901760
      %6295 = vmatmul.mubr.f32.gmra.mrb[0].mxu0 %v6294
      %v6296 = vpop.f32.mrb[0].mxu0
      %v6297 = vadd.f32 %v6190, %v6296
      %v6298 = vpop.f32.mrb[0].mxu0
      %v6299 = vadd.f32 %v6192, %v6298
      %6300 = vmatprep.mubr.f32.mxu0 0.0
      %v6301 = vand.u32 %v5765, 4294901760
      %6302 = vmatmul.mubr.f32.gmra.mrb[0].mxu0 %v6301
      %v6303 = vpop.f32.mrb[0].mxu0
      %v6304 = vadd.f32 %v6199, %v6303
      %v6305 = vpop.f32.mrb[0].mxu0
      %v6306 = vadd.f32 %v6201, %v6305
      %6307 = vdwg.mxu0
      %v6308 = vand.u32 %v5717, 4294901760
      %6309 = vmatprep.subr.mxu0 %v6308
      %v6310 = vand.u32 %v5716, 4294901760
      %6311 = vmatpush1.msra.mxu0 %v6310
      %v6312 = vand.u32 %v5719, 4294901760
      %6313 = vmatprep.subr.mxu0 %v6312
      %v6314 = vand.u32 %v5718, 4294901760
      %6315 = vmatpush1.msra.mxu0 %v6314
      %6316 = vmatprep.subr.mxu0 0.0
      %6317 = vmatpush1.msra.mxu0 0.0
      %6318 = vmatprep.subr.mxu0 0.0
      %6319 = vmatpush1.msra.mxu0 0.0
      %6320 = vmatprep.subr.mxu0 0.0
      %6321 = vmatpush1.msra.mxu0 0.0
      %6322 = vmatprep.subr.mxu0 0.0
      %6323 = vmatpush1.msra.mxu0 0.0
      %6324 = vmatprep.subr.mxu0 0.0
      %6325 = vmatpush1.msra.mxu0 0.0
      %6326 = vmatprep.subr.mxu0 0.0
      %6327 = vmatpush1.msra.mxu0 0.0
      %6328 = vmatprep.subr.mxu0 0.0
      %6329 = vmatpush1.msra.mxu0 0.0
      %6330 = vmatprep.subr.mxu0 0.0
      %6331 = vmatpush1.msra.mxu0 0.0
      %6332 = vmatprep.subr.mxu0 0.0
      %6333 = vmatpush1.msra.mxu0 0.0
      %6334 = vmatprep.subr.mxu0 0.0
      %6335 = vmatpush1.msra.mxu0 0.0
      %6336 = vmatprep.subr.mxu0 0.0
      %6337 = vmatpush1.msra.mxu0 0.0
      %6338 = vmatprep.subr.mxu0 0.0
      %6339 = vmatpush1.msra.mxu0 0.0
      %6340 = vmatprep.subr.mxu0 0.0
      %6341 = vmatpush1.msra.mxu0 0.0
      %6342 = vmatprep.subr.mxu0 0.0
      %6343 = vmatpush1.msra.mxu0 0.0
      %6344 = vmatprep.subr.mxu0 0.0
      %6345 = vmatpush1.msra.mxu0 0.0
      %6346 = vmatprep.subr.mxu0 0.0
      %6347 = vmatpush1.msra.mxu0 0.0
      %6348 = vmatprep.subr.mxu0 0.0
      %6349 = vmatpush1.msra.mxu0 0.0
      %6350 = vmatprep.subr.mxu0 0.0
      %6351 = vmatpush1.msra.mxu0 0.0
      %6352 = vmatprep.subr.mxu0 0.0
      %6353 = vmatpush1.msra.mxu0 0.0
      %6354 = vmatprep.subr.mxu0 0.0
      %6355 = vmatpush1.msra.mxu0 0.0
      %6356 = vmatprep.subr.mxu0 0.0
      %6357 = vmatpush1.msra.mxu0 0.0
      %6358 = vmatprep.subr.mxu0 0.0
      %6359 = vmatpush1.msra.mxu0 0.0
      %6360 = vmatprep.subr.mxu0 0.0
      %6361 = vmatpush1.msra.mxu0 0.0
      %6362 = vmatprep.subr.mxu0 0.0
      %6363 = vmatpush1.msra.mxu0 0.0
      %6364 = vmatprep.subr.mxu0 0.0
      %6365 = vmatpush1.msra.mxu0 0.0
      %6366 = vmatprep.subr.mxu0 0.0
      %6367 = vmatpush1.msra.mxu0 0.0
      %6368 = vmatprep.subr.mxu0 0.0
      %6369 = vmatpush1.msra.mxu0 0.0
      %6370 = vmatprep.subr.mxu0 0.0
      %6371 = vmatpush1.msra.mxu0 0.0
      %6372 = vmatprep.subr.mxu0 0.0
      %6373 = vmatpush1.msra.mxu0 0.0
      %6374 = vmatprep.subr.mxu0 0.0
      %6375 = vmatpush1.msra.mxu0 0.0
      %6376 = vmatprep.mubr.f32.mxu0 0.0
      %v6377 = vand.u32 %v5756, 4294901760
      %6378 = vmatmul.mubr.f32.gmra.mrb[0].mxu0 %v6377
      %v6379 = vpop.f32.mrb[0].mxu0
      %v6380 = vadd.f32 %v6283, %v6379
      %v6381 = vpop.f32.mrb[0].mxu0
      %v6382 = vadd.f32 %v6285, %v6381
      %6383 = vmatprep.mubr.f32.mxu0 0.0
      %v6384 = vand.u32 %v5759, 4294901760
      %6385 = vmatmul.mubr.f32.gmra.mrb[0].mxu0 %v6384
      %v6386 = vpop.f32.mrb[0].mxu0
      %v6387 = vadd.f32 %v6290, %v6386
      %v6388 = vpop.f32.mrb[0].mxu0
      %v6389 = vadd.f32 %v6292, %v6388
      %6390 = vmatprep.mubr.f32.mxu0 0.0
      %v6391 = vand.u32 %v5762, 4294901760
      %6392 = vmatmul.mubr.f32.gmra.mrb[0].mxu0 %v6391
      %v6393 = vpop.f32.mrb[0].mxu0
      %v6394 = vadd.f32 %v6297, %v6393
      %v6395 = vpop.f32.mrb[0].mxu0
      %v6396 = vadd.f32 %v6299, %v6395
      %6397 = vmatprep.mubr.f32.mxu0 0.0
      %v6398 = vand.u32 %v5765, 4294901760
      %6399 = vmatmul.mubr.f32.gmra.mrb[0].mxu0 %v6398
      %v6400 = vpop.f32.mrb[0].mxu0
      %v6401 = vadd.f32 %v6304, %v6400
      %v6402 = vpop.f32.mrb[0].mxu0
      %v6403 = vadd.f32 %v6306, %v6402
      %6404 = vdwg.mxu0
      %v6405 = vtanh.pop %v6380
      %v6406 = vtanh.pop %v6382
      %v6407 = vtanh.pop %v6387
      %v6408 = vtanh.pop %v6389
      %v6409 = vtanh.pop %v6394
      %v6410 = vtanh.pop %v6396
      %v6411 = vtanh.pop %v6401
      %v6412 = vtanh.pop %v6403
      %s6413 = scalar_lea.vmem %s3, 96
      %v6414 = vld [vmem:[%s6413] sm:$0xff]
      %v6415 = vld [vmem:[%s6413 + $0x8] sm:$0xff]
      %v6416 = vld [vmem:[%s6413 + $0x10] sm:$0xff]
      %v6417 = vld [vmem:[%s6413 + $0x18] sm:$0xff]
      %s6418 = scalar_lea.vmem %s4, 96
      %v6419 = vld [vmem:[%s6418] sm:$0xff]
      %v6420 = vld [vmem:[%s6418 + $0x8] sm:$0xff]
      %v6421 = vld [vmem:[%s6418 + $0x10] sm:$0xff]
      %v6422 = vld [vmem:[%s6418 + $0x18] sm:$0xff]
      %6424 = vset.pattern.permute.xlu0 0
      %6425 = vperm.xlu0 %6424, %v6419
      %v6426 = vpop.permute.xlu0 %6425
      %6429 = vset.pattern.permute.xlu0 0
      %6430 = vperm.xlu0 %6429, %v6420
      %v6431 = vpop.permute.xlu0 %6430
      %6434 = vset.pattern.permute.xlu0 0
      %6435 = vperm.xlu0 %6434, %v6421
      %v6436 = vpop.permute.xlu0 %6435
      %6439 = vset.pattern.permute.xlu0 0
      %6440 = vperm.xlu0 %6439, %v6422
      %v6441 = vpop.permute.xlu0 %6440
      %v6444 = vsel %vm2023, %v6414, 0
      %v6447 = vsel %vm2023, %v6415, 0
      %v6450 = vsel %vm2023, %v6416, 0
      %v6453 = vsel %vm2023, %v6417, 0
      %v6455 = vand.u32 %v6406, 4294901760
      %6456 = vmatprep.subr.mxu0 %v6455
      %v6457 = vand.u32 %v6405, 4294901760
      %6458 = vmatpush1.msra.mxu0 %v6457
      %v6459 = vand.u32 %v6408, 4294901760
      %6460 = vmatprep.subr.mxu0 %v6459
      %v6461 = vand.u32 %v6407, 4294901760
      %6462 = vmatpush1.msra.mxu0 %v6461
      %v6463 = vand.u32 %v6410, 4294901760
      %6464 = vmatprep.subr.mxu0 %v6463
      %v6465 = vand.u32 %v6409, 4294901760
      %6466 = vmatpush1.msra.mxu0 %v6465
      %v6467 = vand.u32 %v6412, 4294901760
      %6468 = vmatprep.subr.mxu0 %v6467
      %v6469 = vand.u32 %v6411, 4294901760
      %6470 = vmatpush1.msra.mxu0 %v6469
      %6471 = vmatprep.subr.mxu0 0.0
      %6472 = vmatpush1.msra.mxu0 0.0
      %6473 = vmatprep.subr.mxu0 0.0
      %6474 = vmatpush1.msra.mxu0 0.0
      %6475 = vmatprep.subr.mxu0 0.0
      %6476 = vmatpush1.msra.mxu0 0.0
      %6477 = vmatprep.subr.mxu0 0.0
      %6478 = vmatpush1.msra.mxu0 0.0
      %6479 = vmatprep.subr.mxu0 0.0
      %6480 = vmatpush1.msra.mxu0 0.0
      %6481 = vmatprep.subr.mxu0 0.0
      %6482 = vmatpush1.msra.mxu0 0.0
      %6483 = vmatprep.subr.mxu0 0.0
      %6484 = vmatpush1.msra.mxu0 0.0
      %6485 = vmatprep.subr.mxu0 0.0
      %6486 = vmatpush1.msra.mxu0 0.0
      %6487 = vmatprep.subr.mxu0 0.0
      %6488 = vmatpush1.msra.mxu0 0.0
      %6489 = vmatprep.subr.mxu0 0.0
      %6490 = vmatpush1.msra.mxu0 0.0
      %6491 = vmatprep.subr.mxu0 0.0
      %6492 = vmatpush1.msra.mxu0 0.0
      %6493 = vmatprep.subr.mxu0 0.0
      %6494 = vmatpush1.msra.mxu0 0.0
      %6495 = vmatprep.subr.mxu0 0.0
      %6496 = vmatpush1.msra.mxu0 0.0
      %6497 = vmatprep.subr.mxu0 0.0
      %6498 = vmatpush1.msra.mxu0 0.0
      %6499 = vmatprep.subr.mxu0 0.0
      %6500 = vmatpush1.msra.mxu0 0.0
      %6501 = vmatprep.subr.mxu0 0.0
      %6502 = vmatpush1.msra.mxu0 0.0
      %6503 = vmatprep.subr.mxu0 0.0
      %6504 = vmatpush1.msra.mxu0 0.0
      %6505 = vmatprep.subr.mxu0 0.0
      %6506 = vmatpush1.msra.mxu0 0.0
      %6507 = vmatprep.subr.mxu0 0.0
      %6508 = vmatpush1.msra.mxu0 0.0
      %6509 = vmatprep.subr.mxu0 0.0
      %6510 = vmatpush1.msra.mxu0 0.0
      %6511 = vmatprep.subr.mxu0 0.0
      %6512 = vmatpush1.msra.mxu0 0.0
      %6513 = vmatprep.subr.mxu0 0.0
      %6514 = vmatpush1.msra.mxu0 0.0
      %6515 = vmatprep.subr.mxu0 0.0
      %6516 = vmatpush1.msra.mxu0 0.0
      %6517 = vmatprep.subr.mxu0 0.0
      %6518 = vmatpush1.msra.mxu0 0.0
      %6519 = vmatprep.subr.mxu0 0.0
      %6520 = vmatpush1.msra.mxu0 0.0
      %6521 = vmatprep.subr.mxu0 0.0
      %6522 = vmatpush1.msra.mxu0 0.0
      %6523 = vmatprep.subr.mxu0 0.0
      %6524 = vmatpush1.msra.mxu0 0.0
      %6525 = vmatprep.subr.mxu0 0.0
      %6526 = vmatpush1.msra.mxu0 0.0
      %6527 = vmatprep.mubr.f32.mxu0 0.0
      %v6528 = vand.u32 %v6444, 4294901760
      %v6529 = vsub.f32 %v6444, %v6528
      %v6530 = vand.u32 %v6529, 4294901760
      %v6531 = vsub.f32 %v6529, %v6530
      %v6532 = vand.u32 %v6531, 4294901760
      %6533 = vmatmul.mubr.f32.gmra.mrb[0].mxu0 %v6532
      %v6534 = vpop.f32.mrb[0].mxu0
      %v6535 = vadd.f32 %v6426, %v6534
      %v6536 = vpop.f32.mrb[0].mxu0
      %v6537 = vadd.f32 %v6426, %v6536
      %6538 = vmatprep.mubr.f32.mxu0 0.0
      %v6539 = vand.u32 %v6447, 4294901760
      %v6540 = vsub.f32 %v6447, %v6539
      %v6541 = vand.u32 %v6540, 4294901760
      %v6542 = vsub.f32 %v6540, %v6541
      %v6543 = vand.u32 %v6542, 4294901760
      %6544 = vmatmul.mubr.f32.gmra.mrb[0].mxu0 %v6543
      %v6545 = vpop.f32.mrb[0].mxu0
      %v6546 = vadd.f32 %v6431, %v6545
      %v6547 = vpop.f32.mrb[0].mxu0
      %v6548 = vadd.f32 %v6431, %v6547
      %6549 = vmatprep.mubr.f32.mxu0 0.0
      %v6550 = vand.u32 %v6450, 4294901760
      %v6551 = vsub.f32 %v6450, %v6550
      %v6552 = vand.u32 %v6551, 4294901760
      %v6553 = vsub.f32 %v6551, %v6552
      %v6554 = vand.u32 %v6553, 4294901760
      %6555 = vmatmul.mubr.f32.gmra.mrb[0].mxu0 %v6554
      %v6556 = vpop.f32.mrb[0].mxu0
      %v6557 = vadd.f32 %v6436, %v6556
      %v6558 = vpop.f32.mrb[0].mxu0
      %v6559 = vadd.f32 %v6436, %v6558
      %6560 = vmatprep.mubr.f32.mxu0 0.0
      %v6561 = vand.u32 %v6453, 4294901760
      %v6562 = vsub.f32 %v6453, %v6561
      %v6563 = vand.u32 %v6562, 4294901760
      %v6564 = vsub.f32 %v6562, %v6563
      %v6565 = vand.u32 %v6564, 4294901760
      %6566 = vmatmul.mubr.f32.gmra.mrb[0].mxu0 %v6565
      %v6567 = vpop.f32.mrb[0].mxu0
      %v6568 = vadd.f32 %v6441, %v6567
      %v6569 = vpop.f32.mrb[0].mxu0
      %v6570 = vadd.f32 %v6441, %v6569
      %6571 = vdwg.mxu0
      %v6572 = vand.u32 %v6406, 4294901760
      %v6573 = vsub.f32 %v6406, %v6572
      %v6574 = vand.u32 %v6573, 4294901760
      %v6575 = vsub.f32 %v6573, %v6574
      %v6576 = vand.u32 %v6575, 4294901760
      %6577 = vmatprep.subr.mxu0 %v6576
      %v6578 = vand.u32 %v6405, 4294901760
      %v6579 = vsub.f32 %v6405, %v6578
      %v6580 = vand.u32 %v6579, 4294901760
      %v6581 = vsub.f32 %v6579, %v6580
      %v6582 = vand.u32 %v6581, 4294901760
      %6583 = vmatpush1.msra.mxu0 %v6582
      %v6584 = vand.u32 %v6408, 4294901760
      %v6585 = vsub.f32 %v6408, %v6584
      %v6586 = vand.u32 %v6585, 4294901760
      %v6587 = vsub.f32 %v6585, %v6586
      %v6588 = vand.u32 %v6587, 4294901760
      %6589 = vmatprep.subr.mxu0 %v6588
      %v6590 = vand.u32 %v6407, 4294901760
      %v6591 = vsub.f32 %v6407, %v6590
      %v6592 = vand.u32 %v6591, 4294901760
      %v6593 = vsub.f32 %v6591, %v6592
      %v6594 = vand.u32 %v6593, 4294901760
      %6595 = vmatpush1.msra.mxu0 %v6594
      %v6596 = vand.u32 %v6410, 4294901760
      %v6597 = vsub.f32 %v6410, %v6596
      %v6598 = vand.u32 %v6597, 4294901760
      %v6599 = vsub.f32 %v6597, %v6598
      %v6600 = vand.u32 %v6599, 4294901760
      %6601 = vmatprep.subr.mxu0 %v6600
      %v6602 = vand.u32 %v6409, 4294901760
      %v6603 = vsub.f32 %v6409, %v6602
      %v6604 = vand.u32 %v6603, 4294901760
      %v6605 = vsub.f32 %v6603, %v6604
      %v6606 = vand.u32 %v6605, 4294901760
      %6607 = vmatpush1.msra.mxu0 %v6606
      %v6608 = vand.u32 %v6412, 4294901760
      %v6609 = vsub.f32 %v6412, %v6608
      %v6610 = vand.u32 %v6609, 4294901760
      %v6611 = vsub.f32 %v6609, %v6610
      %v6612 = vand.u32 %v6611, 4294901760
      %6613 = vmatprep.subr.mxu0 %v6612
      %v6614 = vand.u32 %v6411, 4294901760
      %v6615 = vsub.f32 %v6411, %v6614
      %v6616 = vand.u32 %v6615, 4294901760
      %v6617 = vsub.f32 %v6615, %v6616
      %v6618 = vand.u32 %v6617, 4294901760
      %6619 = vmatpush1.msra.mxu0 %v6618
      %6620 = vmatprep.subr.mxu0 0.0
      %6621 = vmatpush1.msra.mxu0 0.0
      %6622 = vmatprep.subr.mxu0 0.0
      %6623 = vmatpush1.msra.mxu0 0.0
      %6624 = vmatprep.subr.mxu0 0.0
      %6625 = vmatpush1.msra.mxu0 0.0
      %6626 = vmatprep.subr.mxu0 0.0
      %6627 = vmatpush1.msra.mxu0 0.0
      %6628 = vmatprep.subr.mxu0 0.0
      %6629 = vmatpush1.msra.mxu0 0.0
      %6630 = vmatprep.subr.mxu0 0.0
      %6631 = vmatpush1.msra.mxu0 0.0
      %6632 = vmatprep.subr.mxu0 0.0
      %6633 = vmatpush1.msra.mxu0 0.0
      %6634 = vmatprep.subr.mxu0 0.0
      %6635 = vmatpush1.msra.mxu0 0.0
      %6636 = vmatprep.subr.mxu0 0.0
      %6637 = vmatpush1.msra.mxu0 0.0
      %6638 = vmatprep.subr.mxu0 0.0
      %6639 = vmatpush1.msra.mxu0 0.0
      %6640 = vmatprep.subr.mxu0 0.0
      %6641 = vmatpush1.msra.mxu0 0.0
      %6642 = vmatprep.subr.mxu0 0.0
      %6643 = vmatpush1.msra.mxu0 0.0
      %6644 = vmatprep.subr.mxu0 0.0
      %6645 = vmatpush1.msra.mxu0 0.0
      %6646 = vmatprep.subr.mxu0 0.0
      %6647 = vmatpush1.msra.mxu0 0.0
      %6648 = vmatprep.subr.mxu0 0.0
      %6649 = vmatpush1.msra.mxu0 0.0
      %6650 = vmatprep.subr.mxu0 0.0
      %6651 = vmatpush1.msra.mxu0 0.0
      %6652 = vmatprep.subr.mxu0 0.0
      %6653 = vmatpush1.msra.mxu0 0.0
      %6654 = vmatprep.subr.mxu0 0.0
      %6655 = vmatpush1.msra.mxu0 0.0
      %6656 = vmatprep.subr.mxu0 0.0
      %6657 = vmatpush1.msra.mxu0 0.0
      %6658 = vmatprep.subr.mxu0 0.0
      %6659 = vmatpush1.msra.mxu0 0.0
      %6660 = vmatprep.subr.mxu0 0.0
      %6661 = vmatpush1.msra.mxu0 0.0
      %6662 = vmatprep.subr.mxu0 0.0
      %6663 = vmatpush1.msra.mxu0 0.0
      %6664 = vmatprep.subr.mxu0 0.0
      %6665 = vmatpush1.msra.mxu0 0.0
      %6666 = vmatprep.subr.mxu0 0.0
      %6667 = vmatpush1.msra.mxu0 0.0
      %6668 = vmatprep.subr.mxu0 0.0
      %6669 = vmatpush1.msra.mxu0 0.0
      %6670 = vmatprep.subr.mxu0 0.0
      %6671 = vmatpush1.msra.mxu0 0.0
      %6672 = vmatprep.subr.mxu0 0.0
      %6673 = vmatpush1.msra.mxu0 0.0
      %6674 = vmatprep.subr.mxu0 0.0
      %6675 = vmatpush1.msra.mxu0 0.0
      %6676 = vmatprep.mubr.f32.mxu0 0.0
      %v6677 = vand.u32 %v6444, 4294901760
      %6678 = vmatmul.mubr.f32.gmra.mrb[0].mxu0 %v6677
      %v6679 = vpop.f32.mrb[0].mxu0
      %v6680 = vadd.f32 %v6535, %v6679
      %v6681 = vpop.f32.mrb[0].mxu0
      %v6682 = vadd.f32 %v6537, %v6681
      %6683 = vmatprep.mubr.f32.mxu0 0.0
      %v6684 = vand.u32 %v6447, 4294901760
      %6685 = vmatmul.mubr.f32.gmra.mrb[0].mxu0 %v6684
      %v6686 = vpop.f32.mrb[0].mxu0
      %v6687 = vadd.f32 %v6546, %v6686
      %v6688 = vpop.f32.mrb[0].mxu0
      %v6689 = vadd.f32 %v6548, %v6688
      %6690 = vmatprep.mubr.f32.mxu0 0.0
      %v6691 = vand.u32 %v6450, 4294901760
      %6692 = vmatmul.mubr.f32.gmra.mrb[0].mxu0 %v6691
      %v6693 = vpop.f32.mrb[0].mxu0
      %v6694 = vadd.f32 %v6557, %v6693
      %v6695 = vpop.f32.mrb[0].mxu0
      %v6696 = vadd.f32 %v6559, %v6695
      %6697 = vmatprep.mubr.f32.mxu0 0.0
      %v6698 = vand.u32 %v6453, 4294901760
      %6699 = vmatmul.mubr.f32.gmra.mrb[0].mxu0 %v6698
      %v6700 = vpop.f32.mrb[0].mxu0
      %v6701 = vadd.f32 %v6568, %v6700
      %v6702 = vpop.f32.mrb[0].mxu0
      %v6703 = vadd.f32 %v6570, %v6702
      %6704 = vdwg.mxu0
      %v6705 = vand.u32 %v6406, 4294901760
      %v6706 = vsub.f32 %v6406, %v6705
      %6707 = vmatprep.subr.mxu0 %v6706
      %v6708 = vand.u32 %v6405, 4294901760
      %v6709 = vsub.f32 %v6405, %v6708
      %6710 = vmatpush1.msra.mxu0 %v6709
      %v6711 = vand.u32 %v6408, 4294901760
      %v6712 = vsub.f32 %v6408, %v6711
      %6713 = vmatprep.subr.mxu0 %v6712
      %v6714 = vand.u32 %v6407, 4294901760
      %v6715 = vsub.f32 %v6407, %v6714
      %6716 = vmatpush1.msra.mxu0 %v6715
      %v6717 = vand.u32 %v6410, 4294901760
      %v6718 = vsub.f32 %v6410, %v6717
      %6719 = vmatprep.subr.mxu0 %v6718
      %v6720 = vand.u32 %v6409, 4294901760
      %v6721 = vsub.f32 %v6409, %v6720
      %6722 = vmatpush1.msra.mxu0 %v6721
      %v6723 = vand.u32 %v6412, 4294901760
      %v6724 = vsub.f32 %v6412, %v6723
      %6725 = vmatprep.subr.mxu0 %v6724
      %v6726 = vand.u32 %v6411, 4294901760
      %v6727 = vsub.f32 %v6411, %v6726
      %6728 = vmatpush1.msra.mxu0 %v6727
      %6729 = vmatprep.subr.mxu0 0.0
      %6730 = vmatpush1.msra.mxu0 0.0
      %6731 = vmatprep.subr.mxu0 0.0
      %6732 = vmatpush1.msra.mxu0 0.0
      %6733 = vmatprep.subr.mxu0 0.0
      %6734 = vmatpush1.msra.mxu0 0.0
      %6735 = vmatprep.subr.mxu0 0.0
      %6736 = vmatpush1.msra.mxu0 0.0
      %6737 = vmatprep.subr.mxu0 0.0
      %6738 = vmatpush1.msra.mxu0 0.0
      %6739 = vmatprep.subr.mxu0 0.0
      %6740 = vmatpush1.msra.mxu0 0.0
      %6741 = vmatprep.subr.mxu0 0.0
      %6742 = vmatpush1.msra.mxu0 0.0
      %6743 = vmatprep.subr.mxu0 0.0
      %6744 = vmatpush1.msra.mxu0 0.0
      %6745 = vmatprep.subr.mxu0 0.0
      %6746 = vmatpush1.msra.mxu0 0.0
      %6747 = vmatprep.subr.mxu0 0.0
      %6748 = vmatpush1.msra.mxu0 0.0
      %6749 = vmatprep.subr.mxu0 0.0
      %6750 = vmatpush1.msra.mxu0 0.0
      %6751 = vmatprep.subr.mxu0 0.0
      %6752 = vmatpush1.msra.mxu0 0.0
      %6753 = vmatprep.subr.mxu0 0.0
      %6754 = vmatpush1.msra.mxu0 0.0
      %6755 = vmatprep.subr.mxu0 0.0
      %6756 = vmatpush1.msra.mxu0 0.0
      %6757 = vmatprep.subr.mxu0 0.0
      %6758 = vmatpush1.msra.mxu0 0.0
      %6759 = vmatprep.subr.mxu0 0.0
      %6760 = vmatpush1.msra.mxu0 0.0
      %6761 = vmatprep.subr.mxu0 0.0
      %6762 = vmatpush1.msra.mxu0 0.0
      %6763 = vmatprep.subr.mxu0 0.0
      %6764 = vmatpush1.msra.mxu0 0.0
      %6765 = vmatprep.subr.mxu0 0.0
      %6766 = vmatpush1.msra.mxu0 0.0
      %6767 = vmatprep.subr.mxu0 0.0
      %6768 = vmatpush1.msra.mxu0 0.0
      %6769 = vmatprep.subr.mxu0 0.0
      %6770 = vmatpush1.msra.mxu0 0.0
      %6771 = vmatprep.subr.mxu0 0.0
      %6772 = vmatpush1.msra.mxu0 0.0
      %6773 = vmatprep.subr.mxu0 0.0
      %6774 = vmatpush1.msra.mxu0 0.0
      %6775 = vmatprep.subr.mxu0 0.0
      %6776 = vmatpush1.msra.mxu0 0.0
      %6777 = vmatprep.subr.mxu0 0.0
      %6778 = vmatpush1.msra.mxu0 0.0
      %6779 = vmatprep.subr.mxu0 0.0
      %6780 = vmatpush1.msra.mxu0 0.0
      %6781 = vmatprep.subr.mxu0 0.0
      %6782 = vmatpush1.msra.mxu0 0.0
      %6783 = vmatprep.subr.mxu0 0.0
      %6784 = vmatpush1.msra.mxu0 0.0
      %6785 = vmatprep.mubr.f32.mxu0 0.0
      %v6786 = vand.u32 %v6444, 4294901760
      %v6787 = vsub.f32 %v6444, %v6786
      %6788 = vmatmul.mubr.f32.gmra.mrb[0].mxu0 %v6787
      %v6789 = vpop.f32.mrb[0].mxu0
      %v6790 = vadd.f32 %v6680, %v6789
      %v6791 = vpop.f32.mrb[0].mxu0
      %v6792 = vadd.f32 %v6682, %v6791
      %6793 = vmatprep.mubr.f32.mxu0 0.0
      %v6794 = vand.u32 %v6447, 4294901760
      %v6795 = vsub.f32 %v6447, %v6794
      %6796 = vmatmul.mubr.f32.gmra.mrb[0].mxu0 %v6795
      %v6797 = vpop.f32.mrb[0].mxu0
      %v6798 = vadd.f32 %v6687, %v6797
      %v6799 = vpop.f32.mrb[0].mxu0
      %v6800 = vadd.f32 %v6689, %v6799
      %6801 = vmatprep.mubr.f32.mxu0 0.0
      %v6802 = vand.u32 %v6450, 4294901760
      %v6803 = vsub.f32 %v6450, %v6802
      %6804 = vmatmul.mubr.f32.gmra.mrb[0].mxu0 %v6803
      %v6805 = vpop.f32.mrb[0].mxu0
      %v6806 = vadd.f32 %v6694, %v6805
      %v6807 = vpop.f32.mrb[0].mxu0
      %v6808 = vadd.f32 %v6696, %v6807
      %6809 = vmatprep.mubr.f32.mxu0 0.0
      %v6810 = vand.u32 %v6453, 4294901760
      %v6811 = vsub.f32 %v6453, %v6810
      %6812 = vmatmul.mubr.f32.gmra.mrb[0].mxu0 %v6811
      %v6813 = vpop.f32.mrb[0].mxu0
      %v6814 = vadd.f32 %v6701, %v6813
      %v6815 = vpop.f32.mrb[0].mxu0
      %v6816 = vadd.f32 %v6703, %v6815
      %6817 = vdwg.mxu0
      %v6818 = vand.u32 %v6406, 4294901760
      %6819 = vmatprep.subr.mxu0 %v6818
      %v6820 = vand.u32 %v6405, 4294901760
      %6821 = vmatpush1.msra.mxu0 %v6820
      %v6822 = vand.u32 %v6408, 4294901760
      %6823 = vmatprep.subr.mxu0 %v6822
      %v6824 = vand.u32 %v6407, 4294901760
      %6825 = vmatpush1.msra.mxu0 %v6824
      %v6826 = vand.u32 %v6410, 4294901760
      %6827 = vmatprep.subr.mxu0 %v6826
      %v6828 = vand.u32 %v6409, 4294901760
      %6829 = vmatpush1.msra.mxu0 %v6828
      %v6830 = vand.u32 %v6412, 4294901760
      %6831 = vmatprep.subr.mxu0 %v6830
      %v6832 = vand.u32 %v6411, 4294901760
      %6833 = vmatpush1.msra.mxu0 %v6832
      %6834 = vmatprep.subr.mxu0 0.0
      %6835 = vmatpush1.msra.mxu0 0.0
      %6836 = vmatprep.subr.mxu0 0.0
      %6837 = vmatpush1.msra.mxu0 0.0
      %6838 = vmatprep.subr.mxu0 0.0
      %6839 = vmatpush1.msra.mxu0 0.0
      %6840 = vmatprep.subr.mxu0 0.0
      %6841 = vmatpush1.msra.mxu0 0.0
      %6842 = vmatprep.subr.mxu0 0.0
      %6843 = vmatpush1.msra.mxu0 0.0
      %6844 = vmatprep.subr.mxu0 0.0
      %6845 = vmatpush1.msra.mxu0 0.0
      %6846 = vmatprep.subr.mxu0 0.0
      %6847 = vmatpush1.msra.mxu0 0.0
      %6848 = vmatprep.subr.mxu0 0.0
      %6849 = vmatpush1.msra.mxu0 0.0
      %6850 = vmatprep.subr.mxu0 0.0
      %6851 = vmatpush1.msra.mxu0 0.0
      %6852 = vmatprep.subr.mxu0 0.0
      %6853 = vmatpush1.msra.mxu0 0.0
      %6854 = vmatprep.subr.mxu0 0.0
      %6855 = vmatpush1.msra.mxu0 0.0
      %6856 = vmatprep.subr.mxu0 0.0
      %6857 = vmatpush1.msra.mxu0 0.0
      %6858 = vmatprep.subr.mxu0 0.0
      %6859 = vmatpush1.msra.mxu0 0.0
      %6860 = vmatprep.subr.mxu0 0.0
      %6861 = vmatpush1.msra.mxu0 0.0
      %6862 = vmatprep.subr.mxu0 0.0
      %6863 = vmatpush1.msra.mxu0 0.0
      %6864 = vmatprep.subr.mxu0 0.0
      %6865 = vmatpush1.msra.mxu0 0.0
      %6866 = vmatprep.subr.mxu0 0.0
      %6867 = vmatpush1.msra.mxu0 0.0
      %6868 = vmatprep.subr.mxu0 0.0
      %6869 = vmatpush1.msra.mxu0 0.0
      %6870 = vmatprep.subr.mxu0 0.0
      %6871 = vmatpush1.msra.mxu0 0.0
      %6872 = vmatprep.subr.mxu0 0.0
      %6873 = vmatpush1.msra.mxu0 0.0
      %6874 = vmatprep.subr.mxu0 0.0
      %6875 = vmatpush1.msra.mxu0 0.0
      %6876 = vmatprep.subr.mxu0 0.0
      %6877 = vmatpush1.msra.mxu0 0.0
      %6878 = vmatprep.subr.mxu0 0.0
      %6879 = vmatpush1.msra.mxu0 0.0
      %6880 = vmatprep.subr.mxu0 0.0
      %6881 = vmatpush1.msra.mxu0 0.0
      %6882 = vmatprep.subr.mxu0 0.0
      %6883 = vmatpush1.msra.mxu0 0.0
      %6884 = vmatprep.subr.mxu0 0.0
      %6885 = vmatpush1.msra.mxu0 0.0
      %6886 = vmatprep.subr.mxu0 0.0
      %6887 = vmatpush1.msra.mxu0 0.0
      %6888 = vmatprep.subr.mxu0 0.0
      %6889 = vmatpush1.msra.mxu0 0.0
      %6890 = vmatprep.mubr.f32.mxu0 0.0
      %v6891 = vand.u32 %v6444, 4294901760
      %v6892 = vsub.f32 %v6444, %v6891
      %v6893 = vand.u32 %v6892, 4294901760
      %6894 = vmatmul.mubr.f32.gmra.mrb[0].mxu0 %v6893
      %v6895 = vpop.f32.mrb[0].mxu0
      %v6896 = vadd.f32 %v6790, %v6895
      %v6897 = vpop.f32.mrb[0].mxu0
      %v6898 = vadd.f32 %v6792, %v6897
      %6899 = vmatprep.mubr.f32.mxu0 0.0
      %v6900 = vand.u32 %v6447, 4294901760
      %v6901 = vsub.f32 %v6447, %v6900
      %v6902 = vand.u32 %v6901, 4294901760
      %6903 = vmatmul.mubr.f32.gmra.mrb[0].mxu0 %v6902
      %v6904 = vpop.f32.mrb[0].mxu0
      %v6905 = vadd.f32 %v6798, %v6904
      %v6906 = vpop.f32.mrb[0].mxu0
      %v6907 = vadd.f32 %v6800, %v6906
      %6908 = vmatprep.mubr.f32.mxu0 0.0
      %v6909 = vand.u32 %v6450, 4294901760
      %v6910 = vsub.f32 %v6450, %v6909
      %v6911 = vand.u32 %v6910, 4294901760
      %6912 = vmatmul.mubr.f32.gmra.mrb[0].mxu0 %v6911
      %v6913 = vpop.f32.mrb[0].mxu0
      %v6914 = vadd.f32 %v6806, %v6913
      %v6915 = vpop.f32.mrb[0].mxu0
      %v6916 = vadd.f32 %v6808, %v6915
      %6917 = vmatprep.mubr.f32.mxu0 0.0
      %v6918 = vand.u32 %v6453, 4294901760
      %v6919 = vsub.f32 %v6453, %v6918
      %v6920 = vand.u32 %v6919, 4294901760
      %6921 = vmatmul.mubr.f32.gmra.mrb[0].mxu0 %v6920
      %v6922 = vpop.f32.mrb[0].mxu0
      %v6923 = vadd.f32 %v6814, %v6922
      %v6924 = vpop.f32.mrb[0].mxu0
      %v6925 = vadd.f32 %v6816, %v6924
      %6926 = vdwg.mxu0
      %v6927 = vand.u32 %v6406, 4294901760
      %v6928 = vsub.f32 %v6406, %v6927
      %v6929 = vand.u32 %v6928, 4294901760
      %6930 = vmatprep.subr.mxu0 %v6929
      %v6931 = vand.u32 %v6405, 4294901760
      %v6932 = vsub.f32 %v6405, %v6931
      %v6933 = vand.u32 %v6932, 4294901760
      %6934 = vmatpush1.msra.mxu0 %v6933
      %v6935 = vand.u32 %v6408, 4294901760
      %v6936 = vsub.f32 %v6408, %v6935
      %v6937 = vand.u32 %v6936, 4294901760
      %6938 = vmatprep.subr.mxu0 %v6937
      %v6939 = vand.u32 %v6407, 4294901760
      %v6940 = vsub.f32 %v6407, %v6939
      %v6941 = vand.u32 %v6940, 4294901760
      %6942 = vmatpush1.msra.mxu0 %v6941
      %v6943 = vand.u32 %v6410, 4294901760
      %v6944 = vsub.f32 %v6410, %v6943
      %v6945 = vand.u32 %v6944, 4294901760
      %6946 = vmatprep.subr.mxu0 %v6945
      %v6947 = vand.u32 %v6409, 4294901760
      %v6948 = vsub.f32 %v6409, %v6947
      %v6949 = vand.u32 %v6948, 4294901760
      %6950 = vmatpush1.msra.mxu0 %v6949
      %v6951 = vand.u32 %v6412, 4294901760
      %v6952 = vsub.f32 %v6412, %v6951
      %v6953 = vand.u32 %v6952, 4294901760
      %6954 = vmatprep.subr.mxu0 %v6953
      %v6955 = vand.u32 %v6411, 4294901760
      %v6956 = vsub.f32 %v6411, %v6955
      %v6957 = vand.u32 %v6956, 4294901760
      %6958 = vmatpush1.msra.mxu0 %v6957
      %6959 = vmatprep.subr.mxu0 0.0
      %6960 = vmatpush1.msra.mxu0 0.0
      %6961 = vmatprep.subr.mxu0 0.0
      %6962 = vmatpush1.msra.mxu0 0.0
      %6963 = vmatprep.subr.mxu0 0.0
      %6964 = vmatpush1.msra.mxu0 0.0
      %6965 = vmatprep.subr.mxu0 0.0
      %6966 = vmatpush1.msra.mxu0 0.0
      %6967 = vmatprep.subr.mxu0 0.0
      %6968 = vmatpush1.msra.mxu0 0.0
      %6969 = vmatprep.subr.mxu0 0.0
      %6970 = vmatpush1.msra.mxu0 0.0
      %6971 = vmatprep.subr.mxu0 0.0
      %6972 = vmatpush1.msra.mxu0 0.0
      %6973 = vmatprep.subr.mxu0 0.0
      %6974 = vmatpush1.msra.mxu0 0.0
      %6975 = vmatprep.subr.mxu0 0.0
      %6976 = vmatpush1.msra.mxu0 0.0
      %6977 = vmatprep.subr.mxu0 0.0
      %6978 = vmatpush1.msra.mxu0 0.0
      %6979 = vmatprep.subr.mxu0 0.0
      %6980 = vmatpush1.msra.mxu0 0.0
      %6981 = vmatprep.subr.mxu0 0.0
      %6982 = vmatpush1.msra.mxu0 0.0
      %6983 = vmatprep.subr.mxu0 0.0
      %6984 = vmatpush1.msra.mxu0 0.0
      %6985 = vmatprep.subr.mxu0 0.0
      %6986 = vmatpush1.msra.mxu0 0.0
      %6987 = vmatprep.subr.mxu0 0.0
      %6988 = vmatpush1.msra.mxu0 0.0
      %6989 = vmatprep.subr.mxu0 0.0
      %6990 = vmatpush1.msra.mxu0 0.0
      %6991 = vmatprep.subr.mxu0 0.0
      %6992 = vmatpush1.msra.mxu0 0.0
      %6993 = vmatprep.subr.mxu0 0.0
      %6994 = vmatpush1.msra.mxu0 0.0
      %6995 = vmatprep.subr.mxu0 0.0
      %6996 = vmatpush1.msra.mxu0 0.0
      %6997 = vmatprep.subr.mxu0 0.0
      %6998 = vmatpush1.msra.mxu0 0.0
      %6999 = vmatprep.subr.mxu0 0.0
      %7000 = vmatpush1.msra.mxu0 0.0
      %7001 = vmatprep.subr.mxu0 0.0
      %7002 = vmatpush1.msra.mxu0 0.0
      %7003 = vmatprep.subr.mxu0 0.0
      %7004 = vmatpush1.msra.mxu0 0.0
      %7005 = vmatprep.subr.mxu0 0.0
      %7006 = vmatpush1.msra.mxu0 0.0
      %7007 = vmatprep.subr.mxu0 0.0
      %7008 = vmatpush1.msra.mxu0 0.0
      %7009 = vmatprep.subr.mxu0 0.0
      %7010 = vmatpush1.msra.mxu0 0.0
      %7011 = vmatprep.subr.mxu0 0.0
      %7012 = vmatpush1.msra.mxu0 0.0
      %7013 = vmatprep.subr.mxu0 0.0
      %7014 = vmatpush1.msra.mxu0 0.0
      %7015 = vmatprep.mubr.f32.mxu0 0.0
      %v7016 = vand.u32 %v6444, 4294901760
      %7017 = vmatmul.mubr.f32.gmra.mrb[0].mxu0 %v7016
      %v7018 = vpop.f32.mrb[0].mxu0
      %v7019 = vadd.f32 %v6896, %v7018
      %v7020 = vpop.f32.mrb[0].mxu0
      %v7021 = vadd.f32 %v6898, %v7020
      %7022 = vmatprep.mubr.f32.mxu0 0.0
      %v7023 = vand.u32 %v6447, 4294901760
      %7024 = vmatmul.mubr.f32.gmra.mrb[0].mxu0 %v7023
      %v7025 = vpop.f32.mrb[0].mxu0
      %v7026 = vadd.f32 %v6905, %v7025
      %v7027 = vpop.f32.mrb[0].mxu0
      %v7028 = vadd.f32 %v6907, %v7027
      %7029 = vmatprep.mubr.f32.mxu0 0.0
      %v7030 = vand.u32 %v6450, 4294901760
      %7031 = vmatmul.mubr.f32.gmra.mrb[0].mxu0 %v7030
      %v7032 = vpop.f32.mrb[0].mxu0
      %v7033 = vadd.f32 %v6914, %v7032
      %v7034 = vpop.f32.mrb[0].mxu0
      %v7035 = vadd.f32 %v6916, %v7034
      %7036 = vmatprep.mubr.f32.mxu0 0.0
      %v7037 = vand.u32 %v6453, 4294901760
      %7038 = vmatmul.mubr.f32.gmra.mrb[0].mxu0 %v7037
      %v7039 = vpop.f32.mrb[0].mxu0
      %v7040 = vadd.f32 %v6923, %v7039
      %v7041 = vpop.f32.mrb[0].mxu0
      %v7042 = vadd.f32 %v6925, %v7041
      %7043 = vdwg.mxu0
      %v7044 = vand.u32 %v6406, 4294901760
      %7045 = vmatprep.subr.mxu0 %v7044
      %v7046 = vand.u32 %v6405, 4294901760
      %7047 = vmatpush1.msra.mxu0 %v7046
      %v7048 = vand.u32 %v6408, 4294901760
      %7049 = vmatprep.subr.mxu0 %v7048
      %v7050 = vand.u32 %v6407, 4294901760
      %7051 = vmatpush1.msra.mxu0 %v7050
      %v7052 = vand.u32 %v6410, 4294901760
      %7053 = vmatprep.subr.mxu0 %v7052
      %v7054 = vand.u32 %v6409, 4294901760
      %7055 = vmatpush1.msra.mxu0 %v7054
      %v7056 = vand.u32 %v6412, 4294901760
      %7057 = vmatprep.subr.mxu0 %v7056
      %v7058 = vand.u32 %v6411, 4294901760
      %7059 = vmatpush1.msra.mxu0 %v7058
      %7060 = vmatprep.subr.mxu0 0.0
      %7061 = vmatpush1.msra.mxu0 0.0
      %7062 = vmatprep.subr.mxu0 0.0
      %7063 = vmatpush1.msra.mxu0 0.0
      %7064 = vmatprep.subr.mxu0 0.0
      %7065 = vmatpush1.msra.mxu0 0.0
      %7066 = vmatprep.subr.mxu0 0.0
      %7067 = vmatpush1.msra.mxu0 0.0
      %7068 = vmatprep.subr.mxu0 0.0
      %7069 = vmatpush1.msra.mxu0 0.0
      %7070 = vmatprep.subr.mxu0 0.0
      %7071 = vmatpush1.msra.mxu0 0.0
      %7072 = vmatprep.subr.mxu0 0.0
      %7073 = vmatpush1.msra.mxu0 0.0
      %7074 = vmatprep.subr.mxu0 0.0
      %7075 = vmatpush1.msra.mxu0 0.0
      %7076 = vmatprep.subr.mxu0 0.0
      %7077 = vmatpush1.msra.mxu0 0.0
      %7078 = vmatprep.subr.mxu0 0.0
      %7079 = vmatpush1.msra.mxu0 0.0
      %7080 = vmatprep.subr.mxu0 0.0
      %7081 = vmatpush1.msra.mxu0 0.0
      %7082 = vmatprep.subr.mxu0 0.0
      %7083 = vmatpush1.msra.mxu0 0.0
      %7084 = vmatprep.subr.mxu0 0.0
      %7085 = vmatpush1.msra.mxu0 0.0
      %7086 = vmatprep.subr.mxu0 0.0
      %7087 = vmatpush1.msra.mxu0 0.0
      %7088 = vmatprep.subr.mxu0 0.0
      %7089 = vmatpush1.msra.mxu0 0.0
      %7090 = vmatprep.subr.mxu0 0.0
      %7091 = vmatpush1.msra.mxu0 0.0
      %7092 = vmatprep.subr.mxu0 0.0
      %7093 = vmatpush1.msra.mxu0 0.0
      %7094 = vmatprep.subr.mxu0 0.0
      %7095 = vmatpush1.msra.mxu0 0.0
      %7096 = vmatprep.subr.mxu0 0.0
      %7097 = vmatpush1.msra.mxu0 0.0
      %7098 = vmatprep.subr.mxu0 0.0
      %7099 = vmatpush1.msra.mxu0 0.0
      %7100 = vmatprep.subr.mxu0 0.0
      %7101 = vmatpush1.msra.mxu0 0.0
      %7102 = vmatprep.subr.mxu0 0.0
      %7103 = vmatpush1.msra.mxu0 0.0
      %7104 = vmatprep.subr.mxu0 0.0
      %7105 = vmatpush1.msra.mxu0 0.0
      %7106 = vmatprep.subr.mxu0 0.0
      %7107 = vmatpush1.msra.mxu0 0.0
      %7108 = vmatprep.subr.mxu0 0.0
      %7109 = vmatpush1.msra.mxu0 0.0
      %7110 = vmatprep.subr.mxu0 0.0
      %7111 = vmatpush1.msra.mxu0 0.0
      %7112 = vmatprep.subr.mxu0 0.0
      %7113 = vmatpush1.msra.mxu0 0.0
      %7114 = vmatprep.subr.mxu0 0.0
      %7115 = vmatpush1.msra.mxu0 0.0
      %7116 = vmatprep.mubr.f32.mxu0 0.0
      %v7117 = vand.u32 %v6444, 4294901760
      %7118 = vmatmul.mubr.f32.gmra.mrb[0].mxu0 %v7117
      %v7119 = vpop.f32.mrb[0].mxu0
      %v7120 = vadd.f32 %v7019, %v7119
      %v7121 = vpop.f32.mrb[0].mxu0
      %v7122 = vadd.f32 %v7021, %v7121
      %7123 = vmatprep.mubr.f32.mxu0 0.0
      %v7124 = vand.u32 %v6447, 4294901760
      %7125 = vmatmul.mubr.f32.gmra.mrb[0].mxu0 %v7124
      %v7126 = vpop.f32.mrb[0].mxu0
      %v7127 = vadd.f32 %v7026, %v7126
      %v7128 = vpop.f32.mrb[0].mxu0
      %v7129 = vadd.f32 %v7028, %v7128
      %7130 = vmatprep.mubr.f32.mxu0 0.0
      %v7131 = vand.u32 %v6450, 4294901760
      %7132 = vmatmul.mubr.f32.gmra.mrb[0].mxu0 %v7131
      %v7133 = vpop.f32.mrb[0].mxu0
      %v7134 = vadd.f32 %v7033, %v7133
      %v7135 = vpop.f32.mrb[0].mxu0
      %v7136 = vadd.f32 %v7035, %v7135
      %7137 = vmatprep.mubr.f32.mxu0 0.0
      %v7138 = vand.u32 %v6453, 4294901760
      %7139 = vmatmul.mubr.f32.gmra.mrb[0].mxu0 %v7138
      %v7140 = vpop.f32.mrb[0].mxu0
      %v7141 = vadd.f32 %v7040, %v7140
      %v7142 = vpop.f32.mrb[0].mxu0
      %v7143 = vadd.f32 %v7042, %v7142
      %7144 = vdwg.mxu0
      %v7145 = vmul.f32 %v7120, 1.442695
      %v7146 = vpow.pop %v7145
      %v7147 = vmul.f32 %v7122, 1.442695
      %v7148 = vpow.pop %v7147
      %v7149 = vmul.f32 %v7127, 1.442695
      %v7150 = vpow.pop %v7149
      %v7151 = vmul.f32 %v7129, 1.442695
      %v7152 = vpow.pop %v7151
      %7154 = vset.pattern.permute.xlu0 0
      %7155 = vperm.xlu0 %7154, %v5723
      %v7156 = vpop.permute.xlu0 %7155
      %7159 = vset.pattern.permute.xlu0 0
      %7160 = vperm.xlu0 %7159, %v5724
      %v7161 = vpop.permute.xlu0 %7160
      %v7163 = vmul.f32 %v7156, %v7146
      %v7164 = vmul.f32 %v7156, %v7148
      %v7165 = vmul.f32 %v7161, %v7150
      %v7166 = vmul.f32 %v7161, %v7152
      %7168 = vset.pattern.permute.xlu0 0
      %7169 = vperm.xlu0 %7168, %v5721
      %v7170 = vpop.permute.xlu0 %7169
      %7173 = vset.pattern.permute.xlu0 0
      %7174 = vperm.xlu0 %7173, %v5722
      %v7175 = vpop.permute.xlu0 %7174
      %v7177 = vadd.f32 %v7170, %v7163
      %v7178 = vadd.f32 %v7170, %v7164
      %v7179 = vadd.f32 %v7175, %v7165
      %v7180 = vadd.f32 %v7175, %v7166
      %v7181 = vmul.f32 %v5716, %v7177
      %v7182 = vmul.f32 %v5717, %v7178
      %v7183 = vmul.f32 %v5718, %v7179
      %v7184 = vmul.f32 %v5719, %v7180
      %v7185 = vmul.f32 %v7156, %v7134
      %v7186 = vmul.f32 %v7156, %v7136
      %v7187 = vmul.f32 %v7161, %v7141
      %v7188 = vmul.f32 %v7161, %v7143
      %v7189 = vadd.f32 %v7181, %v7185
      %v7190 = vadd.f32 %v7182, %v7186
      %v7191 = vadd.f32 %v7183, %v7187
      %v7192 = vadd.f32 %v7184, %v7188
      %7193 = vxpose.xlu0.b32.start [1/16] %v7189, 128
      %7194 = vxpose.xlu0.b32.cont [2/16] %v7191, 128
      %7195 = vxpose.xlu0.b32.cont [3/16] 0.0, 128
      %7196 = vxpose.xlu0.b32.cont [4/16] 0.0, 128
      %7197 = vxpose.xlu0.b32.cont [5/16] 0.0, 128
      %7198 = vxpose.xlu0.b32.cont [6/16] 0.0, 128
      %7199 = vxpose.xlu0.b32.cont [7/16] 0.0, 128
      %7200 = vxpose.xlu0.b32.cont [8/16] 0.0, 128
      %7201 = vxpose.xlu0.b32.cont [9/16] 0.0, 128
      %7202 = vxpose.xlu0.b32.cont [10/16] 0.0, 128
      %7203 = vxpose.xlu0.b32.cont [11/16] 0.0, 128
      %7204 = vxpose.xlu0.b32.cont [12/16] 0.0, 128
      %7205 = vxpose.xlu0.b32.cont [13/16] 0.0, 128
      %7206 = vxpose.xlu0.b32.cont [14/16] 0.0, 128
      %7207 = vxpose.xlu0.b32.cont [15/16] 0.0, 128
      %7208 = vxpose.xlu0.b32.end [16/16] 0.0, 128
      %v7209 = vpop.trf.xlu0
      %v7210 = vpop.trf.xlu0
      %v7211 = vpop.trf.xlu0
      %v7212 = vpop.trf.xlu0
      %v7213 = vpop.trf.xlu0
      %v7214 = vpop.trf.xlu0
      %v7215 = vpop.trf.xlu0
      %v7216 = vpop.trf.xlu0
      %v7217 = vpop.trf.xlu0
      %v7218 = vpop.trf.xlu0
      %v7219 = vpop.trf.xlu0
      %v7220 = vpop.trf.xlu0
      %v7221 = vpop.trf.xlu0
      %v7222 = vpop.trf.xlu0
      %v7223 = vpop.trf.xlu0
      %v7224 = vpop.trf.xlu0
      %7225 = vxpose.xlu0.b32.start [1/16] %v7190, 128
      %7226 = vxpose.xlu0.b32.cont [2/16] %v7192, 128
      %7227 = vxpose.xlu0.b32.cont [3/16] 0.0, 128
      %7228 = vxpose.xlu0.b32.cont [4/16] 0.0, 128
      %7229 = vxpose.xlu0.b32.cont [5/16] 0.0, 128
      %7230 = vxpose.xlu0.b32.cont [6/16] 0.0, 128
      %7231 = vxpose.xlu0.b32.cont [7/16] 0.0, 128
      %7232 = vxpose.xlu0.b32.cont [8/16] 0.0, 128
      %7233 = vxpose.xlu0.b32.cont [9/16] 0.0, 128
      %7234 = vxpose.xlu0.b32.cont [10/16] 0.0, 128
      %7235 = vxpose.xlu0.b32.cont [11/16] 0.0, 128
      %7236 = vxpose.xlu0.b32.cont [12/16] 0.0, 128
      %7237 = vxpose.xlu0.b32.cont [13/16] 0.0, 128
      %7238 = vxpose.xlu0.b32.cont [14/16] 0.0, 128
      %7239 = vxpose.xlu0.b32.cont [15/16] 0.0, 128
      %7240 = vxpose.xlu0.b32.end [16/16] 0.0, 128
      %v7241 = vpop.trf.xlu0
      %v7242 = vpop.trf.xlu0
      %v7243 = vpop.trf.xlu0
      %v7244 = vpop.trf.xlu0
      %v7245 = vpop.trf.xlu0
      %v7246 = vpop.trf.xlu0
      %v7247 = vpop.trf.xlu0
      %v7248 = vpop.trf.xlu0
      %v7249 = vpop.trf.xlu0
      %v7250 = vpop.trf.xlu0
      %v7251 = vpop.trf.xlu0
      %v7252 = vpop.trf.xlu0
      %v7253 = vpop.trf.xlu0
      %v7254 = vpop.trf.xlu0
      %v7255 = vpop.trf.xlu0
      %v7256 = vpop.trf.xlu0
      %v7258 = vsel %vm298, %v7209, 0
      %v7261 = vsel %vm298, %v7210, 0
      %v7264 = vsel %vm298, %v7211, 0
      %v7267 = vsel %vm298, %v7212, 0
      %v7270 = vsel %vm298, %v7213, 0
      %v7273 = vsel %vm298, %v7214, 0
      %v7276 = vsel %vm298, %v7215, 0
      %v7279 = vsel %vm298, %v7216, 0
      %v7282 = vsel %vm298, %v7217, 0
      %v7285 = vsel %vm298, %v7218, 0
      %v7288 = vsel %vm298, %v7219, 0
      %v7291 = vsel %vm298, %v7220, 0
      %v7294 = vsel %vm298, %v7221, 0
      %v7297 = vsel %vm298, %v7222, 0
      %v7300 = vsel %vm298, %v7223, 0
      %v7303 = vsel %vm298, %v7224, 0
      %v7306 = vsel %vm298, %v7241, 0
      %v7309 = vsel %vm298, %v7242, 0
      %v7312 = vsel %vm298, %v7243, 0
      %v7315 = vsel %vm298, %v7244, 0
      %v7318 = vsel %vm298, %v7245, 0
      %v7321 = vsel %vm298, %v7246, 0
      %v7324 = vsel %vm298, %v7247, 0
      %v7327 = vsel %vm298, %v7248, 0
      %v7330 = vsel %vm298, %v7249, 0
      %v7333 = vsel %vm298, %v7250, 0
      %v7336 = vsel %vm298, %v7251, 0
      %v7339 = vsel %vm298, %v7252, 0
      %v7342 = vsel %vm298, %v7253, 0
      %v7345 = vsel %vm298, %v7254, 0
      %v7348 = vsel %vm298, %v7255, 0
      %v7351 = vsel %vm298, %v7256, 0
      %7353 = vmatprep.subr.mxu0 0.0
      %v7354 = vand.u32 %v264, 4294901760
      %7355 = vmatpush1.msra.mxu0 %v7354
      %7356 = vmatprep.subr.mxu0 0.0
      %v7357 = vand.u32 %v265, 4294901760
      %7358 = vmatpush1.msra.mxu0 %v7357
      %7359 = vmatprep.subr.mxu0 0.0
      %7360 = vmatpush1.msra.mxu0 0.0
      %7361 = vmatprep.subr.mxu0 0.0
      %7362 = vmatpush1.msra.mxu0 0.0
      %7363 = vmatprep.subr.mxu0 0.0
      %7364 = vmatpush1.msra.mxu0 0.0
      %7365 = vmatprep.subr.mxu0 0.0
      %7366 = vmatpush1.msra.mxu0 0.0
      %7367 = vmatprep.subr.mxu0 0.0
      %7368 = vmatpush1.msra.mxu0 0.0
      %7369 = vmatprep.subr.mxu0 0.0
      %7370 = vmatpush1.msra.mxu0 0.0
      %7371 = vmatprep.subr.mxu0 0.0
      %7372 = vmatpush1.msra.mxu0 0.0
      %7373 = vmatprep.subr.mxu0 0.0
      %7374 = vmatpush1.msra.mxu0 0.0
      %7375 = vmatprep.subr.mxu0 0.0
      %7376 = vmatpush1.msra.mxu0 0.0
      %7377 = vmatprep.subr.mxu0 0.0
      %7378 = vmatpush1.msra.mxu0 0.0
      %7379 = vmatprep.subr.mxu0 0.0
      %7380 = vmatpush1.msra.mxu0 0.0
      %7381 = vmatprep.subr.mxu0 0.0
      %7382 = vmatpush1.msra.mxu0 0.0
      %7383 = vmatprep.subr.mxu0 0.0
      %7384 = vmatpush1.msra.mxu0 0.0
      %7385 = vmatprep.subr.mxu0 0.0
      %7386 = vmatpush1.msra.mxu0 0.0
      %7387 = vmatprep.subr.mxu0 0.0
      %7388 = vmatpush1.msra.mxu0 0.0
      %7389 = vmatprep.subr.mxu0 0.0
      %7390 = vmatpush1.msra.mxu0 0.0
      %7391 = vmatprep.subr.mxu0 0.0
      %7392 = vmatpush1.msra.mxu0 0.0
      %7393 = vmatprep.subr.mxu0 0.0
      %7394 = vmatpush1.msra.mxu0 0.0
      %7395 = vmatprep.subr.mxu0 0.0
      %7396 = vmatpush1.msra.mxu0 0.0
      %7397 = vmatprep.subr.mxu0 0.0
      %7398 = vmatpush1.msra.mxu0 0.0
      %7399 = vmatprep.subr.mxu0 0.0
      %7400 = vmatpush1.msra.mxu0 0.0
      %7401 = vmatprep.subr.mxu0 0.0
      %7402 = vmatpush1.msra.mxu0 0.0
      %7403 = vmatprep.subr.mxu0 0.0
      %7404 = vmatpush1.msra.mxu0 0.0
      %7405 = vmatprep.subr.mxu0 0.0
      %7406 = vmatpush1.msra.mxu0 0.0
      %7407 = vmatprep.subr.mxu0 0.0
      %7408 = vmatpush1.msra.mxu0 0.0
      %7409 = vmatprep.subr.mxu0 0.0
      %7410 = vmatpush1.msra.mxu0 0.0
      %7411 = vmatprep.subr.mxu0 0.0
      %7412 = vmatpush1.msra.mxu0 0.0
      %7413 = vmatprep.subr.mxu0 0.0
      %7414 = vmatpush1.msra.mxu0 0.0
      %7415 = vmatprep.subr.mxu0 0.0
      %7416 = vmatpush1.msra.mxu0 0.0
      %7417 = vmatprep.subr.mxu0 0.0
      %7418 = vmatpush1.msra.mxu0 0.0
      %7419 = vmatprep.mubr.f32.mxu0 0.0
      %v7420 = vand.u32 %v7258, 4294901760
      %v7421 = vsub.f32 %v7258, %v7420
      %v7422 = vand.u32 %v7421, 4294901760
      %v7423 = vsub.f32 %v7421, %v7422
      %v7424 = vand.u32 %v7423, 4294901760
      %7425 = vmatmul.mubr.f32.gmra.mrb[0].mxu0 %v7424
      %v7426 = vpop.f32.mrb[0].mxu0
      %v7427 = vadd.f32 0.0, %v7426
      %v7428 = vpop.f32.mrb[0].mxu0
      %7429 = vmatprep.mubr.f32.mxu0 0.0
      %v7430 = vand.u32 %v7261, 4294901760
      %v7431 = vsub.f32 %v7261, %v7430
      %v7432 = vand.u32 %v7431, 4294901760
      %v7433 = vsub.f32 %v7431, %v7432
      %v7434 = vand.u32 %v7433, 4294901760
      %7435 = vmatmul.mubr.f32.gmra.mrb[0].mxu0 %v7434
      %v7436 = vpop.f32.mrb[0].mxu0
      %v7437 = vadd.f32 0.0, %v7436
      %v7438 = vpop.f32.mrb[0].mxu0
      %7439 = vmatprep.mubr.f32.mxu0 0.0
      %v7440 = vand.u32 %v7264, 4294901760
      %v7441 = vsub.f32 %v7264, %v7440
      %v7442 = vand.u32 %v7441, 4294901760
      %v7443 = vsub.f32 %v7441, %v7442
      %v7444 = vand.u32 %v7443, 4294901760
      %7445 = vmatmul.mubr.f32.gmra.mrb[0].mxu0 %v7444
      %v7446 = vpop.f32.mrb[0].mxu0
      %v7447 = vadd.f32 0.0, %v7446
      %v7448 = vpop.f32.mrb[0].mxu0
      %7449 = vmatprep.mubr.f32.mxu0 0.0
      %v7450 = vand.u32 %v7267, 4294901760
      %v7451 = vsub.f32 %v7267, %v7450
      %v7452 = vand.u32 %v7451, 4294901760
      %v7453 = vsub.f32 %v7451, %v7452
      %v7454 = vand.u32 %v7453, 4294901760
      %7455 = vmatmul.mubr.f32.gmra.mrb[0].mxu0 %v7454
      %v7456 = vpop.f32.mrb[0].mxu0
      %v7457 = vadd.f32 0.0, %v7456
      %v7458 = vpop.f32.mrb[0].mxu0
      %7459 = vmatprep.mubr.f32.mxu0 0.0
      %v7460 = vand.u32 %v7270, 4294901760
      %v7461 = vsub.f32 %v7270, %v7460
      %v7462 = vand.u32 %v7461, 4294901760
      %v7463 = vsub.f32 %v7461, %v7462
      %v7464 = vand.u32 %v7463, 4294901760
      %7465 = vmatmul.mubr.f32.gmra.mrb[0].mxu0 %v7464
      %v7466 = vpop.f32.mrb[0].mxu0
      %v7467 = vadd.f32 0.0, %v7466
      %v7468 = vpop.f32.mrb[0].mxu0
      %7469 = vmatprep.mubr.f32.mxu0 0.0
      %v7470 = vand.u32 %v7273, 4294901760
      %v7471 = vsub.f32 %v7273, %v7470
      %v7472 = vand.u32 %v7471, 4294901760
      %v7473 = vsub.f32 %v7471, %v7472
      %v7474 = vand.u32 %v7473, 4294901760
      %7475 = vmatmul.mubr.f32.gmra.mrb[0].mxu0 %v7474
      %v7476 = vpop.f32.mrb[0].mxu0
      %v7477 = vadd.f32 0.0, %v7476
      %v7478 = vpop.f32.mrb[0].mxu0
      %7479 = vmatprep.mubr.f32.mxu0 0.0
      %v7480 = vand.u32 %v7276, 4294901760
      %v7481 = vsub.f32 %v7276, %v7480
      %v7482 = vand.u32 %v7481, 4294901760
      %v7483 = vsub.f32 %v7481, %v7482
      %v7484 = vand.u32 %v7483, 4294901760
      %7485 = vmatmul.mubr.f32.gmra.mrb[0].mxu0 %v7484
      %v7486 = vpop.f32.mrb[0].mxu0
      %v7487 = vadd.f32 0.0, %v7486
      %v7488 = vpop.f32.mrb[0].mxu0
      %7489 = vmatprep.mubr.f32.mxu0 0.0
      %v7490 = vand.u32 %v7279, 4294901760
      %v7491 = vsub.f32 %v7279, %v7490
      %v7492 = vand.u32 %v7491, 4294901760
      %v7493 = vsub.f32 %v7491, %v7492
      %v7494 = vand.u32 %v7493, 4294901760
      %7495 = vmatmul.mubr.f32.gmra.mrb[0].mxu0 %v7494
      %v7496 = vpop.f32.mrb[0].mxu0
      %v7497 = vadd.f32 0.0, %v7496
      %v7498 = vpop.f32.mrb[0].mxu0
      %7499 = vmatprep.mubr.f32.mxu0 0.0
      %v7500 = vand.u32 %v7282, 4294901760
      %v7501 = vsub.f32 %v7282, %v7500
      %v7502 = vand.u32 %v7501, 4294901760
      %v7503 = vsub.f32 %v7501, %v7502
      %v7504 = vand.u32 %v7503, 4294901760
      %7505 = vmatmul.mubr.f32.gmra.mrb[0].mxu0 %v7504
      %v7506 = vpop.f32.mrb[0].mxu0
      %v7507 = vadd.f32 0.0, %v7506
      %v7508 = vpop.f32.mrb[0].mxu0
      %7509 = vmatprep.mubr.f32.mxu0 0.0
      %v7510 = vand.u32 %v7285, 4294901760
      %v7511 = vsub.f32 %v7285, %v7510
      %v7512 = vand.u32 %v7511, 4294901760
      %v7513 = vsub.f32 %v7511, %v7512
      %v7514 = vand.u32 %v7513, 4294901760
      %7515 = vmatmul.mubr.f32.gmra.mrb[0].mxu0 %v7514
      %v7516 = vpop.f32.mrb[0].mxu0
      %v7517 = vadd.f32 0.0, %v7516
      %v7518 = vpop.f32.mrb[0].mxu0
      %7519 = vmatprep.mubr.f32.mxu0 0.0
      %v7520 = vand.u32 %v7288, 4294901760
      %v7521 = vsub.f32 %v7288, %v7520
      %v7522 = vand.u32 %v7521, 4294901760
      %v7523 = vsub.f32 %v7521, %v7522
      %v7524 = vand.u32 %v7523, 4294901760
      %7525 = vmatmul.mubr.f32.gmra.mrb[0].mxu0 %v7524
      %v7526 = vpop.f32.mrb[0].mxu0
      %v7527 = vadd.f32 0.0, %v7526
      %v7528 = vpop.f32.mrb[0].mxu0
      %7529 = vmatprep.mubr.f32.mxu0 0.0
      %v7530 = vand.u32 %v7291, 4294901760
      %v7531 = vsub.f32 %v7291, %v7530
      %v7532 = vand.u32 %v7531, 4294901760
      %v7533 = vsub.f32 %v7531, %v7532
      %v7534 = vand.u32 %v7533, 4294901760
      %7535 = vmatmul.mubr.f32.gmra.mrb[0].mxu0 %v7534
      %v7536 = vpop.f32.mrb[0].mxu0
      %v7537 = vadd.f32 0.0, %v7536
      %v7538 = vpop.f32.mrb[0].mxu0
      %7539 = vmatprep.mubr.f32.mxu0 0.0
      %v7540 = vand.u32 %v7294, 4294901760
      %v7541 = vsub.f32 %v7294, %v7540
      %v7542 = vand.u32 %v7541, 4294901760
      %v7543 = vsub.f32 %v7541, %v7542
      %v7544 = vand.u32 %v7543, 4294901760
      %7545 = vmatmul.mubr.f32.gmra.mrb[0].mxu0 %v7544
      %v7546 = vpop.f32.mrb[0].mxu0
      %v7547 = vadd.f32 0.0, %v7546
      %v7548 = vpop.f32.mrb[0].mxu0
      %7549 = vmatprep.mubr.f32.mxu0 0.0
      %v7550 = vand.u32 %v7297, 4294901760
      %v7551 = vsub.f32 %v7297, %v7550
      %v7552 = vand.u32 %v7551, 4294901760
      %v7553 = vsub.f32 %v7551, %v7552
      %v7554 = vand.u32 %v7553, 4294901760
      %7555 = vmatmul.mubr.f32.gmra.mrb[0].mxu0 %v7554
      %v7556 = vpop.f32.mrb[0].mxu0
      %v7557 = vadd.f32 0.0, %v7556
      %v7558 = vpop.f32.mrb[0].mxu0
      %7559 = vmatprep.mubr.f32.mxu0 0.0
      %v7560 = vand.u32 %v7300, 4294901760
      %v7561 = vsub.f32 %v7300, %v7560
      %v7562 = vand.u32 %v7561, 4294901760
      %v7563 = vsub.f32 %v7561, %v7562
      %v7564 = vand.u32 %v7563, 4294901760
      %7565 = vmatmul.mubr.f32.gmra.mrb[0].mxu0 %v7564
      %v7566 = vpop.f32.mrb[0].mxu0
      %v7567 = vadd.f32 0.0, %v7566
      %v7568 = vpop.f32.mrb[0].mxu0
      %7569 = vmatprep.mubr.f32.mxu0 0.0
      %v7570 = vand.u32 %v7303, 4294901760
      %v7571 = vsub.f32 %v7303, %v7570
      %v7572 = vand.u32 %v7571, 4294901760
      %v7573 = vsub.f32 %v7571, %v7572
      %v7574 = vand.u32 %v7573, 4294901760
      %7575 = vmatmul.mubr.f32.gmra.mrb[0].mxu0 %v7574
      %v7576 = vpop.f32.mrb[0].mxu0
      %v7577 = vadd.f32 0.0, %v7576
      %v7578 = vpop.f32.mrb[0].mxu0
      %7579 = vmatprep.mubr.f32.mxu0 0.0
      %v7580 = vand.u32 %v7306, 4294901760
      %v7581 = vsub.f32 %v7306, %v7580
      %v7582 = vand.u32 %v7581, 4294901760
      %v7583 = vsub.f32 %v7581, %v7582
      %v7584 = vand.u32 %v7583, 4294901760
      %7585 = vmatmul.mubr.f32.gmra.mrb[0].mxu0 %v7584
      %v7586 = vpop.f32.mrb[0].mxu0
      %v7587 = vadd.f32 0.0, %v7586
      %v7588 = vpop.f32.mrb[0].mxu0
      %7589 = vmatprep.mubr.f32.mxu0 0.0
      %v7590 = vand.u32 %v7309, 4294901760
      %v7591 = vsub.f32 %v7309, %v7590
      %v7592 = vand.u32 %v7591, 4294901760
      %v7593 = vsub.f32 %v7591, %v7592
      %v7594 = vand.u32 %v7593, 4294901760
      %7595 = vmatmul.mubr.f32.gmra.mrb[0].mxu0 %v7594
      %v7596 = vpop.f32.mrb[0].mxu0
      %v7597 = vadd.f32 0.0, %v7596
      %v7598 = vpop.f32.mrb[0].mxu0
      %7599 = vmatprep.mubr.f32.mxu0 0.0
      %v7600 = vand.u32 %v7312, 4294901760
      %v7601 = vsub.f32 %v7312, %v7600
      %v7602 = vand.u32 %v7601, 4294901760
      %v7603 = vsub.f32 %v7601, %v7602
      %v7604 = vand.u32 %v7603, 4294901760
      %7605 = vmatmul.mubr.f32.gmra.mrb[0].mxu0 %v7604
      %v7606 = vpop.f32.mrb[0].mxu0
      %v7607 = vadd.f32 0.0, %v7606
      %v7608 = vpop.f32.mrb[0].mxu0
      %7609 = vmatprep.mubr.f32.mxu0 0.0
      %v7610 = vand.u32 %v7315, 4294901760
      %v7611 = vsub.f32 %v7315, %v7610
      %v7612 = vand.u32 %v7611, 4294901760
      %v7613 = vsub.f32 %v7611, %v7612
      %v7614 = vand.u32 %v7613, 4294901760
      %7615 = vmatmul.mubr.f32.gmra.mrb[0].mxu0 %v7614
      %v7616 = vpop.f32.mrb[0].mxu0
      %v7617 = vadd.f32 0.0, %v7616
      %v7618 = vpop.f32.mrb[0].mxu0
      %7619 = vmatprep.mubr.f32.mxu0 0.0
      %v7620 = vand.u32 %v7318, 4294901760
      %v7621 = vsub.f32 %v7318, %v7620
      %v7622 = vand.u32 %v7621, 4294901760
      %v7623 = vsub.f32 %v7621, %v7622
      %v7624 = vand.u32 %v7623, 4294901760
      %7625 = vmatmul.mubr.f32.gmra.mrb[0].mxu0 %v7624
      %v7626 = vpop.f32.mrb[0].mxu0
      %v7627 = vadd.f32 0.0, %v7626
      %v7628 = vpop.f32.mrb[0].mxu0
      %7629 = vmatprep.mubr.f32.mxu0 0.0
      %v7630 = vand.u32 %v7321, 4294901760
      %v7631 = vsub.f32 %v7321, %v7630
      %v7632 = vand.u32 %v7631, 4294901760
      %v7633 = vsub.f32 %v7631, %v7632
      %v7634 = vand.u32 %v7633, 4294901760
      %7635 = vmatmul.mubr.f32.gmra.mrb[0].mxu0 %v7634
      %v7636 = vpop.f32.mrb[0].mxu0
      %v7637 = vadd.f32 0.0, %v7636
      %v7638 = vpop.f32.mrb[0].mxu0
      %7639 = vmatprep.mubr.f32.mxu0 0.0
      %v7640 = vand.u32 %v7324, 4294901760
      %v7641 = vsub.f32 %v7324, %v7640
      %v7642 = vand.u32 %v7641, 4294901760
      %v7643 = vsub.f32 %v7641, %v7642
      %v7644 = vand.u32 %v7643, 4294901760
      %7645 = vmatmul.mubr.f32.gmra.mrb[0].mxu0 %v7644
      %v7646 = vpop.f32.mrb[0].mxu0
      %v7647 = vadd.f32 0.0, %v7646
      %v7648 = vpop.f32.mrb[0].mxu0
      %7649 = vmatprep.mubr.f32.mxu0 0.0
      %v7650 = vand.u32 %v7327, 4294901760
      %v7651 = vsub.f32 %v7327, %v7650
      %v7652 = vand.u32 %v7651, 4294901760
      %v7653 = vsub.f32 %v7651, %v7652
      %v7654 = vand.u32 %v7653, 4294901760
      %7655 = vmatmul.mubr.f32.gmra.mrb[0].mxu0 %v7654
      %v7656 = vpop.f32.mrb[0].mxu0
      %v7657 = vadd.f32 0.0, %v7656
      %v7658 = vpop.f32.mrb[0].mxu0
      %7659 = vmatprep.mubr.f32.mxu0 0.0
      %v7660 = vand.u32 %v7330, 4294901760
      %v7661 = vsub.f32 %v7330, %v7660
      %v7662 = vand.u32 %v7661, 4294901760
      %v7663 = vsub.f32 %v7661, %v7662
      %v7664 = vand.u32 %v7663, 4294901760
      %7665 = vmatmul.mubr.f32.gmra.mrb[0].mxu0 %v7664
      %v7666 = vpop.f32.mrb[0].mxu0
      %v7667 = vadd.f32 0.0, %v7666
      %v7668 = vpop.f32.mrb[0].mxu0
      %7669 = vmatprep.mubr.f32.mxu0 0.0
      %v7670 = vand.u32 %v7333, 4294901760
      %v7671 = vsub.f32 %v7333, %v7670
      %v7672 = vand.u32 %v7671, 4294901760
      %v7673 = vsub.f32 %v7671, %v7672
      %v7674 = vand.u32 %v7673, 4294901760
      %7675 = vmatmul.mubr.f32.gmra.mrb[0].mxu0 %v7674
      %v7676 = vpop.f32.mrb[0].mxu0
      %v7677 = vadd.f32 0.0, %v7676
      %v7678 = vpop.f32.mrb[0].mxu0
      %7679 = vmatprep.mubr.f32.mxu0 0.0
      %v7680 = vand.u32 %v7336, 4294901760
      %v7681 = vsub.f32 %v7336, %v7680
      %v7682 = vand.u32 %v7681, 4294901760
      %v7683 = vsub.f32 %v7681, %v7682
      %v7684 = vand.u32 %v7683, 4294901760
      %7685 = vmatmul.mubr.f32.gmra.mrb[0].mxu0 %v7684
      %v7686 = vpop.f32.mrb[0].mxu0
      %v7687 = vadd.f32 0.0, %v7686
      %v7688 = vpop.f32.mrb[0].mxu0
      %7689 = vmatprep.mubr.f32.mxu0 0.0
      %v7690 = vand.u32 %v7339, 4294901760
      %v7691 = vsub.f32 %v7339, %v7690
      %v7692 = vand.u32 %v7691, 4294901760
      %v7693 = vsub.f32 %v7691, %v7692
      %v7694 = vand.u32 %v7693, 4294901760
      %7695 = vmatmul.mubr.f32.gmra.mrb[0].mxu0 %v7694
      %v7696 = vpop.f32.mrb[0].mxu0
      %v7697 = vadd.f32 0.0, %v7696
      %v7698 = vpop.f32.mrb[0].mxu0
      %7699 = vmatprep.mubr.f32.mxu0 0.0
      %v7700 = vand.u32 %v7342, 4294901760
      %v7701 = vsub.f32 %v7342, %v7700
      %v7702 = vand.u32 %v7701, 4294901760
      %v7703 = vsub.f32 %v7701, %v7702
      %v7704 = vand.u32 %v7703, 4294901760
      %7705 = vmatmul.mubr.f32.gmra.mrb[0].mxu0 %v7704
      %v7706 = vpop.f32.mrb[0].mxu0
      %v7707 = vadd.f32 0.0, %v7706
      %v7708 = vpop.f32.mrb[0].mxu0
      %7709 = vmatprep.mubr.f32.mxu0 0.0
      %v7710 = vand.u32 %v7345, 4294901760
      %v7711 = vsub.f32 %v7345, %v7710
      %v7712 = vand.u32 %v7711, 4294901760
      %v7713 = vsub.f32 %v7711, %v7712
      %v7714 = vand.u32 %v7713, 4294901760
      %7715 = vmatmul.mubr.f32.gmra.mrb[0].mxu0 %v7714
      %v7716 = vpop.f32.mrb[0].mxu0
      %v7717 = vadd.f32 0.0, %v7716
      %v7718 = vpop.f32.mrb[0].mxu0
      %7719 = vmatprep.mubr.f32.mxu0 0.0
      %v7720 = vand.u32 %v7348, 4294901760
      %v7721 = vsub.f32 %v7348, %v7720
      %v7722 = vand.u32 %v7721, 4294901760
      %v7723 = vsub.f32 %v7721, %v7722
      %v7724 = vand.u32 %v7723, 4294901760
      %7725 = vmatmul.mubr.f32.gmra.mrb[0].mxu0 %v7724
      %v7726 = vpop.f32.mrb[0].mxu0
      %v7727 = vadd.f32 0.0, %v7726
      %v7728 = vpop.f32.mrb[0].mxu0
      %7729 = vmatprep.mubr.f32.mxu0 0.0
      %v7730 = vand.u32 %v7351, 4294901760
      %v7731 = vsub.f32 %v7351, %v7730
      %v7732 = vand.u32 %v7731, 4294901760
      %v7733 = vsub.f32 %v7731, %v7732
      %v7734 = vand.u32 %v7733, 4294901760
      %7735 = vmatmul.mubr.f32.gmra.mrb[0].mxu0 %v7734
      %v7736 = vpop.f32.mrb[0].mxu0
      %v7737 = vadd.f32 0.0, %v7736
      %v7738 = vpop.f32.mrb[0].mxu0
      %7739 = vdwg.mxu0
      %7740 = vmatprep.subr.mxu0 0.0
      %v7741 = vand.u32 %v264, 4294901760
      %v7742 = vsub.f32 %v264, %v7741
      %v7743 = vand.u32 %v7742, 4294901760
      %v7744 = vsub.f32 %v7742, %v7743
      %v7745 = vand.u32 %v7744, 4294901760
      %7746 = vmatpush1.msra.mxu0 %v7745
      %7747 = vmatprep.subr.mxu0 0.0
      %v7748 = vand.u32 %v265, 4294901760
      %v7749 = vsub.f32 %v265, %v7748
      %v7750 = vand.u32 %v7749, 4294901760
      %v7751 = vsub.f32 %v7749, %v7750
      %v7752 = vand.u32 %v7751, 4294901760
      %7753 = vmatpush1.msra.mxu0 %v7752
      %7754 = vmatprep.subr.mxu0 0.0
      %7755 = vmatpush1.msra.mxu0 0.0
      %7756 = vmatprep.subr.mxu0 0.0
      %7757 = vmatpush1.msra.mxu0 0.0
      %7758 = vmatprep.subr.mxu0 0.0
      %7759 = vmatpush1.msra.mxu0 0.0
      %7760 = vmatprep.subr.mxu0 0.0
      %7761 = vmatpush1.msra.mxu0 0.0
      %7762 = vmatprep.subr.mxu0 0.0
      %7763 = vmatpush1.msra.mxu0 0.0
      %7764 = vmatprep.subr.mxu0 0.0
      %7765 = vmatpush1.msra.mxu0 0.0
      %7766 = vmatprep.subr.mxu0 0.0
      %7767 = vmatpush1.msra.mxu0 0.0
      %7768 = vmatprep.subr.mxu0 0.0
      %7769 = vmatpush1.msra.mxu0 0.0
      %7770 = vmatprep.subr.mxu0 0.0
      %7771 = vmatpush1.msra.mxu0 0.0
      %7772 = vmatprep.subr.mxu0 0.0
      %7773 = vmatpush1.msra.mxu0 0.0
      %7774 = vmatprep.subr.mxu0 0.0
      %7775 = vmatpush1.msra.mxu0 0.0
      %7776 = vmatprep.subr.mxu0 0.0
      %7777 = vmatpush1.msra.mxu0 0.0
      %7778 = vmatprep.subr.mxu0 0.0
      %7779 = vmatpush1.msra.mxu0 0.0
      %7780 = vmatprep.subr.mxu0 0.0
      %7781 = vmatpush1.msra.mxu0 0.0
      %7782 = vmatprep.subr.mxu0 0.0
      %7783 = vmatpush1.msra.mxu0 0.0
      %7784 = vmatprep.subr.mxu0 0.0
      %7785 = vmatpush1.msra.mxu0 0.0
      %7786 = vmatprep.subr.mxu0 0.0
      %7787 = vmatpush1.msra.mxu0 0.0
      %7788 = vmatprep.subr.mxu0 0.0
      %7789 = vmatpush1.msra.mxu0 0.0
      %7790 = vmatprep.subr.mxu0 0.0
      %7791 = vmatpush1.msra.mxu0 0.0
      %7792 = vmatprep.subr.mxu0 0.0
      %7793 = vmatpush1.msra.mxu0 0.0
      %7794 = vmatprep.subr.mxu0 0.0
      %7795 = vmatpush1.msra.mxu0 0.0
      %7796 = vmatprep.subr.mxu0 0.0
      %7797 = vmatpush1.msra.mxu0 0.0
      %7798 = vmatprep.subr.mxu0 0.0
      %7799 = vmatpush1.msra.mxu0 0.0
      %7800 = vmatprep.subr.mxu0 0.0
      %7801 = vmatpush1.msra.mxu0 0.0
      %7802 = vmatprep.subr.mxu0 0.0
      %7803 = vmatpush1.msra.mxu0 0.0
      %7804 = vmatprep.subr.mxu0 0.0
      %7805 = vmatpush1.msra.mxu0 0.0
      %7806 = vmatprep.subr.mxu0 0.0
      %7807 = vmatpush1.msra.mxu0 0.0
      %7808 = vmatprep.subr.mxu0 0.0
      %7809 = vmatpush1.msra.mxu0 0.0
      %7810 = vmatprep.subr.mxu0 0.0
      %7811 = vmatpush1.msra.mxu0 0.0
      %7812 = vmatprep.subr.mxu0 0.0
      %7813 = vmatpush1.msra.mxu0 0.0
      %7814 = vmatprep.mubr.f32.mxu0 0.0
      %v7815 = vand.u32 %v7258, 4294901760
      %7816 = vmatmul.mubr.f32.gmra.mrb[0].mxu0 %v7815
      %v7817 = vpop.f32.mrb[0].mxu0
      %v7818 = vadd.f32 %v7427, %v7817
      %v7819 = vpop.f32.mrb[0].mxu0
      %7820 = vmatprep.mubr.f32.mxu0 0.0
      %v7821 = vand.u32 %v7261, 4294901760
      %7822 = vmatmul.mubr.f32.gmra.mrb[0].mxu0 %v7821
      %v7823 = vpop.f32.mrb[0].mxu0
      %v7824 = vadd.f32 %v7437, %v7823
      %v7825 = vpop.f32.mrb[0].mxu0
      %7826 = vmatprep.mubr.f32.mxu0 0.0
      %v7827 = vand.u32 %v7264, 4294901760
      %7828 = vmatmul.mubr.f32.gmra.mrb[0].mxu0 %v7827
      %v7829 = vpop.f32.mrb[0].mxu0
      %v7830 = vadd.f32 %v7447, %v7829
      %v7831 = vpop.f32.mrb[0].mxu0
      %7832 = vmatprep.mubr.f32.mxu0 0.0
      %v7833 = vand.u32 %v7267, 4294901760
      %7834 = vmatmul.mubr.f32.gmra.mrb[0].mxu0 %v7833
      %v7835 = vpop.f32.mrb[0].mxu0
      %v7836 = vadd.f32 %v7457, %v7835
      %v7837 = vpop.f32.mrb[0].mxu0
      %7838 = vmatprep.mubr.f32.mxu0 0.0
      %v7839 = vand.u32 %v7270, 4294901760
      %7840 = vmatmul.mubr.f32.gmra.mrb[0].mxu0 %v7839
      %v7841 = vpop.f32.mrb[0].mxu0
      %v7842 = vadd.f32 %v7467, %v7841
      %v7843 = vpop.f32.mrb[0].mxu0
      %7844 = vmatprep.mubr.f32.mxu0 0.0
      %v7845 = vand.u32 %v7273, 4294901760
      %7846 = vmatmul.mubr.f32.gmra.mrb[0].mxu0 %v7845
      %v7847 = vpop.f32.mrb[0].mxu0
      %v7848 = vadd.f32 %v7477, %v7847
      %v7849 = vpop.f32.mrb[0].mxu0
      %7850 = vmatprep.mubr.f32.mxu0 0.0
      %v7851 = vand.u32 %v7276, 4294901760
      %7852 = vmatmul.mubr.f32.gmra.mrb[0].mxu0 %v7851
      %v7853 = vpop.f32.mrb[0].mxu0
      %v7854 = vadd.f32 %v7487, %v7853
      %v7855 = vpop.f32.mrb[0].mxu0
      %7856 = vmatprep.mubr.f32.mxu0 0.0
      %v7857 = vand.u32 %v7279, 4294901760
      %7858 = vmatmul.mubr.f32.gmra.mrb[0].mxu0 %v7857
      %v7859 = vpop.f32.mrb[0].mxu0
      %v7860 = vadd.f32 %v7497, %v7859
      %v7861 = vpop.f32.mrb[0].mxu0
      %7862 = vmatprep.mubr.f32.mxu0 0.0
      %v7863 = vand.u32 %v7282, 4294901760
      %7864 = vmatmul.mubr.f32.gmra.mrb[0].mxu0 %v7863
      %v7865 = vpop.f32.mrb[0].mxu0
      %v7866 = vadd.f32 %v7507, %v7865
      %v7867 = vpop.f32.mrb[0].mxu0
      %7868 = vmatprep.mubr.f32.mxu0 0.0
      %v7869 = vand.u32 %v7285, 4294901760
      %7870 = vmatmul.mubr.f32.gmra.mrb[0].mxu0 %v7869
      %v7871 = vpop.f32.mrb[0].mxu0
      %v7872 = vadd.f32 %v7517, %v7871
      %v7873 = vpop.f32.mrb[0].mxu0
      %7874 = vmatprep.mubr.f32.mxu0 0.0
      %v7875 = vand.u32 %v7288, 4294901760
      %7876 = vmatmul.mubr.f32.gmra.mrb[0].mxu0 %v7875
      %v7877 = vpop.f32.mrb[0].mxu0
      %v7878 = vadd.f32 %v7527, %v7877
      %v7879 = vpop.f32.mrb[0].mxu0
      %7880 = vmatprep.mubr.f32.mxu0 0.0
      %v7881 = vand.u32 %v7291, 4294901760
      %7882 = vmatmul.mubr.f32.gmra.mrb[0].mxu0 %v7881
      %v7883 = vpop.f32.mrb[0].mxu0
      %v7884 = vadd.f32 %v7537, %v7883
      %v7885 = vpop.f32.mrb[0].mxu0
      %7886 = vmatprep.mubr.f32.mxu0 0.0
      %v7887 = vand.u32 %v7294, 4294901760
      %7888 = vmatmul.mubr.f32.gmra.mrb[0].mxu0 %v7887
      %v7889 = vpop.f32.mrb[0].mxu0
      %v7890 = vadd.f32 %v7547, %v7889
      %v7891 = vpop.f32.mrb[0].mxu0
      %7892 = vmatprep.mubr.f32.mxu0 0.0
      %v7893 = vand.u32 %v7297, 4294901760
      %7894 = vmatmul.mubr.f32.gmra.mrb[0].mxu0 %v7893
      %v7895 = vpop.f32.mrb[0].mxu0
      %v7896 = vadd.f32 %v7557, %v7895
      %v7897 = vpop.f32.mrb[0].mxu0
      %7898 = vmatprep.mubr.f32.mxu0 0.0
      %v7899 = vand.u32 %v7300, 4294901760
      %7900 = vmatmul.mubr.f32.gmra.mrb[0].mxu0 %v7899
      %v7901 = vpop.f32.mrb[0].mxu0
      %v7902 = vadd.f32 %v7567, %v7901
      %v7903 = vpop.f32.mrb[0].mxu0
      %7904 = vmatprep.mubr.f32.mxu0 0.0
      %v7905 = vand.u32 %v7303, 4294901760
      %7906 = vmatmul.mubr.f32.gmra.mrb[0].mxu0 %v7905
      %v7907 = vpop.f32.mrb[0].mxu0
      %v7908 = vadd.f32 %v7577, %v7907
      %v7909 = vpop.f32.mrb[0].mxu0
      %7910 = vmatprep.mubr.f32.mxu0 0.0
      %v7911 = vand.u32 %v7306, 4294901760
      %7912 = vmatmul.mubr.f32.gmra.mrb[0].mxu0 %v7911
      %v7913 = vpop.f32.mrb[0].mxu0
      %v7914 = vadd.f32 %v7587, %v7913
      %v7915 = vpop.f32.mrb[0].mxu0
      %7916 = vmatprep.mubr.f32.mxu0 0.0
      %v7917 = vand.u32 %v7309, 4294901760
      %7918 = vmatmul.mubr.f32.gmra.mrb[0].mxu0 %v7917
      %v7919 = vpop.f32.mrb[0].mxu0
      %v7920 = vadd.f32 %v7597, %v7919
      %v7921 = vpop.f32.mrb[0].mxu0
      %7922 = vmatprep.mubr.f32.mxu0 0.0
      %v7923 = vand.u32 %v7312, 4294901760
      %7924 = vmatmul.mubr.f32.gmra.mrb[0].mxu0 %v7923
      %v7925 = vpop.f32.mrb[0].mxu0
      %v7926 = vadd.f32 %v7607, %v7925
      %v7927 = vpop.f32.mrb[0].mxu0
      %7928 = vmatprep.mubr.f32.mxu0 0.0
      %v7929 = vand.u32 %v7315, 4294901760
      %7930 = vmatmul.mubr.f32.gmra.mrb[0].mxu0 %v7929
      %v7931 = vpop.f32.mrb[0].mxu0
      %v7932 = vadd.f32 %v7617, %v7931
      %v7933 = vpop.f32.mrb[0].mxu0
      %7934 = vmatprep.mubr.f32.mxu0 0.0
      %v7935 = vand.u32 %v7318, 4294901760
      %7936 = vmatmul.mubr.f32.gmra.mrb[0].mxu0 %v7935
      %v7937 = vpop.f32.mrb[0].mxu0
      %v7938 = vadd.f32 %v7627, %v7937
      %v7939 = vpop.f32.mrb[0].mxu0
      %7940 = vmatprep.mubr.f32.mxu0 0.0
      %v7941 = vand.u32 %v7321, 4294901760
      %7942 = vmatmul.mubr.f32.gmra.mrb[0].mxu0 %v7941
      %v7943 = vpop.f32.mrb[0].mxu0
      %v7944 = vadd.f32 %v7637, %v7943
      %v7945 = vpop.f32.mrb[0].mxu0
      %7946 = vmatprep.mubr.f32.mxu0 0.0
      %v7947 = vand.u32 %v7324, 4294901760
      %7948 = vmatmul.mubr.f32.gmra.mrb[0].mxu0 %v7947
      %v7949 = vpop.f32.mrb[0].mxu0
      %v7950 = vadd.f32 %v7647, %v7949
      %v7951 = vpop.f32.mrb[0].mxu0
      %7952 = vmatprep.mubr.f32.mxu0 0.0
      %v7953 = vand.u32 %v7327, 4294901760
      %7954 = vmatmul.mubr.f32.gmra.mrb[0].mxu0 %v7953
      %v7955 = vpop.f32.mrb[0].mxu0
      %v7956 = vadd.f32 %v7657, %v7955
      %v7957 = vpop.f32.mrb[0].mxu0
      %7958 = vmatprep.mubr.f32.mxu0 0.0
      %v7959 = vand.u32 %v7330, 4294901760
      %7960 = vmatmul.mubr.f32.gmra.mrb[0].mxu0 %v7959
      %v7961 = vpop.f32.mrb[0].mxu0
      %v7962 = vadd.f32 %v7667, %v7961
      %v7963 = vpop.f32.mrb[0].mxu0
      %7964 = vmatprep.mubr.f32.mxu0 0.0
      %v7965 = vand.u32 %v7333, 4294901760
      %7966 = vmatmul.mubr.f32.gmra.mrb[0].mxu0 %v7965
      %v7967 = vpop.f32.mrb[0].mxu0
      %v7968 = vadd.f32 %v7677, %v7967
      %v7969 = vpop.f32.mrb[0].mxu0
      %7970 = vmatprep.mubr.f32.mxu0 0.0
      %v7971 = vand.u32 %v7336, 4294901760
      %7972 = vmatmul.mubr.f32.gmra.mrb[0].mxu0 %v7971
      %v7973 = vpop.f32.mrb[0].mxu0
      %v7974 = vadd.f32 %v7687, %v7973
      %v7975 = vpop.f32.mrb[0].mxu0
      %7976 = vmatprep.mubr.f32.mxu0 0.0
      %v7977 = vand.u32 %v7339, 4294901760
      %7978 = vmatmul.mubr.f32.gmra.mrb[0].mxu0 %v7977
      %v7979 = vpop.f32.mrb[0].mxu0
      %v7980 = vadd.f32 %v7697, %v7979
      %v7981 = vpop.f32.mrb[0].mxu0
      %7982 = vmatprep.mubr.f32.mxu0 0.0
      %v7983 = vand.u32 %v7342, 4294901760
      %7984 = vmatmul.mubr.f32.gmra.mrb[0].mxu0 %v7983
      %v7985 = vpop.f32.mrb[0].mxu0
      %v7986 = vadd.f32 %v7707, %v7985
      %v7987 = vpop.f32.mrb[0].mxu0
      %7988 = vmatprep.mubr.f32.mxu0 0.0
      %v7989 = vand.u32 %v7345, 4294901760
      %7990 = vmatmul.mubr.f32.gmra.mrb[0].mxu0 %v7989
      %v7991 = vpop.f32.mrb[0].mxu0
      %v7992 = vadd.f32 %v7717, %v7991
      %v7993 = vpop.f32.mrb[0].mxu0
      %7994 = vmatprep.mubr.f32.mxu0 0.0
      %v7995 = vand.u32 %v7348, 4294901760
      %7996 = vmatmul.mubr.f32.gmra.mrb[0].mxu0 %v7995
      %v7997 = vpop.f32.mrb[0].mxu0
      %v7998 = vadd.f32 %v7727, %v7997
      %v7999 = vpop.f32.mrb[0].mxu0
      %8000 = vmatprep.mubr.f32.mxu0 0.0
      %v8001 = vand.u32 %v7351, 4294901760
      %8002 = vmatmul.mubr.f32.gmra.mrb[0].mxu0 %v8001
      %v8003 = vpop.f32.mrb[0].mxu0
      %v8004 = vadd.f32 %v7737, %v8003
      %v8005 = vpop.f32.mrb[0].mxu0
      %8006 = vdwg.mxu0
      %8007 = vmatprep.subr.mxu0 0.0
      %v8008 = vand.u32 %v264, 4294901760
      %v8009 = vsub.f32 %v264, %v8008
      %8010 = vmatpush1.msra.mxu0 %v8009
      %8011 = vmatprep.subr.mxu0 0.0
      %v8012 = vand.u32 %v265, 4294901760
      %v8013 = vsub.f32 %v265, %v8012
      %8014 = vmatpush1.msra.mxu0 %v8013
      %8015 = vmatprep.subr.mxu0 0.0
      %8016 = vmatpush1.msra.mxu0 0.0
      %8017 = vmatprep.subr.mxu0 0.0
      %8018 = vmatpush1.msra.mxu0 0.0
      %8019 = vmatprep.subr.mxu0 0.0
      %8020 = vmatpush1.msra.mxu0 0.0
      %8021 = vmatprep.subr.mxu0 0.0
      %8022 = vmatpush1.msra.mxu0 0.0
      %8023 = vmatprep.subr.mxu0 0.0
      %8024 = vmatpush1.msra.mxu0 0.0
      %8025 = vmatprep.subr.mxu0 0.0
      %8026 = vmatpush1.msra.mxu0 0.0
      %8027 = vmatprep.subr.mxu0 0.0
      %8028 = vmatpush1.msra.mxu0 0.0
      %8029 = vmatprep.subr.mxu0 0.0
      %8030 = vmatpush1.msra.mxu0 0.0
      %8031 = vmatprep.subr.mxu0 0.0
      %8032 = vmatpush1.msra.mxu0 0.0
      %8033 = vmatprep.subr.mxu0 0.0
      %8034 = vmatpush1.msra.mxu0 0.0
      %8035 = vmatprep.subr.mxu0 0.0
      %8036 = vmatpush1.msra.mxu0 0.0
      %8037 = vmatprep.subr.mxu0 0.0
      %8038 = vmatpush1.msra.mxu0 0.0
      %8039 = vmatprep.subr.mxu0 0.0
      %8040 = vmatpush1.msra.mxu0 0.0
      %8041 = vmatprep.subr.mxu0 0.0
      %8042 = vmatpush1.msra.mxu0 0.0
      %8043 = vmatprep.subr.mxu0 0.0
      %8044 = vmatpush1.msra.mxu0 0.0
      %8045 = vmatprep.subr.mxu0 0.0
      %8046 = vmatpush1.msra.mxu0 0.0
      %8047 = vmatprep.subr.mxu0 0.0
      %8048 = vmatpush1.msra.mxu0 0.0
      %8049 = vmatprep.subr.mxu0 0.0
      %8050 = vmatpush1.msra.mxu0 0.0
      %8051 = vmatprep.subr.mxu0 0.0
      %8052 = vmatpush1.msra.mxu0 0.0
      %8053 = vmatprep.subr.mxu0 0.0
      %8054 = vmatpush1.msra.mxu0 0.0
      %8055 = vmatprep.subr.mxu0 0.0
      %8056 = vmatpush1.msra.mxu0 0.0
      %8057 = vmatprep.subr.mxu0 0.0
      %8058 = vmatpush1.msra.mxu0 0.0
      %8059 = vmatprep.subr.mxu0 0.0
      %8060 = vmatpush1.msra.mxu0 0.0
      %8061 = vmatprep.subr.mxu0 0.0
      %8062 = vmatpush1.msra.mxu0 0.0
      %8063 = vmatprep.subr.mxu0 0.0
      %8064 = vmatpush1.msra.mxu0 0.0
      %8065 = vmatprep.subr.mxu0 0.0
      %8066 = vmatpush1.msra.mxu0 0.0
      %8067 = vmatprep.subr.mxu0 0.0
      %8068 = vmatpush1.msra.mxu0 0.0
      %8069 = vmatprep.subr.mxu0 0.0
      %8070 = vmatpush1.msra.mxu0 0.0
      %8071 = vmatprep.subr.mxu0 0.0
      %8072 = vmatpush1.msra.mxu0 0.0
      %8073 = vmatprep.subr.mxu0 0.0
      %8074 = vmatpush1.msra.mxu0 0.0
      %8075 = vmatprep.mubr.f32.mxu0 0.0
      %v8076 = vand.u32 %v7258, 4294901760
      %v8077 = vsub.f32 %v7258, %v8076
      %8078 = vmatmul.mubr.f32.gmra.mrb[0].mxu0 %v8077
      %v8079 = vpop.f32.mrb[0].mxu0
      %v8080 = vadd.f32 %v7818, %v8079
      %v8081 = vpop.f32.mrb[0].mxu0
      %8082 = vmatprep.mubr.f32.mxu0 0.0
      %v8083 = vand.u32 %v7261, 4294901760
      %v8084 = vsub.f32 %v7261, %v8083
      %8085 = vmatmul.mubr.f32.gmra.mrb[0].mxu0 %v8084
      %v8086 = vpop.f32.mrb[0].mxu0
      %v8087 = vadd.f32 %v7824, %v8086
      %v8088 = vpop.f32.mrb[0].mxu0
      %8089 = vmatprep.mubr.f32.mxu0 0.0
      %v8090 = vand.u32 %v7264, 4294901760
      %v8091 = vsub.f32 %v7264, %v8090
      %8092 = vmatmul.mubr.f32.gmra.mrb[0].mxu0 %v8091
      %v8093 = vpop.f32.mrb[0].mxu0
      %v8094 = vadd.f32 %v7830, %v8093
      %v8095 = vpop.f32.mrb[0].mxu0
      %8096 = vmatprep.mubr.f32.mxu0 0.0
      %v8097 = vand.u32 %v7267, 4294901760
      %v8098 = vsub.f32 %v7267, %v8097
      %8099 = vmatmul.mubr.f32.gmra.mrb[0].mxu0 %v8098
      %v8100 = vpop.f32.mrb[0].mxu0
      %v8101 = vadd.f32 %v7836, %v8100
      %v8102 = vpop.f32.mrb[0].mxu0
      %8103 = vmatprep.mubr.f32.mxu0 0.0
      %v8104 = vand.u32 %v7270, 4294901760
      %v8105 = vsub.f32 %v7270, %v8104
      %8106 = vmatmul.mubr.f32.gmra.mrb[0].mxu0 %v8105
      %v8107 = vpop.f32.mrb[0].mxu0
      %v8108 = vadd.f32 %v7842, %v8107
      %v8109 = vpop.f32.mrb[0].mxu0
      %8110 = vmatprep.mubr.f32.mxu0 0.0
      %v8111 = vand.u32 %v7273, 4294901760
      %v8112 = vsub.f32 %v7273, %v8111
      %8113 = vmatmul.mubr.f32.gmra.mrb[0].mxu0 %v8112
      %v8114 = vpop.f32.mrb[0].mxu0
      %v8115 = vadd.f32 %v7848, %v8114
      %v8116 = vpop.f32.mrb[0].mxu0
      %8117 = vmatprep.mubr.f32.mxu0 0.0
      %v8118 = vand.u32 %v7276, 4294901760
      %v8119 = vsub.f32 %v7276, %v8118
      %8120 = vmatmul.mubr.f32.gmra.mrb[0].mxu0 %v8119
      %v8121 = vpop.f32.mrb[0].mxu0
      %v8122 = vadd.f32 %v7854, %v8121
      %v8123 = vpop.f32.mrb[0].mxu0
      %8124 = vmatprep.mubr.f32.mxu0 0.0
      %v8125 = vand.u32 %v7279, 4294901760
      %v8126 = vsub.f32 %v7279, %v8125
      %8127 = vmatmul.mubr.f32.gmra.mrb[0].mxu0 %v8126
      %v8128 = vpop.f32.mrb[0].mxu0
      %v8129 = vadd.f32 %v7860, %v8128
      %v8130 = vpop.f32.mrb[0].mxu0
      %8131 = vmatprep.mubr.f32.mxu0 0.0
      %v8132 = vand.u32 %v7282, 4294901760
      %v8133 = vsub.f32 %v7282, %v8132
      %8134 = vmatmul.mubr.f32.gmra.mrb[0].mxu0 %v8133
      %v8135 = vpop.f32.mrb[0].mxu0
      %v8136 = vadd.f32 %v7866, %v8135
      %v8137 = vpop.f32.mrb[0].mxu0
      %8138 = vmatprep.mubr.f32.mxu0 0.0
      %v8139 = vand.u32 %v7285, 4294901760
      %v8140 = vsub.f32 %v7285, %v8139
      %8141 = vmatmul.mubr.f32.gmra.mrb[0].mxu0 %v8140
      %v8142 = vpop.f32.mrb[0].mxu0
      %v8143 = vadd.f32 %v7872, %v8142
      %v8144 = vpop.f32.mrb[0].mxu0
      %8145 = vmatprep.mubr.f32.mxu0 0.0
      %v8146 = vand.u32 %v7288, 4294901760
      %v8147 = vsub.f32 %v7288, %v8146
      %8148 = vmatmul.mubr.f32.gmra.mrb[0].mxu0 %v8147
      %v8149 = vpop.f32.mrb[0].mxu0
      %v8150 = vadd.f32 %v7878, %v8149
      %v8151 = vpop.f32.mrb[0].mxu0
      %8152 = vmatprep.mubr.f32.mxu0 0.0
      %v8153 = vand.u32 %v7291, 4294901760
      %v8154 = vsub.f32 %v7291, %v8153
      %8155 = vmatmul.mubr.f32.gmra.mrb[0].mxu0 %v8154
      %v8156 = vpop.f32.mrb[0].mxu0
      %v8157 = vadd.f32 %v7884, %v8156
      %v8158 = vpop.f32.mrb[0].mxu0
      %8159 = vmatprep.mubr.f32.mxu0 0.0
      %v8160 = vand.u32 %v7294, 4294901760
      %v8161 = vsub.f32 %v7294, %v8160
      %8162 = vmatmul.mubr.f32.gmra.mrb[0].mxu0 %v8161
      %v8163 = vpop.f32.mrb[0].mxu0
      %v8164 = vadd.f32 %v7890, %v8163
      %v8165 = vpop.f32.mrb[0].mxu0
      %8166 = vmatprep.mubr.f32.mxu0 0.0
      %v8167 = vand.u32 %v7297, 4294901760
      %v8168 = vsub.f32 %v7297, %v8167
      %8169 = vmatmul.mubr.f32.gmra.mrb[0].mxu0 %v8168
      %v8170 = vpop.f32.mrb[0].mxu0
      %v8171 = vadd.f32 %v7896, %v8170
      %v8172 = vpop.f32.mrb[0].mxu0
      %8173 = vmatprep.mubr.f32.mxu0 0.0
      %v8174 = vand.u32 %v7300, 4294901760
      %v8175 = vsub.f32 %v7300, %v8174
      %8176 = vmatmul.mubr.f32.gmra.mrb[0].mxu0 %v8175
      %v8177 = vpop.f32.mrb[0].mxu0
      %v8178 = vadd.f32 %v7902, %v8177
      %v8179 = vpop.f32.mrb[0].mxu0
      %8180 = vmatprep.mubr.f32.mxu0 0.0
      %v8181 = vand.u32 %v7303, 4294901760
      %v8182 = vsub.f32 %v7303, %v8181
      %8183 = vmatmul.mubr.f32.gmra.mrb[0].mxu0 %v8182
      %v8184 = vpop.f32.mrb[0].mxu0
      %v8185 = vadd.f32 %v7908, %v8184
      %v8186 = vpop.f32.mrb[0].mxu0
      %8187 = vmatprep.mubr.f32.mxu0 0.0
      %v8188 = vand.u32 %v7306, 4294901760
      %v8189 = vsub.f32 %v7306, %v8188
      %8190 = vmatmul.mubr.f32.gmra.mrb[0].mxu0 %v8189
      %v8191 = vpop.f32.mrb[0].mxu0
      %v8192 = vadd.f32 %v7914, %v8191
      %v8193 = vpop.f32.mrb[0].mxu0
      %8194 = vmatprep.mubr.f32.mxu0 0.0
      %v8195 = vand.u32 %v7309, 4294901760
      %v8196 = vsub.f32 %v7309, %v8195
      %8197 = vmatmul.mubr.f32.gmra.mrb[0].mxu0 %v8196
      %v8198 = vpop.f32.mrb[0].mxu0
      %v8199 = vadd.f32 %v7920, %v8198
      %v8200 = vpop.f32.mrb[0].mxu0
      %8201 = vmatprep.mubr.f32.mxu0 0.0
      %v8202 = vand.u32 %v7312, 4294901760
      %v8203 = vsub.f32 %v7312, %v8202
      %8204 = vmatmul.mubr.f32.gmra.mrb[0].mxu0 %v8203
      %v8205 = vpop.f32.mrb[0].mxu0
      %v8206 = vadd.f32 %v7926, %v8205
      %v8207 = vpop.f32.mrb[0].mxu0
      %8208 = vmatprep.mubr.f32.mxu0 0.0
      %v8209 = vand.u32 %v7315, 4294901760
      %v8210 = vsub.f32 %v7315, %v8209
      %8211 = vmatmul.mubr.f32.gmra.mrb[0].mxu0 %v8210
      %v8212 = vpop.f32.mrb[0].mxu0
      %v8213 = vadd.f32 %v7932, %v8212
      %v8214 = vpop.f32.mrb[0].mxu0
      %8215 = vmatprep.mubr.f32.mxu0 0.0
      %v8216 = vand.u32 %v7318, 4294901760
      %v8217 = vsub.f32 %v7318, %v8216
      %8218 = vmatmul.mubr.f32.gmra.mrb[0].mxu0 %v8217
      %v8219 = vpop.f32.mrb[0].mxu0
      %v8220 = vadd.f32 %v7938, %v8219
      %v8221 = vpop.f32.mrb[0].mxu0
      %8222 = vmatprep.mubr.f32.mxu0 0.0
      %v8223 = vand.u32 %v7321, 4294901760
      %v8224 = vsub.f32 %v7321, %v8223
      %8225 = vmatmul.mubr.f32.gmra.mrb[0].mxu0 %v8224
      %v8226 = vpop.f32.mrb[0].mxu0
      %v8227 = vadd.f32 %v7944, %v8226
      %v8228 = vpop.f32.mrb[0].mxu0
      %8229 = vmatprep.mubr.f32.mxu0 0.0
      %v8230 = vand.u32 %v7324, 4294901760
      %v8231 = vsub.f32 %v7324, %v8230
      %8232 = vmatmul.mubr.f32.gmra.mrb[0].mxu0 %v8231
      %v8233 = vpop.f32.mrb[0].mxu0
      %v8234 = vadd.f32 %v7950, %v8233
      %v8235 = vpop.f32.mrb[0].mxu0
      %8236 = vmatprep.mubr.f32.mxu0 0.0
      %v8237 = vand.u32 %v7327, 4294901760
      %v8238 = vsub.f32 %v7327, %v8237
      %8239 = vmatmul.mubr.f32.gmra.mrb[0].mxu0 %v8238
      %v8240 = vpop.f32.mrb[0].mxu0
      %v8241 = vadd.f32 %v7956, %v8240
      %v8242 = vpop.f32.mrb[0].mxu0
      %8243 = vmatprep.mubr.f32.mxu0 0.0
      %v8244 = vand.u32 %v7330, 4294901760
      %v8245 = vsub.f32 %v7330, %v8244
      %8246 = vmatmul.mubr.f32.gmra.mrb[0].mxu0 %v8245
      %v8247 = vpop.f32.mrb[0].mxu0
      %v8248 = vadd.f32 %v7962, %v8247
      %v8249 = vpop.f32.mrb[0].mxu0
      %8250 = vmatprep.mubr.f32.mxu0 0.0
      %v8251 = vand.u32 %v7333, 4294901760
      %v8252 = vsub.f32 %v7333, %v8251
      %8253 = vmatmul.mubr.f32.gmra.mrb[0].mxu0 %v8252
      %v8254 = vpop.f32.mrb[0].mxu0
      %v8255 = vadd.f32 %v7968, %v8254
      %v8256 = vpop.f32.mrb[0].mxu0
      %8257 = vmatprep.mubr.f32.mxu0 0.0
      %v8258 = vand.u32 %v7336, 4294901760
      %v8259 = vsub.f32 %v7336, %v8258
      %8260 = vmatmul.mubr.f32.gmra.mrb[0].mxu0 %v8259
      %v8261 = vpop.f32.mrb[0].mxu0
      %v8262 = vadd.f32 %v7974, %v8261
      %v8263 = vpop.f32.mrb[0].mxu0
      %8264 = vmatprep.mubr.f32.mxu0 0.0
      %v8265 = vand.u32 %v7339, 4294901760
      %v8266 = vsub.f32 %v7339, %v8265
      %8267 = vmatmul.mubr.f32.gmra.mrb[0].mxu0 %v8266
      %v8268 = vpop.f32.mrb[0].mxu0
      %v8269 = vadd.f32 %v7980, %v8268
      %v8270 = vpop.f32.mrb[0].mxu0
      %8271 = vmatprep.mubr.f32.mxu0 0.0
      %v8272 = vand.u32 %v7342, 4294901760
      %v8273 = vsub.f32 %v7342, %v8272
      %8274 = vmatmul.mubr.f32.gmra.mrb[0].mxu0 %v8273
      %v8275 = vpop.f32.mrb[0].mxu0
      %v8276 = vadd.f32 %v7986, %v8275
      %v8277 = vpop.f32.mrb[0].mxu0
      %8278 = vmatprep.mubr.f32.mxu0 0.0
      %v8279 = vand.u32 %v7345, 4294901760
      %v8280 = vsub.f32 %v7345, %v8279
      %8281 = vmatmul.mubr.f32.gmra.mrb[0].mxu0 %v8280
      %v8282 = vpop.f32.mrb[0].mxu0
      %v8283 = vadd.f32 %v7992, %v8282
      %v8284 = vpop.f32.mrb[0].mxu0
      %8285 = vmatprep.mubr.f32.mxu0 0.0
      %v8286 = vand.u32 %v7348, 4294901760
      %v8287 = vsub.f32 %v7348, %v8286
      %8288 = vmatmul.mubr.f32.gmra.mrb[0].mxu0 %v8287
      %v8289 = vpop.f32.mrb[0].mxu0
      %v8290 = vadd.f32 %v7998, %v8289
      %v8291 = vpop.f32.mrb[0].mxu0
      %8292 = vmatprep.mubr.f32.mxu0 0.0
      %v8293 = vand.u32 %v7351, 4294901760
      %v8294 = vsub.f32 %v7351, %v8293
      %8295 = vmatmul.mubr.f32.gmra.mrb[0].mxu0 %v8294
      %v8296 = vpop.f32.mrb[0].mxu0
      %v8297 = vadd.f32 %v8004, %v8296
      %v8298 = vpop.f32.mrb[0].mxu0
      %8299 = vdwg.mxu0
      %8300 = vmatprep.subr.mxu0 0.0
      %v8301 = vand.u32 %v264, 4294901760
      %8302 = vmatpush1.msra.mxu0 %v8301
      %8303 = vmatprep.subr.mxu0 0.0
      %v8304 = vand.u32 %v265, 4294901760
      %8305 = vmatpush1.msra.mxu0 %v8304
      %8306 = vmatprep.subr.mxu0 0.0
      %8307 = vmatpush1.msra.mxu0 0.0
      %8308 = vmatprep.subr.mxu0 0.0
      %8309 = vmatpush1.msra.mxu0 0.0
      %8310 = vmatprep.subr.mxu0 0.0
      %8311 = vmatpush1.msra.mxu0 0.0
      %8312 = vmatprep.subr.mxu0 0.0
      %8313 = vmatpush1.msra.mxu0 0.0
      %8314 = vmatprep.subr.mxu0 0.0
      %8315 = vmatpush1.msra.mxu0 0.0
      %8316 = vmatprep.subr.mxu0 0.0
      %8317 = vmatpush1.msra.mxu0 0.0
      %8318 = vmatprep.subr.mxu0 0.0
      %8319 = vmatpush1.msra.mxu0 0.0
      %8320 = vmatprep.subr.mxu0 0.0
      %8321 = vmatpush1.msra.mxu0 0.0
      %8322 = vmatprep.subr.mxu0 0.0
      %8323 = vmatpush1.msra.mxu0 0.0
      %8324 = vmatprep.subr.mxu0 0.0
      %8325 = vmatpush1.msra.mxu0 0.0
      %8326 = vmatprep.subr.mxu0 0.0
      %8327 = vmatpush1.msra.mxu0 0.0
      %8328 = vmatprep.subr.mxu0 0.0
      %8329 = vmatpush1.msra.mxu0 0.0
      %8330 = vmatprep.subr.mxu0 0.0
      %8331 = vmatpush1.msra.mxu0 0.0
      %8332 = vmatprep.subr.mxu0 0.0
      %8333 = vmatpush1.msra.mxu0 0.0
      %8334 = vmatprep.subr.mxu0 0.0
      %8335 = vmatpush1.msra.mxu0 0.0
      %8336 = vmatprep.subr.mxu0 0.0
      %8337 = vmatpush1.msra.mxu0 0.0
      %8338 = vmatprep.subr.mxu0 0.0
      %8339 = vmatpush1.msra.mxu0 0.0
      %8340 = vmatprep.subr.mxu0 0.0
      %8341 = vmatpush1.msra.mxu0 0.0
      %8342 = vmatprep.subr.mxu0 0.0
      %8343 = vmatpush1.msra.mxu0 0.0
      %8344 = vmatprep.subr.mxu0 0.0
      %8345 = vmatpush1.msra.mxu0 0.0
      %8346 = vmatprep.subr.mxu0 0.0
      %8347 = vmatpush1.msra.mxu0 0.0
      %8348 = vmatprep.subr.mxu0 0.0
      %8349 = vmatpush1.msra.mxu0 0.0
      %8350 = vmatprep.subr.mxu0 0.0
      %8351 = vmatpush1.msra.mxu0 0.0
      %8352 = vmatprep.subr.mxu0 0.0
      %8353 = vmatpush1.msra.mxu0 0.0
      %8354 = vmatprep.subr.mxu0 0.0
      %8355 = vmatpush1.msra.mxu0 0.0
      %8356 = vmatprep.subr.mxu0 0.0
      %8357 = vmatpush1.msra.mxu0 0.0
      %8358 = vmatprep.subr.mxu0 0.0
      %8359 = vmatpush1.msra.mxu0 0.0
      %8360 = vmatprep.subr.mxu0 0.0
      %8361 = vmatpush1.msra.mxu0 0.0
      %8362 = vmatprep.subr.mxu0 0.0
      %8363 = vmatpush1.msra.mxu0 0.0
      %8364 = vmatprep.subr.mxu0 0.0
      %8365 = vmatpush1.msra.mxu0 0.0
      %8366 = vmatprep.mubr.f32.mxu0 0.0
      %v8367 = vand.u32 %v7258, 4294901760
      %v8368 = vsub.f32 %v7258, %v8367
      %v8369 = vand.u32 %v8368, 4294901760
      %8370 = vmatmul.mubr.f32.gmra.mrb[0].mxu0 %v8369
      %v8371 = vpop.f32.mrb[0].mxu0
      %v8372 = vadd.f32 %v8080, %v8371
      %v8373 = vpop.f32.mrb[0].mxu0
      %8374 = vmatprep.mubr.f32.mxu0 0.0
      %v8375 = vand.u32 %v7261, 4294901760
      %v8376 = vsub.f32 %v7261, %v8375
      %v8377 = vand.u32 %v8376, 4294901760
      %8378 = vmatmul.mubr.f32.gmra.mrb[0].mxu0 %v8377
      %v8379 = vpop.f32.mrb[0].mxu0
      %v8380 = vadd.f32 %v8087, %v8379
      %v8381 = vpop.f32.mrb[0].mxu0
      %8382 = vmatprep.mubr.f32.mxu0 0.0
      %v8383 = vand.u32 %v7264, 4294901760
      %v8384 = vsub.f32 %v7264, %v8383
      %v8385 = vand.u32 %v8384, 4294901760
      %8386 = vmatmul.mubr.f32.gmra.mrb[0].mxu0 %v8385
      %v8387 = vpop.f32.mrb[0].mxu0
      %v8388 = vadd.f32 %v8094, %v8387
      %v8389 = vpop.f32.mrb[0].mxu0
      %8390 = vmatprep.mubr.f32.mxu0 0.0
      %v8391 = vand.u32 %v7267, 4294901760
      %v8392 = vsub.f32 %v7267, %v8391
      %v8393 = vand.u32 %v8392, 4294901760
      %8394 = vmatmul.mubr.f32.gmra.mrb[0].mxu0 %v8393
      %v8395 = vpop.f32.mrb[0].mxu0
      %v8396 = vadd.f32 %v8101, %v8395
      %v8397 = vpop.f32.mrb[0].mxu0
      %8398 = vmatprep.mubr.f32.mxu0 0.0
      %v8399 = vand.u32 %v7270, 4294901760
      %v8400 = vsub.f32 %v7270, %v8399
      %v8401 = vand.u32 %v8400, 4294901760
      %8402 = vmatmul.mubr.f32.gmra.mrb[0].mxu0 %v8401
      %v8403 = vpop.f32.mrb[0].mxu0
      %v8404 = vadd.f32 %v8108, %v8403
      %v8405 = vpop.f32.mrb[0].mxu0
      %8406 = vmatprep.mubr.f32.mxu0 0.0
      %v8407 = vand.u32 %v7273, 4294901760
      %v8408 = vsub.f32 %v7273, %v8407
      %v8409 = vand.u32 %v8408, 4294901760
      %8410 = vmatmul.mubr.f32.gmra.mrb[0].mxu0 %v8409
      %v8411 = vpop.f32.mrb[0].mxu0
      %v8412 = vadd.f32 %v8115, %v8411
      %v8413 = vpop.f32.mrb[0].mxu0
      %8414 = vmatprep.mubr.f32.mxu0 0.0
      %v8415 = vand.u32 %v7276, 4294901760
      %v8416 = vsub.f32 %v7276, %v8415
      %v8417 = vand.u32 %v8416, 4294901760
      %8418 = vmatmul.mubr.f32.gmra.mrb[0].mxu0 %v8417
      %v8419 = vpop.f32.mrb[0].mxu0
      %v8420 = vadd.f32 %v8122, %v8419
      %v8421 = vpop.f32.mrb[0].mxu0
      %8422 = vmatprep.mubr.f32.mxu0 0.0
      %v8423 = vand.u32 %v7279, 4294901760
      %v8424 = vsub.f32 %v7279, %v8423
      %v8425 = vand.u32 %v8424, 4294901760
      %8426 = vmatmul.mubr.f32.gmra.mrb[0].mxu0 %v8425
      %v8427 = vpop.f32.mrb[0].mxu0
      %v8428 = vadd.f32 %v8129, %v8427
      %v8429 = vpop.f32.mrb[0].mxu0
      %8430 = vmatprep.mubr.f32.mxu0 0.0
      %v8431 = vand.u32 %v7282, 4294901760
      %v8432 = vsub.f32 %v7282, %v8431
      %v8433 = vand.u32 %v8432, 4294901760
      %8434 = vmatmul.mubr.f32.gmra.mrb[0].mxu0 %v8433
      %v8435 = vpop.f32.mrb[0].mxu0
      %v8436 = vadd.f32 %v8136, %v8435
      %v8437 = vpop.f32.mrb[0].mxu0
      %8438 = vmatprep.mubr.f32.mxu0 0.0
      %v8439 = vand.u32 %v7285, 4294901760
      %v8440 = vsub.f32 %v7285, %v8439
      %v8441 = vand.u32 %v8440, 4294901760
      %8442 = vmatmul.mubr.f32.gmra.mrb[0].mxu0 %v8441
      %v8443 = vpop.f32.mrb[0].mxu0
      %v8444 = vadd.f32 %v8143, %v8443
      %v8445 = vpop.f32.mrb[0].mxu0
      %8446 = vmatprep.mubr.f32.mxu0 0.0
      %v8447 = vand.u32 %v7288, 4294901760
      %v8448 = vsub.f32 %v7288, %v8447
      %v8449 = vand.u32 %v8448, 4294901760
      %8450 = vmatmul.mubr.f32.gmra.mrb[0].mxu0 %v8449
      %v8451 = vpop.f32.mrb[0].mxu0
      %v8452 = vadd.f32 %v8150, %v8451
      %v8453 = vpop.f32.mrb[0].mxu0
      %8454 = vmatprep.mubr.f32.mxu0 0.0
      %v8455 = vand.u32 %v7291, 4294901760
      %v8456 = vsub.f32 %v7291, %v8455
      %v8457 = vand.u32 %v8456, 4294901760
      %8458 = vmatmul.mubr.f32.gmra.mrb[0].mxu0 %v8457
      %v8459 = vpop.f32.mrb[0].mxu0
      %v8460 = vadd.f32 %v8157, %v8459
      %v8461 = vpop.f32.mrb[0].mxu0
      %8462 = vmatprep.mubr.f32.mxu0 0.0
      %v8463 = vand.u32 %v7294, 4294901760
      %v8464 = vsub.f32 %v7294, %v8463
      %v8465 = vand.u32 %v8464, 4294901760
      %8466 = vmatmul.mubr.f32.gmra.mrb[0].mxu0 %v8465
      %v8467 = vpop.f32.mrb[0].mxu0
      %v8468 = vadd.f32 %v8164, %v8467
      %v8469 = vpop.f32.mrb[0].mxu0
      %8470 = vmatprep.mubr.f32.mxu0 0.0
      %v8471 = vand.u32 %v7297, 4294901760
      %v8472 = vsub.f32 %v7297, %v8471
      %v8473 = vand.u32 %v8472, 4294901760
      %8474 = vmatmul.mubr.f32.gmra.mrb[0].mxu0 %v8473
      %v8475 = vpop.f32.mrb[0].mxu0
      %v8476 = vadd.f32 %v8171, %v8475
      %v8477 = vpop.f32.mrb[0].mxu0
      %8478 = vmatprep.mubr.f32.mxu0 0.0
      %v8479 = vand.u32 %v7300, 4294901760
      %v8480 = vsub.f32 %v7300, %v8479
      %v8481 = vand.u32 %v8480, 4294901760
      %8482 = vmatmul.mubr.f32.gmra.mrb[0].mxu0 %v8481
      %v8483 = vpop.f32.mrb[0].mxu0
      %v8484 = vadd.f32 %v8178, %v8483
      %v8485 = vpop.f32.mrb[0].mxu0
      %8486 = vmatprep.mubr.f32.mxu0 0.0
      %v8487 = vand.u32 %v7303, 4294901760
      %v8488 = vsub.f32 %v7303, %v8487
      %v8489 = vand.u32 %v8488, 4294901760
      %8490 = vmatmul.mubr.f32.gmra.mrb[0].mxu0 %v8489
      %v8491 = vpop.f32.mrb[0].mxu0
      %v8492 = vadd.f32 %v8185, %v8491
      %v8493 = vpop.f32.mrb[0].mxu0
      %8494 = vmatprep.mubr.f32.mxu0 0.0
      %v8495 = vand.u32 %v7306, 4294901760
      %v8496 = vsub.f32 %v7306, %v8495
      %v8497 = vand.u32 %v8496, 4294901760
      %8498 = vmatmul.mubr.f32.gmra.mrb[0].mxu0 %v8497
      %v8499 = vpop.f32.mrb[0].mxu0
      %v8500 = vadd.f32 %v8192, %v8499
      %v8501 = vpop.f32.mrb[0].mxu0
      %8502 = vmatprep.mubr.f32.mxu0 0.0
      %v8503 = vand.u32 %v7309, 4294901760
      %v8504 = vsub.f32 %v7309, %v8503
      %v8505 = vand.u32 %v8504, 4294901760
      %8506 = vmatmul.mubr.f32.gmra.mrb[0].mxu0 %v8505
      %v8507 = vpop.f32.mrb[0].mxu0
      %v8508 = vadd.f32 %v8199, %v8507
      %v8509 = vpop.f32.mrb[0].mxu0
      %8510 = vmatprep.mubr.f32.mxu0 0.0
      %v8511 = vand.u32 %v7312, 4294901760
      %v8512 = vsub.f32 %v7312, %v8511
      %v8513 = vand.u32 %v8512, 4294901760
      %8514 = vmatmul.mubr.f32.gmra.mrb[0].mxu0 %v8513
      %v8515 = vpop.f32.mrb[0].mxu0
      %v8516 = vadd.f32 %v8206, %v8515
      %v8517 = vpop.f32.mrb[0].mxu0
      %8518 = vmatprep.mubr.f32.mxu0 0.0
      %v8519 = vand.u32 %v7315, 4294901760
      %v8520 = vsub.f32 %v7315, %v8519
      %v8521 = vand.u32 %v8520, 4294901760
      %8522 = vmatmul.mubr.f32.gmra.mrb[0].mxu0 %v8521
      %v8523 = vpop.f32.mrb[0].mxu0
      %v8524 = vadd.f32 %v8213, %v8523
      %v8525 = vpop.f32.mrb[0].mxu0
      %8526 = vmatprep.mubr.f32.mxu0 0.0
      %v8527 = vand.u32 %v7318, 4294901760
      %v8528 = vsub.f32 %v7318, %v8527
      %v8529 = vand.u32 %v8528, 4294901760
      %8530 = vmatmul.mubr.f32.gmra.mrb[0].mxu0 %v8529
      %v8531 = vpop.f32.mrb[0].mxu0
      %v8532 = vadd.f32 %v8220, %v8531
      %v8533 = vpop.f32.mrb[0].mxu0
      %8534 = vmatprep.mubr.f32.mxu0 0.0
      %v8535 = vand.u32 %v7321, 4294901760
      %v8536 = vsub.f32 %v7321, %v8535
      %v8537 = vand.u32 %v8536, 4294901760
      %8538 = vmatmul.mubr.f32.gmra.mrb[0].mxu0 %v8537
      %v8539 = vpop.f32.mrb[0].mxu0
      %v8540 = vadd.f32 %v8227, %v8539
      %v8541 = vpop.f32.mrb[0].mxu0
      %8542 = vmatprep.mubr.f32.mxu0 0.0
      %v8543 = vand.u32 %v7324, 4294901760
      %v8544 = vsub.f32 %v7324, %v8543
      %v8545 = vand.u32 %v8544, 4294901760
      %8546 = vmatmul.mubr.f32.gmra.mrb[0].mxu0 %v8545
      %v8547 = vpop.f32.mrb[0].mxu0
      %v8548 = vadd.f32 %v8234, %v8547
      %v8549 = vpop.f32.mrb[0].mxu0
      %8550 = vmatprep.mubr.f32.mxu0 0.0
      %v8551 = vand.u32 %v7327, 4294901760
      %v8552 = vsub.f32 %v7327, %v8551
      %v8553 = vand.u32 %v8552, 4294901760
      %8554 = vmatmul.mubr.f32.gmra.mrb[0].mxu0 %v8553
      %v8555 = vpop.f32.mrb[0].mxu0
      %v8556 = vadd.f32 %v8241, %v8555
      %v8557 = vpop.f32.mrb[0].mxu0
      %8558 = vmatprep.mubr.f32.mxu0 0.0
      %v8559 = vand.u32 %v7330, 4294901760
      %v8560 = vsub.f32 %v7330, %v8559
      %v8561 = vand.u32 %v8560, 4294901760
      %8562 = vmatmul.mubr.f32.gmra.mrb[0].mxu0 %v8561
      %v8563 = vpop.f32.mrb[0].mxu0
      %v8564 = vadd.f32 %v8248, %v8563
      %v8565 = vpop.f32.mrb[0].mxu0
      %8566 = vmatprep.mubr.f32.mxu0 0.0
      %v8567 = vand.u32 %v7333, 4294901760
      %v8568 = vsub.f32 %v7333, %v8567
      %v8569 = vand.u32 %v8568, 4294901760
      %8570 = vmatmul.mubr.f32.gmra.mrb[0].mxu0 %v8569
      %v8571 = vpop.f32.mrb[0].mxu0
      %v8572 = vadd.f32 %v8255, %v8571
      %v8573 = vpop.f32.mrb[0].mxu0
      %8574 = vmatprep.mubr.f32.mxu0 0.0
      %v8575 = vand.u32 %v7336, 4294901760
      %v8576 = vsub.f32 %v7336, %v8575
      %v8577 = vand.u32 %v8576, 4294901760
      %8578 = vmatmul.mubr.f32.gmra.mrb[0].mxu0 %v8577
      %v8579 = vpop.f32.mrb[0].mxu0
      %v8580 = vadd.f32 %v8262, %v8579
      %v8581 = vpop.f32.mrb[0].mxu0
      %8582 = vmatprep.mubr.f32.mxu0 0.0
      %v8583 = vand.u32 %v7339, 4294901760
      %v8584 = vsub.f32 %v7339, %v8583
      %v8585 = vand.u32 %v8584, 4294901760
      %8586 = vmatmul.mubr.f32.gmra.mrb[0].mxu0 %v8585
      %v8587 = vpop.f32.mrb[0].mxu0
      %v8588 = vadd.f32 %v8269, %v8587
      %v8589 = vpop.f32.mrb[0].mxu0
      %8590 = vmatprep.mubr.f32.mxu0 0.0
      %v8591 = vand.u32 %v7342, 4294901760
      %v8592 = vsub.f32 %v7342, %v8591
      %v8593 = vand.u32 %v8592, 4294901760
      %8594 = vmatmul.mubr.f32.gmra.mrb[0].mxu0 %v8593
      %v8595 = vpop.f32.mrb[0].mxu0
      %v8596 = vadd.f32 %v8276, %v8595
      %v8597 = vpop.f32.mrb[0].mxu0
      %8598 = vmatprep.mubr.f32.mxu0 0.0
      %v8599 = vand.u32 %v7345, 4294901760
      %v8600 = vsub.f32 %v7345, %v8599
      %v8601 = vand.u32 %v8600, 4294901760
      %8602 = vmatmul.mubr.f32.gmra.mrb[0].mxu0 %v8601
      %v8603 = vpop.f32.mrb[0].mxu0
      %v8604 = vadd.f32 %v8283, %v8603
      %v8605 = vpop.f32.mrb[0].mxu0
      %8606 = vmatprep.mubr.f32.mxu0 0.0
      %v8607 = vand.u32 %v7348, 4294901760
      %v8608 = vsub.f32 %v7348, %v8607
      %v8609 = vand.u32 %v8608, 4294901760
      %8610 = vmatmul.mubr.f32.gmra.mrb[0].mxu0 %v8609
      %v8611 = vpop.f32.mrb[0].mxu0
      %v8612 = vadd.f32 %v8290, %v8611
      %v8613 = vpop.f32.mrb[0].mxu0
      %8614 = vmatprep.mubr.f32.mxu0 0.0
      %v8615 = vand.u32 %v7351, 4294901760
      %v8616 = vsub.f32 %v7351, %v8615
      %v8617 = vand.u32 %v8616, 4294901760
      %8618 = vmatmul.mubr.f32.gmra.mrb[0].mxu0 %v8617
      %v8619 = vpop.f32.mrb[0].mxu0
      %v8620 = vadd.f32 %v8297, %v8619
      %v8621 = vpop.f32.mrb[0].mxu0
      %8622 = vdwg.mxu0
      %8623 = vmatprep.subr.mxu0 0.0
      %v8624 = vand.u32 %v264, 4294901760
      %v8625 = vsub.f32 %v264, %v8624
      %v8626 = vand.u32 %v8625, 4294901760
      %8627 = vmatpush1.msra.mxu0 %v8626
      %8628 = vmatprep.subr.mxu0 0.0
      %v8629 = vand.u32 %v265, 4294901760
      %v8630 = vsub.f32 %v265, %v8629
      %v8631 = vand.u32 %v8630, 4294901760
      %8632 = vmatpush1.msra.mxu0 %v8631
      %8633 = vmatprep.subr.mxu0 0.0
      %8634 = vmatpush1.msra.mxu0 0.0
      %8635 = vmatprep.subr.mxu0 0.0
      %8636 = vmatpush1.msra.mxu0 0.0
      %8637 = vmatprep.subr.mxu0 0.0
      %8638 = vmatpush1.msra.mxu0 0.0
      %8639 = vmatprep.subr.mxu0 0.0
      %8640 = vmatpush1.msra.mxu0 0.0
      %8641 = vmatprep.subr.mxu0 0.0
      %8642 = vmatpush1.msra.mxu0 0.0
      %8643 = vmatprep.subr.mxu0 0.0
      %8644 = vmatpush1.msra.mxu0 0.0
      %8645 = vmatprep.subr.mxu0 0.0
      %8646 = vmatpush1.msra.mxu0 0.0
      %8647 = vmatprep.subr.mxu0 0.0
      %8648 = vmatpush1.msra.mxu0 0.0
      %8649 = vmatprep.subr.mxu0 0.0
      %8650 = vmatpush1.msra.mxu0 0.0
      %8651 = vmatprep.subr.mxu0 0.0
      %8652 = vmatpush1.msra.mxu0 0.0
      %8653 = vmatprep.subr.mxu0 0.0
      %8654 = vmatpush1.msra.mxu0 0.0
      %8655 = vmatprep.subr.mxu0 0.0
      %8656 = vmatpush1.msra.mxu0 0.0
      %8657 = vmatprep.subr.mxu0 0.0
      %8658 = vmatpush1.msra.mxu0 0.0
      %8659 = vmatprep.subr.mxu0 0.0
      %8660 = vmatpush1.msra.mxu0 0.0
      %8661 = vmatprep.subr.mxu0 0.0
      %8662 = vmatpush1.msra.mxu0 0.0
      %8663 = vmatprep.subr.mxu0 0.0
      %8664 = vmatpush1.msra.mxu0 0.0
      %8665 = vmatprep.subr.mxu0 0.0
      %8666 = vmatpush1.msra.mxu0 0.0
      %8667 = vmatprep.subr.mxu0 0.0
      %8668 = vmatpush1.msra.mxu0 0.0
      %8669 = vmatprep.subr.mxu0 0.0
      %8670 = vmatpush1.msra.mxu0 0.0
      %8671 = vmatprep.subr.mxu0 0.0
      %8672 = vmatpush1.msra.mxu0 0.0
      %8673 = vmatprep.subr.mxu0 0.0
      %8674 = vmatpush1.msra.mxu0 0.0
      %8675 = vmatprep.subr.mxu0 0.0
      %8676 = vmatpush1.msra.mxu0 0.0
      %8677 = vmatprep.subr.mxu0 0.0
      %8678 = vmatpush1.msra.mxu0 0.0
      %8679 = vmatprep.subr.mxu0 0.0
      %8680 = vmatpush1.msra.mxu0 0.0
      %8681 = vmatprep.subr.mxu0 0.0
      %8682 = vmatpush1.msra.mxu0 0.0
      %8683 = vmatprep.subr.mxu0 0.0
      %8684 = vmatpush1.msra.mxu0 0.0
      %8685 = vmatprep.subr.mxu0 0.0
      %8686 = vmatpush1.msra.mxu0 0.0
      %8687 = vmatprep.subr.mxu0 0.0
      %8688 = vmatpush1.msra.mxu0 0.0
      %8689 = vmatprep.subr.mxu0 0.0
      %8690 = vmatpush1.msra.mxu0 0.0
      %8691 = vmatprep.subr.mxu0 0.0
      %8692 = vmatpush1.msra.mxu0 0.0
      %8693 = vmatprep.mubr.f32.mxu0 0.0
      %v8694 = vand.u32 %v7258, 4294901760
      %8695 = vmatmul.mubr.f32.gmra.mrb[0].mxu0 %v8694
      %v8696 = vpop.f32.mrb[0].mxu0
      %v8697 = vadd.f32 %v8372, %v8696
      %v8698 = vpop.f32.mrb[0].mxu0
      %8699 = vmatprep.mubr.f32.mxu0 0.0
      %v8700 = vand.u32 %v7261, 4294901760
      %8701 = vmatmul.mubr.f32.gmra.mrb[0].mxu0 %v8700
      %v8702 = vpop.f32.mrb[0].mxu0
      %v8703 = vadd.f32 %v8380, %v8702
      %v8704 = vpop.f32.mrb[0].mxu0
      %8705 = vmatprep.mubr.f32.mxu0 0.0
      %v8706 = vand.u32 %v7264, 4294901760
      %8707 = vmatmul.mubr.f32.gmra.mrb[0].mxu0 %v8706
      %v8708 = vpop.f32.mrb[0].mxu0
      %v8709 = vadd.f32 %v8388, %v8708
      %v8710 = vpop.f32.mrb[0].mxu0
      %8711 = vmatprep.mubr.f32.mxu0 0.0
      %v8712 = vand.u32 %v7267, 4294901760
      %8713 = vmatmul.mubr.f32.gmra.mrb[0].mxu0 %v8712
      %v8714 = vpop.f32.mrb[0].mxu0
      %v8715 = vadd.f32 %v8396, %v8714
      %v8716 = vpop.f32.mrb[0].mxu0
      %8717 = vmatprep.mubr.f32.mxu0 0.0
      %v8718 = vand.u32 %v7270, 4294901760
      %8719 = vmatmul.mubr.f32.gmra.mrb[0].mxu0 %v8718
      %v8720 = vpop.f32.mrb[0].mxu0
      %v8721 = vadd.f32 %v8404, %v8720
      %v8722 = vpop.f32.mrb[0].mxu0
      %8723 = vmatprep.mubr.f32.mxu0 0.0
      %v8724 = vand.u32 %v7273, 4294901760
      %8725 = vmatmul.mubr.f32.gmra.mrb[0].mxu0 %v8724
      %v8726 = vpop.f32.mrb[0].mxu0
      %v8727 = vadd.f32 %v8412, %v8726
      %v8728 = vpop.f32.mrb[0].mxu0
      %8729 = vmatprep.mubr.f32.mxu0 0.0
      %v8730 = vand.u32 %v7276, 4294901760
      %8731 = vmatmul.mubr.f32.gmra.mrb[0].mxu0 %v8730
      %v8732 = vpop.f32.mrb[0].mxu0
      %v8733 = vadd.f32 %v8420, %v8732
      %v8734 = vpop.f32.mrb[0].mxu0
      %8735 = vmatprep.mubr.f32.mxu0 0.0
      %v8736 = vand.u32 %v7279, 4294901760
      %8737 = vmatmul.mubr.f32.gmra.mrb[0].mxu0 %v8736
      %v8738 = vpop.f32.mrb[0].mxu0
      %v8739 = vadd.f32 %v8428, %v8738
      %v8740 = vpop.f32.mrb[0].mxu0
      %8741 = vmatprep.mubr.f32.mxu0 0.0
      %v8742 = vand.u32 %v7282, 4294901760
      %8743 = vmatmul.mubr.f32.gmra.mrb[0].mxu0 %v8742
      %v8744 = vpop.f32.mrb[0].mxu0
      %v8745 = vadd.f32 %v8436, %v8744
      %v8746 = vpop.f32.mrb[0].mxu0
      %8747 = vmatprep.mubr.f32.mxu0 0.0
      %v8748 = vand.u32 %v7285, 4294901760
      %8749 = vmatmul.mubr.f32.gmra.mrb[0].mxu0 %v8748
      %v8750 = vpop.f32.mrb[0].mxu0
      %v8751 = vadd.f32 %v8444, %v8750
      %v8752 = vpop.f32.mrb[0].mxu0
      %8753 = vmatprep.mubr.f32.mxu0 0.0
      %v8754 = vand.u32 %v7288, 4294901760
      %8755 = vmatmul.mubr.f32.gmra.mrb[0].mxu0 %v8754
      %v8756 = vpop.f32.mrb[0].mxu0
      %v8757 = vadd.f32 %v8452, %v8756
      %v8758 = vpop.f32.mrb[0].mxu0
      %8759 = vmatprep.mubr.f32.mxu0 0.0
      %v8760 = vand.u32 %v7291, 4294901760
      %8761 = vmatmul.mubr.f32.gmra.mrb[0].mxu0 %v8760
      %v8762 = vpop.f32.mrb[0].mxu0
      %v8763 = vadd.f32 %v8460, %v8762
      %v8764 = vpop.f32.mrb[0].mxu0
      %8765 = vmatprep.mubr.f32.mxu0 0.0
      %v8766 = vand.u32 %v7294, 4294901760
      %8767 = vmatmul.mubr.f32.gmra.mrb[0].mxu0 %v8766
      %v8768 = vpop.f32.mrb[0].mxu0
      %v8769 = vadd.f32 %v8468, %v8768
      %v8770 = vpop.f32.mrb[0].mxu0
      %8771 = vmatprep.mubr.f32.mxu0 0.0
      %v8772 = vand.u32 %v7297, 4294901760
      %8773 = vmatmul.mubr.f32.gmra.mrb[0].mxu0 %v8772
      %v8774 = vpop.f32.mrb[0].mxu0
      %v8775 = vadd.f32 %v8476, %v8774
      %v8776 = vpop.f32.mrb[0].mxu0
      %8777 = vmatprep.mubr.f32.mxu0 0.0
      %v8778 = vand.u32 %v7300, 4294901760
      %8779 = vmatmul.mubr.f32.gmra.mrb[0].mxu0 %v8778
      %v8780 = vpop.f32.mrb[0].mxu0
      %v8781 = vadd.f32 %v8484, %v8780
      %v8782 = vpop.f32.mrb[0].mxu0
      %8783 = vmatprep.mubr.f32.mxu0 0.0
      %v8784 = vand.u32 %v7303, 4294901760
      %8785 = vmatmul.mubr.f32.gmra.mrb[0].mxu0 %v8784
      %v8786 = vpop.f32.mrb[0].mxu0
      %v8787 = vadd.f32 %v8492, %v8786
      %v8788 = vpop.f32.mrb[0].mxu0
      %8789 = vmatprep.mubr.f32.mxu0 0.0
      %v8790 = vand.u32 %v7306, 4294901760
      %8791 = vmatmul.mubr.f32.gmra.mrb[0].mxu0 %v8790
      %v8792 = vpop.f32.mrb[0].mxu0
      %v8793 = vadd.f32 %v8500, %v8792
      %v8794 = vpop.f32.mrb[0].mxu0
      %8795 = vmatprep.mubr.f32.mxu0 0.0
      %v8796 = vand.u32 %v7309, 4294901760
      %8797 = vmatmul.mubr.f32.gmra.mrb[0].mxu0 %v8796
      %v8798 = vpop.f32.mrb[0].mxu0
      %v8799 = vadd.f32 %v8508, %v8798
      %v8800 = vpop.f32.mrb[0].mxu0
      %8801 = vmatprep.mubr.f32.mxu0 0.0
      %v8802 = vand.u32 %v7312, 4294901760
      %8803 = vmatmul.mubr.f32.gmra.mrb[0].mxu0 %v8802
      %v8804 = vpop.f32.mrb[0].mxu0
      %v8805 = vadd.f32 %v8516, %v8804
      %v8806 = vpop.f32.mrb[0].mxu0
      %8807 = vmatprep.mubr.f32.mxu0 0.0
      %v8808 = vand.u32 %v7315, 4294901760
      %8809 = vmatmul.mubr.f32.gmra.mrb[0].mxu0 %v8808
      %v8810 = vpop.f32.mrb[0].mxu0
      %v8811 = vadd.f32 %v8524, %v8810
      %v8812 = vpop.f32.mrb[0].mxu0
      %8813 = vmatprep.mubr.f32.mxu0 0.0
      %v8814 = vand.u32 %v7318, 4294901760
      %8815 = vmatmul.mubr.f32.gmra.mrb[0].mxu0 %v8814
      %v8816 = vpop.f32.mrb[0].mxu0
      %v8817 = vadd.f32 %v8532, %v8816
      %v8818 = vpop.f32.mrb[0].mxu0
      %8819 = vmatprep.mubr.f32.mxu0 0.0
      %v8820 = vand.u32 %v7321, 4294901760
      %8821 = vmatmul.mubr.f32.gmra.mrb[0].mxu0 %v8820
      %v8822 = vpop.f32.mrb[0].mxu0
      %v8823 = vadd.f32 %v8540, %v8822
      %v8824 = vpop.f32.mrb[0].mxu0
      %8825 = vmatprep.mubr.f32.mxu0 0.0
      %v8826 = vand.u32 %v7324, 4294901760
      %8827 = vmatmul.mubr.f32.gmra.mrb[0].mxu0 %v8826
      %v8828 = vpop.f32.mrb[0].mxu0
      %v8829 = vadd.f32 %v8548, %v8828
      %v8830 = vpop.f32.mrb[0].mxu0
      %8831 = vmatprep.mubr.f32.mxu0 0.0
      %v8832 = vand.u32 %v7327, 4294901760
      %8833 = vmatmul.mubr.f32.gmra.mrb[0].mxu0 %v8832
      %v8834 = vpop.f32.mrb[0].mxu0
      %v8835 = vadd.f32 %v8556, %v8834
      %v8836 = vpop.f32.mrb[0].mxu0
      %8837 = vmatprep.mubr.f32.mxu0 0.0
      %v8838 = vand.u32 %v7330, 4294901760
      %8839 = vmatmul.mubr.f32.gmra.mrb[0].mxu0 %v8838
      %v8840 = vpop.f32.mrb[0].mxu0
      %v8841 = vadd.f32 %v8564, %v8840
      %v8842 = vpop.f32.mrb[0].mxu0
      %8843 = vmatprep.mubr.f32.mxu0 0.0
      %v8844 = vand.u32 %v7333, 4294901760
      %8845 = vmatmul.mubr.f32.gmra.mrb[0].mxu0 %v8844
      %v8846 = vpop.f32.mrb[0].mxu0
      %v8847 = vadd.f32 %v8572, %v8846
      %v8848 = vpop.f32.mrb[0].mxu0
      %8849 = vmatprep.mubr.f32.mxu0 0.0
      %v8850 = vand.u32 %v7336, 4294901760
      %8851 = vmatmul.mubr.f32.gmra.mrb[0].mxu0 %v8850
      %v8852 = vpop.f32.mrb[0].mxu0
      %v8853 = vadd.f32 %v8580, %v8852
      %v8854 = vpop.f32.mrb[0].mxu0
      %8855 = vmatprep.mubr.f32.mxu0 0.0
      %v8856 = vand.u32 %v7339, 4294901760
      %8857 = vmatmul.mubr.f32.gmra.mrb[0].mxu0 %v8856
      %v8858 = vpop.f32.mrb[0].mxu0
      %v8859 = vadd.f32 %v8588, %v8858
      %v8860 = vpop.f32.mrb[0].mxu0
      %8861 = vmatprep.mubr.f32.mxu0 0.0
      %v8862 = vand.u32 %v7342, 4294901760
      %8863 = vmatmul.mubr.f32.gmra.mrb[0].mxu0 %v8862
      %v8864 = vpop.f32.mrb[0].mxu0
      %v8865 = vadd.f32 %v8596, %v8864
      %v8866 = vpop.f32.mrb[0].mxu0
      %8867 = vmatprep.mubr.f32.mxu0 0.0
      %v8868 = vand.u32 %v7345, 4294901760
      %8869 = vmatmul.mubr.f32.gmra.mrb[0].mxu0 %v8868
      %v8870 = vpop.f32.mrb[0].mxu0
      %v8871 = vadd.f32 %v8604, %v8870
      %v8872 = vpop.f32.mrb[0].mxu0
      %8873 = vmatprep.mubr.f32.mxu0 0.0
      %v8874 = vand.u32 %v7348, 4294901760
      %8875 = vmatmul.mubr.f32.gmra.mrb[0].mxu0 %v8874
      %v8876 = vpop.f32.mrb[0].mxu0
      %v8877 = vadd.f32 %v8612, %v8876
      %v8878 = vpop.f32.mrb[0].mxu0
      %8879 = vmatprep.mubr.f32.mxu0 0.0
      %v8880 = vand.u32 %v7351, 4294901760
      %8881 = vmatmul.mubr.f32.gmra.mrb[0].mxu0 %v8880
      %v8882 = vpop.f32.mrb[0].mxu0
      %v8883 = vadd.f32 %v8620, %v8882
      %v8884 = vpop.f32.mrb[0].mxu0
      %8885 = vdwg.mxu0
      %8886 = vmatprep.subr.mxu0 0.0
      %v8887 = vand.u32 %v264, 4294901760
      %8888 = vmatpush1.msra.mxu0 %v8887
      %8889 = vmatprep.subr.mxu0 0.0
      %v8890 = vand.u32 %v265, 4294901760
      %8891 = vmatpush1.msra.mxu0 %v8890
      %8892 = vmatprep.subr.mxu0 0.0
      %8893 = vmatpush1.msra.mxu0 0.0
      %8894 = vmatprep.subr.mxu0 0.0
      %8895 = vmatpush1.msra.mxu0 0.0
      %8896 = vmatprep.subr.mxu0 0.0
      %8897 = vmatpush1.msra.mxu0 0.0
      %8898 = vmatprep.subr.mxu0 0.0
      %8899 = vmatpush1.msra.mxu0 0.0
      %8900 = vmatprep.subr.mxu0 0.0
      %8901 = vmatpush1.msra.mxu0 0.0
      %8902 = vmatprep.subr.mxu0 0.0
      %8903 = vmatpush1.msra.mxu0 0.0
      %8904 = vmatprep.subr.mxu0 0.0
      %8905 = vmatpush1.msra.mxu0 0.0
      %8906 = vmatprep.subr.mxu0 0.0
      %8907 = vmatpush1.msra.mxu0 0.0
      %8908 = vmatprep.subr.mxu0 0.0
      %8909 = vmatpush1.msra.mxu0 0.0
      %8910 = vmatprep.subr.mxu0 0.0
      %8911 = vmatpush1.msra.mxu0 0.0
      %8912 = vmatprep.subr.mxu0 0.0
      %8913 = vmatpush1.msra.mxu0 0.0
      %8914 = vmatprep.subr.mxu0 0.0
      %8915 = vmatpush1.msra.mxu0 0.0
      %8916 = vmatprep.subr.mxu0 0.0
      %8917 = vmatpush1.msra.mxu0 0.0
      %8918 = vmatprep.subr.mxu0 0.0
      %8919 = vmatpush1.msra.mxu0 0.0
      %8920 = vmatprep.subr.mxu0 0.0
      %8921 = vmatpush1.msra.mxu0 0.0
      %8922 = vmatprep.subr.mxu0 0.0
      %8923 = vmatpush1.msra.mxu0 0.0
      %8924 = vmatprep.subr.mxu0 0.0
      %8925 = vmatpush1.msra.mxu0 0.0
      %8926 = vmatprep.subr.mxu0 0.0
      %8927 = vmatpush1.msra.mxu0 0.0
      %8928 = vmatprep.subr.mxu0 0.0
      %8929 = vmatpush1.msra.mxu0 0.0
      %8930 = vmatprep.subr.mxu0 0.0
      %8931 = vmatpush1.msra.mxu0 0.0
      %8932 = vmatprep.subr.mxu0 0.0
      %8933 = vmatpush1.msra.mxu0 0.0
      %8934 = vmatprep.subr.mxu0 0.0
      %8935 = vmatpush1.msra.mxu0 0.0
      %8936 = vmatprep.subr.mxu0 0.0
      %8937 = vmatpush1.msra.mxu0 0.0
      %8938 = vmatprep.subr.mxu0 0.0
      %8939 = vmatpush1.msra.mxu0 0.0
      %8940 = vmatprep.subr.mxu0 0.0
      %8941 = vmatpush1.msra.mxu0 0.0
      %8942 = vmatprep.subr.mxu0 0.0
      %8943 = vmatpush1.msra.mxu0 0.0
      %8944 = vmatprep.subr.mxu0 0.0
      %8945 = vmatpush1.msra.mxu0 0.0
      %8946 = vmatprep.subr.mxu0 0.0
      %8947 = vmatpush1.msra.mxu0 0.0
      %8948 = vmatprep.subr.mxu0 0.0
      %8949 = vmatpush1.msra.mxu0 0.0
      %8950 = vmatprep.subr.mxu0 0.0
      %8951 = vmatpush1.msra.mxu0 0.0
      %8952 = vmatprep.mubr.f32.mxu0 0.0
      %v8953 = vand.u32 %v7258, 4294901760
      %8954 = vmatmul.mubr.f32.gmra.mrb[0].mxu0 %v8953
      %v8955 = vpop.f32.mrb[0].mxu0
      %v8956 = vadd.f32 %v8697, %v8955
      %v8957 = vpop.f32.mrb[0].mxu0
      %8958 = vmatprep.mubr.f32.mxu0 0.0
      %v8959 = vand.u32 %v7261, 4294901760
      %8960 = vmatmul.mubr.f32.gmra.mrb[0].mxu0 %v8959
      %v8961 = vpop.f32.mrb[0].mxu0
      %v8962 = vadd.f32 %v8703, %v8961
      %v8963 = vpop.f32.mrb[0].mxu0
      %8964 = vmatprep.mubr.f32.mxu0 0.0
      %v8965 = vand.u32 %v7264, 4294901760
      %8966 = vmatmul.mubr.f32.gmra.mrb[0].mxu0 %v8965
      %v8967 = vpop.f32.mrb[0].mxu0
      %v8968 = vadd.f32 %v8709, %v8967
      %v8969 = vpop.f32.mrb[0].mxu0
      %8970 = vmatprep.mubr.f32.mxu0 0.0
      %v8971 = vand.u32 %v7267, 4294901760
      %8972 = vmatmul.mubr.f32.gmra.mrb[0].mxu0 %v8971
      %v8973 = vpop.f32.mrb[0].mxu0
      %v8974 = vadd.f32 %v8715, %v8973
      %v8975 = vpop.f32.mrb[0].mxu0
      %8976 = vmatprep.mubr.f32.mxu0 0.0
      %v8977 = vand.u32 %v7270, 4294901760
      %8978 = vmatmul.mubr.f32.gmra.mrb[0].mxu0 %v8977
      %v8979 = vpop.f32.mrb[0].mxu0
      %v8980 = vadd.f32 %v8721, %v8979
      %v8981 = vpop.f32.mrb[0].mxu0
      %8982 = vmatprep.mubr.f32.mxu0 0.0
      %v8983 = vand.u32 %v7273, 4294901760
      %8984 = vmatmul.mubr.f32.gmra.mrb[0].mxu0 %v8983
      %v8985 = vpop.f32.mrb[0].mxu0
      %v8986 = vadd.f32 %v8727, %v8985
      %v8987 = vpop.f32.mrb[0].mxu0
      %8988 = vmatprep.mubr.f32.mxu0 0.0
      %v8989 = vand.u32 %v7276, 4294901760
      %8990 = vmatmul.mubr.f32.gmra.mrb[0].mxu0 %v8989
      %v8991 = vpop.f32.mrb[0].mxu0
      %v8992 = vadd.f32 %v8733, %v8991
      %v8993 = vpop.f32.mrb[0].mxu0
      %8994 = vmatprep.mubr.f32.mxu0 0.0
      %v8995 = vand.u32 %v7279, 4294901760
      %8996 = vmatmul.mubr.f32.gmra.mrb[0].mxu0 %v8995
      %v8997 = vpop.f32.mrb[0].mxu0
      %v8998 = vadd.f32 %v8739, %v8997
      %v8999 = vpop.f32.mrb[0].mxu0
      %9000 = vmatprep.mubr.f32.mxu0 0.0
      %v9001 = vand.u32 %v7282, 4294901760
      %9002 = vmatmul.mubr.f32.gmra.mrb[0].mxu0 %v9001
      %v9003 = vpop.f32.mrb[0].mxu0
      %v9004 = vadd.f32 %v8745, %v9003
      %v9005 = vpop.f32.mrb[0].mxu0
      %9006 = vmatprep.mubr.f32.mxu0 0.0
      %v9007 = vand.u32 %v7285, 4294901760
      %9008 = vmatmul.mubr.f32.gmra.mrb[0].mxu0 %v9007
      %v9009 = vpop.f32.mrb[0].mxu0
      %v9010 = vadd.f32 %v8751, %v9009
      %v9011 = vpop.f32.mrb[0].mxu0
      %9012 = vmatprep.mubr.f32.mxu0 0.0
      %v9013 = vand.u32 %v7288, 4294901760
      %9014 = vmatmul.mubr.f32.gmra.mrb[0].mxu0 %v9013
      %v9015 = vpop.f32.mrb[0].mxu0
      %v9016 = vadd.f32 %v8757, %v9015
      %v9017 = vpop.f32.mrb[0].mxu0
      %9018 = vmatprep.mubr.f32.mxu0 0.0
      %v9019 = vand.u32 %v7291, 4294901760
      %9020 = vmatmul.mubr.f32.gmra.mrb[0].mxu0 %v9019
      %v9021 = vpop.f32.mrb[0].mxu0
      %v9022 = vadd.f32 %v8763, %v9021
      %v9023 = vpop.f32.mrb[0].mxu0
      %9024 = vmatprep.mubr.f32.mxu0 0.0
      %v9025 = vand.u32 %v7294, 4294901760
      %9026 = vmatmul.mubr.f32.gmra.mrb[0].mxu0 %v9025
      %v9027 = vpop.f32.mrb[0].mxu0
      %v9028 = vadd.f32 %v8769, %v9027
      %v9029 = vpop.f32.mrb[0].mxu0
      %9030 = vmatprep.mubr.f32.mxu0 0.0
      %v9031 = vand.u32 %v7297, 4294901760
      %9032 = vmatmul.mubr.f32.gmra.mrb[0].mxu0 %v9031
      %v9033 = vpop.f32.mrb[0].mxu0
      %v9034 = vadd.f32 %v8775, %v9033
      %v9035 = vpop.f32.mrb[0].mxu0
      %9036 = vmatprep.mubr.f32.mxu0 0.0
      %v9037 = vand.u32 %v7300, 4294901760
      %9038 = vmatmul.mubr.f32.gmra.mrb[0].mxu0 %v9037
      %v9039 = vpop.f32.mrb[0].mxu0
      %v9040 = vadd.f32 %v8781, %v9039
      %v9041 = vpop.f32.mrb[0].mxu0
      %9042 = vmatprep.mubr.f32.mxu0 0.0
      %v9043 = vand.u32 %v7303, 4294901760
      %9044 = vmatmul.mubr.f32.gmra.mrb[0].mxu0 %v9043
      %v9045 = vpop.f32.mrb[0].mxu0
      %v9046 = vadd.f32 %v8787, %v9045
      %v9047 = vpop.f32.mrb[0].mxu0
      %9048 = vmatprep.mubr.f32.mxu0 0.0
      %v9049 = vand.u32 %v7306, 4294901760
      %9050 = vmatmul.mubr.f32.gmra.mrb[0].mxu0 %v9049
      %v9051 = vpop.f32.mrb[0].mxu0
      %v9052 = vadd.f32 %v8793, %v9051
      %v9053 = vpop.f32.mrb[0].mxu0
      %9054 = vmatprep.mubr.f32.mxu0 0.0
      %v9055 = vand.u32 %v7309, 4294901760
      %9056 = vmatmul.mubr.f32.gmra.mrb[0].mxu0 %v9055
      %v9057 = vpop.f32.mrb[0].mxu0
      %v9058 = vadd.f32 %v8799, %v9057
      %v9059 = vpop.f32.mrb[0].mxu0
      %9060 = vmatprep.mubr.f32.mxu0 0.0
      %v9061 = vand.u32 %v7312, 4294901760
      %9062 = vmatmul.mubr.f32.gmra.mrb[0].mxu0 %v9061
      %v9063 = vpop.f32.mrb[0].mxu0
      %v9064 = vadd.f32 %v8805, %v9063
      %v9065 = vpop.f32.mrb[0].mxu0
      %9066 = vmatprep.mubr.f32.mxu0 0.0
      %v9067 = vand.u32 %v7315, 4294901760
      %9068 = vmatmul.mubr.f32.gmra.mrb[0].mxu0 %v9067
      %v9069 = vpop.f32.mrb[0].mxu0
      %v9070 = vadd.f32 %v8811, %v9069
      %v9071 = vpop.f32.mrb[0].mxu0
      %9072 = vmatprep.mubr.f32.mxu0 0.0
      %v9073 = vand.u32 %v7318, 4294901760
      %9074 = vmatmul.mubr.f32.gmra.mrb[0].mxu0 %v9073
      %v9075 = vpop.f32.mrb[0].mxu0
      %v9076 = vadd.f32 %v8817, %v9075
      %v9077 = vpop.f32.mrb[0].mxu0
      %9078 = vmatprep.mubr.f32.mxu0 0.0
      %v9079 = vand.u32 %v7321, 4294901760
      %9080 = vmatmul.mubr.f32.gmra.mrb[0].mxu0 %v9079
      %v9081 = vpop.f32.mrb[0].mxu0
      %v9082 = vadd.f32 %v8823, %v9081
      %v9083 = vpop.f32.mrb[0].mxu0
      %9084 = vmatprep.mubr.f32.mxu0 0.0
      %v9085 = vand.u32 %v7324, 4294901760
      %9086 = vmatmul.mubr.f32.gmra.mrb[0].mxu0 %v9085
      %v9087 = vpop.f32.mrb[0].mxu0
      %v9088 = vadd.f32 %v8829, %v9087
      %v9089 = vpop.f32.mrb[0].mxu0
      %9090 = vmatprep.mubr.f32.mxu0 0.0
      %v9091 = vand.u32 %v7327, 4294901760
      %9092 = vmatmul.mubr.f32.gmra.mrb[0].mxu0 %v9091
      %v9093 = vpop.f32.mrb[0].mxu0
      %v9094 = vadd.f32 %v8835, %v9093
      %v9095 = vpop.f32.mrb[0].mxu0
      %9096 = vmatprep.mubr.f32.mxu0 0.0
      %v9097 = vand.u32 %v7330, 4294901760
      %9098 = vmatmul.mubr.f32.gmra.mrb[0].mxu0 %v9097
      %v9099 = vpop.f32.mrb[0].mxu0
      %v9100 = vadd.f32 %v8841, %v9099
      %v9101 = vpop.f32.mrb[0].mxu0
      %9102 = vmatprep.mubr.f32.mxu0 0.0
      %v9103 = vand.u32 %v7333, 4294901760
      %9104 = vmatmul.mubr.f32.gmra.mrb[0].mxu0 %v9103
      %v9105 = vpop.f32.mrb[0].mxu0
      %v9106 = vadd.f32 %v8847, %v9105
      %v9107 = vpop.f32.mrb[0].mxu0
      %9108 = vmatprep.mubr.f32.mxu0 0.0
      %v9109 = vand.u32 %v7336, 4294901760
      %9110 = vmatmul.mubr.f32.gmra.mrb[0].mxu0 %v9109
      %v9111 = vpop.f32.mrb[0].mxu0
      %v9112 = vadd.f32 %v8853, %v9111
      %v9113 = vpop.f32.mrb[0].mxu0
      %9114 = vmatprep.mubr.f32.mxu0 0.0
      %v9115 = vand.u32 %v7339, 4294901760
      %9116 = vmatmul.mubr.f32.gmra.mrb[0].mxu0 %v9115
      %v9117 = vpop.f32.mrb[0].mxu0
      %v9118 = vadd.f32 %v8859, %v9117
      %v9119 = vpop.f32.mrb[0].mxu0
      %9120 = vmatprep.mubr.f32.mxu0 0.0
      %v9121 = vand.u32 %v7342, 4294901760
      %9122 = vmatmul.mubr.f32.gmra.mrb[0].mxu0 %v9121
      %v9123 = vpop.f32.mrb[0].mxu0
      %v9124 = vadd.f32 %v8865, %v9123
      %v9125 = vpop.f32.mrb[0].mxu0
      %9126 = vmatprep.mubr.f32.mxu0 0.0
      %v9127 = vand.u32 %v7345, 4294901760
      %9128 = vmatmul.mubr.f32.gmra.mrb[0].mxu0 %v9127
      %v9129 = vpop.f32.mrb[0].mxu0
      %v9130 = vadd.f32 %v8871, %v9129
      %v9131 = vpop.f32.mrb[0].mxu0
      %9132 = vmatprep.mubr.f32.mxu0 0.0
      %v9133 = vand.u32 %v7348, 4294901760
      %9134 = vmatmul.mubr.f32.gmra.mrb[0].mxu0 %v9133
      %v9135 = vpop.f32.mrb[0].mxu0
      %v9136 = vadd.f32 %v8877, %v9135
      %v9137 = vpop.f32.mrb[0].mxu0
      %9138 = vmatprep.mubr.f32.mxu0 0.0
      %v9139 = vand.u32 %v7351, 4294901760
      %9140 = vmatmul.mubr.f32.gmra.mrb[0].mxu0 %v9139
      %v9141 = vpop.f32.mrb[0].mxu0
      %v9142 = vadd.f32 %v8883, %v9141
      %v9143 = vpop.f32.mrb[0].mxu0
      %9144 = vdwg.mxu0
      %9145 = vst.msk [vmem:[%s253] sm:$0xff] %vm298, %v8956
      %9146 = vst.msk [vmem:[%s253 + $0x8] sm:$0xff] %vm298, %v8962
      %9147 = vst.msk [vmem:[%s253 + $0x10] sm:$0xff] %vm298, %v8968
      %9148 = vst.msk [vmem:[%s253 + $0x18] sm:$0xff] %vm298, %v8974
      %9149 = vst.msk [vmem:[%s253 + $0x20] sm:$0xff] %vm298, %v8980
      %9150 = vst.msk [vmem:[%s253 + $0x28] sm:$0xff] %vm298, %v8986
      %9151 = vst.msk [vmem:[%s253 + $0x30] sm:$0xff] %vm298, %v8992
      %9152 = vst.msk [vmem:[%s253 + $0x38] sm:$0xff] %vm298, %v8998
      %9153 = vst.msk [vmem:[%s253 + $0x40] sm:$0xff] %vm298, %v9004
      %9154 = vst.msk [vmem:[%s253 + $0x48] sm:$0xff] %vm298, %v9010
      %9155 = vst.msk [vmem:[%s253 + $0x50] sm:$0xff] %vm298, %v9016
      %9156 = vst.msk [vmem:[%s253 + $0x58] sm:$0xff] %vm298, %v9022
      %9157 = vst.msk [vmem:[%s253 + $0x60] sm:$0xff] %vm298, %v9028
      %9158 = vst.msk [vmem:[%s253 + $0x68] sm:$0xff] %vm298, %v9034
      %9159 = vst.msk [vmem:[%s253 + $0x70] sm:$0xff] %vm298, %v9040
      %9160 = vst.msk [vmem:[%s253 + $0x78] sm:$0xff] %vm298, %v9046
      %9161 = vst.msk [vmem:[%s253 + $0x80] sm:$0xff] %vm298, %v9052
      %9162 = vst.msk [vmem:[%s253 + $0x88] sm:$0xff] %vm298, %v9058
      %9163 = vst.msk [vmem:[%s253 + $0x90] sm:$0xff] %vm298, %v9064
      %9164 = vst.msk [vmem:[%s253 + $0x98] sm:$0xff] %vm298, %v9070
      %9165 = vst.msk [vmem:[%s253 + $0xa0] sm:$0xff] %vm298, %v9076
      %9166 = vst.msk [vmem:[%s253 + $0xa8] sm:$0xff] %vm298, %v9082
      %9167 = vst.msk [vmem:[%s253 + $0xb0] sm:$0xff] %vm298, %v9088
      %9168 = vst.msk [vmem:[%s253 + $0xb8] sm:$0xff] %vm298, %v9094
      %9169 = vst.msk [vmem:[%s253 + $0xc0] sm:$0xff] %vm298, %v9100
      %9170 = vst.msk [vmem:[%s253 + $0xc8] sm:$0xff] %vm298, %v9106
      %9171 = vst.msk [vmem:[%s253 + $0xd0] sm:$0xff] %vm298, %v9112
      %9172 = vst.msk [vmem:[%s253 + $0xd8] sm:$0xff] %vm298, %v9118
      %9173 = vst.msk [vmem:[%s253 + $0xe0] sm:$0xff] %vm298, %v9124
      %9174 = vst.msk [vmem:[%s253 + $0xe8] sm:$0xff] %vm298, %v9130
      %9175 = vst.msk [vmem:[%s253 + $0xf0] sm:$0xff] %vm298, %v9136
      %9176 = vst.msk [vmem:[%s253 + $0xf8] sm:$0xff] %vm298, %v9142
      %s9177 = smul.u32 32, %s17
      %p9178 = scmp.lt.s32.totalorder %s9177, 63
      %s9179 = scalar_select %p9178, %s9177, 63
      %s9180 = smul.addr %s9179, 8
      %s9181 = scalar_lea.vmem %s6, %s9180
      // Predicated region
      $region45: #{multiscale_flow_forward.1} parent=43 // pred_check
        %p9182 = pneg %p166
      $region46: #{multiscale_flow_forward.1} parent=43 // pred_check_branch
        %9184 = sbr.rel (%p9182) target = $region48
      $region47: #{multiscale_flow_forward.1} parent=43 // pred_region
        %s9185 = smul.u32 32, %s17
      $region48: #{multiscale_flow_forward.1} parent=43 // pred_fallthru
        _
    $region44: #{multiscale_flow_forward.1} parent=5 // pred_fallthru
      _
    %p9186 = scmp.le.s32.totalorder 2, %s12
    // Predicated region
    $region49: #{multiscale_flow_forward.1} parent=5 // pred_check
      %p9187 = pneg %p9186
    $region50: #{multiscale_flow_forward.1} parent=5 // pred_check_branch
      %9189 = sbr.rel (%p9187) target = $region52
    $region51: #{multiscale_flow_forward.1} parent=5 // pred_region
      %s9190 = ssub.s32 %s12, 2
      // Predicated region
      $region53: #{multiscale_flow_forward.1} parent=51 // pred_check
        %p9191 = pneg %p172
      $region54: #{multiscale_flow_forward.1} parent=51 // pred_check_branch
        %9193 = sbr.rel (%p9191) target = $region56
      $region55: #{multiscale_flow_forward.1} parent=51 // pred_region
        %s9194 = smul.u32 32, %s18
        %p9195 = scmp.lt.s32.totalorder %s9194, 63
        %s9196 = scalar_select %p9195, %s9194, 63
        %s9197 = smul.addr %s9196, 8
        %s9198 = scalar_lea.vmem %s6, %s9197
      $region56: #{multiscale_flow_forward.1} parent=51 // pred_fallthru
        _
    $region52: #{multiscale_flow_forward.1} parent=5 // pred_fallthru
      _
  $region6: #{multiscale_flow_forward.1} parent=0 // loop_footer
    %s16 = sadd.s32 1, %s12
  $region7: #{multiscale_flow_forward.1} parent=0 // loop_footer_branch
    %11 = sbr.rel target = $region3
  $region8: #{multiscale_flow_forward.1} parent=0 // loop_exit
    _

</llo_original>
